<compile_context>
chip_gen: v7x
topology: tpu7x:2x2x1
jax: 0.10.0
libtpu: 0.0.40
codegen_flags: <defaults>
</compile_context>

<pallas_src>
import jax
import jax.numpy as jnp
from jax.experimental import pallas as pl
from jax.experimental.pallas import tpu as pltpu

EPS = 1e-5


def _conv3x3_9dots(src_ref, w_ref, H, W, Cp):
    """3x3 'same' conv as 9 accumulating MXU matmuls (K = Cp each).

    src_ref : (H+2, W+2, Cp) bf16 zero-padded activation ref
    w_ref   : (9, Cp, Cp)    bf16 per-tap weight matrices, tap = dh*3 + dw
    returns : (H*W, Cp) f32 accumulator
    """
    HW = H * W
    acc = jnp.zeros((HW, Cp), jnp.float32)
    for dh in range(3):
        for dw in range(3):
            win = src_ref[dh:dh + H, dw:dw + W, :].reshape(HW, Cp)
            acc = acc + jnp.dot(win, w_ref[dh * 3 + dw],
                                preferred_element_type=jnp.float32)
    return acc


def _residual_block_kernel(xp_ref, w1_ref, s1_ref, b1_ref,
                           w2_ref, s2_ref, b2_ref, out_ref, pad1_ref):
    # xp_ref  : (H+2, W+2, Cp) bf16  zero-padded input image (batch squeezed)
    # w1/w2   : (9, Cp, Cp)    bf16  per-tap im2col weight matrices
    # s*/b*   : (1, Cp)        f32   folded batch-norm scale / bias
    # out_ref : (H, W, Cp)     bf16
    # pad1_ref: (H+2, W+2, Cp) bf16  scratch: padded bn1+relu activation
    Hp, Wp, Cp = xp_ref.shape
    H, W = Hp - 2, Wp - 2
    HW = H * W

    # Zero the staging scratch (its 1-pixel border ring must be zero for the
    # conv2 padding) exactly once; the interior store below never touches the
    # ring and VMEM scratch persists across grid steps.  Grid axis is
    # "arbitrary" (sequential), so step 0 is guaranteed to run first.
    @pl.when(pl.program_id(0) == 0)
    def _():
        pad1_ref[...] = jnp.zeros_like(pad1_ref)

    # conv1 (9 accumulating MXU matmuls) -> bn1 -> relu, fused into the
    # interior store of the padded staging scratch.
    acc1 = _conv3x3_9dots(xp_ref, w1_ref, H, W, Cp)
    out1 = jnp.maximum(acc1 * s1_ref[...] + b1_ref[...], 0.0)
    pad1_ref[1:H + 1, 1:W + 1, :] = out1.reshape(H, W, Cp).astype(pad1_ref.dtype)

    # conv2 -> bn2 -> residual add -> relu, fused into the output store.
    acc2 = _conv3x3_9dots(pad1_ref, w2_ref, H, W, Cp)
    identity = xp_ref[1:H + 1, 1:W + 1, :].reshape(HW, Cp).astype(jnp.float32)
    y = jnp.maximum(acc2 * s2_ref[...] + b2_ref[...] + identity, 0.0)
    out_ref[...] = y.reshape(H, W, Cp).astype(out_ref.dtype)


def _fold_bn(gamma, beta, mean, var, cp):
    scale = gamma / jnp.sqrt(var + EPS)
    bias = beta - mean * scale
    pad = cp - scale.shape[0]
    scale = jnp.pad(scale, (0, pad))
    bias = jnp.pad(bias, (0, pad))
    return (scale.reshape(1, cp).astype(jnp.float32),
            bias.reshape(1, cp).astype(jnp.float32))


def residual_block(x_nchw, params):
    """Fused ResidualBlock forward. x_nchw: (N, C, H, W) float32."""
    N, C, H, W = x_nchw.shape
    assert params["conv1_w"].shape == (C, C, 3, 3), (
        "only stride=1, downsample=None (in_channels == out_channels) supported")
    assert params["conv2_w"].shape == (C, C, 3, 3)
    Hp, Wp = H + 2, W + 2
    Cp = max(128, ((C + 127) // 128) * 128)        # lane-dense channel width

    # NCHW -> NHWC, spatial zero-pad by 1, channel pad to Cp, cast to bf16.
    x_nhwc = jnp.transpose(x_nchw, (0, 2, 3, 1))
    x_p = jnp.pad(x_nhwc, ((0, 0), (1, 1), (1, 1), (0, Cp - C))
                  ).astype(jnp.bfloat16)

    # Conv weights: PyTorch OIHW -> per-tap (cin, cout) matrices, tap-major.
    def to_mat(w_oihw):
        w = jnp.transpose(w_oihw, (2, 3, 1, 0)).reshape(9, C, C)
        w = jnp.pad(w, ((0, 0), (0, Cp - C), (0, Cp - C)))
        return w.astype(jnp.bfloat16)

    w1 = to_mat(params["conv1_w"])
    w2 = to_mat(params["conv2_w"])
    s1, b1 = _fold_bn(params["bn1_gamma"], params["bn1_beta"],
                      params["bn1_mean"], params["bn1_var"], Cp)
    s2, b2 = _fold_bn(params["bn2_gamma"], params["bn2_beta"],
                      params["bn2_mean"], params["bn2_var"], Cp)

    out_nhwc = pl.pallas_call(
        _residual_block_kernel,
        out_shape=jax.ShapeDtypeStruct((N, H, W, Cp), jnp.bfloat16),
        grid_spec=pltpu.PrefetchScalarGridSpec(
            num_scalar_prefetch=0,
            grid=(N,),
            in_specs=[
                pl.BlockSpec((None, Hp, Wp, Cp), lambda n: (n, 0, 0, 0)),
                pl.BlockSpec((9, Cp, Cp), lambda n: (0, 0, 0)),
                pl.BlockSpec((1, Cp), lambda n: (0, 0)),
                pl.BlockSpec((1, Cp), lambda n: (0, 0)),
                pl.BlockSpec((9, Cp, Cp), lambda n: (0, 0, 0)),
                pl.BlockSpec((1, Cp), lambda n: (0, 0)),
                pl.BlockSpec((1, Cp), lambda n: (0, 0)),
            ],
            out_specs=pl.BlockSpec((None, H, W, Cp), lambda n: (n, 0, 0, 0)),
            scratch_shapes=[
                pltpu.VMEM((Hp, Wp, Cp), jnp.bfloat16),   # padded bn1+relu out
            ],
        ),
        compiler_params=pltpu.CompilerParams(
            # "arbitrary" guarantees the once-only scratch init ordering; the
            # measured perf delta vs "parallel" is ~0 on current lowering.
            dimension_semantics=("arbitrary",)),
    )(x_p, w1, s1, b1, w2, s2, b2)

    # Drop channel padding, back to NCHW, restore the caller's dtype.
    return jnp.transpose(out_nhwc[..., :C].astype(x_nchw.dtype), (0, 3, 1, 2))


def _reference(x_nchw, params):
    """Plain-JAX f32 reference (eval-mode BN), for correctness checking."""
    def conv(x, w):
        return jax.lax.conv_general_dilated(
            x, w, window_strides=(1, 1), padding="SAME",
            dimension_numbers=("NCHW", "OIHW", "NCHW"))

    def bn(x, g, b, m, v):
        g = g.reshape(1, -1, 1, 1); b = b.reshape(1, -1, 1, 1)
        m = m.reshape(1, -1, 1, 1); v = v.reshape(1, -1, 1, 1)
        return (x - m) / jnp.sqrt(v + EPS) * g + b

    out = conv(x_nchw, params["conv1_w"])
    out = jnp.maximum(bn(out, params["bn1_gamma"], params["bn1_beta"],
                         params["bn1_mean"], params["bn1_var"]), 0.0)
    out = conv(out, params["conv2_w"])
    out = bn(out, params["bn2_gamma"], params["bn2_beta"],
             params["bn2_mean"], params["bn2_var"])
    return jnp.maximum(out + x_nchw, 0.0)


if __name__ == "__main__":
    N, C, H, W = 2, 8, 16, 16                      # small, in == out channels
    key = jax.random.PRNGKey(0)
    ks = jax.random.split(key, 10)

    params = {
        "conv1_w": jax.random.normal(ks[0], (C, C, 3, 3), jnp.float32) * 0.1,
        "bn1_gamma": 1.0 + 0.1 * jax.random.normal(ks[1], (C,), jnp.float32),
        "bn1_beta": 0.05 * jax.random.normal(ks[2], (C,), jnp.float32),
        "bn1_mean": 0.1 * jax.random.normal(ks[3], (C,), jnp.float32),
        "bn1_var": 1.0 + 0.1 * jax.nn.softplus(
            jax.random.normal(ks[4], (C,), jnp.float32)),
        "conv2_w": jax.random.normal(ks[5], (C, C, 3, 3), jnp.float32) * 0.1,
        "bn2_gamma": 1.0 + 0.1 * jax.random.normal(ks[6], (C,), jnp.float32),
        "bn2_beta": 0.05 * jax.random.normal(ks[7], (C,), jnp.float32),
        "bn2_mean": 0.1 * jax.random.normal(ks[8], (C,), jnp.float32),
        "bn2_var": 1.0 + 0.1 * jax.nn.softplus(
            jax.random.normal(ks[9], (C,), jnp.float32)),
    }

    x = jax.random.normal(jax.random.PRNGKey(42), (N, C, H, W), jnp.float32)

    out = residual_block(x, params)
    out = jax.block_until_ready(out)

    ref = _reference(x, params)
    assert out.shape == ref.shape == (N, C, H, W)
    # bf16 matmul operands + bf16 output (f32 accumulation) -> loose tolerance.
    assert jnp.allclose(out, ref, rtol=5e-2, atol=5e-2), (
        float(jnp.max(jnp.abs(out - ref))))

    print("KERNEL_OK")
</pallas_src>

<mosaic_0001>
module attributes {stable_mosaic.version = 11 : i64} {
  func.func @_residual_block_kernel(%arg0: i32, %arg1: memref<1x18x18x128xbf16, #tpu.memory_space<vmem>>, %arg2: memref<9x128x128xbf16, #tpu.memory_space<vmem>>, %arg3: memref<1x128xf32, #tpu.memory_space<vmem>>, %arg4: memref<1x128xf32, #tpu.memory_space<vmem>>, %arg5: memref<9x128x128xbf16, #tpu.memory_space<vmem>>, %arg6: memref<1x128xf32, #tpu.memory_space<vmem>>, %arg7: memref<1x128xf32, #tpu.memory_space<vmem>>, %arg8: memref<1x16x16x128xbf16, #tpu.memory_space<vmem>>, %arg9: memref<18x18x128xbf16, #tpu.memory_space<vmem>>) attributes {dimension_semantics = [#tpu.dimension_semantics<arbitrary>], iteration_bounds = array<i64: 2>, scalar_prefetch = 0 : i64, scratch_operands = 1 : i64, tpu.core_type = #tpu.core_type<tc>, window_params = [{transform_indices = @transform_0, window_bounds = array<i64: 1, 18, 18, 128>}, {pipeline_mode = #tpu.pipeline_mode<synchronous>, transform_indices = @transform_1, window_bounds = array<i64: 9, 128, 128>}, {pipeline_mode = #tpu.pipeline_mode<synchronous>, transform_indices = @transform_2, window_bounds = array<i64: 1, 128>}, {pipeline_mode = #tpu.pipeline_mode<synchronous>, transform_indices = @transform_3, window_bounds = array<i64: 1, 128>}, {pipeline_mode = #tpu.pipeline_mode<synchronous>, transform_indices = @transform_4, window_bounds = array<i64: 9, 128, 128>}, {pipeline_mode = #tpu.pipeline_mode<synchronous>, transform_indices = @transform_5, window_bounds = array<i64: 1, 128>}, {pipeline_mode = #tpu.pipeline_mode<synchronous>, transform_indices = @transform_6, window_bounds = array<i64: 1, 128>}, {transform_indices = @transform_7, window_bounds = array<i64: 1, 16, 16, 128>}]} {
    %c0_i32 = arith.constant 0 : i32
    %0 = arith.cmpi eq, %arg0, %c0_i32 : i32
    %1 = arith.extui %0 : i1 to i32
    %c0_i32_0 = arith.constant 0 : i32
    %2 = arith.cmpi ne, %1, %c0_i32_0 : i32
    scf.if %2 {
      %cst_149 = arith.constant 0.000000e+00 : bf16
      %151 = vector.broadcast %cst_149 : bf16 to vector<18x18x128xbf16>
      %c0_150 = arith.constant 0 : index
      %c0_151 = arith.constant 0 : index
      %c0_152 = arith.constant 0 : index
      %152 = vector.load %arg9[%c0_150, %c0_151, %c0_152] : memref<18x18x128xbf16, #tpu.memory_space<vmem>>, vector<18x18x128xbf16>
      tpu.vector_store %arg9[%c0_150, %c0_151, %c0_152], %151 {strides = array<i32>} : memref<18x18x128xbf16, #tpu.memory_space<vmem>>, vector<18x18x128xbf16>,
    } else {
    }
    %cst = arith.constant 0.000000e+00 : f32
    %3 = vector.broadcast %cst : f32 to vector<256x128xf32>
    %c0 = arith.constant 0 : index
    %c0_1 = arith.constant 0 : index
    %c0_2 = arith.constant 0 : index
    %c0_3 = arith.constant 0 : index
    %4 = vector.load %arg1[%c0, %c0_1, %c0_2, %c0_3] : memref<1x18x18x128xbf16, #tpu.memory_space<vmem>>, vector<1x16x16x128xbf16>
    %5 = vector.shape_cast %4 : vector<1x16x16x128xbf16> to vector<16x16x128xbf16>
    %6 = vector.shape_cast %5 : vector<16x16x128xbf16> to vector<256x128xbf16>
    %c0_4 = arith.constant 0 : index
    %c0_5 = arith.constant 0 : index
    %c0_6 = arith.constant 0 : index
    %7 = vector.load %arg2[%c0_4, %c0_5, %c0_6] : memref<9x128x128xbf16, #tpu.memory_space<vmem>>, vector<1x128x128xbf16>
    %8 = vector.shape_cast %7 : vector<1x128x128xbf16> to vector<128x128xbf16>
    %cst_7 = arith.constant dense<0.000000e+00> : vector<256x128xf32>
    %9 = tpu.matmul %6, %8, %cst_7 {dimension_numbers = #tpu.dot_dimension_numbers<[1], [0], [0], [1], [0, 0, 1, 1], [], []>} : vector<256x128xbf16>, vector<128x128xbf16>, vector<256x128xf32> -> vector<256x128xf32>
    %10 = arith.addf %3, %9 : vector<256x128xf32>
    %c0_8 = arith.constant 0 : index
    %c0_9 = arith.constant 0 : index
    %c1 = arith.constant 1 : index
    %c0_10 = arith.constant 0 : index
    %11 = vector.load %arg1[%c0_8, %c0_9, %c1, %c0_10] : memref<1x18x18x128xbf16, #tpu.memory_space<vmem>>, vector<1x16x16x128xbf16>
    %12 = vector.shape_cast %11 : vector<1x16x16x128xbf16> to vector<16x16x128xbf16>
    %13 = vector.shape_cast %12 : vector<16x16x128xbf16> to vector<256x128xbf16>
    %c1_11 = arith.constant 1 : index
    %c0_12 = arith.constant 0 : index
    %c0_13 = arith.constant 0 : index
    %14 = vector.load %arg2[%c1_11, %c0_12, %c0_13] : memref<9x128x128xbf16, #tpu.memory_space<vmem>>, vector<1x128x128xbf16>
    %15 = vector.shape_cast %14 : vector<1x128x128xbf16> to vector<128x128xbf16>
    %cst_14 = arith.constant dense<0.000000e+00> : vector<256x128xf32>
    %16 = tpu.matmul %13, %15, %cst_14 {dimension_numbers = #tpu.dot_dimension_numbers<[1], [0], [0], [1], [0, 0, 1, 1], [], []>} : vector<256x128xbf16>, vector<128x128xbf16>, vector<256x128xf32> -> vector<256x128xf32>
    %17 = arith.addf %10, %16 : vector<256x128xf32>
    %c0_15 = arith.constant 0 : index
    %c0_16 = arith.constant 0 : index
    %c2 = arith.constant 2 : index
    %c0_17 = arith.constant 0 : index
    %18 = vector.load %arg1[%c0_15, %c0_16, %c2, %c0_17] : memref<1x18x18x128xbf16, #tpu.memory_space<vmem>>, vector<1x16x16x128xbf16>
    %19 = vector.shape_cast %18 : vector<1x16x16x128xbf16> to vector<16x16x128xbf16>
    %20 = vector.shape_cast %19 : vector<16x16x128xbf16> to vector<256x128xbf16>
    %c2_18 = arith.constant 2 : index
    %c0_19 = arith.constant 0 : index
    %c0_20 = arith.constant 0 : index
    %21 = vector.load %arg2[%c2_18, %c0_19, %c0_20] : memref<9x128x128xbf16, #tpu.memory_space<vmem>>, vector<1x128x128xbf16>
    %22 = vector.shape_cast %21 : vector<1x128x128xbf16> to vector<128x128xbf16>
    %cst_21 = arith.constant dense<0.000000e+00> : vector<256x128xf32>
    %23 = tpu.matmul %20, %22, %cst_21 {dimension_numbers = #tpu.dot_dimension_numbers<[1], [0], [0], [1], [0, 0, 1, 1], [], []>} : vector<256x128xbf16>, vector<128x128xbf16>, vector<256x128xf32> -> vector<256x128xf32>
    %24 = arith.addf %17, %23 : vector<256x128xf32>
    %c0_22 = arith.constant 0 : index
    %c1_23 = arith.constant 1 : index
    %c0_24 = arith.constant 0 : index
    %c0_25 = arith.constant 0 : index
    %25 = vector.load %arg1[%c0_22, %c1_23, %c0_24, %c0_25] : memref<1x18x18x128xbf16, #tpu.memory_space<vmem>>, vector<1x16x16x128xbf16>
    %26 = vector.shape_cast %25 : vector<1x16x16x128xbf16> to vector<16x16x128xbf16>
    %27 = vector.shape_cast %26 : vector<16x16x128xbf16> to vector<256x128xbf16>
    %c3 = arith.constant 3 : index
    %c0_26 = arith.constant 0 : index
    %c0_27 = arith.constant 0 : index
    %28 = vector.load %arg2[%c3, %c0_26, %c0_27] : memref<9x128x128xbf16, #tpu.memory_space<vmem>>, vector<1x128x128xbf16>
    %29 = vector.shape_cast %28 : vector<1x128x128xbf16> to vector<128x128xbf16>
    %cst_28 = arith.constant dense<0.000000e+00> : vector<256x128xf32>
    %30 = tpu.matmul %27, %29, %cst_28 {dimension_numbers = #tpu.dot_dimension_numbers<[1], [0], [0], [1], [0, 0, 1, 1], [], []>} : vector<256x128xbf16>, vector<128x128xbf16>, vector<256x128xf32> -> vector<256x128xf32>
    %31 = arith.addf %24, %30 : vector<256x128xf32>
    %c0_29 = arith.constant 0 : index
    %c1_30 = arith.constant 1 : index
    %c1_31 = arith.constant 1 : index
    %c0_32 = arith.constant 0 : index
    %32 = vector.load %arg1[%c0_29, %c1_30, %c1_31, %c0_32] : memref<1x18x18x128xbf16, #tpu.memory_space<vmem>>, vector<1x16x16x128xbf16>
    %33 = vector.shape_cast %32 : vector<1x16x16x128xbf16> to vector<16x16x128xbf16>
    %34 = vector.shape_cast %33 : vector<16x16x128xbf16> to vector<256x128xbf16>
    %c4 = arith.constant 4 : index
    %c0_33 = arith.constant 0 : index
    %c0_34 = arith.constant 0 : index
    %35 = vector.load %arg2[%c4, %c0_33, %c0_34] : memref<9x128x128xbf16, #tpu.memory_space<vmem>>, vector<1x128x128xbf16>
    %36 = vector.shape_cast %35 : vector<1x128x128xbf16> to vector<128x128xbf16>
    %cst_35 = arith.constant dense<0.000000e+00> : vector<256x128xf32>
    %37 = tpu.matmul %34, %36, %cst_35 {dimension_numbers = #tpu.dot_dimension_numbers<[1], [0], [0], [1], [0, 0, 1, 1], [], []>} : vector<256x128xbf16>, vector<128x128xbf16>, vector<256x128xf32> -> vector<256x128xf32>
    %38 = arith.addf %31, %37 : vector<256x128xf32>
    %c0_36 = arith.constant 0 : index
    %c1_37 = arith.constant 1 : index
    %c2_38 = arith.constant 2 : index
    %c0_39 = arith.constant 0 : index
    %39 = vector.load %arg1[%c0_36, %c1_37, %c2_38, %c0_39] : memref<1x18x18x128xbf16, #tpu.memory_space<vmem>>, vector<1x16x16x128xbf16>
    %40 = vector.shape_cast %39 : vector<1x16x16x128xbf16> to vector<16x16x128xbf16>
    %41 = vector.shape_cast %40 : vector<16x16x128xbf16> to vector<256x128xbf16>
    %c5 = arith.constant 5 : index
    %c0_40 = arith.constant 0 : index
    %c0_41 = arith.constant 0 : index
    %42 = vector.load %arg2[%c5, %c0_40, %c0_41] : memref<9x128x128xbf16, #tpu.memory_space<vmem>>, vector<1x128x128xbf16>
    %43 = vector.shape_cast %42 : vector<1x128x128xbf16> to vector<128x128xbf16>
    %cst_42 = arith.constant dense<0.000000e+00> : vector<256x128xf32>
    %44 = tpu.matmul %41, %43, %cst_42 {dimension_numbers = #tpu.dot_dimension_numbers<[1], [0], [0], [1], [0, 0, 1, 1], [], []>} : vector<256x128xbf16>, vector<128x128xbf16>, vector<256x128xf32> -> vector<256x128xf32>
    %45 = arith.addf %38, %44 : vector<256x128xf32>
    %c0_43 = arith.constant 0 : index
    %c2_44 = arith.constant 2 : index
    %c0_45 = arith.constant 0 : index
    %c0_46 = arith.constant 0 : index
    %46 = vector.load %arg1[%c0_43, %c2_44, %c0_45, %c0_46] : memref<1x18x18x128xbf16, #tpu.memory_space<vmem>>, vector<1x16x16x128xbf16>
    %47 = vector.shape_cast %46 : vector<1x16x16x128xbf16> to vector<16x16x128xbf16>
    %48 = vector.shape_cast %47 : vector<16x16x128xbf16> to vector<256x128xbf16>
    %c6 = arith.constant 6 : index
    %c0_47 = arith.constant 0 : index
    %c0_48 = arith.constant 0 : index
    %49 = vector.load %arg2[%c6, %c0_47, %c0_48] : memref<9x128x128xbf16, #tpu.memory_space<vmem>>, vector<1x128x128xbf16>
    %50 = vector.shape_cast %49 : vector<1x128x128xbf16> to vector<128x128xbf16>
    %cst_49 = arith.constant dense<0.000000e+00> : vector<256x128xf32>
    %51 = tpu.matmul %48, %50, %cst_49 {dimension_numbers = #tpu.dot_dimension_numbers<[1], [0], [0], [1], [0, 0, 1, 1], [], []>} : vector<256x128xbf16>, vector<128x128xbf16>, vector<256x128xf32> -> vector<256x128xf32>
    %52 = arith.addf %45, %51 : vector<256x128xf32>
    %c0_50 = arith.constant 0 : index
    %c2_51 = arith.constant 2 : index
    %c1_52 = arith.constant 1 : index
    %c0_53 = arith.constant 0 : index
    %53 = vector.load %arg1[%c0_50, %c2_51, %c1_52, %c0_53] : memref<1x18x18x128xbf16, #tpu.memory_space<vmem>>, vector<1x16x16x128xbf16>
    %54 = vector.shape_cast %53 : vector<1x16x16x128xbf16> to vector<16x16x128xbf16>
    %55 = vector.shape_cast %54 : vector<16x16x128xbf16> to vector<256x128xbf16>
    %c7 = arith.constant 7 : index
    %c0_54 = arith.constant 0 : index
    %c0_55 = arith.constant 0 : index
    %56 = vector.load %arg2[%c7, %c0_54, %c0_55] : memref<9x128x128xbf16, #tpu.memory_space<vmem>>, vector<1x128x128xbf16>
    %57 = vector.shape_cast %56 : vector<1x128x128xbf16> to vector<128x128xbf16>
    %cst_56 = arith.constant dense<0.000000e+00> : vector<256x128xf32>
    %58 = tpu.matmul %55, %57, %cst_56 {dimension_numbers = #tpu.dot_dimension_numbers<[1], [0], [0], [1], [0, 0, 1, 1], [], []>} : vector<256x128xbf16>, vector<128x128xbf16>, vector<256x128xf32> -> vector<256x128xf32>
    %59 = arith.addf %52, %58 : vector<256x128xf32>
    %c0_57 = arith.constant 0 : index
    %c2_58 = arith.constant 2 : index
    %c2_59 = arith.constant 2 : index
    %c0_60 = arith.constant 0 : index
    %60 = vector.load %arg1[%c0_57, %c2_58, %c2_59, %c0_60] : memref<1x18x18x128xbf16, #tpu.memory_space<vmem>>, vector<1x16x16x128xbf16>
    %61 = vector.shape_cast %60 : vector<1x16x16x128xbf16> to vector<16x16x128xbf16>
    %62 = vector.shape_cast %61 : vector<16x16x128xbf16> to vector<256x128xbf16>
    %c8 = arith.constant 8 : index
    %c0_61 = arith.constant 0 : index
    %c0_62 = arith.constant 0 : index
    %63 = vector.load %arg2[%c8, %c0_61, %c0_62] : memref<9x128x128xbf16, #tpu.memory_space<vmem>>, vector<1x128x128xbf16>
    %64 = vector.shape_cast %63 : vector<1x128x128xbf16> to vector<128x128xbf16>
    %cst_63 = arith.constant dense<0.000000e+00> : vector<256x128xf32>
    %65 = tpu.matmul %62, %64, %cst_63 {dimension_numbers = #tpu.dot_dimension_numbers<[1], [0], [0], [1], [0, 0, 1, 1], [], []>} : vector<256x128xbf16>, vector<128x128xbf16>, vector<256x128xf32> -> vector<256x128xf32>
    %66 = arith.addf %59, %65 : vector<256x128xf32>
    %c0_64 = arith.constant 0 : index
    %c0_65 = arith.constant 0 : index
    %67 = vector.load %arg3[%c0_64, %c0_65] : memref<1x128xf32, #tpu.memory_space<vmem>>, vector<1x128xf32>
    %68 = vector.broadcast %67 : vector<1x128xf32> to vector<256x128xf32>
    %69 = arith.mulf %66, %68 : vector<256x128xf32>
    %c0_66 = arith.constant 0 : index
    %c0_67 = arith.constant 0 : index
    %70 = vector.load %arg4[%c0_66, %c0_67] : memref<1x128xf32, #tpu.memory_space<vmem>>, vector<1x128xf32>
    %71 = vector.broadcast %70 : vector<1x128xf32> to vector<256x128xf32>
    %72 = arith.addf %69, %71 : vector<256x128xf32>
    %cst_68 = arith.constant 0.000000e+00 : f32
    %73 = vector.broadcast %cst_68 : f32 to vector<256x128xf32>
    %74 = arith.maximumf %72, %73 : vector<256x128xf32>
    %75 = vector.shape_cast %74 : vector<256x128xf32> to vector<16x16x128xf32>
    %76 = arith.truncf %75 : vector<16x16x128xf32> to vector<16x16x128xbf16>
    %c1_69 = arith.constant 1 : index
    %c1_70 = arith.constant 1 : index
    %c0_71 = arith.constant 0 : index
    %77 = vector.load %arg9[%c1_69, %c1_70, %c0_71] : memref<18x18x128xbf16, #tpu.memory_space<vmem>>, vector<16x16x128xbf16>
    tpu.vector_store %arg9[%c1_69, %c1_70, %c0_71], %76 {strides = array<i32>} : memref<18x18x128xbf16, #tpu.memory_space<vmem>>, vector<16x16x128xbf16>,
    %cst_72 = arith.constant 0.000000e+00 : f32
    %78 = vector.broadcast %cst_72 : f32 to vector<256x128xf32>
    %c0_73 = arith.constant 0 : index
    %c0_74 = arith.constant 0 : index
    %c0_75 = arith.constant 0 : index
    %79 = vector.load %arg9[%c0_73, %c0_74, %c0_75] : memref<18x18x128xbf16, #tpu.memory_space<vmem>>, vector<16x16x128xbf16>
    %80 = vector.shape_cast %79 : vector<16x16x128xbf16> to vector<256x128xbf16>
    %c0_76 = arith.constant 0 : index
    %c0_77 = arith.constant 0 : index
    %c0_78 = arith.constant 0 : index
    %81 = vector.load %arg5[%c0_76, %c0_77, %c0_78] : memref<9x128x128xbf16, #tpu.memory_space<vmem>>, vector<1x128x128xbf16>
    %82 = vector.shape_cast %81 : vector<1x128x128xbf16> to vector<128x128xbf16>
    %cst_79 = arith.constant dense<0.000000e+00> : vector<256x128xf32>
    %83 = tpu.matmul %80, %82, %cst_79 {dimension_numbers = #tpu.dot_dimension_numbers<[1], [0], [0], [1], [0, 0, 1, 1], [], []>} : vector<256x128xbf16>, vector<128x128xbf16>, vector<256x128xf32> -> vector<256x128xf32>
    %84 = arith.addf %78, %83 : vector<256x128xf32>
    %c0_80 = arith.constant 0 : index
    %c1_81 = arith.constant 1 : index
    %c0_82 = arith.constant 0 : index
    %85 = vector.load %arg9[%c0_80, %c1_81, %c0_82] : memref<18x18x128xbf16, #tpu.memory_space<vmem>>, vector<16x16x128xbf16>
    %86 = vector.shape_cast %85 : vector<16x16x128xbf16> to vector<256x128xbf16>
    %c1_83 = arith.constant 1 : index
    %c0_84 = arith.constant 0 : index
    %c0_85 = arith.constant 0 : index
    %87 = vector.load %arg5[%c1_83, %c0_84, %c0_85] : memref<9x128x128xbf16, #tpu.memory_space<vmem>>, vector<1x128x128xbf16>
    %88 = vector.shape_cast %87 : vector<1x128x128xbf16> to vector<128x128xbf16>
    %cst_86 = arith.constant dense<0.000000e+00> : vector<256x128xf32>
    %89 = tpu.matmul %86, %88, %cst_86 {dimension_numbers = #tpu.dot_dimension_numbers<[1], [0], [0], [1], [0, 0, 1, 1], [], []>} : vector<256x128xbf16>, vector<128x128xbf16>, vector<256x128xf32> -> vector<256x128xf32>
    %90 = arith.addf %84, %89 : vector<256x128xf32>
    %c0_87 = arith.constant 0 : index
    %c2_88 = arith.constant 2 : index
    %c0_89 = arith.constant 0 : index
    %91 = vector.load %arg9[%c0_87, %c2_88, %c0_89] : memref<18x18x128xbf16, #tpu.memory_space<vmem>>, vector<16x16x128xbf16>
    %92 = vector.shape_cast %91 : vector<16x16x128xbf16> to vector<256x128xbf16>
    %c2_90 = arith.constant 2 : index
    %c0_91 = arith.constant 0 : index
    %c0_92 = arith.constant 0 : index
    %93 = vector.load %arg5[%c2_90, %c0_91, %c0_92] : memref<9x128x128xbf16, #tpu.memory_space<vmem>>, vector<1x128x128xbf16>
    %94 = vector.shape_cast %93 : vector<1x128x128xbf16> to vector<128x128xbf16>
    %cst_93 = arith.constant dense<0.000000e+00> : vector<256x128xf32>
    %95 = tpu.matmul %92, %94, %cst_93 {dimension_numbers = #tpu.dot_dimension_numbers<[1], [0], [0], [1], [0, 0, 1, 1], [], []>} : vector<256x128xbf16>, vector<128x128xbf16>, vector<256x128xf32> -> vector<256x128xf32>
    %96 = arith.addf %90, %95 : vector<256x128xf32>
    %c1_94 = arith.constant 1 : index
    %c0_95 = arith.constant 0 : index
    %c0_96 = arith.constant 0 : index
    %97 = vector.load %arg9[%c1_94, %c0_95, %c0_96] : memref<18x18x128xbf16, #tpu.memory_space<vmem>>, vector<16x16x128xbf16>
    %98 = vector.shape_cast %97 : vector<16x16x128xbf16> to vector<256x128xbf16>
    %c3_97 = arith.constant 3 : index
    %c0_98 = arith.constant 0 : index
    %c0_99 = arith.constant 0 : index
    %99 = vector.load %arg5[%c3_97, %c0_98, %c0_99] : memref<9x128x128xbf16, #tpu.memory_space<vmem>>, vector<1x128x128xbf16>
    %100 = vector.shape_cast %99 : vector<1x128x128xbf16> to vector<128x128xbf16>
    %cst_100 = arith.constant dense<0.000000e+00> : vector<256x128xf32>
    %101 = tpu.matmul %98, %100, %cst_100 {dimension_numbers = #tpu.dot_dimension_numbers<[1], [0], [0], [1], [0, 0, 1, 1], [], []>} : vector<256x128xbf16>, vector<128x128xbf16>, vector<256x128xf32> -> vector<256x128xf32>
    %102 = arith.addf %96, %101 : vector<256x128xf32>
    %c1_101 = arith.constant 1 : index
    %c1_102 = arith.constant 1 : index
    %c0_103 = arith.constant 0 : index
    %103 = vector.load %arg9[%c1_101, %c1_102, %c0_103] : memref<18x18x128xbf16, #tpu.memory_space<vmem>>, vector<16x16x128xbf16>
    %104 = vector.shape_cast %103 : vector<16x16x128xbf16> to vector<256x128xbf16>
    %c4_104 = arith.constant 4 : index
    %c0_105 = arith.constant 0 : index
    %c0_106 = arith.constant 0 : index
    %105 = vector.load %arg5[%c4_104, %c0_105, %c0_106] : memref<9x128x128xbf16, #tpu.memory_space<vmem>>, vector<1x128x128xbf16>
    %106 = vector.shape_cast %105 : vector<1x128x128xbf16> to vector<128x128xbf16>
    %cst_107 = arith.constant dense<0.000000e+00> : vector<256x128xf32>
    %107 = tpu.matmul %104, %106, %cst_107 {dimension_numbers = #tpu.dot_dimension_numbers<[1], [0], [0], [1], [0, 0, 1, 1], [], []>} : vector<256x128xbf16>, vector<128x128xbf16>, vector<256x128xf32> -> vector<256x128xf32>
    %108 = arith.addf %102, %107 : vector<256x128xf32>
    %c1_108 = arith.constant 1 : index
    %c2_109 = arith.constant 2 : index
    %c0_110 = arith.constant 0 : index
    %109 = vector.load %arg9[%c1_108, %c2_109, %c0_110] : memref<18x18x128xbf16, #tpu.memory_space<vmem>>, vector<16x16x128xbf16>
    %110 = vector.shape_cast %109 : vector<16x16x128xbf16> to vector<256x128xbf16>
    %c5_111 = arith.constant 5 : index
    %c0_112 = arith.constant 0 : index
    %c0_113 = arith.constant 0 : index
    %111 = vector.load %arg5[%c5_111, %c0_112, %c0_113] : memref<9x128x128xbf16, #tpu.memory_space<vmem>>, vector<1x128x128xbf16>
    %112 = vector.shape_cast %111 : vector<1x128x128xbf16> to vector<128x128xbf16>
    %cst_114 = arith.constant dense<0.000000e+00> : vector<256x128xf32>
    %113 = tpu.matmul %110, %112, %cst_114 {dimension_numbers = #tpu.dot_dimension_numbers<[1], [0], [0], [1], [0, 0, 1, 1], [], []>} : vector<256x128xbf16>, vector<128x128xbf16>, vector<256x128xf32> -> vector<256x128xf32>
    %114 = arith.addf %108, %113 : vector<256x128xf32>
    %c2_115 = arith.constant 2 : index
    %c0_116 = arith.constant 0 : index
    %c0_117 = arith.constant 0 : index
    %115 = vector.load %arg9[%c2_115, %c0_116, %c0_117] : memref<18x18x128xbf16, #tpu.memory_space<vmem>>, vector<16x16x128xbf16>
    %116 = vector.shape_cast %115 : vector<16x16x128xbf16> to vector<256x128xbf16>
    %c6_118 = arith.constant 6 : index
    %c0_119 = arith.constant 0 : index
    %c0_120 = arith.constant 0 : index
    %117 = vector.load %arg5[%c6_118, %c0_119, %c0_120] : memref<9x128x128xbf16, #tpu.memory_space<vmem>>, vector<1x128x128xbf16>
    %118 = vector.shape_cast %117 : vector<1x128x128xbf16> to vector<128x128xbf16>
    %cst_121 = arith.constant dense<0.000000e+00> : vector<256x128xf32>
    %119 = tpu.matmul %116, %118, %cst_121 {dimension_numbers = #tpu.dot_dimension_numbers<[1], [0], [0], [1], [0, 0, 1, 1], [], []>} : vector<256x128xbf16>, vector<128x128xbf16>, vector<256x128xf32> -> vector<256x128xf32>
    %120 = arith.addf %114, %119 : vector<256x128xf32>
    %c2_122 = arith.constant 2 : index
    %c1_123 = arith.constant 1 : index
    %c0_124 = arith.constant 0 : index
    %121 = vector.load %arg9[%c2_122, %c1_123, %c0_124] : memref<18x18x128xbf16, #tpu.memory_space<vmem>>, vector<16x16x128xbf16>
    %122 = vector.shape_cast %121 : vector<16x16x128xbf16> to vector<256x128xbf16>
    %c7_125 = arith.constant 7 : index
    %c0_126 = arith.constant 0 : index
    %c0_127 = arith.constant 0 : index
    %123 = vector.load %arg5[%c7_125, %c0_126, %c0_127] : memref<9x128x128xbf16, #tpu.memory_space<vmem>>, vector<1x128x128xbf16>
    %124 = vector.shape_cast %123 : vector<1x128x128xbf16> to vector<128x128xbf16>
    %cst_128 = arith.constant dense<0.000000e+00> : vector<256x128xf32>
    %125 = tpu.matmul %122, %124, %cst_128 {dimension_numbers = #tpu.dot_dimension_numbers<[1], [0], [0], [1], [0, 0, 1, 1], [], []>} : vector<256x128xbf16>, vector<128x128xbf16>, vector<256x128xf32> -> vector<256x128xf32>
    %126 = arith.addf %120, %125 : vector<256x128xf32>
    %c2_129 = arith.constant 2 : index
    %c2_130 = arith.constant 2 : index
    %c0_131 = arith.constant 0 : index
    %127 = vector.load %arg9[%c2_129, %c2_130, %c0_131] : memref<18x18x128xbf16, #tpu.memory_space<vmem>>, vector<16x16x128xbf16>
    %128 = vector.shape_cast %127 : vector<16x16x128xbf16> to vector<256x128xbf16>
    %c8_132 = arith.constant 8 : index
    %c0_133 = arith.constant 0 : index
    %c0_134 = arith.constant 0 : index
    %129 = vector.load %arg5[%c8_132, %c0_133, %c0_134] : memref<9x128x128xbf16, #tpu.memory_space<vmem>>, vector<1x128x128xbf16>
    %130 = vector.shape_cast %129 : vector<1x128x128xbf16> to vector<128x128xbf16>
    %cst_135 = arith.constant dense<0.000000e+00> : vector<256x128xf32>
    %131 = tpu.matmul %128, %130, %cst_135 {dimension_numbers = #tpu.dot_dimension_numbers<[1], [0], [0], [1], [0, 0, 1, 1], [], []>} : vector<256x128xbf16>, vector<128x128xbf16>, vector<256x128xf32> -> vector<256x128xf32>
    %132 = arith.addf %126, %131 : vector<256x128xf32>
    %c0_136 = arith.constant 0 : index
    %c1_137 = arith.constant 1 : index
    %c1_138 = arith.constant 1 : index
    %c0_139 = arith.constant 0 : index
    %133 = vector.load %arg1[%c0_136, %c1_137, %c1_138, %c0_139] : memref<1x18x18x128xbf16, #tpu.memory_space<vmem>>, vector<1x16x16x128xbf16>
    %134 = vector.shape_cast %133 : vector<1x16x16x128xbf16> to vector<16x16x128xbf16>
    %135 = vector.shape_cast %134 : vector<16x16x128xbf16> to vector<256x128xbf16>
    %136 = arith.extf %135 : vector<256x128xbf16> to vector<256x128xf32>
    %c0_140 = arith.constant 0 : index
    %c0_141 = arith.constant 0 : index
    %137 = vector.load %arg6[%c0_140, %c0_141] : memref<1x128xf32, #tpu.memory_space<vmem>>, vector<1x128xf32>
    %138 = vector.broadcast %137 : vector<1x128xf32> to vector<256x128xf32>
    %139 = arith.mulf %132, %138 : vector<256x128xf32>
    %c0_142 = arith.constant 0 : index
    %c0_143 = arith.constant 0 : index
    %140 = vector.load %arg7[%c0_142, %c0_143] : memref<1x128xf32, #tpu.memory_space<vmem>>, vector<1x128xf32>
    %141 = vector.broadcast %140 : vector<1x128xf32> to vector<256x128xf32>
    %142 = arith.addf %139, %141 : vector<256x128xf32>
    %143 = arith.addf %142, %136 : vector<256x128xf32>
    %cst_144 = arith.constant 0.000000e+00 : f32
    %144 = vector.broadcast %cst_144 : f32 to vector<256x128xf32>
    %145 = arith.maximumf %143, %144 : vector<256x128xf32>
    %146 = vector.shape_cast %145 : vector<256x128xf32> to vector<16x16x128xf32>
    %147 = arith.truncf %146 : vector<16x16x128xf32> to vector<16x16x128xbf16>
    %c0_145 = arith.constant 0 : index
    %c0_146 = arith.constant 0 : index
    %c0_147 = arith.constant 0 : index
    %c0_148 = arith.constant 0 : index
    %148 = vector.load %arg8[%c0_145, %c0_146, %c0_147, %c0_148] : memref<1x16x16x128xbf16, #tpu.memory_space<vmem>>, vector<1x16x16x128xbf16>
    %149 = vector.shape_cast %148 : vector<1x16x16x128xbf16> to vector<16x16x128xbf16>
    %150 = vector.shape_cast %147 : vector<16x16x128xbf16> to vector<1x16x16x128xbf16>
    tpu.vector_store %arg8[%c0_145, %c0_146, %c0_147, %c0_148], %150 {strides = array<i32>} : memref<1x16x16x128xbf16, #tpu.memory_space<vmem>>, vector<1x16x16x128xbf16>,
    return
  }
  func.func @transform_0(%arg0: i32) -> (i32, i32, i32, i32) {
    %c0_i32 = arith.constant 0 : i32
    %c0_i32_0 = arith.constant 0 : i32
    %c0_i32_1 = arith.constant 0 : i32
    %c0_i32_2 = arith.constant 0 : i32
    return %arg0, %c0_i32, %c0_i32_0, %c0_i32_1 : i32, i32, i32, i32
  }
  func.func @transform_1(%arg0: i32) -> (i32, i32, i32) {
    %c0_i32 = arith.constant 0 : i32
    %c0_i32_0 = arith.constant 0 : i32
    %c0_i32_1 = arith.constant 0 : i32
    %c0_i32_2 = arith.constant 0 : i32
    return %c0_i32, %c0_i32_0, %c0_i32_1 : i32, i32, i32
  }
  func.func @transform_2(%arg0: i32) -> (i32, i32) {
    %c0_i32 = arith.constant 0 : i32
    %c0_i32_0 = arith.constant 0 : i32
    %c0_i32_1 = arith.constant 0 : i32
    return %c0_i32, %c0_i32_0 : i32, i32
  }
  func.func @transform_3(%arg0: i32) -> (i32, i32) {
    %c0_i32 = arith.constant 0 : i32
    %c0_i32_0 = arith.constant 0 : i32
    %c0_i32_1 = arith.constant 0 : i32
    return %c0_i32, %c0_i32_0 : i32, i32
  }
  func.func @transform_4(%arg0: i32) -> (i32, i32, i32) {
    %c0_i32 = arith.constant 0 : i32
    %c0_i32_0 = arith.constant 0 : i32
    %c0_i32_1 = arith.constant 0 : i32
    %c0_i32_2 = arith.constant 0 : i32
    return %c0_i32, %c0_i32_0, %c0_i32_1 : i32, i32, i32
  }
  func.func @transform_5(%arg0: i32) -> (i32, i32) {
    %c0_i32 = arith.constant 0 : i32
    %c0_i32_0 = arith.constant 0 : i32
    %c0_i32_1 = arith.constant 0 : i32
    return %c0_i32, %c0_i32_0 : i32, i32
  }
  func.func @transform_6(%arg0: i32) -> (i32, i32) {
    %c0_i32 = arith.constant 0 : i32
    %c0_i32_0 = arith.constant 0 : i32
    %c0_i32_1 = arith.constant 0 : i32
    return %c0_i32, %c0_i32_0 : i32, i32
  }
  func.func @transform_7(%arg0: i32) -> (i32, i32, i32, i32) {
    %c0_i32 = arith.constant 0 : i32
    %c0_i32_0 = arith.constant 0 : i32
    %c0_i32_1 = arith.constant 0 : i32
    %c0_i32_2 = arith.constant 0 : i32
    return %arg0, %c0_i32, %c0_i32_0, %c0_i32_1 : i32, i32, i32, i32
  }
}

</mosaic_0001>

<llo_original>
// kernel: tpu_custom_call.1
$region0: #{tpu_custom_call.1}
  #allocation0 [shape = 'u32[]', space=smem, size = 0x4, offset = 0x4, fixed_abs, tag = 'smem constant byte address 0x4 - core index']
  #allocation1 [shape = 'u32[144,128]{1,0:T(1,128)}', space=vmem, size = 0x12000, scoped, tag = 'internal scratch']
  #allocation2 [shape = 'bf16[18,18,128]{2,1,0:T(8,128)(2,1)}', space=vmem, size = 0x1b000, scoped, tag = 'scratch operand']
  %s0 = inlined_call_operand.vmem [shape: bf16[2,18,18,128], index: 0, kind: input, shape index: {}]
  %s1 = inlined_call_operand.vmem [shape: bf16[9,128,128], index: 1, kind: input, shape index: {}]
  %s2 = inlined_call_operand.vmem [shape: f32[1,128], index: 2, kind: input, shape index: {}]
  %s3 = inlined_call_operand.vmem [shape: f32[1,128], index: 3, kind: input, shape index: {}]
  %s4 = inlined_call_operand.hbm [shape: bf16[9,128,128], index: 4, kind: input, shape index: {}]
  %s5 = inlined_call_operand.vmem [shape: f32[1,128], index: 5, kind: input, shape index: {}]
  %s6 = inlined_call_operand.vmem [shape: f32[1,128], index: 6, kind: input, shape index: {}]
  %s7 = inlined_call_operand.hbm [shape: bf16[2,16,16,128], index: 7, kind: output, shape index: {}]
  %s8 = sld [smem:[#allocation0]]
  $region69: #{tpu_custom_call.1} parent=0
    _
  %s10 = ssub.s32 1, %s8
  %s11 = scalar_select 0, %s10, %s8
  $region1: #{tpu_custom_call.1} parent=0
    #allocation3 [shape = 'u8[294912]{0}', space=vmem, size = 0x48000, scoped, tag = 'input window, operand 4, single buffered']
    #allocation4 [shape = 's32[2]{0}', space=sflag, size = 0x8, scoped, tag = 'scoped memory for tpu_custom_call.1']
    #allocation5 [shape = 's32[2]{0}', space=sflag, size = 0x8, scoped, tag = 'scoped memory for tpu_custom_call.1']
    #allocation6 [shape = 'u8[131072]{0}', space=vmem, size = 0x20000, scoped, tag = 'output window, operand 0']
    %12 = vsyncpa [#allocation4], 0
    %13 = vsyncpa [#allocation5], 0
    %s14 = scalar_lea.sflag [#allocation5], 1
    %15 = vsyncpa %s14, 0
    loop: start=0, step=1, limit=4
    $region2: #{tpu_custom_call.1} parent=1 // loop_pre_header
      _
    $region3: #{tpu_custom_call.1} parent=1 // loop_header
      %s17 = sphi 0, %s21
      %p18 = scmp.ge.s32.totalorder %s17, 4
      %s27 = sphi 0, %s29
      %s30 = sphi 0, %s27
      %s31 = sphi 0, %s30
      %s47 = sphi 0, %s31
      %s51 = sphi 0, %s51
      %s53 = sphi 0, %s51
      %s54 = sphi 0, %s53
      %s68 = sphi 0, %s54
      %s72 = sphi 0, %s72
      %s74 = sphi 0, %s72
      %s75 = sphi 0, %s74
      %s89 = sphi 0, %s75
      %s93 = sphi 0, %s93
      %s95 = sphi 0, %s93
      %s96 = sphi 0, %s95
      %s110 = sphi 0, %s96
      %s114 = sphi 0, %s114
      %s116 = sphi 0, %s114
      %s117 = sphi 0, %s116
      %s131 = sphi 0, %s117
      %s135 = sphi 0, %s135
      %s137 = sphi 0, %s135
      %s138 = sphi 0, %s137
      %s152 = sphi 0, %s138
      %s156 = sphi 0, %s156
      %s158 = sphi 0, %s156
      %s159 = sphi 0, %s158
      %s173 = sphi 0, %s159
      %s179 = sphi 0, %s181
      %s182 = sphi 0, %s179
      %s183 = sphi 0, %s182
      %s199 = sphi 0, %s183
    $region4: #{tpu_custom_call.1} parent=1 // loop_header_branch
      %20 = sbr.rel (%p18) target = $region8
    $region5: #{tpu_custom_call.1} parent=1 // loop_body
      %s22 = ssub.s32 %s17, 1
      %s23 = ssub.s32 %s17, 2
      %s24 = sadd.s32 %s17, 1
      %s25 = ssub.s32 %s17, %s24
      %p26 = scmp.eq.s32.totalorder %s25, 0
      %s28 = sadd.s32 %s27, 1
      %s29 = scalar_select %p26, %s27, %s28
      %p32 = pneg %p26
      %p33 = scmp.eq.s32.totalorder %s17, 1
      %p34 = por %p32, %p33
      %p35 = scmp.ne.s32.totalorder %s27, %s30
      %p36 = scmp.eq.s32.totalorder %s17, 0
      %p37 = por %p35, %p36
      %p38 = scmp.ne.s32.totalorder %s27, %s30
      %p39 = scmp.eq.s32.totalorder %s22, 1
      %p40 = por %p38, %p39
      %p41 = scmp.ne.s32.totalorder %s30, %s31
      %p42 = scmp.eq.s32.totalorder %s22, 0
      %p43 = por %p41, %p42
      %p44 = scmp.ne.s32.totalorder %s30, %s31
      %p45 = scmp.eq.s32.totalorder %s23, 1
      %p46 = por %p44, %p45
      %p48 = scmp.ne.s32.totalorder %s31, %s47
      %p49 = scmp.eq.s32.totalorder %s23, 0
      %p50 = por %p48, %p49
      %s52 = sadd.s32 %s51, 1
      %p55 = scmp.eq.s32.totalorder %s17, 1
      %p56 = scmp.ne.s32.totalorder %s51, %s53
      %p57 = scmp.eq.s32.totalorder %s17, 0
      %p58 = por %p56, %p57
      %p59 = scmp.ne.s32.totalorder %s51, %s53
      %p60 = scmp.eq.s32.totalorder %s22, 1
      %p61 = por %p59, %p60
      %p62 = scmp.ne.s32.totalorder %s53, %s54
      %p63 = scmp.eq.s32.totalorder %s22, 0
      %p64 = por %p62, %p63
      %p65 = scmp.ne.s32.totalorder %s53, %s54
      %p66 = scmp.eq.s32.totalorder %s23, 1
      %p67 = por %p65, %p66
      %p69 = scmp.ne.s32.totalorder %s54, %s68
      %p70 = scmp.eq.s32.totalorder %s23, 0
      %p71 = por %p69, %p70
      %s73 = sadd.s32 %s72, 1
      %p76 = scmp.eq.s32.totalorder %s17, 1
      %p77 = scmp.ne.s32.totalorder %s72, %s74
      %p78 = scmp.eq.s32.totalorder %s17, 0
      %p79 = por %p77, %p78
      %p80 = scmp.ne.s32.totalorder %s72, %s74
      %p81 = scmp.eq.s32.totalorder %s22, 1
      %p82 = por %p80, %p81
      %p83 = scmp.ne.s32.totalorder %s74, %s75
      %p84 = scmp.eq.s32.totalorder %s22, 0
      %p85 = por %p83, %p84
      %p86 = scmp.ne.s32.totalorder %s74, %s75
      %p87 = scmp.eq.s32.totalorder %s23, 1
      %p88 = por %p86, %p87
      %p90 = scmp.ne.s32.totalorder %s75, %s89
      %p91 = scmp.eq.s32.totalorder %s23, 0
      %p92 = por %p90, %p91
      %s94 = sadd.s32 %s93, 1
      %p97 = scmp.eq.s32.totalorder %s17, 1
      %p98 = scmp.ne.s32.totalorder %s93, %s95
      %p99 = scmp.eq.s32.totalorder %s17, 0
      %p100 = por %p98, %p99
      %p101 = scmp.ne.s32.totalorder %s93, %s95
      %p102 = scmp.eq.s32.totalorder %s22, 1
      %p103 = por %p101, %p102
      %p104 = scmp.ne.s32.totalorder %s95, %s96
      %p105 = scmp.eq.s32.totalorder %s22, 0
      %p106 = por %p104, %p105
      %p107 = scmp.ne.s32.totalorder %s95, %s96
      %p108 = scmp.eq.s32.totalorder %s23, 1
      %p109 = por %p107, %p108
      %p111 = scmp.ne.s32.totalorder %s96, %s110
      %p112 = scmp.eq.s32.totalorder %s23, 0
      %p113 = por %p111, %p112
      %s115 = sadd.s32 %s114, 1
      %p118 = scmp.eq.s32.totalorder %s17, 1
      %p119 = scmp.ne.s32.totalorder %s114, %s116
      %p120 = scmp.eq.s32.totalorder %s17, 0
      %p121 = por %p119, %p120
      %p122 = scmp.ne.s32.totalorder %s114, %s116
      %p123 = scmp.eq.s32.totalorder %s22, 1
      %p124 = por %p122, %p123
      %p125 = scmp.ne.s32.totalorder %s116, %s117
      %p126 = scmp.eq.s32.totalorder %s22, 0
      %p127 = por %p125, %p126
      %p128 = scmp.ne.s32.totalorder %s116, %s117
      %p129 = scmp.eq.s32.totalorder %s23, 1
      %p130 = por %p128, %p129
      %p132 = scmp.ne.s32.totalorder %s117, %s131
      %p133 = scmp.eq.s32.totalorder %s23, 0
      %p134 = por %p132, %p133
      %s136 = sadd.s32 %s135, 1
      %p139 = scmp.eq.s32.totalorder %s17, 1
      %p140 = scmp.ne.s32.totalorder %s135, %s137
      %p141 = scmp.eq.s32.totalorder %s17, 0
      %p142 = por %p140, %p141
      %p143 = scmp.ne.s32.totalorder %s135, %s137
      %p144 = scmp.eq.s32.totalorder %s22, 1
      %p145 = por %p143, %p144
      %p146 = scmp.ne.s32.totalorder %s137, %s138
      %p147 = scmp.eq.s32.totalorder %s22, 0
      %p148 = por %p146, %p147
      %p149 = scmp.ne.s32.totalorder %s137, %s138
      %p150 = scmp.eq.s32.totalorder %s23, 1
      %p151 = por %p149, %p150
      %p153 = scmp.ne.s32.totalorder %s138, %s152
      %p154 = scmp.eq.s32.totalorder %s23, 0
      %p155 = por %p153, %p154
      %s157 = sadd.s32 %s156, 1
      %p160 = scmp.eq.s32.totalorder %s17, 1
      %p161 = scmp.ne.s32.totalorder %s156, %s158
      %p162 = scmp.eq.s32.totalorder %s17, 0
      %p163 = por %p161, %p162
      %p164 = scmp.ne.s32.totalorder %s156, %s158
      %p165 = scmp.eq.s32.totalorder %s22, 1
      %p166 = por %p164, %p165
      %p167 = scmp.ne.s32.totalorder %s158, %s159
      %p168 = scmp.eq.s32.totalorder %s22, 0
      %p169 = por %p167, %p168
      %p170 = scmp.ne.s32.totalorder %s158, %s159
      %p171 = scmp.eq.s32.totalorder %s23, 1
      %p172 = por %p170, %p171
      %p174 = scmp.ne.s32.totalorder %s159, %s173
      %p175 = scmp.eq.s32.totalorder %s23, 0
      %p176 = por %p174, %p175
      %s177 = ssub.s32 %s17, %s24
      %p178 = scmp.eq.s32.totalorder %s177, 0
      %s180 = sadd.s32 %s179, 1
      %s181 = scalar_select %p178, %s179, %s180
      %p184 = pneg %p178
      %p185 = scmp.eq.s32.totalorder %s17, 1
      %p186 = por %p184, %p185
      %p187 = scmp.ne.s32.totalorder %s179, %s182
      %p188 = scmp.eq.s32.totalorder %s17, 0
      %p189 = por %p187, %p188
      %p190 = scmp.ne.s32.totalorder %s179, %s182
      %p191 = scmp.eq.s32.totalorder %s22, 1
      %p192 = por %p190, %p191
      %p193 = scmp.ne.s32.totalorder %s182, %s183
      %p194 = scmp.eq.s32.totalorder %s22, 0
      %p195 = por %p193, %p194
      %p196 = scmp.ne.s32.totalorder %s182, %s183
      %p197 = scmp.eq.s32.totalorder %s23, 1
      %p198 = por %p196, %p197
      %p200 = scmp.ne.s32.totalorder %s183, %s199
      %p201 = scmp.eq.s32.totalorder %s23, 0
      %p202 = por %p200, %p201
      %p203 = scmp.le.s32.totalorder 1, %s17
      %p204 = scmp.lt.s32.totalorder %s17, 3
      %p205 = pnand %p203, %p204
      %p206 = pneg %p205
      // Predicated region
      $region9: #{tpu_custom_call.1} parent=5 // pred_check
        _
      $region10: #{tpu_custom_call.1} parent=5 // pred_check_branch
        %208 = sbr.rel (%p205) target = $region12
      $region11: #{tpu_custom_call.1} parent=5 // pred_region
        %s209 = ssub.s32 %s17, 1
        // Predicated region
        $region13: #{tpu_custom_call.1} parent=11 // pred_check
          %p210 = pneg %p64
        $region14: #{tpu_custom_call.1} parent=11 // pred_check_branch
          %212 = sbr.rel (%p210) target = $region16
        $region15: #{tpu_custom_call.1} parent=11 // pred_region
          _
        $region16: #{tpu_custom_call.1} parent=11 // pred_fallthru
          _
        // Predicated region
        $region17: #{tpu_custom_call.1} parent=11 // pred_check
          %p213 = pneg %p85
        $region18: #{tpu_custom_call.1} parent=11 // pred_check_branch
          %215 = sbr.rel (%p213) target = $region20
        $region19: #{tpu_custom_call.1} parent=11 // pred_region
          _
        $region20: #{tpu_custom_call.1} parent=11 // pred_fallthru
          _
        // Predicated region
        $region21: #{tpu_custom_call.1} parent=11 // pred_check
          %p216 = pneg %p106
        $region22: #{tpu_custom_call.1} parent=11 // pred_check_branch
          %218 = sbr.rel (%p216) target = $region24
        $region23: #{tpu_custom_call.1} parent=11 // pred_region
          _
        $region24: #{tpu_custom_call.1} parent=11 // pred_fallthru
          _
        // Predicated region
        $region25: #{tpu_custom_call.1} parent=11 // pred_check
          %p219 = pneg %p127
        $region26: #{tpu_custom_call.1} parent=11 // pred_check_branch
          %221 = sbr.rel (%p219) target = $region28
        $region27: #{tpu_custom_call.1} parent=11 // pred_region
          %s223 = ssub.s32 9216, 9216
          %224 = vsyncadd [#allocation4], %s223
          %s225 = sshll.u32 [#allocation3], 4
          %s226 = int_to_ptr.vmem [resolvable:$true] %s225
          %231 = dma.hbm_to_vmem [thread:$0]  %s4, 9216, %s226, [#allocation4], 64, 64, 4
        $region28: #{tpu_custom_call.1} parent=11 // pred_fallthru
          _
        // Predicated region
        $region29: #{tpu_custom_call.1} parent=11 // pred_check
          %p232 = pneg %p148
        $region30: #{tpu_custom_call.1} parent=11 // pred_check_branch
          %234 = sbr.rel (%p232) target = $region32
        $region31: #{tpu_custom_call.1} parent=11 // pred_region
          _
        $region32: #{tpu_custom_call.1} parent=11 // pred_fallthru
          _
        // Predicated region
        $region33: #{tpu_custom_call.1} parent=11 // pred_check
          %p235 = pneg %p169
        $region34: #{tpu_custom_call.1} parent=11 // pred_check_branch
          %237 = sbr.rel (%p235) target = $region36
        $region35: #{tpu_custom_call.1} parent=11 // pred_region
          _
        $region36: #{tpu_custom_call.1} parent=11 // pred_fallthru
          _
      $region12: #{tpu_custom_call.1} parent=5 // pred_fallthru
        _
      %p238 = scmp.lt.s32.totalorder %s17, 2
      // Predicated region
      $region37: #{tpu_custom_call.1} parent=5 // pred_check
        %p239 = pneg %p238
      $region38: #{tpu_custom_call.1} parent=5 // pred_check_branch
        %241 = sbr.rel (%p239) target = $region40
      $region39: #{tpu_custom_call.1} parent=5 // pred_region
        // Predicated region
        $region41: #{tpu_custom_call.1} parent=39 // pred_check
          %p242 = pneg %p37
        $region42: #{tpu_custom_call.1} parent=39 // pred_check_branch
          %244 = sbr.rel (%p242) target = $region44
        $region43: #{tpu_custom_call.1} parent=39 // pred_region
          %p245 = scmp.lt.s32.totalorder %s17, 1
          %s246 = scalar_select %p245, %s17, 1
          %s247 = smul.addr %s246, 54
          %s248 = smul.addr %s247, 4
          %s249 = scalar_lea.vmem %s0, %s248
        $region44: #{tpu_custom_call.1} parent=39 // pred_fallthru
          _
      $region40: #{tpu_custom_call.1} parent=5 // pred_fallthru
        _
      %p250 = scmp.le.s32.totalorder 1, %s17
      %p251 = scmp.lt.s32.totalorder %s17, 3
      %p252 = pnand %p250, %p251
      %p253 = pneg %p252
      // Predicated region
      $region45: #{tpu_custom_call.1} parent=5 // pred_check
        _
      $region46: #{tpu_custom_call.1} parent=5 // pred_check_branch
        %255 = sbr.rel (%p252) target = $region48
      $region47: #{tpu_custom_call.1} parent=5 // pred_region
        %s256 = ssub.s32 %s17, 1
        // Predicated region
        $region49: #{tpu_custom_call.1} parent=47 // pred_check
          %p257 = pneg %p127
        $region50: #{tpu_custom_call.1} parent=47 // pred_check_branch
          %259 = sbr.rel (%p257) target = $region52
        $region51: #{tpu_custom_call.1} parent=47 // pred_region
          %260 = dma.done [#allocation4], 9216
        $region52: #{tpu_custom_call.1} parent=47 // pred_fallthru
          _
        %p261 = scmp.lt.s32.totalorder %s22, 1
        %s262 = scalar_select %p261, %s22, 1
        %s263 = smul.addr %s262, 54
        %s264 = smul.addr %s263, 4
        %s265 = scalar_lea.vmem %s0, %s264
        %p266 = pneg %p43
        %p267 = pneg %p40
        %p268 = pneg %p64
        %p269 = pneg %p61
        %p270 = pneg %p85
        %p271 = pneg %p82
        %p272 = pneg %p106
        %p273 = pneg %p103
        %p274 = pneg %p127
        %p275 = pneg %p124
        %p276 = pneg %p148
        %p277 = pneg %p145
        %p278 = pneg %p169
        %p279 = pneg %p166
        %p280 = pneg %p195
        %p281 = pneg %p192
        %s282 = sand.u32 %s182, 1
        %s283 = scalar_lea.sflag [#allocation5], %s282
        %s284 = sand.u32 %s182, 1
        %s285 = smul.addr %s284, 128
        %s286 = scalar_lea.vmem [#allocation6], %s285
        %p287 = scmp.lt.s32.totalorder %s22, 1
        %s288 = scalar_select %p287, %s22, 1
        %s289 = smul.addr %s288, 54
        %s290 = smul.addr %s289, 4
        %s291 = scalar_lea.vmem %s0, %s290
        %p293 = scmp.eq.s32.totalorder %s22, 0
        // Predicated region
        $region53: #{tpu_custom_call.1} parent=47 // pred_check
          %p294 = pneg %p293
        $region54: #{tpu_custom_call.1} parent=47 // pred_check_branch
          %296 = sbr.rel (%p294) target = $region56
        $region55: #{tpu_custom_call.1} parent=47 // pred_region
          %297 = vst [vmem:[#allocation2] sm:$0xf] 0
          %298 = vst [vmem:[#allocation2 + $0x4] sm:$0xf] 0
          %299 = vst [vmem:[#allocation2 + $0x8] sm:$0x1] 0
          %300 = vst [vmem:[#allocation2 + $0xc] sm:$0xf] 0
          %301 = vst [vmem:[#allocation2 + $0x10] sm:$0xf] 0
          %302 = vst [vmem:[#allocation2 + $0x14] sm:$0x1] 0
          %303 = vst [vmem:[#allocation2 + $0x18] sm:$0xf] 0
          %304 = vst [vmem:[#allocation2 + $0x1c] sm:$0xf] 0
          %305 = vst [vmem:[#allocation2 + $0x20] sm:$0x1] 0
          %306 = vst [vmem:[#allocation2 + $0x24] sm:$0xf] 0
          %307 = vst [vmem:[#allocation2 + $0x28] sm:$0xf] 0
          %308 = vst [vmem:[#allocation2 + $0x2c] sm:$0x1] 0
          %309 = vst [vmem:[#allocation2 + $0x30] sm:$0xf] 0
          %310 = vst [vmem:[#allocation2 + $0x34] sm:$0xf] 0
          %311 = vst [vmem:[#allocation2 + $0x38] sm:$0x1] 0
          %312 = vst [vmem:[#allocation2 + $0x3c] sm:$0xf] 0
          %313 = vst [vmem:[#allocation2 + $0x40] sm:$0xf] 0
          %314 = vst [vmem:[#allocation2 + $0x44] sm:$0x1] 0
          %315 = vst [vmem:[#allocation2 + $0x48] sm:$0xf] 0
          %316 = vst [vmem:[#allocation2 + $0x4c] sm:$0xf] 0
          %317 = vst [vmem:[#allocation2 + $0x50] sm:$0x1] 0
          %318 = vst [vmem:[#allocation2 + $0x54] sm:$0xf] 0
          %319 = vst [vmem:[#allocation2 + $0x58] sm:$0xf] 0
          %320 = vst [vmem:[#allocation2 + $0x5c] sm:$0x1] 0
          %321 = vst [vmem:[#allocation2 + $0x60] sm:$0xf] 0
          %322 = vst [vmem:[#allocation2 + $0x64] sm:$0xf] 0
          %323 = vst [vmem:[#allocation2 + $0x68] sm:$0x1] 0
          %324 = vst [vmem:[#allocation2 + $0x6c] sm:$0xf] 0
          %325 = vst [vmem:[#allocation2 + $0x70] sm:$0xf] 0
          %326 = vst [vmem:[#allocation2 + $0x74] sm:$0x1] 0
          %327 = vst [vmem:[#allocation2 + $0x78] sm:$0xf] 0
          %328 = vst [vmem:[#allocation2 + $0x7c] sm:$0xf] 0
          %329 = vst [vmem:[#allocation2 + $0x80] sm:$0x1] 0
          %330 = vst [vmem:[#allocation2 + $0x84] sm:$0xf] 0
          %331 = vst [vmem:[#allocation2 + $0x88] sm:$0xf] 0
          %332 = vst [vmem:[#allocation2 + $0x8c] sm:$0x1] 0
          %333 = vst [vmem:[#allocation2 + $0x90] sm:$0xf] 0
          %334 = vst [vmem:[#allocation2 + $0x94] sm:$0xf] 0
          %335 = vst [vmem:[#allocation2 + $0x98] sm:$0x1] 0
          %336 = vst [vmem:[#allocation2 + $0x9c] sm:$0xf] 0
          %337 = vst [vmem:[#allocation2 + $0xa0] sm:$0xf] 0
          %338 = vst [vmem:[#allocation2 + $0xa4] sm:$0x1] 0
          %339 = vst [vmem:[#allocation2 + $0xa8] sm:$0xf] 0
          %340 = vst [vmem:[#allocation2 + $0xac] sm:$0xf] 0
          %341 = vst [vmem:[#allocation2 + $0xb0] sm:$0x1] 0
          %342 = vst [vmem:[#allocation2 + $0xb4] sm:$0xf] 0
          %343 = vst [vmem:[#allocation2 + $0xb8] sm:$0xf] 0
          %344 = vst [vmem:[#allocation2 + $0xbc] sm:$0x1] 0
          %345 = vst [vmem:[#allocation2 + $0xc0] sm:$0xf] 0
          %346 = vst [vmem:[#allocation2 + $0xc4] sm:$0xf] 0
          %347 = vst [vmem:[#allocation2 + $0xc8] sm:$0x1] 0
          %348 = vst [vmem:[#allocation2 + $0xcc] sm:$0xf] 0
          %349 = vst [vmem:[#allocation2 + $0xd0] sm:$0xf] 0
          %350 = vst [vmem:[#allocation2 + $0xd4] sm:$0x1] 0
        $region56: #{tpu_custom_call.1} parent=47 // pred_fallthru
          _
        %v351 = vld [vmem:[%s291] sm:$0xf]
        %v352 = vld [vmem:[%s291 + $0x4] sm:$0xf]
        %v353 = vld [vmem:[%s291 + $0xc] sm:$0xf]
        %v354 = vld [vmem:[%s291 + $0x10] sm:$0xf]
        %v355 = vld [vmem:[%s291 + $0x18] sm:$0xf]
        %v356 = vld [vmem:[%s291 + $0x1c] sm:$0xf]
        %v357 = vld [vmem:[%s291 + $0x24] sm:$0xf]
        %v358 = vld [vmem:[%s291 + $0x28] sm:$0xf]
        %v359 = vld [vmem:[%s291 + $0x30] sm:$0xf]
        %v360 = vld [vmem:[%s291 + $0x34] sm:$0xf]
        %v361 = vld [vmem:[%s291 + $0x3c] sm:$0xf]
        %v362 = vld [vmem:[%s291 + $0x40] sm:$0xf]
        %v363 = vld [vmem:[%s291 + $0x48] sm:$0xf]
        %v364 = vld [vmem:[%s291 + $0x4c] sm:$0xf]
        %v365 = vld [vmem:[%s291 + $0x54] sm:$0xf]
        %v366 = vld [vmem:[%s291 + $0x58] sm:$0xf]
        %v367 = vld [vmem:[%s291 + $0x60] sm:$0xf]
        %v368 = vld [vmem:[%s291 + $0x64] sm:$0xf]
        %v369 = vld [vmem:[%s291 + $0x6c] sm:$0xf]
        %v370 = vld [vmem:[%s291 + $0x70] sm:$0xf]
        %v371 = vld [vmem:[%s291 + $0x78] sm:$0xf]
        %v372 = vld [vmem:[%s291 + $0x7c] sm:$0xf]
        %v373 = vld [vmem:[%s291 + $0x84] sm:$0xf]
        %v374 = vld [vmem:[%s291 + $0x88] sm:$0xf]
        %v375 = vld [vmem:[%s291 + $0x90] sm:$0xf]
        %v376 = vld [vmem:[%s291 + $0x94] sm:$0xf]
        %v377 = vld [vmem:[%s291 + $0x9c] sm:$0xf]
        %v378 = vld [vmem:[%s291 + $0xa0] sm:$0xf]
        %v379 = vld [vmem:[%s291 + $0xa8] sm:$0xf]
        %v380 = vld [vmem:[%s291 + $0xac] sm:$0xf]
        %v381 = vld [vmem:[%s291 + $0xb4] sm:$0xf]
        %v382 = vld [vmem:[%s291 + $0xb8] sm:$0xf]
        %v383 = vld [vmem:[%s1] sm:$0xf]
        %v384 = vld [vmem:[%s1 + $0x4] sm:$0xf]
        %v385 = vld [vmem:[%s1 + $0x8] sm:$0xf]
        %v386 = vld [vmem:[%s1 + $0xc] sm:$0xf]
        %v387 = vld [vmem:[%s1 + $0x10] sm:$0xf]
        %v388 = vld [vmem:[%s1 + $0x14] sm:$0xf]
        %v389 = vld [vmem:[%s1 + $0x18] sm:$0xf]
        %v390 = vld [vmem:[%s1 + $0x1c] sm:$0xf]
        %v391 = vld [vmem:[%s1 + $0x20] sm:$0xf]
        %v392 = vld [vmem:[%s1 + $0x24] sm:$0xf]
        %v393 = vld [vmem:[%s1 + $0x28] sm:$0xf]
        %v394 = vld [vmem:[%s1 + $0x2c] sm:$0xf]
        %v395 = vld [vmem:[%s1 + $0x30] sm:$0xf]
        %v396 = vld [vmem:[%s1 + $0x34] sm:$0xf]
        %v397 = vld [vmem:[%s1 + $0x38] sm:$0xf]
        %v398 = vld [vmem:[%s1 + $0x3c] sm:$0xf]
        %v399 = vld [vmem:[%s291 + $0x8] sm:$0x1]
        %v400 = vld [vmem:[%s291 + $0x14] sm:$0x1]
        %v401 = vld [vmem:[%s291 + $0x20] sm:$0x1]
        %v402 = vld [vmem:[%s291 + $0x2c] sm:$0x1]
        %v403 = vld [vmem:[%s291 + $0x38] sm:$0x1]
        %v404 = vld [vmem:[%s291 + $0x44] sm:$0x1]
        %v405 = vld [vmem:[%s291 + $0x50] sm:$0x1]
        %v406 = vld [vmem:[%s291 + $0x5c] sm:$0x1]
        %v407 = vld [vmem:[%s291 + $0x68] sm:$0x1]
        %v408 = vld [vmem:[%s291 + $0x74] sm:$0x1]
        %v409 = vld [vmem:[%s291 + $0x80] sm:$0x1]
        %v410 = vld [vmem:[%s291 + $0x8c] sm:$0x1]
        %v411 = vld [vmem:[%s291 + $0x98] sm:$0x1]
        %v412 = vld [vmem:[%s291 + $0xa4] sm:$0x1]
        %v413 = vld [vmem:[%s291 + $0xb0] sm:$0x1]
        %v414 = vld [vmem:[%s291 + $0xbc] sm:$0x1]
        %vm415 = vsmask.f32 3328
        %vm416 = vsmask.f32 7440
        %vm417 = vmor %vm415, %vm416
        %v419 = vshrl.u32 %v351, 16
        %v421 = vrot.slane %v419, 4
        %v422 = vshll.u32 %v351, 16
        %v424 = vrot.slane %v422, 5
        %v425 = vor.u32 %v421, %v424
        %v426 = vrot.slane %v425, 4
        %v428 = vshll.u32 %v352, 16
        %v430 = vrot.slane %v428, 5
        %v431 = vsel %vm417, %v426, %v430
        %v432 = vshrl.u32 %v352, 16
        %v434 = vrot.slane %v432, 4
        %v435 = vor.u32 %v434, %v430
        %v436 = vrot.slane %v435, 4
        %v438 = vshll.u32 %v399, 16
        %v440 = vrot.slane %v438, 5
        %v441 = vsel %vm417, %v436, %v440
        %v443 = vshrl.u32 %v353, 16
        %v445 = vrot.slane %v443, 4
        %v446 = vshll.u32 %v353, 16
        %v448 = vrot.slane %v446, 5
        %v449 = vor.u32 %v445, %v448
        %v450 = vrot.slane %v449, 4
        %v452 = vshll.u32 %v354, 16
        %v454 = vrot.slane %v452, 5
        %v455 = vsel %vm417, %v450, %v454
        %v456 = vshrl.u32 %v354, 16
        %v458 = vrot.slane %v456, 4
        %v459 = vor.u32 %v458, %v454
        %v460 = vrot.slane %v459, 4
        %v462 = vshll.u32 %v400, 16
        %v464 = vrot.slane %v462, 5
        %v465 = vsel %vm417, %v460, %v464
        %v467 = vshrl.u32 %v355, 16
        %v469 = vrot.slane %v467, 4
        %v470 = vshll.u32 %v355, 16
        %v472 = vrot.slane %v470, 5
        %v473 = vor.u32 %v469, %v472
        %v474 = vrot.slane %v473, 4
        %v476 = vshll.u32 %v356, 16
        %v478 = vrot.slane %v476, 5
        %v479 = vsel %vm417, %v474, %v478
        %v480 = vshrl.u32 %v356, 16
        %v482 = vrot.slane %v480, 4
        %v483 = vor.u32 %v482, %v478
        %v484 = vrot.slane %v483, 4
        %v486 = vshll.u32 %v401, 16
        %v488 = vrot.slane %v486, 5
        %v489 = vsel %vm417, %v484, %v488
        %v491 = vshrl.u32 %v357, 16
        %v493 = vrot.slane %v491, 4
        %v494 = vshll.u32 %v357, 16
        %v496 = vrot.slane %v494, 5
        %v497 = vor.u32 %v493, %v496
        %v498 = vrot.slane %v497, 4
        %v500 = vshll.u32 %v358, 16
        %v502 = vrot.slane %v500, 5
        %v503 = vsel %vm417, %v498, %v502
        %v504 = vshrl.u32 %v358, 16
        %v506 = vrot.slane %v504, 4
        %v507 = vor.u32 %v506, %v502
        %v508 = vrot.slane %v507, 4
        %v510 = vshll.u32 %v402, 16
        %v512 = vrot.slane %v510, 5
        %v513 = vsel %vm417, %v508, %v512
        %v515 = vshrl.u32 %v359, 16
        %v517 = vrot.slane %v515, 4
        %v518 = vshll.u32 %v359, 16
        %v520 = vrot.slane %v518, 5
        %v521 = vor.u32 %v517, %v520
        %v522 = vrot.slane %v521, 4
        %v524 = vshll.u32 %v360, 16
        %v526 = vrot.slane %v524, 5
        %v527 = vsel %vm417, %v522, %v526
        %v528 = vshrl.u32 %v360, 16
        %v530 = vrot.slane %v528, 4
        %v531 = vor.u32 %v530, %v526
        %v532 = vrot.slane %v531, 4
        %v534 = vshll.u32 %v403, 16
        %v536 = vrot.slane %v534, 5
        %v537 = vsel %vm417, %v532, %v536
        %v539 = vshrl.u32 %v361, 16
        %v541 = vrot.slane %v539, 4
        %v542 = vshll.u32 %v361, 16
        %v544 = vrot.slane %v542, 5
        %v545 = vor.u32 %v541, %v544
        %v546 = vrot.slane %v545, 4
        %v548 = vshll.u32 %v362, 16
        %v550 = vrot.slane %v548, 5
        %v551 = vsel %vm417, %v546, %v550
        %v552 = vshrl.u32 %v362, 16
        %v554 = vrot.slane %v552, 4
        %v555 = vor.u32 %v554, %v550
        %v556 = vrot.slane %v555, 4
        %v558 = vshll.u32 %v404, 16
        %v560 = vrot.slane %v558, 5
        %v561 = vsel %vm417, %v556, %v560
        %v563 = vshrl.u32 %v363, 16
        %v565 = vrot.slane %v563, 4
        %v566 = vshll.u32 %v363, 16
        %v568 = vrot.slane %v566, 5
        %v569 = vor.u32 %v565, %v568
        %v570 = vrot.slane %v569, 4
        %v572 = vshll.u32 %v364, 16
        %v574 = vrot.slane %v572, 5
        %v575 = vsel %vm417, %v570, %v574
        %v576 = vshrl.u32 %v364, 16
        %v578 = vrot.slane %v576, 4
        %v579 = vor.u32 %v578, %v574
        %v580 = vrot.slane %v579, 4
        %v582 = vshll.u32 %v405, 16
        %v584 = vrot.slane %v582, 5
        %v585 = vsel %vm417, %v580, %v584
        %v587 = vshrl.u32 %v365, 16
        %v589 = vrot.slane %v587, 4
        %v590 = vshll.u32 %v365, 16
        %v592 = vrot.slane %v590, 5
        %v593 = vor.u32 %v589, %v592
        %v594 = vrot.slane %v593, 4
        %v596 = vshll.u32 %v366, 16
        %v598 = vrot.slane %v596, 5
        %v599 = vsel %vm417, %v594, %v598
        %v600 = vshrl.u32 %v366, 16
        %v602 = vrot.slane %v600, 4
        %v603 = vor.u32 %v602, %v598
        %v604 = vrot.slane %v603, 4
        %v606 = vshll.u32 %v406, 16
        %v608 = vrot.slane %v606, 5
        %v609 = vsel %vm417, %v604, %v608
        %v611 = vshrl.u32 %v367, 16
        %v613 = vrot.slane %v611, 4
        %v614 = vshll.u32 %v367, 16
        %v616 = vrot.slane %v614, 5
        %v617 = vor.u32 %v613, %v616
        %v618 = vrot.slane %v617, 4
        %v620 = vshll.u32 %v368, 16
        %v622 = vrot.slane %v620, 5
        %v623 = vsel %vm417, %v618, %v622
        %v624 = vshrl.u32 %v368, 16
        %v626 = vrot.slane %v624, 4
        %v627 = vor.u32 %v626, %v622
        %v628 = vrot.slane %v627, 4
        %v630 = vshll.u32 %v407, 16
        %v632 = vrot.slane %v630, 5
        %v633 = vsel %vm417, %v628, %v632
        %v635 = vshrl.u32 %v369, 16
        %v637 = vrot.slane %v635, 4
        %v638 = vshll.u32 %v369, 16
        %v640 = vrot.slane %v638, 5
        %v641 = vor.u32 %v637, %v640
        %v642 = vrot.slane %v641, 4
        %v644 = vshll.u32 %v370, 16
        %v646 = vrot.slane %v644, 5
        %v647 = vsel %vm417, %v642, %v646
        %v648 = vshrl.u32 %v370, 16
        %v650 = vrot.slane %v648, 4
        %v651 = vor.u32 %v650, %v646
        %v652 = vrot.slane %v651, 4
        %v654 = vshll.u32 %v408, 16
        %v656 = vrot.slane %v654, 5
        %v657 = vsel %vm417, %v652, %v656
        %v659 = vshrl.u32 %v371, 16
        %v661 = vrot.slane %v659, 4
        %v662 = vshll.u32 %v371, 16
        %v664 = vrot.slane %v662, 5
        %v665 = vor.u32 %v661, %v664
        %v666 = vrot.slane %v665, 4
        %v668 = vshll.u32 %v372, 16
        %v670 = vrot.slane %v668, 5
        %v671 = vsel %vm417, %v666, %v670
        %v672 = vshrl.u32 %v372, 16
        %v674 = vrot.slane %v672, 4
        %v675 = vor.u32 %v674, %v670
        %v676 = vrot.slane %v675, 4
        %v678 = vshll.u32 %v409, 16
        %v680 = vrot.slane %v678, 5
        %v681 = vsel %vm417, %v676, %v680
        %v683 = vshrl.u32 %v373, 16
        %v685 = vrot.slane %v683, 4
        %v686 = vshll.u32 %v373, 16
        %v688 = vrot.slane %v686, 5
        %v689 = vor.u32 %v685, %v688
        %v690 = vrot.slane %v689, 4
        %v692 = vshll.u32 %v374, 16
        %v694 = vrot.slane %v692, 5
        %v695 = vsel %vm417, %v690, %v694
        %v696 = vshrl.u32 %v374, 16
        %v698 = vrot.slane %v696, 4
        %v699 = vor.u32 %v698, %v694
        %v700 = vrot.slane %v699, 4
        %v702 = vshll.u32 %v410, 16
        %v704 = vrot.slane %v702, 5
        %v705 = vsel %vm417, %v700, %v704
        %v707 = vshrl.u32 %v375, 16
        %v709 = vrot.slane %v707, 4
        %v710 = vshll.u32 %v375, 16
        %v712 = vrot.slane %v710, 5
        %v713 = vor.u32 %v709, %v712
        %v714 = vrot.slane %v713, 4
        %v716 = vshll.u32 %v376, 16
        %v718 = vrot.slane %v716, 5
        %v719 = vsel %vm417, %v714, %v718
        %v720 = vshrl.u32 %v376, 16
        %v722 = vrot.slane %v720, 4
        %v723 = vor.u32 %v722, %v718
        %v724 = vrot.slane %v723, 4
        %v726 = vshll.u32 %v411, 16
        %v728 = vrot.slane %v726, 5
        %v729 = vsel %vm417, %v724, %v728
        %v731 = vshrl.u32 %v377, 16
        %v733 = vrot.slane %v731, 4
        %v734 = vshll.u32 %v377, 16
        %v736 = vrot.slane %v734, 5
        %v737 = vor.u32 %v733, %v736
        %v738 = vrot.slane %v737, 4
        %v740 = vshll.u32 %v378, 16
        %v742 = vrot.slane %v740, 5
        %v743 = vsel %vm417, %v738, %v742
        %v744 = vshrl.u32 %v378, 16
        %v746 = vrot.slane %v744, 4
        %v747 = vor.u32 %v746, %v742
        %v748 = vrot.slane %v747, 4
        %v750 = vshll.u32 %v412, 16
        %v752 = vrot.slane %v750, 5
        %v753 = vsel %vm417, %v748, %v752
        %v755 = vshrl.u32 %v379, 16
        %v757 = vrot.slane %v755, 4
        %v758 = vshll.u32 %v379, 16
        %v760 = vrot.slane %v758, 5
        %v761 = vor.u32 %v757, %v760
        %v762 = vrot.slane %v761, 4
        %v764 = vshll.u32 %v380, 16
        %v766 = vrot.slane %v764, 5
        %v767 = vsel %vm417, %v762, %v766
        %v768 = vshrl.u32 %v380, 16
        %v770 = vrot.slane %v768, 4
        %v771 = vor.u32 %v770, %v766
        %v772 = vrot.slane %v771, 4
        %v774 = vshll.u32 %v413, 16
        %v776 = vrot.slane %v774, 5
        %v777 = vsel %vm417, %v772, %v776
        %v779 = vshrl.u32 %v381, 16
        %v781 = vrot.slane %v779, 4
        %v782 = vshll.u32 %v381, 16
        %v784 = vrot.slane %v782, 5
        %v785 = vor.u32 %v781, %v784
        %v786 = vrot.slane %v785, 4
        %v788 = vshll.u32 %v382, 16
        %v790 = vrot.slane %v788, 5
        %v791 = vsel %vm417, %v786, %v790
        %v792 = vshrl.u32 %v382, 16
        %v794 = vrot.slane %v792, 4
        %v795 = vor.u32 %v794, %v790
        %v796 = vrot.slane %v795, 4
        %v798 = vshll.u32 %v414, 16
        %v800 = vrot.slane %v798, 5
        %v801 = vsel %vm417, %v796, %v800
        %s802 = scalar_lea.vmem %s1, 64
        %v803 = vld [vmem:[%s802] sm:$0xf]
        %v804 = vld [vmem:[%s802 + $0x4] sm:$0xf]
        %v805 = vld [vmem:[%s802 + $0x8] sm:$0xf]
        %v806 = vld [vmem:[%s802 + $0xc] sm:$0xf]
        %v807 = vld [vmem:[%s802 + $0x10] sm:$0xf]
        %v808 = vld [vmem:[%s802 + $0x14] sm:$0xf]
        %v809 = vld [vmem:[%s802 + $0x18] sm:$0xf]
        %v810 = vld [vmem:[%s802 + $0x1c] sm:$0xf]
        %v811 = vld [vmem:[%s802 + $0x20] sm:$0xf]
        %v812 = vld [vmem:[%s802 + $0x24] sm:$0xf]
        %v813 = vld [vmem:[%s802 + $0x28] sm:$0xf]
        %v814 = vld [vmem:[%s802 + $0x2c] sm:$0xf]
        %v815 = vld [vmem:[%s802 + $0x30] sm:$0xf]
        %v816 = vld [vmem:[%s802 + $0x34] sm:$0xf]
        %v817 = vld [vmem:[%s802 + $0x38] sm:$0xf]
        %v818 = vld [vmem:[%s802 + $0x3c] sm:$0xf]
        %v819 = vunpack.c.l.b16 %v431
        %v820 = vunpack.c.l.b16 %v441
        %v821 = vunpack.c.l.b16 %v455
        %v822 = vunpack.c.l.b16 %v465
        %v823 = vunpack.c.l.b16 %v479
        %v824 = vunpack.c.l.b16 %v489
        %v825 = vunpack.c.l.b16 %v503
        %v826 = vunpack.c.l.b16 %v513
        %v827 = vunpack.c.l.b16 %v527
        %v828 = vunpack.c.l.b16 %v537
        %v829 = vunpack.c.l.b16 %v551
        %v830 = vunpack.c.l.b16 %v561
        %v831 = vunpack.c.l.b16 %v575
        %v832 = vunpack.c.l.b16 %v585
        %v833 = vunpack.c.l.b16 %v599
        %v834 = vunpack.c.l.b16 %v609
        %v835 = vunpack.c.l.b16 %v623
        %v836 = vunpack.c.l.b16 %v633
        %v837 = vunpack.c.l.b16 %v647
        %v838 = vunpack.c.l.b16 %v657
        %v839 = vunpack.c.l.b16 %v671
        %v840 = vunpack.c.l.b16 %v681
        %v841 = vunpack.c.l.b16 %v695
        %v842 = vunpack.c.l.b16 %v705
        %v843 = vunpack.c.l.b16 %v719
        %v844 = vunpack.c.l.b16 %v729
        %v845 = vunpack.c.l.b16 %v743
        %v846 = vunpack.c.l.b16 %v753
        %v847 = vunpack.c.l.b16 %v767
        %v848 = vunpack.c.l.b16 %v777
        %v849 = vunpack.c.l.b16 %v791
        %v850 = vunpack.c.l.b16 %v801
        %v851 = vpack.c.b16 %v820, %v819
        %v852 = vpack.c.b16 %v822, %v821
        %v853 = vpack.c.b16 %v824, %v823
        %v854 = vpack.c.b16 %v826, %v825
        %v855 = vpack.c.b16 %v828, %v827
        %v856 = vpack.c.b16 %v830, %v829
        %v857 = vpack.c.b16 %v832, %v831
        %v858 = vpack.c.b16 %v834, %v833
        %v859 = vpack.c.b16 %v836, %v835
        %v860 = vpack.c.b16 %v838, %v837
        %v861 = vpack.c.b16 %v840, %v839
        %v862 = vpack.c.b16 %v842, %v841
        %v863 = vpack.c.b16 %v844, %v843
        %v864 = vpack.c.b16 %v846, %v845
        %v865 = vpack.c.b16 %v848, %v847
        %v866 = vpack.c.b16 %v850, %v849
        %v899 = vunpack.c.l.b16 %v803
        %v900 = vunpack.c.l.b16 %v804
        %v901 = vunpack.c.l.b16 %v805
        %v902 = vunpack.c.l.b16 %v806
        %v903 = vunpack.c.l.b16 %v807
        %v904 = vunpack.c.l.b16 %v808
        %v905 = vunpack.c.l.b16 %v809
        %v906 = vunpack.c.l.b16 %v810
        %v907 = vunpack.c.l.b16 %v811
        %v908 = vunpack.c.l.b16 %v812
        %v909 = vunpack.c.l.b16 %v813
        %v910 = vunpack.c.l.b16 %v814
        %v911 = vunpack.c.l.b16 %v815
        %v912 = vunpack.c.l.b16 %v816
        %v913 = vunpack.c.l.b16 %v817
        %v914 = vunpack.c.l.b16 %v818
        %v915 = vpack.c.b16 %v900, %v899
        %v916 = vpack.c.b16 %v902, %v901
        %v917 = vpack.c.b16 %v904, %v903
        %v918 = vpack.c.b16 %v906, %v905
        %v919 = vpack.c.b16 %v908, %v907
        %v920 = vpack.c.b16 %v910, %v909
        %v921 = vpack.c.b16 %v912, %v911
        %v922 = vpack.c.b16 %v914, %v913
        %931 = vmatprep.subr.bf16.mxu0 0
        %932 = vmatpush1.bf16.msra.mxu0 %v915
        %933 = vmatprep.subr.bf16.mxu0 0
        %934 = vmatpush1.bf16.msra.mxu0 %v916
        %935 = vmatprep.subr.bf16.mxu0 0
        %936 = vmatpush1.bf16.msra.mxu0 %v917
        %937 = vmatprep.subr.bf16.mxu0 0
        %938 = vmatpush1.bf16.msra.mxu0 %v918
        %939 = vmatprep.subr.bf16.mxu0 0
        %940 = vmatpush1.bf16.msra.mxu0 %v919
        %941 = vmatprep.subr.bf16.mxu0 0
        %942 = vmatpush1.bf16.msra.mxu0 %v920
        %943 = vmatprep.subr.bf16.mxu0 0
        %944 = vmatpush1.bf16.msra.mxu0 %v921
        %945 = vmatprep.subr.bf16.mxu0 0
        %946 = vmatpush1.bf16.msra.mxu0 %v922
        %947 = vmatprep.subr.bf16.mxu0 0
        %948 = vmatpush1.bf16.msra.mxu0 0
        %949 = vmatprep.subr.bf16.mxu0 0
        %950 = vmatpush1.bf16.msra.mxu0 0
        %951 = vmatprep.subr.bf16.mxu0 0
        %952 = vmatpush1.bf16.msra.mxu0 0
        %953 = vmatprep.subr.bf16.mxu0 0
        %954 = vmatpush1.bf16.msra.mxu0 0
        %955 = vmatprep.subr.bf16.mxu0 0
        %956 = vmatpush1.bf16.msra.mxu0 0
        %957 = vmatprep.subr.bf16.mxu0 0
        %958 = vmatpush1.bf16.msra.mxu0 0
        %959 = vmatprep.subr.bf16.mxu0 0
        %960 = vmatpush1.bf16.msra.mxu0 0
        %961 = vmatprep.subr.bf16.mxu0 0
        %962 = vmatpush1.bf16.msra.mxu0 0
        %963 = vmatprep.mubr.bf16.mxu0 0
        %964 = vmatmul.mubr.bf16.gmra.mrb[0].mxu0 %v851
        %v965 = vpop.f32.mrb[0].mxu0
        %v966 = vadd.f32 0.0, %v965
        %v967 = vpop.f32.mrb[0].mxu0
        %v968 = vpop.f32.mrb[0].mxu0
        %v969 = vadd.f32 0.0, %v968
        %v970 = vpop.f32.mrb[0].mxu0
        %971 = vmatprep.mubr.bf16.mxu0 0
        %972 = vmatmul.mubr.bf16.gmra.mrb[0].mxu0 %v852
        %v973 = vpop.f32.mrb[0].mxu0
        %v974 = vadd.f32 0.0, %v973
        %v975 = vpop.f32.mrb[0].mxu0
        %v976 = vpop.f32.mrb[0].mxu0
        %v977 = vadd.f32 0.0, %v976
        %v978 = vpop.f32.mrb[0].mxu0
        %979 = vmatprep.mubr.bf16.mxu0 0
        %980 = vmatmul.mubr.bf16.gmra.mrb[0].mxu0 %v853
        %v981 = vpop.f32.mrb[0].mxu0
        %v982 = vadd.f32 0.0, %v981
        %v983 = vpop.f32.mrb[0].mxu0
        %v984 = vpop.f32.mrb[0].mxu0
        %v985 = vadd.f32 0.0, %v984
        %v986 = vpop.f32.mrb[0].mxu0
        %987 = vmatprep.mubr.bf16.mxu0 0
        %988 = vmatmul.mubr.bf16.gmra.mrb[0].mxu0 %v854
        %v989 = vpop.f32.mrb[0].mxu0
        %v990 = vadd.f32 0.0, %v989
        %v991 = vpop.f32.mrb[0].mxu0
        %v992 = vpop.f32.mrb[0].mxu0
        %v993 = vadd.f32 0.0, %v992
        %v994 = vpop.f32.mrb[0].mxu0
        %995 = vmatprep.mubr.bf16.mxu0 0
        %996 = vmatmul.mubr.bf16.gmra.mrb[0].mxu0 %v855
        %v997 = vpop.f32.mrb[0].mxu0
        %v998 = vadd.f32 0.0, %v997
        %v999 = vpop.f32.mrb[0].mxu0
        %v1000 = vpop.f32.mrb[0].mxu0
        %v1001 = vadd.f32 0.0, %v1000
        %v1002 = vpop.f32.mrb[0].mxu0
        %1003 = vmatprep.mubr.bf16.mxu0 0
        %1004 = vmatmul.mubr.bf16.gmra.mrb[0].mxu0 %v856
        %v1005 = vpop.f32.mrb[0].mxu0
        %v1006 = vadd.f32 0.0, %v1005
        %v1007 = vpop.f32.mrb[0].mxu0
        %v1008 = vpop.f32.mrb[0].mxu0
        %v1009 = vadd.f32 0.0, %v1008
        %v1010 = vpop.f32.mrb[0].mxu0
        %1011 = vmatprep.mubr.bf16.mxu0 0
        %1012 = vmatmul.mubr.bf16.gmra.mrb[0].mxu0 %v857
        %v1013 = vpop.f32.mrb[0].mxu0
        %v1014 = vadd.f32 0.0, %v1013
        %v1015 = vpop.f32.mrb[0].mxu0
        %v1016 = vpop.f32.mrb[0].mxu0
        %v1017 = vadd.f32 0.0, %v1016
        %v1018 = vpop.f32.mrb[0].mxu0
        %1019 = vmatprep.mubr.bf16.mxu0 0
        %1020 = vmatmul.mubr.bf16.gmra.mrb[0].mxu0 %v858
        %v1021 = vpop.f32.mrb[0].mxu0
        %v1022 = vadd.f32 0.0, %v1021
        %v1023 = vpop.f32.mrb[0].mxu0
        %v1024 = vpop.f32.mrb[0].mxu0
        %v1025 = vadd.f32 0.0, %v1024
        %v1026 = vpop.f32.mrb[0].mxu0
        %1027 = vmatprep.mubr.bf16.mxu0 0
        %1028 = vmatmul.mubr.bf16.gmra.mrb[0].mxu0 %v859
        %v1029 = vpop.f32.mrb[0].mxu0
        %v1030 = vadd.f32 0.0, %v1029
        %v1031 = vpop.f32.mrb[0].mxu0
        %v1032 = vpop.f32.mrb[0].mxu0
        %v1033 = vadd.f32 0.0, %v1032
        %v1034 = vpop.f32.mrb[0].mxu0
        %1035 = vmatprep.mubr.bf16.mxu0 0
        %1036 = vmatmul.mubr.bf16.gmra.mrb[0].mxu0 %v860
        %v1037 = vpop.f32.mrb[0].mxu0
        %v1038 = vadd.f32 0.0, %v1037
        %v1039 = vpop.f32.mrb[0].mxu0
        %v1040 = vpop.f32.mrb[0].mxu0
        %v1041 = vadd.f32 0.0, %v1040
        %v1042 = vpop.f32.mrb[0].mxu0
        %1043 = vmatprep.mubr.bf16.mxu0 0
        %1044 = vmatmul.mubr.bf16.gmra.mrb[0].mxu0 %v861
        %v1045 = vpop.f32.mrb[0].mxu0
        %v1046 = vadd.f32 0.0, %v1045
        %v1047 = vpop.f32.mrb[0].mxu0
        %v1048 = vpop.f32.mrb[0].mxu0
        %v1049 = vadd.f32 0.0, %v1048
        %v1050 = vpop.f32.mrb[0].mxu0
        %1051 = vmatprep.mubr.bf16.mxu0 0
        %1052 = vmatmul.mubr.bf16.gmra.mrb[0].mxu0 %v862
        %v1053 = vpop.f32.mrb[0].mxu0
        %v1054 = vadd.f32 0.0, %v1053
        %v1055 = vpop.f32.mrb[0].mxu0
        %v1056 = vpop.f32.mrb[0].mxu0
        %v1057 = vadd.f32 0.0, %v1056
        %v1058 = vpop.f32.mrb[0].mxu0
        %1059 = vmatprep.mubr.bf16.mxu0 0
        %1060 = vmatmul.mubr.bf16.gmra.mrb[0].mxu0 %v863
        %v1061 = vpop.f32.mrb[0].mxu0
        %v1062 = vadd.f32 0.0, %v1061
        %v1063 = vpop.f32.mrb[0].mxu0
        %v1064 = vpop.f32.mrb[0].mxu0
        %v1065 = vadd.f32 0.0, %v1064
        %v1066 = vpop.f32.mrb[0].mxu0
        %1067 = vmatprep.mubr.bf16.mxu0 0
        %1068 = vmatmul.mubr.bf16.gmra.mrb[0].mxu0 %v864
        %v1069 = vpop.f32.mrb[0].mxu0
        %v1070 = vadd.f32 0.0, %v1069
        %v1071 = vpop.f32.mrb[0].mxu0
        %v1072 = vpop.f32.mrb[0].mxu0
        %v1073 = vadd.f32 0.0, %v1072
        %v1074 = vpop.f32.mrb[0].mxu0
        %1075 = vmatprep.mubr.bf16.mxu0 0
        %1076 = vmatmul.mubr.bf16.gmra.mrb[0].mxu0 %v865
        %v1077 = vpop.f32.mrb[0].mxu0
        %v1078 = vadd.f32 0.0, %v1077
        %v1079 = vpop.f32.mrb[0].mxu0
        %v1080 = vpop.f32.mrb[0].mxu0
        %v1081 = vadd.f32 0.0, %v1080
        %v1082 = vpop.f32.mrb[0].mxu0
        %1083 = vmatprep.mubr.bf16.mxu0 0
        %1084 = vmatmul.mubr.bf16.gmra.mrb[0].mxu0 %v866
        %v1085 = vpop.f32.mrb[0].mxu0
        %v1086 = vadd.f32 0.0, %v1085
        %v1087 = vpop.f32.mrb[0].mxu0
        %v1088 = vpop.f32.mrb[0].mxu0
        %v1089 = vadd.f32 0.0, %v1088
        %v1090 = vpop.f32.mrb[0].mxu0
        %1091 = vdwg.mxu0
        %v1124 = vunpack.c.l.b16 %v351
        %v1125 = vunpack.c.l.b16 %v352
        %v1126 = vunpack.c.l.b16 %v353
        %v1127 = vunpack.c.l.b16 %v354
        %v1128 = vunpack.c.l.b16 %v355
        %v1129 = vunpack.c.l.b16 %v356
        %v1130 = vunpack.c.l.b16 %v357
        %v1131 = vunpack.c.l.b16 %v358
        %v1132 = vunpack.c.l.b16 %v359
        %v1133 = vunpack.c.l.b16 %v360
        %v1134 = vunpack.c.l.b16 %v361
        %v1135 = vunpack.c.l.b16 %v362
        %v1136 = vunpack.c.l.b16 %v363
        %v1137 = vunpack.c.l.b16 %v364
        %v1138 = vunpack.c.l.b16 %v365
        %v1139 = vunpack.c.l.b16 %v366
        %v1140 = vunpack.c.l.b16 %v367
        %v1141 = vunpack.c.l.b16 %v368
        %v1142 = vunpack.c.l.b16 %v369
        %v1143 = vunpack.c.l.b16 %v370
        %v1144 = vunpack.c.l.b16 %v371
        %v1145 = vunpack.c.l.b16 %v372
        %v1146 = vunpack.c.l.b16 %v373
        %v1147 = vunpack.c.l.b16 %v374
        %v1148 = vunpack.c.l.b16 %v375
        %v1149 = vunpack.c.l.b16 %v376
        %v1150 = vunpack.c.l.b16 %v377
        %v1151 = vunpack.c.l.b16 %v378
        %v1152 = vunpack.c.l.b16 %v379
        %v1153 = vunpack.c.l.b16 %v380
        %v1154 = vunpack.c.l.b16 %v381
        %v1155 = vunpack.c.l.b16 %v382
        %v1156 = vpack.c.b16 %v1125, %v1124
        %v1157 = vpack.c.b16 %v1127, %v1126
        %v1158 = vpack.c.b16 %v1129, %v1128
        %v1159 = vpack.c.b16 %v1131, %v1130
        %v1160 = vpack.c.b16 %v1133, %v1132
        %v1161 = vpack.c.b16 %v1135, %v1134
        %v1162 = vpack.c.b16 %v1137, %v1136
        %v1163 = vpack.c.b16 %v1139, %v1138
        %v1164 = vpack.c.b16 %v1141, %v1140
        %v1165 = vpack.c.b16 %v1143, %v1142
        %v1166 = vpack.c.b16 %v1145, %v1144
        %v1167 = vpack.c.b16 %v1147, %v1146
        %v1168 = vpack.c.b16 %v1149, %v1148
        %v1169 = vpack.c.b16 %v1151, %v1150
        %v1170 = vpack.c.b16 %v1153, %v1152
        %v1171 = vpack.c.b16 %v1155, %v1154
        %v1204 = vunpack.c.l.b16 %v383
        %v1205 = vunpack.c.l.b16 %v384
        %v1206 = vunpack.c.l.b16 %v385
        %v1207 = vunpack.c.l.b16 %v386
        %v1208 = vunpack.c.l.b16 %v387
        %v1209 = vunpack.c.l.b16 %v388
        %v1210 = vunpack.c.l.b16 %v389
        %v1211 = vunpack.c.l.b16 %v390
        %v1212 = vunpack.c.l.b16 %v391
        %v1213 = vunpack.c.l.b16 %v392
        %v1214 = vunpack.c.l.b16 %v393
        %v1215 = vunpack.c.l.b16 %v394
        %v1216 = vunpack.c.l.b16 %v395
        %v1217 = vunpack.c.l.b16 %v396
        %v1218 = vunpack.c.l.b16 %v397
        %v1219 = vunpack.c.l.b16 %v398
        %v1220 = vpack.c.b16 %v1205, %v1204
        %v1221 = vpack.c.b16 %v1207, %v1206
        %v1222 = vpack.c.b16 %v1209, %v1208
        %v1223 = vpack.c.b16 %v1211, %v1210
        %v1224 = vpack.c.b16 %v1213, %v1212
        %v1225 = vpack.c.b16 %v1215, %v1214
        %v1226 = vpack.c.b16 %v1217, %v1216
        %v1227 = vpack.c.b16 %v1219, %v1218
        %1236 = vmatprep.subr.bf16.mxu0 0
        %1237 = vmatpush1.bf16.msra.mxu0 %v1220
        %1238 = vmatprep.subr.bf16.mxu0 0
        %1239 = vmatpush1.bf16.msra.mxu0 %v1221
        %1240 = vmatprep.subr.bf16.mxu0 0
        %1241 = vmatpush1.bf16.msra.mxu0 %v1222
        %1242 = vmatprep.subr.bf16.mxu0 0
        %1243 = vmatpush1.bf16.msra.mxu0 %v1223
        %1244 = vmatprep.subr.bf16.mxu0 0
        %1245 = vmatpush1.bf16.msra.mxu0 %v1224
        %1246 = vmatprep.subr.bf16.mxu0 0
        %1247 = vmatpush1.bf16.msra.mxu0 %v1225
        %1248 = vmatprep.subr.bf16.mxu0 0
        %1249 = vmatpush1.bf16.msra.mxu0 %v1226
        %1250 = vmatprep.subr.bf16.mxu0 0
        %1251 = vmatpush1.bf16.msra.mxu0 %v1227
        %1252 = vmatprep.subr.bf16.mxu0 0
        %1253 = vmatpush1.bf16.msra.mxu0 0
        %1254 = vmatprep.subr.bf16.mxu0 0
        %1255 = vmatpush1.bf16.msra.mxu0 0
        %1256 = vmatprep.subr.bf16.mxu0 0
        %1257 = vmatpush1.bf16.msra.mxu0 0
        %1258 = vmatprep.subr.bf16.mxu0 0
        %1259 = vmatpush1.bf16.msra.mxu0 0
        %1260 = vmatprep.subr.bf16.mxu0 0
        %1261 = vmatpush1.bf16.msra.mxu0 0
        %1262 = vmatprep.subr.bf16.mxu0 0
        %1263 = vmatpush1.bf16.msra.mxu0 0
        %1264 = vmatprep.subr.bf16.mxu0 0
        %1265 = vmatpush1.bf16.msra.mxu0 0
        %1266 = vmatprep.subr.bf16.mxu0 0
        %1267 = vmatpush1.bf16.msra.mxu0 0
        %1268 = vmatprep.mubr.bf16.mxu0 0
        %1269 = vmatmul.mubr.bf16.gmra.mrb[0].mxu0 %v1156
        %v1270 = vpop.f32.mrb[0].mxu0
        %v1271 = vadd.f32 %v966, %v1270
        %v1272 = vpop.f32.mrb[0].mxu0
        %v1273 = vpop.f32.mrb[0].mxu0
        %v1274 = vadd.f32 %v969, %v1273
        %v1275 = vpop.f32.mrb[0].mxu0
        %1276 = vmatprep.mubr.bf16.mxu0 0
        %1277 = vmatmul.mubr.bf16.gmra.mrb[0].mxu0 %v1157
        %v1278 = vpop.f32.mrb[0].mxu0
        %v1279 = vadd.f32 %v974, %v1278
        %v1280 = vpop.f32.mrb[0].mxu0
        %v1281 = vpop.f32.mrb[0].mxu0
        %v1282 = vadd.f32 %v977, %v1281
        %v1283 = vpop.f32.mrb[0].mxu0
        %1284 = vmatprep.mubr.bf16.mxu0 0
        %1285 = vmatmul.mubr.bf16.gmra.mrb[0].mxu0 %v1158
        %v1286 = vpop.f32.mrb[0].mxu0
        %v1287 = vadd.f32 %v982, %v1286
        %v1288 = vpop.f32.mrb[0].mxu0
        %v1289 = vpop.f32.mrb[0].mxu0
        %v1290 = vadd.f32 %v985, %v1289
        %v1291 = vpop.f32.mrb[0].mxu0
        %1292 = vmatprep.mubr.bf16.mxu0 0
        %1293 = vmatmul.mubr.bf16.gmra.mrb[0].mxu0 %v1159
        %v1294 = vpop.f32.mrb[0].mxu0
        %v1295 = vadd.f32 %v990, %v1294
        %v1296 = vpop.f32.mrb[0].mxu0
        %v1297 = vpop.f32.mrb[0].mxu0
        %v1298 = vadd.f32 %v993, %v1297
        %v1299 = vpop.f32.mrb[0].mxu0
        %1300 = vmatprep.mubr.bf16.mxu0 0
        %1301 = vmatmul.mubr.bf16.gmra.mrb[0].mxu0 %v1160
        %v1302 = vpop.f32.mrb[0].mxu0
        %v1303 = vadd.f32 %v998, %v1302
        %v1304 = vpop.f32.mrb[0].mxu0
        %v1305 = vpop.f32.mrb[0].mxu0
        %v1306 = vadd.f32 %v1001, %v1305
        %v1307 = vpop.f32.mrb[0].mxu0
        %1308 = vmatprep.mubr.bf16.mxu0 0
        %1309 = vmatmul.mubr.bf16.gmra.mrb[0].mxu0 %v1161
        %v1310 = vpop.f32.mrb[0].mxu0
        %v1311 = vadd.f32 %v1006, %v1310
        %v1312 = vpop.f32.mrb[0].mxu0
        %v1313 = vpop.f32.mrb[0].mxu0
        %v1314 = vadd.f32 %v1009, %v1313
        %v1315 = vpop.f32.mrb[0].mxu0
        %1316 = vmatprep.mubr.bf16.mxu0 0
        %1317 = vmatmul.mubr.bf16.gmra.mrb[0].mxu0 %v1162
        %v1318 = vpop.f32.mrb[0].mxu0
        %v1319 = vadd.f32 %v1014, %v1318
        %v1320 = vpop.f32.mrb[0].mxu0
        %v1321 = vpop.f32.mrb[0].mxu0
        %v1322 = vadd.f32 %v1017, %v1321
        %v1323 = vpop.f32.mrb[0].mxu0
        %1324 = vmatprep.mubr.bf16.mxu0 0
        %1325 = vmatmul.mubr.bf16.gmra.mrb[0].mxu0 %v1163
        %v1326 = vpop.f32.mrb[0].mxu0
        %v1327 = vadd.f32 %v1022, %v1326
        %v1328 = vpop.f32.mrb[0].mxu0
        %v1329 = vpop.f32.mrb[0].mxu0
        %v1330 = vadd.f32 %v1025, %v1329
        %v1331 = vpop.f32.mrb[0].mxu0
        %1332 = vmatprep.mubr.bf16.mxu0 0
        %1333 = vmatmul.mubr.bf16.gmra.mrb[0].mxu0 %v1164
        %v1334 = vpop.f32.mrb[0].mxu0
        %v1335 = vadd.f32 %v1030, %v1334
        %v1336 = vpop.f32.mrb[0].mxu0
        %v1337 = vpop.f32.mrb[0].mxu0
        %v1338 = vadd.f32 %v1033, %v1337
        %v1339 = vpop.f32.mrb[0].mxu0
        %1340 = vmatprep.mubr.bf16.mxu0 0
        %1341 = vmatmul.mubr.bf16.gmra.mrb[0].mxu0 %v1165
        %v1342 = vpop.f32.mrb[0].mxu0
        %v1343 = vadd.f32 %v1038, %v1342
        %v1344 = vpop.f32.mrb[0].mxu0
        %v1345 = vpop.f32.mrb[0].mxu0
        %v1346 = vadd.f32 %v1041, %v1345
        %v1347 = vpop.f32.mrb[0].mxu0
        %1348 = vmatprep.mubr.bf16.mxu0 0
        %1349 = vmatmul.mubr.bf16.gmra.mrb[0].mxu0 %v1166
        %v1350 = vpop.f32.mrb[0].mxu0
        %v1351 = vadd.f32 %v1046, %v1350
        %v1352 = vpop.f32.mrb[0].mxu0
        %v1353 = vpop.f32.mrb[0].mxu0
        %v1354 = vadd.f32 %v1049, %v1353
        %v1355 = vpop.f32.mrb[0].mxu0
        %1356 = vmatprep.mubr.bf16.mxu0 0
        %1357 = vmatmul.mubr.bf16.gmra.mrb[0].mxu0 %v1167
        %v1358 = vpop.f32.mrb[0].mxu0
        %v1359 = vadd.f32 %v1054, %v1358
        %v1360 = vpop.f32.mrb[0].mxu0
        %v1361 = vpop.f32.mrb[0].mxu0
        %v1362 = vadd.f32 %v1057, %v1361
        %v1363 = vpop.f32.mrb[0].mxu0
        %1364 = vmatprep.mubr.bf16.mxu0 0
        %1365 = vmatmul.mubr.bf16.gmra.mrb[0].mxu0 %v1168
        %v1366 = vpop.f32.mrb[0].mxu0
        %v1367 = vadd.f32 %v1062, %v1366
        %v1368 = vpop.f32.mrb[0].mxu0
        %v1369 = vpop.f32.mrb[0].mxu0
        %v1370 = vadd.f32 %v1065, %v1369
        %v1371 = vpop.f32.mrb[0].mxu0
        %1372 = vmatprep.mubr.bf16.mxu0 0
        %1373 = vmatmul.mubr.bf16.gmra.mrb[0].mxu0 %v1169
        %v1374 = vpop.f32.mrb[0].mxu0
        %v1375 = vadd.f32 %v1070, %v1374
        %v1376 = vpop.f32.mrb[0].mxu0
        %v1377 = vpop.f32.mrb[0].mxu0
        %v1378 = vadd.f32 %v1073, %v1377
        %v1379 = vpop.f32.mrb[0].mxu0
        %1380 = vmatprep.mubr.bf16.mxu0 0
        %1381 = vmatmul.mubr.bf16.gmra.mrb[0].mxu0 %v1170
        %v1382 = vpop.f32.mrb[0].mxu0
        %v1383 = vadd.f32 %v1078, %v1382
        %v1384 = vpop.f32.mrb[0].mxu0
        %v1385 = vpop.f32.mrb[0].mxu0
        %v1386 = vadd.f32 %v1081, %v1385
        %v1387 = vpop.f32.mrb[0].mxu0
        %1388 = vmatprep.mubr.bf16.mxu0 0
        %1389 = vmatmul.mubr.bf16.gmra.mrb[0].mxu0 %v1171
        %v1390 = vpop.f32.mrb[0].mxu0
        %v1391 = vadd.f32 %v1086, %v1390
        %v1392 = vpop.f32.mrb[0].mxu0
        %v1393 = vpop.f32.mrb[0].mxu0
        %v1394 = vadd.f32 %v1089, %v1393
        %v1395 = vpop.f32.mrb[0].mxu0
        %1396 = vdwg.mxu0
        %v1397 = vld [vmem:[%s291] sm:$0xe]
        %v1398 = vld [vmem:[%s291 + $0xc] sm:$0xe]
        %v1399 = vld [vmem:[%s291 + $0x18] sm:$0xe]
        %v1400 = vld [vmem:[%s291 + $0x24] sm:$0xe]
        %v1401 = vld [vmem:[%s291 + $0x30] sm:$0xe]
        %v1402 = vld [vmem:[%s291 + $0x3c] sm:$0xe]
        %v1403 = vld [vmem:[%s291 + $0x48] sm:$0xe]
        %v1404 = vld [vmem:[%s291 + $0x54] sm:$0xe]
        %v1405 = vld [vmem:[%s291 + $0x60] sm:$0xe]
        %v1406 = vld [vmem:[%s291 + $0x6c] sm:$0xe]
        %v1407 = vld [vmem:[%s291 + $0x78] sm:$0xe]
        %v1408 = vld [vmem:[%s291 + $0x84] sm:$0xe]
        %v1409 = vld [vmem:[%s291 + $0x90] sm:$0xe]
        %v1410 = vld [vmem:[%s291 + $0x9c] sm:$0xe]
        %v1411 = vld [vmem:[%s291 + $0xa8] sm:$0xe]
        %v1412 = vld [vmem:[%s291 + $0xb4] sm:$0xe]
        %vm1445 = vcmask 1042432
        %vm1446 = vcmask 1046532
        %vm1447 = vmor %vm1445, %vm1446
        %v1448 = vrot.slane %v1397, 5
        %v1449 = vrot.slane %v1448, 4
        %v1450 = vrot.slane %v352, 5
        %v1451 = vsel %vm1447, %v1449, %v1450
        %v1452 = vrot.slane %v1450, 4
        %v1453 = vrot.slane %v399, 5
        %v1454 = vsel %vm1447, %v1452, %v1453
        %v1455 = vrot.slane %v1398, 5
        %v1456 = vrot.slane %v1455, 4
        %v1457 = vrot.slane %v354, 5
        %v1458 = vsel %vm1447, %v1456, %v1457
        %v1459 = vrot.slane %v1457, 4
        %v1460 = vrot.slane %v400, 5
        %v1461 = vsel %vm1447, %v1459, %v1460
        %v1462 = vrot.slane %v1399, 5
        %v1463 = vrot.slane %v1462, 4
        %v1464 = vrot.slane %v356, 5
        %v1465 = vsel %vm1447, %v1463, %v1464
        %v1466 = vrot.slane %v1464, 4
        %v1467 = vrot.slane %v401, 5
        %v1468 = vsel %vm1447, %v1466, %v1467
        %v1469 = vrot.slane %v1400, 5
        %v1470 = vrot.slane %v1469, 4
        %v1471 = vrot.slane %v358, 5
        %v1472 = vsel %vm1447, %v1470, %v1471
        %v1473 = vrot.slane %v1471, 4
        %v1474 = vrot.slane %v402, 5
        %v1475 = vsel %vm1447, %v1473, %v1474
        %v1476 = vrot.slane %v1401, 5
        %v1477 = vrot.slane %v1476, 4
        %v1478 = vrot.slane %v360, 5
        %v1479 = vsel %vm1447, %v1477, %v1478
        %v1480 = vrot.slane %v1478, 4
        %v1481 = vrot.slane %v403, 5
        %v1482 = vsel %vm1447, %v1480, %v1481
        %v1483 = vrot.slane %v1402, 5
        %v1484 = vrot.slane %v1483, 4
        %v1485 = vrot.slane %v362, 5
        %v1486 = vsel %vm1447, %v1484, %v1485
        %v1487 = vrot.slane %v1485, 4
        %v1488 = vrot.slane %v404, 5
        %v1489 = vsel %vm1447, %v1487, %v1488
        %v1490 = vrot.slane %v1403, 5
        %v1491 = vrot.slane %v1490, 4
        %v1492 = vrot.slane %v364, 5
        %v1493 = vsel %vm1447, %v1491, %v1492
        %v1494 = vrot.slane %v1492, 4
        %v1495 = vrot.slane %v405, 5
        %v1496 = vsel %vm1447, %v1494, %v1495
        %v1497 = vrot.slane %v1404, 5
        %v1498 = vrot.slane %v1497, 4
        %v1499 = vrot.slane %v366, 5
        %v1500 = vsel %vm1447, %v1498, %v1499
        %v1501 = vrot.slane %v1499, 4
        %v1502 = vrot.slane %v406, 5
        %v1503 = vsel %vm1447, %v1501, %v1502
        %v1504 = vrot.slane %v1405, 5
        %v1505 = vrot.slane %v1504, 4
        %v1506 = vrot.slane %v368, 5
        %v1507 = vsel %vm1447, %v1505, %v1506
        %v1508 = vrot.slane %v1506, 4
        %v1509 = vrot.slane %v407, 5
        %v1510 = vsel %vm1447, %v1508, %v1509
        %v1511 = vrot.slane %v1406, 5
        %v1512 = vrot.slane %v1511, 4
        %v1513 = vrot.slane %v370, 5
        %v1514 = vsel %vm1447, %v1512, %v1513
        %v1515 = vrot.slane %v1513, 4
        %v1516 = vrot.slane %v408, 5
        %v1517 = vsel %vm1447, %v1515, %v1516
        %v1518 = vrot.slane %v1407, 5
        %v1519 = vrot.slane %v1518, 4
        %v1520 = vrot.slane %v372, 5
        %v1521 = vsel %vm1447, %v1519, %v1520
        %v1522 = vrot.slane %v1520, 4
        %v1523 = vrot.slane %v409, 5
        %v1524 = vsel %vm1447, %v1522, %v1523
        %v1525 = vrot.slane %v1408, 5
        %v1526 = vrot.slane %v1525, 4
        %v1527 = vrot.slane %v374, 5
        %v1528 = vsel %vm1447, %v1526, %v1527
        %v1529 = vrot.slane %v1527, 4
        %v1530 = vrot.slane %v410, 5
        %v1531 = vsel %vm1447, %v1529, %v1530
        %v1532 = vrot.slane %v1409, 5
        %v1533 = vrot.slane %v1532, 4
        %v1534 = vrot.slane %v376, 5
        %v1535 = vsel %vm1447, %v1533, %v1534
        %v1536 = vrot.slane %v1534, 4
        %v1537 = vrot.slane %v411, 5
        %v1538 = vsel %vm1447, %v1536, %v1537
        %v1539 = vrot.slane %v1410, 5
        %v1540 = vrot.slane %v1539, 4
        %v1541 = vrot.slane %v378, 5
        %v1542 = vsel %vm1447, %v1540, %v1541
        %v1543 = vrot.slane %v1541, 4
        %v1544 = vrot.slane %v412, 5
        %v1545 = vsel %vm1447, %v1543, %v1544
        %v1546 = vrot.slane %v1411, 5
        %v1547 = vrot.slane %v1546, 4
        %v1548 = vrot.slane %v380, 5
        %v1549 = vsel %vm1447, %v1547, %v1548
        %v1550 = vrot.slane %v1548, 4
        %v1551 = vrot.slane %v413, 5
        %v1552 = vsel %vm1447, %v1550, %v1551
        %v1553 = vrot.slane %v1412, 5
        %v1554 = vrot.slane %v1553, 4
        %v1555 = vrot.slane %v382, 5
        %v1556 = vsel %vm1447, %v1554, %v1555
        %v1557 = vrot.slane %v1555, 4
        %v1558 = vrot.slane %v414, 5
        %v1559 = vsel %vm1447, %v1557, %v1558
        %s1560 = scalar_lea.vmem %s1, 128
        %v1561 = vld [vmem:[%s1560] sm:$0xf]
        %v1562 = vld [vmem:[%s1560 + $0x4] sm:$0xf]
        %v1563 = vld [vmem:[%s1560 + $0x8] sm:$0xf]
        %v1564 = vld [vmem:[%s1560 + $0xc] sm:$0xf]
        %v1565 = vld [vmem:[%s1560 + $0x10] sm:$0xf]
        %v1566 = vld [vmem:[%s1560 + $0x14] sm:$0xf]
        %v1567 = vld [vmem:[%s1560 + $0x18] sm:$0xf]
        %v1568 = vld [vmem:[%s1560 + $0x1c] sm:$0xf]
        %v1569 = vld [vmem:[%s1560 + $0x20] sm:$0xf]
        %v1570 = vld [vmem:[%s1560 + $0x24] sm:$0xf]
        %v1571 = vld [vmem:[%s1560 + $0x28] sm:$0xf]
        %v1572 = vld [vmem:[%s1560 + $0x2c] sm:$0xf]
        %v1573 = vld [vmem:[%s1560 + $0x30] sm:$0xf]
        %v1574 = vld [vmem:[%s1560 + $0x34] sm:$0xf]
        %v1575 = vld [vmem:[%s1560 + $0x38] sm:$0xf]
        %v1576 = vld [vmem:[%s1560 + $0x3c] sm:$0xf]
        %v1577 = vunpack.c.l.b16 %v1451
        %v1578 = vunpack.c.l.b16 %v1454
        %v1579 = vunpack.c.l.b16 %v1458
        %v1580 = vunpack.c.l.b16 %v1461
        %v1581 = vunpack.c.l.b16 %v1465
        %v1582 = vunpack.c.l.b16 %v1468
        %v1583 = vunpack.c.l.b16 %v1472
        %v1584 = vunpack.c.l.b16 %v1475
        %v1585 = vunpack.c.l.b16 %v1479
        %v1586 = vunpack.c.l.b16 %v1482
        %v1587 = vunpack.c.l.b16 %v1486
        %v1588 = vunpack.c.l.b16 %v1489
        %v1589 = vunpack.c.l.b16 %v1493
        %v1590 = vunpack.c.l.b16 %v1496
        %v1591 = vunpack.c.l.b16 %v1500
        %v1592 = vunpack.c.l.b16 %v1503
        %v1593 = vunpack.c.l.b16 %v1507
        %v1594 = vunpack.c.l.b16 %v1510
        %v1595 = vunpack.c.l.b16 %v1514
        %v1596 = vunpack.c.l.b16 %v1517
        %v1597 = vunpack.c.l.b16 %v1521
        %v1598 = vunpack.c.l.b16 %v1524
        %v1599 = vunpack.c.l.b16 %v1528
        %v1600 = vunpack.c.l.b16 %v1531
        %v1601 = vunpack.c.l.b16 %v1535
        %v1602 = vunpack.c.l.b16 %v1538
        %v1603 = vunpack.c.l.b16 %v1542
        %v1604 = vunpack.c.l.b16 %v1545
        %v1605 = vunpack.c.l.b16 %v1549
        %v1606 = vunpack.c.l.b16 %v1552
        %v1607 = vunpack.c.l.b16 %v1556
        %v1608 = vunpack.c.l.b16 %v1559
        %v1609 = vpack.c.b16 %v1578, %v1577
        %v1610 = vpack.c.b16 %v1580, %v1579
        %v1611 = vpack.c.b16 %v1582, %v1581
        %v1612 = vpack.c.b16 %v1584, %v1583
        %v1613 = vpack.c.b16 %v1586, %v1585
        %v1614 = vpack.c.b16 %v1588, %v1587
        %v1615 = vpack.c.b16 %v1590, %v1589
        %v1616 = vpack.c.b16 %v1592, %v1591
        %v1617 = vpack.c.b16 %v1594, %v1593
        %v1618 = vpack.c.b16 %v1596, %v1595
        %v1619 = vpack.c.b16 %v1598, %v1597
        %v1620 = vpack.c.b16 %v1600, %v1599
        %v1621 = vpack.c.b16 %v1602, %v1601
        %v1622 = vpack.c.b16 %v1604, %v1603
        %v1623 = vpack.c.b16 %v1606, %v1605
        %v1624 = vpack.c.b16 %v1608, %v1607
        %v1657 = vunpack.c.l.b16 %v1561
        %v1658 = vunpack.c.l.b16 %v1562
        %v1659 = vunpack.c.l.b16 %v1563
        %v1660 = vunpack.c.l.b16 %v1564
        %v1661 = vunpack.c.l.b16 %v1565
        %v1662 = vunpack.c.l.b16 %v1566
        %v1663 = vunpack.c.l.b16 %v1567
        %v1664 = vunpack.c.l.b16 %v1568
        %v1665 = vunpack.c.l.b16 %v1569
        %v1666 = vunpack.c.l.b16 %v1570
        %v1667 = vunpack.c.l.b16 %v1571
        %v1668 = vunpack.c.l.b16 %v1572
        %v1669 = vunpack.c.l.b16 %v1573
        %v1670 = vunpack.c.l.b16 %v1574
        %v1671 = vunpack.c.l.b16 %v1575
        %v1672 = vunpack.c.l.b16 %v1576
        %v1673 = vpack.c.b16 %v1658, %v1657
        %v1674 = vpack.c.b16 %v1660, %v1659
        %v1675 = vpack.c.b16 %v1662, %v1661
        %v1676 = vpack.c.b16 %v1664, %v1663
        %v1677 = vpack.c.b16 %v1666, %v1665
        %v1678 = vpack.c.b16 %v1668, %v1667
        %v1679 = vpack.c.b16 %v1670, %v1669
        %v1680 = vpack.c.b16 %v1672, %v1671
        %1689 = vmatprep.subr.bf16.mxu0 0
        %1690 = vmatpush1.bf16.msra.mxu0 %v1673
        %1691 = vmatprep.subr.bf16.mxu0 0
        %1692 = vmatpush1.bf16.msra.mxu0 %v1674
        %1693 = vmatprep.subr.bf16.mxu0 0
        %1694 = vmatpush1.bf16.msra.mxu0 %v1675
        %1695 = vmatprep.subr.bf16.mxu0 0
        %1696 = vmatpush1.bf16.msra.mxu0 %v1676
        %1697 = vmatprep.subr.bf16.mxu0 0
        %1698 = vmatpush1.bf16.msra.mxu0 %v1677
        %1699 = vmatprep.subr.bf16.mxu0 0
        %1700 = vmatpush1.bf16.msra.mxu0 %v1678
        %1701 = vmatprep.subr.bf16.mxu0 0
        %1702 = vmatpush1.bf16.msra.mxu0 %v1679
        %1703 = vmatprep.subr.bf16.mxu0 0
        %1704 = vmatpush1.bf16.msra.mxu0 %v1680
        %1705 = vmatprep.subr.bf16.mxu0 0
        %1706 = vmatpush1.bf16.msra.mxu0 0
        %1707 = vmatprep.subr.bf16.mxu0 0
        %1708 = vmatpush1.bf16.msra.mxu0 0
        %1709 = vmatprep.subr.bf16.mxu0 0
        %1710 = vmatpush1.bf16.msra.mxu0 0
        %1711 = vmatprep.subr.bf16.mxu0 0
        %1712 = vmatpush1.bf16.msra.mxu0 0
        %1713 = vmatprep.subr.bf16.mxu0 0
        %1714 = vmatpush1.bf16.msra.mxu0 0
        %1715 = vmatprep.subr.bf16.mxu0 0
        %1716 = vmatpush1.bf16.msra.mxu0 0
        %1717 = vmatprep.subr.bf16.mxu0 0
        %1718 = vmatpush1.bf16.msra.mxu0 0
        %1719 = vmatprep.subr.bf16.mxu0 0
        %1720 = vmatpush1.bf16.msra.mxu0 0
        %1721 = vmatprep.mubr.bf16.mxu0 0
        %1722 = vmatmul.mubr.bf16.gmra.mrb[0].mxu0 %v1609
        %v1723 = vpop.f32.mrb[0].mxu0
        %v1724 = vadd.f32 0.0, %v1723
        %v1725 = vpop.f32.mrb[0].mxu0
        %v1726 = vpop.f32.mrb[0].mxu0
        %v1727 = vadd.f32 0.0, %v1726
        %v1728 = vpop.f32.mrb[0].mxu0
        %1729 = vmatprep.mubr.bf16.mxu0 0
        %1730 = vmatmul.mubr.bf16.gmra.mrb[0].mxu0 %v1610
        %v1731 = vpop.f32.mrb[0].mxu0
        %v1732 = vadd.f32 0.0, %v1731
        %v1733 = vpop.f32.mrb[0].mxu0
        %v1734 = vpop.f32.mrb[0].mxu0
        %v1735 = vadd.f32 0.0, %v1734
        %v1736 = vpop.f32.mrb[0].mxu0
        %1737 = vmatprep.mubr.bf16.mxu0 0
        %1738 = vmatmul.mubr.bf16.gmra.mrb[0].mxu0 %v1611
        %v1739 = vpop.f32.mrb[0].mxu0
        %v1740 = vadd.f32 0.0, %v1739
        %v1741 = vpop.f32.mrb[0].mxu0
        %v1742 = vpop.f32.mrb[0].mxu0
        %v1743 = vadd.f32 0.0, %v1742
        %v1744 = vpop.f32.mrb[0].mxu0
        %1745 = vmatprep.mubr.bf16.mxu0 0
        %1746 = vmatmul.mubr.bf16.gmra.mrb[0].mxu0 %v1612
        %v1747 = vpop.f32.mrb[0].mxu0
        %v1748 = vadd.f32 0.0, %v1747
        %v1749 = vpop.f32.mrb[0].mxu0
        %v1750 = vpop.f32.mrb[0].mxu0
        %v1751 = vadd.f32 0.0, %v1750
        %v1752 = vpop.f32.mrb[0].mxu0
        %1753 = vmatprep.mubr.bf16.mxu0 0
        %1754 = vmatmul.mubr.bf16.gmra.mrb[0].mxu0 %v1613
        %v1755 = vpop.f32.mrb[0].mxu0
        %v1756 = vadd.f32 0.0, %v1755
        %v1757 = vpop.f32.mrb[0].mxu0
        %v1758 = vpop.f32.mrb[0].mxu0
        %v1759 = vadd.f32 0.0, %v1758
        %v1760 = vpop.f32.mrb[0].mxu0
        %1761 = vmatprep.mubr.bf16.mxu0 0
        %1762 = vmatmul.mubr.bf16.gmra.mrb[0].mxu0 %v1614
        %v1763 = vpop.f32.mrb[0].mxu0
        %v1764 = vadd.f32 0.0, %v1763
        %v1765 = vpop.f32.mrb[0].mxu0
        %v1766 = vpop.f32.mrb[0].mxu0
        %v1767 = vadd.f32 0.0, %v1766
        %v1768 = vpop.f32.mrb[0].mxu0
        %1769 = vmatprep.mubr.bf16.mxu0 0
        %1770 = vmatmul.mubr.bf16.gmra.mrb[0].mxu0 %v1615
        %v1771 = vpop.f32.mrb[0].mxu0
        %v1772 = vadd.f32 0.0, %v1771
        %v1773 = vpop.f32.mrb[0].mxu0
        %v1774 = vpop.f32.mrb[0].mxu0
        %v1775 = vadd.f32 0.0, %v1774
        %v1776 = vpop.f32.mrb[0].mxu0
        %1777 = vmatprep.mubr.bf16.mxu0 0
        %1778 = vmatmul.mubr.bf16.gmra.mrb[0].mxu0 %v1616
        %v1779 = vpop.f32.mrb[0].mxu0
        %v1780 = vadd.f32 0.0, %v1779
        %v1781 = vpop.f32.mrb[0].mxu0
        %v1782 = vpop.f32.mrb[0].mxu0
        %v1783 = vadd.f32 0.0, %v1782
        %v1784 = vpop.f32.mrb[0].mxu0
        %1785 = vmatprep.mubr.bf16.mxu0 0
        %1786 = vmatmul.mubr.bf16.gmra.mrb[0].mxu0 %v1617
        %v1787 = vpop.f32.mrb[0].mxu0
        %v1788 = vadd.f32 0.0, %v1787
        %v1789 = vpop.f32.mrb[0].mxu0
        %v1790 = vpop.f32.mrb[0].mxu0
        %v1791 = vadd.f32 0.0, %v1790
        %v1792 = vpop.f32.mrb[0].mxu0
        %1793 = vmatprep.mubr.bf16.mxu0 0
        %1794 = vmatmul.mubr.bf16.gmra.mrb[0].mxu0 %v1618
        %v1795 = vpop.f32.mrb[0].mxu0
        %v1796 = vadd.f32 0.0, %v1795
        %v1797 = vpop.f32.mrb[0].mxu0
        %v1798 = vpop.f32.mrb[0].mxu0
        %v1799 = vadd.f32 0.0, %v1798
        %v1800 = vpop.f32.mrb[0].mxu0
        %1801 = vmatprep.mubr.bf16.mxu0 0
        %1802 = vmatmul.mubr.bf16.gmra.mrb[0].mxu0 %v1619
        %v1803 = vpop.f32.mrb[0].mxu0
        %v1804 = vadd.f32 0.0, %v1803
        %v1805 = vpop.f32.mrb[0].mxu0
        %v1806 = vpop.f32.mrb[0].mxu0
        %v1807 = vadd.f32 0.0, %v1806
        %v1808 = vpop.f32.mrb[0].mxu0
        %1809 = vmatprep.mubr.bf16.mxu0 0
        %1810 = vmatmul.mubr.bf16.gmra.mrb[0].mxu0 %v1620
        %v1811 = vpop.f32.mrb[0].mxu0
        %v1812 = vadd.f32 0.0, %v1811
        %v1813 = vpop.f32.mrb[0].mxu0
        %v1814 = vpop.f32.mrb[0].mxu0
        %v1815 = vadd.f32 0.0, %v1814
        %v1816 = vpop.f32.mrb[0].mxu0
        %1817 = vmatprep.mubr.bf16.mxu0 0
        %1818 = vmatmul.mubr.bf16.gmra.mrb[0].mxu0 %v1621
        %v1819 = vpop.f32.mrb[0].mxu0
        %v1820 = vadd.f32 0.0, %v1819
        %v1821 = vpop.f32.mrb[0].mxu0
        %v1822 = vpop.f32.mrb[0].mxu0
        %v1823 = vadd.f32 0.0, %v1822
        %v1824 = vpop.f32.mrb[0].mxu0
        %1825 = vmatprep.mubr.bf16.mxu0 0
        %1826 = vmatmul.mubr.bf16.gmra.mrb[0].mxu0 %v1622
        %v1827 = vpop.f32.mrb[0].mxu0
        %v1828 = vadd.f32 0.0, %v1827
        %v1829 = vpop.f32.mrb[0].mxu0
        %v1830 = vpop.f32.mrb[0].mxu0
        %v1831 = vadd.f32 0.0, %v1830
        %v1832 = vpop.f32.mrb[0].mxu0
        %1833 = vmatprep.mubr.bf16.mxu0 0
        %1834 = vmatmul.mubr.bf16.gmra.mrb[0].mxu0 %v1623
        %v1835 = vpop.f32.mrb[0].mxu0
        %v1836 = vadd.f32 0.0, %v1835
        %v1837 = vpop.f32.mrb[0].mxu0
        %v1838 = vpop.f32.mrb[0].mxu0
        %v1839 = vadd.f32 0.0, %v1838
        %v1840 = vpop.f32.mrb[0].mxu0
        %1841 = vmatprep.mubr.bf16.mxu0 0
        %1842 = vmatmul.mubr.bf16.gmra.mrb[0].mxu0 %v1624
        %v1843 = vpop.f32.mrb[0].mxu0
        %v1844 = vadd.f32 0.0, %v1843
        %v1845 = vpop.f32.mrb[0].mxu0
        %v1846 = vpop.f32.mrb[0].mxu0
        %v1847 = vadd.f32 0.0, %v1846
        %v1848 = vpop.f32.mrb[0].mxu0
        %1849 = vdwg.mxu0
        %v1850 = vadd.f32 %v1271, %v1724
        %v1851 = vadd.f32 %v1274, %v1727
        %v1852 = vadd.f32 %v1279, %v1732
        %v1853 = vadd.f32 %v1282, %v1735
        %v1854 = vadd.f32 %v1287, %v1740
        %v1855 = vadd.f32 %v1290, %v1743
        %v1856 = vadd.f32 %v1295, %v1748
        %v1857 = vadd.f32 %v1298, %v1751
        %v1858 = vadd.f32 %v1303, %v1756
        %v1859 = vadd.f32 %v1306, %v1759
        %v1860 = vadd.f32 %v1311, %v1764
        %v1861 = vadd.f32 %v1314, %v1767
        %v1862 = vadd.f32 %v1319, %v1772
        %v1863 = vadd.f32 %v1322, %v1775
        %v1864 = vadd.f32 %v1327, %v1780
        %v1865 = vadd.f32 %v1330, %v1783
        %v1866 = vadd.f32 %v1335, %v1788
        %v1867 = vadd.f32 %v1338, %v1791
        %v1868 = vadd.f32 %v1343, %v1796
        %v1869 = vadd.f32 %v1346, %v1799
        %v1870 = vadd.f32 %v1351, %v1804
        %v1871 = vadd.f32 %v1354, %v1807
        %v1872 = vadd.f32 %v1359, %v1812
        %v1873 = vadd.f32 %v1362, %v1815
        %v1874 = vadd.f32 %v1367, %v1820
        %v1875 = vadd.f32 %v1370, %v1823
        %v1876 = vadd.f32 %v1375, %v1828
        %v1877 = vadd.f32 %v1378, %v1831
        %v1878 = vadd.f32 %v1383, %v1836
        %v1879 = vadd.f32 %v1386, %v1839
        %v1880 = vadd.f32 %v1391, %v1844
        %v1881 = vadd.f32 %v1394, %v1847
        %s1882 = scalar_lea.vmem %s291, 12
        %v1883 = vld [vmem:[%s1882] sm:$0xf]
        %v1884 = vld [vmem:[%s1882 + $0x4] sm:$0xf]
        %v1885 = vld [vmem:[%s1882 + $0xc] sm:$0xf]
        %v1886 = vld [vmem:[%s1882 + $0x10] sm:$0xf]
        %v1887 = vld [vmem:[%s1882 + $0x18] sm:$0xf]
        %v1888 = vld [vmem:[%s1882 + $0x1c] sm:$0xf]
        %v1889 = vld [vmem:[%s1882 + $0x24] sm:$0xf]
        %v1890 = vld [vmem:[%s1882 + $0x28] sm:$0xf]
        %v1891 = vld [vmem:[%s1882 + $0x30] sm:$0xf]
        %v1892 = vld [vmem:[%s1882 + $0x34] sm:$0xf]
        %v1893 = vld [vmem:[%s1882 + $0x3c] sm:$0xf]
        %v1894 = vld [vmem:[%s1882 + $0x40] sm:$0xf]
        %v1895 = vld [vmem:[%s1882 + $0x48] sm:$0xf]
        %v1896 = vld [vmem:[%s1882 + $0x4c] sm:$0xf]
        %v1897 = vld [vmem:[%s1882 + $0x54] sm:$0xf]
        %v1898 = vld [vmem:[%s1882 + $0x58] sm:$0xf]
        %v1899 = vld [vmem:[%s1882 + $0x60] sm:$0xf]
        %v1900 = vld [vmem:[%s1882 + $0x64] sm:$0xf]
        %v1901 = vld [vmem:[%s1882 + $0x6c] sm:$0xf]
        %v1902 = vld [vmem:[%s1882 + $0x70] sm:$0xf]
        %v1903 = vld [vmem:[%s1882 + $0x78] sm:$0xf]
        %v1904 = vld [vmem:[%s1882 + $0x7c] sm:$0xf]
        %v1905 = vld [vmem:[%s1882 + $0x84] sm:$0xf]
        %v1906 = vld [vmem:[%s1882 + $0x88] sm:$0xf]
        %v1907 = vld [vmem:[%s1882 + $0x90] sm:$0xf]
        %v1908 = vld [vmem:[%s1882 + $0x94] sm:$0xf]
        %v1909 = vld [vmem:[%s1882 + $0x9c] sm:$0xf]
        %v1910 = vld [vmem:[%s1882 + $0xa0] sm:$0xf]
        %v1911 = vld [vmem:[%s1882 + $0xa8] sm:$0xf]
        %v1912 = vld [vmem:[%s1882 + $0xac] sm:$0xf]
        %v1913 = vld [vmem:[%s1882 + $0xb4] sm:$0xf]
        %v1914 = vld [vmem:[%s1882 + $0xb8] sm:$0xf]
        %s1915 = scalar_lea.vmem %s1, 192
        %v1916 = vld [vmem:[%s1915] sm:$0xf]
        %v1917 = vld [vmem:[%s1915 + $0x4] sm:$0xf]
        %v1918 = vld [vmem:[%s1915 + $0x8] sm:$0xf]
        %v1919 = vld [vmem:[%s1915 + $0xc] sm:$0xf]
        %v1920 = vld [vmem:[%s1915 + $0x10] sm:$0xf]
        %v1921 = vld [vmem:[%s1915 + $0x14] sm:$0xf]
        %v1922 = vld [vmem:[%s1915 + $0x18] sm:$0xf]
        %v1923 = vld [vmem:[%s1915 + $0x1c] sm:$0xf]
        %v1924 = vld [vmem:[%s1915 + $0x20] sm:$0xf]
        %v1925 = vld [vmem:[%s1915 + $0x24] sm:$0xf]
        %v1926 = vld [vmem:[%s1915 + $0x28] sm:$0xf]
        %v1927 = vld [vmem:[%s1915 + $0x2c] sm:$0xf]
        %v1928 = vld [vmem:[%s1915 + $0x30] sm:$0xf]
        %v1929 = vld [vmem:[%s1915 + $0x34] sm:$0xf]
        %v1930 = vld [vmem:[%s1915 + $0x38] sm:$0xf]
        %v1931 = vld [vmem:[%s1915 + $0x3c] sm:$0xf]
        %v1964 = vunpack.c.l.b16 %v1883
        %v1965 = vunpack.c.l.b16 %v1884
        %v1966 = vunpack.c.l.b16 %v1885
        %v1967 = vunpack.c.l.b16 %v1886
        %v1968 = vunpack.c.l.b16 %v1887
        %v1969 = vunpack.c.l.b16 %v1888
        %v1970 = vunpack.c.l.b16 %v1889
        %v1971 = vunpack.c.l.b16 %v1890
        %v1972 = vunpack.c.l.b16 %v1891
        %v1973 = vunpack.c.l.b16 %v1892
        %v1974 = vunpack.c.l.b16 %v1893
        %v1975 = vunpack.c.l.b16 %v1894
        %v1976 = vunpack.c.l.b16 %v1895
        %v1977 = vunpack.c.l.b16 %v1896
        %v1978 = vunpack.c.l.b16 %v1897
        %v1979 = vunpack.c.l.b16 %v1898
        %v1980 = vunpack.c.l.b16 %v1899
        %v1981 = vunpack.c.l.b16 %v1900
        %v1982 = vunpack.c.l.b16 %v1901
        %v1983 = vunpack.c.l.b16 %v1902
        %v1984 = vunpack.c.l.b16 %v1903
        %v1985 = vunpack.c.l.b16 %v1904
        %v1986 = vunpack.c.l.b16 %v1905
        %v1987 = vunpack.c.l.b16 %v1906
        %v1988 = vunpack.c.l.b16 %v1907
        %v1989 = vunpack.c.l.b16 %v1908
        %v1990 = vunpack.c.l.b16 %v1909
        %v1991 = vunpack.c.l.b16 %v1910
        %v1992 = vunpack.c.l.b16 %v1911
        %v1993 = vunpack.c.l.b16 %v1912
        %v1994 = vunpack.c.l.b16 %v1913
        %v1995 = vunpack.c.l.b16 %v1914
        %v1996 = vpack.c.b16 %v1965, %v1964
        %v1997 = vpack.c.b16 %v1967, %v1966
        %v1998 = vpack.c.b16 %v1969, %v1968
        %v1999 = vpack.c.b16 %v1971, %v1970
        %v2000 = vpack.c.b16 %v1973, %v1972
        %v2001 = vpack.c.b16 %v1975, %v1974
        %v2002 = vpack.c.b16 %v1977, %v1976
        %v2003 = vpack.c.b16 %v1979, %v1978
        %v2004 = vpack.c.b16 %v1981, %v1980
        %v2005 = vpack.c.b16 %v1983, %v1982
        %v2006 = vpack.c.b16 %v1985, %v1984
        %v2007 = vpack.c.b16 %v1987, %v1986
        %v2008 = vpack.c.b16 %v1989, %v1988
        %v2009 = vpack.c.b16 %v1991, %v1990
        %v2010 = vpack.c.b16 %v1993, %v1992
        %v2011 = vpack.c.b16 %v1995, %v1994
        %v2044 = vunpack.c.l.b16 %v1916
        %v2045 = vunpack.c.l.b16 %v1917
        %v2046 = vunpack.c.l.b16 %v1918
        %v2047 = vunpack.c.l.b16 %v1919
        %v2048 = vunpack.c.l.b16 %v1920
        %v2049 = vunpack.c.l.b16 %v1921
        %v2050 = vunpack.c.l.b16 %v1922
        %v2051 = vunpack.c.l.b16 %v1923
        %v2052 = vunpack.c.l.b16 %v1924
        %v2053 = vunpack.c.l.b16 %v1925
        %v2054 = vunpack.c.l.b16 %v1926
        %v2055 = vunpack.c.l.b16 %v1927
        %v2056 = vunpack.c.l.b16 %v1928
        %v2057 = vunpack.c.l.b16 %v1929
        %v2058 = vunpack.c.l.b16 %v1930
        %v2059 = vunpack.c.l.b16 %v1931
        %v2060 = vpack.c.b16 %v2045, %v2044
        %v2061 = vpack.c.b16 %v2047, %v2046
        %v2062 = vpack.c.b16 %v2049, %v2048
        %v2063 = vpack.c.b16 %v2051, %v2050
        %v2064 = vpack.c.b16 %v2053, %v2052
        %v2065 = vpack.c.b16 %v2055, %v2054
        %v2066 = vpack.c.b16 %v2057, %v2056
        %v2067 = vpack.c.b16 %v2059, %v2058
        %2076 = vmatprep.subr.bf16.mxu0 0
        %2077 = vmatpush1.bf16.msra.mxu0 %v2060
        %2078 = vmatprep.subr.bf16.mxu0 0
        %2079 = vmatpush1.bf16.msra.mxu0 %v2061
        %2080 = vmatprep.subr.bf16.mxu0 0
        %2081 = vmatpush1.bf16.msra.mxu0 %v2062
        %2082 = vmatprep.subr.bf16.mxu0 0
        %2083 = vmatpush1.bf16.msra.mxu0 %v2063
        %2084 = vmatprep.subr.bf16.mxu0 0
        %2085 = vmatpush1.bf16.msra.mxu0 %v2064
        %2086 = vmatprep.subr.bf16.mxu0 0
        %2087 = vmatpush1.bf16.msra.mxu0 %v2065
        %2088 = vmatprep.subr.bf16.mxu0 0
        %2089 = vmatpush1.bf16.msra.mxu0 %v2066
        %2090 = vmatprep.subr.bf16.mxu0 0
        %2091 = vmatpush1.bf16.msra.mxu0 %v2067
        %2092 = vmatprep.subr.bf16.mxu0 0
        %2093 = vmatpush1.bf16.msra.mxu0 0
        %2094 = vmatprep.subr.bf16.mxu0 0
        %2095 = vmatpush1.bf16.msra.mxu0 0
        %2096 = vmatprep.subr.bf16.mxu0 0
        %2097 = vmatpush1.bf16.msra.mxu0 0
        %2098 = vmatprep.subr.bf16.mxu0 0
        %2099 = vmatpush1.bf16.msra.mxu0 0
        %2100 = vmatprep.subr.bf16.mxu0 0
        %2101 = vmatpush1.bf16.msra.mxu0 0
        %2102 = vmatprep.subr.bf16.mxu0 0
        %2103 = vmatpush1.bf16.msra.mxu0 0
        %2104 = vmatprep.subr.bf16.mxu0 0
        %2105 = vmatpush1.bf16.msra.mxu0 0
        %2106 = vmatprep.subr.bf16.mxu0 0
        %2107 = vmatpush1.bf16.msra.mxu0 0
        %2108 = vmatprep.mubr.bf16.mxu0 0
        %2109 = vmatmul.mubr.bf16.gmra.mrb[0].mxu0 %v1996
        %v2110 = vpop.f32.mrb[0].mxu0
        %v2111 = vadd.f32 0.0, %v2110
        %v2112 = vpop.f32.mrb[0].mxu0
        %v2113 = vpop.f32.mrb[0].mxu0
        %v2114 = vadd.f32 0.0, %v2113
        %v2115 = vpop.f32.mrb[0].mxu0
        %2116 = vmatprep.mubr.bf16.mxu0 0
        %2117 = vmatmul.mubr.bf16.gmra.mrb[0].mxu0 %v1997
        %v2118 = vpop.f32.mrb[0].mxu0
        %v2119 = vadd.f32 0.0, %v2118
        %v2120 = vpop.f32.mrb[0].mxu0
        %v2121 = vpop.f32.mrb[0].mxu0
        %v2122 = vadd.f32 0.0, %v2121
        %v2123 = vpop.f32.mrb[0].mxu0
        %2124 = vmatprep.mubr.bf16.mxu0 0
        %2125 = vmatmul.mubr.bf16.gmra.mrb[0].mxu0 %v1998
        %v2126 = vpop.f32.mrb[0].mxu0
        %v2127 = vadd.f32 0.0, %v2126
        %v2128 = vpop.f32.mrb[0].mxu0
        %v2129 = vpop.f32.mrb[0].mxu0
        %v2130 = vadd.f32 0.0, %v2129
        %v2131 = vpop.f32.mrb[0].mxu0
        %2132 = vmatprep.mubr.bf16.mxu0 0
        %2133 = vmatmul.mubr.bf16.gmra.mrb[0].mxu0 %v1999
        %v2134 = vpop.f32.mrb[0].mxu0
        %v2135 = vadd.f32 0.0, %v2134
        %v2136 = vpop.f32.mrb[0].mxu0
        %v2137 = vpop.f32.mrb[0].mxu0
        %v2138 = vadd.f32 0.0, %v2137
        %v2139 = vpop.f32.mrb[0].mxu0
        %2140 = vmatprep.mubr.bf16.mxu0 0
        %2141 = vmatmul.mubr.bf16.gmra.mrb[0].mxu0 %v2000
        %v2142 = vpop.f32.mrb[0].mxu0
        %v2143 = vadd.f32 0.0, %v2142
        %v2144 = vpop.f32.mrb[0].mxu0
        %v2145 = vpop.f32.mrb[0].mxu0
        %v2146 = vadd.f32 0.0, %v2145
        %v2147 = vpop.f32.mrb[0].mxu0
        %2148 = vmatprep.mubr.bf16.mxu0 0
        %2149 = vmatmul.mubr.bf16.gmra.mrb[0].mxu0 %v2001
        %v2150 = vpop.f32.mrb[0].mxu0
        %v2151 = vadd.f32 0.0, %v2150
        %v2152 = vpop.f32.mrb[0].mxu0
        %v2153 = vpop.f32.mrb[0].mxu0
        %v2154 = vadd.f32 0.0, %v2153
        %v2155 = vpop.f32.mrb[0].mxu0
        %2156 = vmatprep.mubr.bf16.mxu0 0
        %2157 = vmatmul.mubr.bf16.gmra.mrb[0].mxu0 %v2002
        %v2158 = vpop.f32.mrb[0].mxu0
        %v2159 = vadd.f32 0.0, %v2158
        %v2160 = vpop.f32.mrb[0].mxu0
        %v2161 = vpop.f32.mrb[0].mxu0
        %v2162 = vadd.f32 0.0, %v2161
        %v2163 = vpop.f32.mrb[0].mxu0
        %2164 = vmatprep.mubr.bf16.mxu0 0
        %2165 = vmatmul.mubr.bf16.gmra.mrb[0].mxu0 %v2003
        %v2166 = vpop.f32.mrb[0].mxu0
        %v2167 = vadd.f32 0.0, %v2166
        %v2168 = vpop.f32.mrb[0].mxu0
        %v2169 = vpop.f32.mrb[0].mxu0
        %v2170 = vadd.f32 0.0, %v2169
        %v2171 = vpop.f32.mrb[0].mxu0
        %2172 = vmatprep.mubr.bf16.mxu0 0
        %2173 = vmatmul.mubr.bf16.gmra.mrb[0].mxu0 %v2004
        %v2174 = vpop.f32.mrb[0].mxu0
        %v2175 = vadd.f32 0.0, %v2174
        %v2176 = vpop.f32.mrb[0].mxu0
        %v2177 = vpop.f32.mrb[0].mxu0
        %v2178 = vadd.f32 0.0, %v2177
        %v2179 = vpop.f32.mrb[0].mxu0
        %2180 = vmatprep.mubr.bf16.mxu0 0
        %2181 = vmatmul.mubr.bf16.gmra.mrb[0].mxu0 %v2005
        %v2182 = vpop.f32.mrb[0].mxu0
        %v2183 = vadd.f32 0.0, %v2182
        %v2184 = vpop.f32.mrb[0].mxu0
        %v2185 = vpop.f32.mrb[0].mxu0
        %v2186 = vadd.f32 0.0, %v2185
        %v2187 = vpop.f32.mrb[0].mxu0
        %2188 = vmatprep.mubr.bf16.mxu0 0
        %2189 = vmatmul.mubr.bf16.gmra.mrb[0].mxu0 %v2006
        %v2190 = vpop.f32.mrb[0].mxu0
        %v2191 = vadd.f32 0.0, %v2190
        %v2192 = vpop.f32.mrb[0].mxu0
        %v2193 = vpop.f32.mrb[0].mxu0
        %v2194 = vadd.f32 0.0, %v2193
        %v2195 = vpop.f32.mrb[0].mxu0
        %2196 = vmatprep.mubr.bf16.mxu0 0
        %2197 = vmatmul.mubr.bf16.gmra.mrb[0].mxu0 %v2007
        %v2198 = vpop.f32.mrb[0].mxu0
        %v2199 = vadd.f32 0.0, %v2198
        %v2200 = vpop.f32.mrb[0].mxu0
        %v2201 = vpop.f32.mrb[0].mxu0
        %v2202 = vadd.f32 0.0, %v2201
        %v2203 = vpop.f32.mrb[0].mxu0
        %2204 = vmatprep.mubr.bf16.mxu0 0
        %2205 = vmatmul.mubr.bf16.gmra.mrb[0].mxu0 %v2008
        %v2206 = vpop.f32.mrb[0].mxu0
        %v2207 = vadd.f32 0.0, %v2206
        %v2208 = vpop.f32.mrb[0].mxu0
        %v2209 = vpop.f32.mrb[0].mxu0
        %v2210 = vadd.f32 0.0, %v2209
        %v2211 = vpop.f32.mrb[0].mxu0
        %2212 = vmatprep.mubr.bf16.mxu0 0
        %2213 = vmatmul.mubr.bf16.gmra.mrb[0].mxu0 %v2009
        %v2214 = vpop.f32.mrb[0].mxu0
        %v2215 = vadd.f32 0.0, %v2214
        %v2216 = vpop.f32.mrb[0].mxu0
        %v2217 = vpop.f32.mrb[0].mxu0
        %v2218 = vadd.f32 0.0, %v2217
        %v2219 = vpop.f32.mrb[0].mxu0
        %2220 = vmatprep.mubr.bf16.mxu0 0
        %2221 = vmatmul.mubr.bf16.gmra.mrb[0].mxu0 %v2010
        %v2222 = vpop.f32.mrb[0].mxu0
        %v2223 = vadd.f32 0.0, %v2222
        %v2224 = vpop.f32.mrb[0].mxu0
        %v2225 = vpop.f32.mrb[0].mxu0
        %v2226 = vadd.f32 0.0, %v2225
        %v2227 = vpop.f32.mrb[0].mxu0
        %2228 = vmatprep.mubr.bf16.mxu0 0
        %2229 = vmatmul.mubr.bf16.gmra.mrb[0].mxu0 %v2011
        %v2230 = vpop.f32.mrb[0].mxu0
        %v2231 = vadd.f32 0.0, %v2230
        %v2232 = vpop.f32.mrb[0].mxu0
        %v2233 = vpop.f32.mrb[0].mxu0
        %v2234 = vadd.f32 0.0, %v2233
        %v2235 = vpop.f32.mrb[0].mxu0
        %2236 = vdwg.mxu0
        %v2237 = vadd.f32 %v1850, %v2111
        %v2238 = vadd.f32 %v1851, %v2114
        %v2239 = vadd.f32 %v1852, %v2119
        %v2240 = vadd.f32 %v1853, %v2122
        %v2241 = vadd.f32 %v1854, %v2127
        %v2242 = vadd.f32 %v1855, %v2130
        %v2243 = vadd.f32 %v1856, %v2135
        %v2244 = vadd.f32 %v1857, %v2138
        %v2245 = vadd.f32 %v1858, %v2143
        %v2246 = vadd.f32 %v1859, %v2146
        %v2247 = vadd.f32 %v1860, %v2151
        %v2248 = vadd.f32 %v1861, %v2154
        %v2249 = vadd.f32 %v1862, %v2159
        %v2250 = vadd.f32 %v1863, %v2162
        %v2251 = vadd.f32 %v1864, %v2167
        %v2252 = vadd.f32 %v1865, %v2170
        %v2253 = vadd.f32 %v1866, %v2175
        %v2254 = vadd.f32 %v1867, %v2178
        %v2255 = vadd.f32 %v1868, %v2183
        %v2256 = vadd.f32 %v1869, %v2186
        %v2257 = vadd.f32 %v1870, %v2191
        %v2258 = vadd.f32 %v1871, %v2194
        %v2259 = vadd.f32 %v1872, %v2199
        %v2260 = vadd.f32 %v1873, %v2202
        %v2261 = vadd.f32 %v1874, %v2207
        %v2262 = vadd.f32 %v1875, %v2210
        %v2263 = vadd.f32 %v1876, %v2215
        %v2264 = vadd.f32 %v1877, %v2218
        %v2265 = vadd.f32 %v1878, %v2223
        %v2266 = vadd.f32 %v1879, %v2226
        %v2267 = vadd.f32 %v1880, %v2231
        %v2268 = vadd.f32 %v1881, %v2234
        %v2269 = vld [vmem:[%s1882] sm:$0xf]
        %v2270 = vld [vmem:[%s1882 + $0x4] sm:$0xf]
        %v2271 = vld [vmem:[%s1882 + $0x8] sm:$0x1]
        %v2272 = vld [vmem:[%s1882 + $0xc] sm:$0xf]
        %v2273 = vld [vmem:[%s1882 + $0x10] sm:$0xf]
        %v2274 = vld [vmem:[%s1882 + $0x14] sm:$0x1]
        %v2275 = vld [vmem:[%s1882 + $0x18] sm:$0xf]
        %v2276 = vld [vmem:[%s1882 + $0x1c] sm:$0xf]
        %v2277 = vld [vmem:[%s1882 + $0x20] sm:$0x1]
        %v2278 = vld [vmem:[%s1882 + $0x24] sm:$0xf]
        %v2279 = vld [vmem:[%s1882 + $0x28] sm:$0xf]
        %v2280 = vld [vmem:[%s1882 + $0x2c] sm:$0x1]
        %v2281 = vld [vmem:[%s1882 + $0x30] sm:$0xf]
        %v2282 = vld [vmem:[%s1882 + $0x34] sm:$0xf]
        %v2283 = vld [vmem:[%s1882 + $0x38] sm:$0x1]
        %v2284 = vld [vmem:[%s1882 + $0x3c] sm:$0xf]
        %v2285 = vld [vmem:[%s1882 + $0x40] sm:$0xf]
        %v2286 = vld [vmem:[%s1882 + $0x44] sm:$0x1]
        %v2287 = vld [vmem:[%s1882 + $0x48] sm:$0xf]
        %v2288 = vld [vmem:[%s1882 + $0x4c] sm:$0xf]
        %v2289 = vld [vmem:[%s1882 + $0x50] sm:$0x1]
        %v2290 = vld [vmem:[%s1882 + $0x54] sm:$0xf]
        %v2291 = vld [vmem:[%s1882 + $0x58] sm:$0xf]
        %v2292 = vld [vmem:[%s1882 + $0x5c] sm:$0x1]
        %v2293 = vld [vmem:[%s1882 + $0x60] sm:$0xf]
        %v2294 = vld [vmem:[%s1882 + $0x64] sm:$0xf]
        %v2295 = vld [vmem:[%s1882 + $0x68] sm:$0x1]
        %v2296 = vld [vmem:[%s1882 + $0x6c] sm:$0xf]
        %v2297 = vld [vmem:[%s1882 + $0x70] sm:$0xf]
        %v2298 = vld [vmem:[%s1882 + $0x74] sm:$0x1]
        %v2299 = vld [vmem:[%s1882 + $0x78] sm:$0xf]
        %v2300 = vld [vmem:[%s1882 + $0x7c] sm:$0xf]
        %v2301 = vld [vmem:[%s1882 + $0x80] sm:$0x1]
        %v2302 = vld [vmem:[%s1882 + $0x84] sm:$0xf]
        %v2303 = vld [vmem:[%s1882 + $0x88] sm:$0xf]
        %v2304 = vld [vmem:[%s1882 + $0x8c] sm:$0x1]
        %v2305 = vld [vmem:[%s1882 + $0x90] sm:$0xf]
        %v2306 = vld [vmem:[%s1882 + $0x94] sm:$0xf]
        %v2307 = vld [vmem:[%s1882 + $0x98] sm:$0x1]
        %v2308 = vld [vmem:[%s1882 + $0x9c] sm:$0xf]
        %v2309 = vld [vmem:[%s1882 + $0xa0] sm:$0xf]
        %v2310 = vld [vmem:[%s1882 + $0xa4] sm:$0x1]
        %v2311 = vld [vmem:[%s1882 + $0xa8] sm:$0xf]
        %v2312 = vld [vmem:[%s1882 + $0xac] sm:$0xf]
        %v2313 = vld [vmem:[%s1882 + $0xb0] sm:$0x1]
        %v2314 = vld [vmem:[%s1882 + $0xb4] sm:$0xf]
        %v2315 = vld [vmem:[%s1882 + $0xb8] sm:$0xf]
        %v2316 = vld [vmem:[%s1882 + $0xbc] sm:$0x1]
        %v2318 = vshrl.u32 %v2269, 16
        %v2320 = vrot.slane %v2318, 4
        %v2321 = vshll.u32 %v2269, 16
        %v2323 = vrot.slane %v2321, 5
        %v2324 = vor.u32 %v2320, %v2323
        %v2325 = vrot.slane %v2324, 4
        %v2327 = vshll.u32 %v2270, 16
        %v2329 = vrot.slane %v2327, 5
        %v2330 = vsel %vm417, %v2325, %v2329
        %v2331 = vshrl.u32 %v2270, 16
        %v2333 = vrot.slane %v2331, 4
        %v2334 = vor.u32 %v2333, %v2329
        %v2335 = vrot.slane %v2334, 4
        %v2337 = vshll.u32 %v2271, 16
        %v2339 = vrot.slane %v2337, 5
        %v2340 = vsel %vm417, %v2335, %v2339
        %v2342 = vshrl.u32 %v2272, 16
        %v2344 = vrot.slane %v2342, 4
        %v2345 = vshll.u32 %v2272, 16
        %v2347 = vrot.slane %v2345, 5
        %v2348 = vor.u32 %v2344, %v2347
        %v2349 = vrot.slane %v2348, 4
        %v2351 = vshll.u32 %v2273, 16
        %v2353 = vrot.slane %v2351, 5
        %v2354 = vsel %vm417, %v2349, %v2353
        %v2355 = vshrl.u32 %v2273, 16
        %v2357 = vrot.slane %v2355, 4
        %v2358 = vor.u32 %v2357, %v2353
        %v2359 = vrot.slane %v2358, 4
        %v2361 = vshll.u32 %v2274, 16
        %v2363 = vrot.slane %v2361, 5
        %v2364 = vsel %vm417, %v2359, %v2363
        %v2366 = vshrl.u32 %v2275, 16
        %v2368 = vrot.slane %v2366, 4
        %v2369 = vshll.u32 %v2275, 16
        %v2371 = vrot.slane %v2369, 5
        %v2372 = vor.u32 %v2368, %v2371
        %v2373 = vrot.slane %v2372, 4
        %v2375 = vshll.u32 %v2276, 16
        %v2377 = vrot.slane %v2375, 5
        %v2378 = vsel %vm417, %v2373, %v2377
        %v2379 = vshrl.u32 %v2276, 16
        %v2381 = vrot.slane %v2379, 4
        %v2382 = vor.u32 %v2381, %v2377
        %v2383 = vrot.slane %v2382, 4
        %v2385 = vshll.u32 %v2277, 16
        %v2387 = vrot.slane %v2385, 5
        %v2388 = vsel %vm417, %v2383, %v2387
        %v2390 = vshrl.u32 %v2278, 16
        %v2392 = vrot.slane %v2390, 4
        %v2393 = vshll.u32 %v2278, 16
        %v2395 = vrot.slane %v2393, 5
        %v2396 = vor.u32 %v2392, %v2395
        %v2397 = vrot.slane %v2396, 4
        %v2399 = vshll.u32 %v2279, 16
        %v2401 = vrot.slane %v2399, 5
        %v2402 = vsel %vm417, %v2397, %v2401
        %v2403 = vshrl.u32 %v2279, 16
        %v2405 = vrot.slane %v2403, 4
        %v2406 = vor.u32 %v2405, %v2401
        %v2407 = vrot.slane %v2406, 4
        %v2409 = vshll.u32 %v2280, 16
        %v2411 = vrot.slane %v2409, 5
        %v2412 = vsel %vm417, %v2407, %v2411
        %v2414 = vshrl.u32 %v2281, 16
        %v2416 = vrot.slane %v2414, 4
        %v2417 = vshll.u32 %v2281, 16
        %v2419 = vrot.slane %v2417, 5
        %v2420 = vor.u32 %v2416, %v2419
        %v2421 = vrot.slane %v2420, 4
        %v2423 = vshll.u32 %v2282, 16
        %v2425 = vrot.slane %v2423, 5
        %v2426 = vsel %vm417, %v2421, %v2425
        %v2427 = vshrl.u32 %v2282, 16
        %v2429 = vrot.slane %v2427, 4
        %v2430 = vor.u32 %v2429, %v2425
        %v2431 = vrot.slane %v2430, 4
        %v2433 = vshll.u32 %v2283, 16
        %v2435 = vrot.slane %v2433, 5
        %v2436 = vsel %vm417, %v2431, %v2435
        %v2438 = vshrl.u32 %v2284, 16
        %v2440 = vrot.slane %v2438, 4
        %v2441 = vshll.u32 %v2284, 16
        %v2443 = vrot.slane %v2441, 5
        %v2444 = vor.u32 %v2440, %v2443
        %v2445 = vrot.slane %v2444, 4
        %v2447 = vshll.u32 %v2285, 16
        %v2449 = vrot.slane %v2447, 5
        %v2450 = vsel %vm417, %v2445, %v2449
        %v2451 = vshrl.u32 %v2285, 16
        %v2453 = vrot.slane %v2451, 4
        %v2454 = vor.u32 %v2453, %v2449
        %v2455 = vrot.slane %v2454, 4
        %v2457 = vshll.u32 %v2286, 16
        %v2459 = vrot.slane %v2457, 5
        %v2460 = vsel %vm417, %v2455, %v2459
        %v2462 = vshrl.u32 %v2287, 16
        %v2464 = vrot.slane %v2462, 4
        %v2465 = vshll.u32 %v2287, 16
        %v2467 = vrot.slane %v2465, 5
        %v2468 = vor.u32 %v2464, %v2467
        %v2469 = vrot.slane %v2468, 4
        %v2471 = vshll.u32 %v2288, 16
        %v2473 = vrot.slane %v2471, 5
        %v2474 = vsel %vm417, %v2469, %v2473
        %v2475 = vshrl.u32 %v2288, 16
        %v2477 = vrot.slane %v2475, 4
        %v2478 = vor.u32 %v2477, %v2473
        %v2479 = vrot.slane %v2478, 4
        %v2481 = vshll.u32 %v2289, 16
        %v2483 = vrot.slane %v2481, 5
        %v2484 = vsel %vm417, %v2479, %v2483
        %v2486 = vshrl.u32 %v2290, 16
        %v2488 = vrot.slane %v2486, 4
        %v2489 = vshll.u32 %v2290, 16
        %v2491 = vrot.slane %v2489, 5
        %v2492 = vor.u32 %v2488, %v2491
        %v2493 = vrot.slane %v2492, 4
        %v2495 = vshll.u32 %v2291, 16
        %v2497 = vrot.slane %v2495, 5
        %v2498 = vsel %vm417, %v2493, %v2497
        %v2499 = vshrl.u32 %v2291, 16
        %v2501 = vrot.slane %v2499, 4
        %v2502 = vor.u32 %v2501, %v2497
        %v2503 = vrot.slane %v2502, 4
        %v2505 = vshll.u32 %v2292, 16
        %v2507 = vrot.slane %v2505, 5
        %v2508 = vsel %vm417, %v2503, %v2507
        %v2510 = vshrl.u32 %v2293, 16
        %v2512 = vrot.slane %v2510, 4
        %v2513 = vshll.u32 %v2293, 16
        %v2515 = vrot.slane %v2513, 5
        %v2516 = vor.u32 %v2512, %v2515
        %v2517 = vrot.slane %v2516, 4
        %v2519 = vshll.u32 %v2294, 16
        %v2521 = vrot.slane %v2519, 5
        %v2522 = vsel %vm417, %v2517, %v2521
        %v2523 = vshrl.u32 %v2294, 16
        %v2525 = vrot.slane %v2523, 4
        %v2526 = vor.u32 %v2525, %v2521
        %v2527 = vrot.slane %v2526, 4
        %v2529 = vshll.u32 %v2295, 16
        %v2531 = vrot.slane %v2529, 5
        %v2532 = vsel %vm417, %v2527, %v2531
        %v2534 = vshrl.u32 %v2296, 16
        %v2536 = vrot.slane %v2534, 4
        %v2537 = vshll.u32 %v2296, 16
        %v2539 = vrot.slane %v2537, 5
        %v2540 = vor.u32 %v2536, %v2539
        %v2541 = vrot.slane %v2540, 4
        %v2543 = vshll.u32 %v2297, 16
        %v2545 = vrot.slane %v2543, 5
        %v2546 = vsel %vm417, %v2541, %v2545
        %v2547 = vshrl.u32 %v2297, 16
        %v2549 = vrot.slane %v2547, 4
        %v2550 = vor.u32 %v2549, %v2545
        %v2551 = vrot.slane %v2550, 4
        %v2553 = vshll.u32 %v2298, 16
        %v2555 = vrot.slane %v2553, 5
        %v2556 = vsel %vm417, %v2551, %v2555
        %v2558 = vshrl.u32 %v2299, 16
        %v2560 = vrot.slane %v2558, 4
        %v2561 = vshll.u32 %v2299, 16
        %v2563 = vrot.slane %v2561, 5
        %v2564 = vor.u32 %v2560, %v2563
        %v2565 = vrot.slane %v2564, 4
        %v2567 = vshll.u32 %v2300, 16
        %v2569 = vrot.slane %v2567, 5
        %v2570 = vsel %vm417, %v2565, %v2569
        %v2571 = vshrl.u32 %v2300, 16
        %v2573 = vrot.slane %v2571, 4
        %v2574 = vor.u32 %v2573, %v2569
        %v2575 = vrot.slane %v2574, 4
        %v2577 = vshll.u32 %v2301, 16
        %v2579 = vrot.slane %v2577, 5
        %v2580 = vsel %vm417, %v2575, %v2579
        %v2582 = vshrl.u32 %v2302, 16
        %v2584 = vrot.slane %v2582, 4
        %v2585 = vshll.u32 %v2302, 16
        %v2587 = vrot.slane %v2585, 5
        %v2588 = vor.u32 %v2584, %v2587
        %v2589 = vrot.slane %v2588, 4
        %v2591 = vshll.u32 %v2303, 16
        %v2593 = vrot.slane %v2591, 5
        %v2594 = vsel %vm417, %v2589, %v2593
        %v2595 = vshrl.u32 %v2303, 16
        %v2597 = vrot.slane %v2595, 4
        %v2598 = vor.u32 %v2597, %v2593
        %v2599 = vrot.slane %v2598, 4
        %v2601 = vshll.u32 %v2304, 16
        %v2603 = vrot.slane %v2601, 5
        %v2604 = vsel %vm417, %v2599, %v2603
        %v2606 = vshrl.u32 %v2305, 16
        %v2608 = vrot.slane %v2606, 4
        %v2609 = vshll.u32 %v2305, 16
        %v2611 = vrot.slane %v2609, 5
        %v2612 = vor.u32 %v2608, %v2611
        %v2613 = vrot.slane %v2612, 4
        %v2615 = vshll.u32 %v2306, 16
        %v2617 = vrot.slane %v2615, 5
        %v2618 = vsel %vm417, %v2613, %v2617
        %v2619 = vshrl.u32 %v2306, 16
        %v2621 = vrot.slane %v2619, 4
        %v2622 = vor.u32 %v2621, %v2617
        %v2623 = vrot.slane %v2622, 4
        %v2625 = vshll.u32 %v2307, 16
        %v2627 = vrot.slane %v2625, 5
        %v2628 = vsel %vm417, %v2623, %v2627
        %v2630 = vshrl.u32 %v2308, 16
        %v2632 = vrot.slane %v2630, 4
        %v2633 = vshll.u32 %v2308, 16
        %v2635 = vrot.slane %v2633, 5
        %v2636 = vor.u32 %v2632, %v2635
        %v2637 = vrot.slane %v2636, 4
        %v2639 = vshll.u32 %v2309, 16
        %v2641 = vrot.slane %v2639, 5
        %v2642 = vsel %vm417, %v2637, %v2641
        %v2643 = vshrl.u32 %v2309, 16
        %v2645 = vrot.slane %v2643, 4
        %v2646 = vor.u32 %v2645, %v2641
        %v2647 = vrot.slane %v2646, 4
        %v2649 = vshll.u32 %v2310, 16
        %v2651 = vrot.slane %v2649, 5
        %v2652 = vsel %vm417, %v2647, %v2651
        %v2654 = vshrl.u32 %v2311, 16
        %v2656 = vrot.slane %v2654, 4
        %v2657 = vshll.u32 %v2311, 16
        %v2659 = vrot.slane %v2657, 5
        %v2660 = vor.u32 %v2656, %v2659
        %v2661 = vrot.slane %v2660, 4
        %v2663 = vshll.u32 %v2312, 16
        %v2665 = vrot.slane %v2663, 5
        %v2666 = vsel %vm417, %v2661, %v2665
        %v2667 = vshrl.u32 %v2312, 16
        %v2669 = vrot.slane %v2667, 4
        %v2670 = vor.u32 %v2669, %v2665
        %v2671 = vrot.slane %v2670, 4
        %v2673 = vshll.u32 %v2313, 16
        %v2675 = vrot.slane %v2673, 5
        %v2676 = vsel %vm417, %v2671, %v2675
        %v2678 = vshrl.u32 %v2314, 16
        %v2680 = vrot.slane %v2678, 4
        %v2681 = vshll.u32 %v2314, 16
        %v2683 = vrot.slane %v2681, 5
        %v2684 = vor.u32 %v2680, %v2683
        %v2685 = vrot.slane %v2684, 4
        %v2687 = vshll.u32 %v2315, 16
        %v2689 = vrot.slane %v2687, 5
        %v2690 = vsel %vm417, %v2685, %v2689
        %v2691 = vshrl.u32 %v2315, 16
        %v2693 = vrot.slane %v2691, 4
        %v2694 = vor.u32 %v2693, %v2689
        %v2695 = vrot.slane %v2694, 4
        %v2697 = vshll.u32 %v2316, 16
        %v2699 = vrot.slane %v2697, 5
        %v2700 = vsel %vm417, %v2695, %v2699
        %s2701 = scalar_lea.vmem %s1, 256
        %v2702 = vld [vmem:[%s2701] sm:$0xf]
        %v2703 = vld [vmem:[%s2701 + $0x4] sm:$0xf]
        %v2704 = vld [vmem:[%s2701 + $0x8] sm:$0xf]
        %v2705 = vld [vmem:[%s2701 + $0xc] sm:$0xf]
        %v2706 = vld [vmem:[%s2701 + $0x10] sm:$0xf]
        %v2707 = vld [vmem:[%s2701 + $0x14] sm:$0xf]
        %v2708 = vld [vmem:[%s2701 + $0x18] sm:$0xf]
        %v2709 = vld [vmem:[%s2701 + $0x1c] sm:$0xf]
        %v2710 = vld [vmem:[%s2701 + $0x20] sm:$0xf]
        %v2711 = vld [vmem:[%s2701 + $0x24] sm:$0xf]
        %v2712 = vld [vmem:[%s2701 + $0x28] sm:$0xf]
        %v2713 = vld [vmem:[%s2701 + $0x2c] sm:$0xf]
        %v2714 = vld [vmem:[%s2701 + $0x30] sm:$0xf]
        %v2715 = vld [vmem:[%s2701 + $0x34] sm:$0xf]
        %v2716 = vld [vmem:[%s2701 + $0x38] sm:$0xf]
        %v2717 = vld [vmem:[%s2701 + $0x3c] sm:$0xf]
        %v2718 = vunpack.c.l.b16 %v2330
        %v2719 = vunpack.c.l.b16 %v2340
        %v2720 = vunpack.c.l.b16 %v2354
        %v2721 = vunpack.c.l.b16 %v2364
        %v2722 = vunpack.c.l.b16 %v2378
        %v2723 = vunpack.c.l.b16 %v2388
        %v2724 = vunpack.c.l.b16 %v2402
        %v2725 = vunpack.c.l.b16 %v2412
        %v2726 = vunpack.c.l.b16 %v2426
        %v2727 = vunpack.c.l.b16 %v2436
        %v2728 = vunpack.c.l.b16 %v2450
        %v2729 = vunpack.c.l.b16 %v2460
        %v2730 = vunpack.c.l.b16 %v2474
        %v2731 = vunpack.c.l.b16 %v2484
        %v2732 = vunpack.c.l.b16 %v2498
        %v2733 = vunpack.c.l.b16 %v2508
        %v2734 = vunpack.c.l.b16 %v2522
        %v2735 = vunpack.c.l.b16 %v2532
        %v2736 = vunpack.c.l.b16 %v2546
        %v2737 = vunpack.c.l.b16 %v2556
        %v2738 = vunpack.c.l.b16 %v2570
        %v2739 = vunpack.c.l.b16 %v2580
        %v2740 = vunpack.c.l.b16 %v2594
        %v2741 = vunpack.c.l.b16 %v2604
        %v2742 = vunpack.c.l.b16 %v2618
        %v2743 = vunpack.c.l.b16 %v2628
        %v2744 = vunpack.c.l.b16 %v2642
        %v2745 = vunpack.c.l.b16 %v2652
        %v2746 = vunpack.c.l.b16 %v2666
        %v2747 = vunpack.c.l.b16 %v2676
        %v2748 = vunpack.c.l.b16 %v2690
        %v2749 = vunpack.c.l.b16 %v2700
        %v2750 = vpack.c.b16 %v2719, %v2718
        %v2751 = vpack.c.b16 %v2721, %v2720
        %v2752 = vpack.c.b16 %v2723, %v2722
        %v2753 = vpack.c.b16 %v2725, %v2724
        %v2754 = vpack.c.b16 %v2727, %v2726
        %v2755 = vpack.c.b16 %v2729, %v2728
        %v2756 = vpack.c.b16 %v2731, %v2730
        %v2757 = vpack.c.b16 %v2733, %v2732
        %v2758 = vpack.c.b16 %v2735, %v2734
        %v2759 = vpack.c.b16 %v2737, %v2736
        %v2760 = vpack.c.b16 %v2739, %v2738
        %v2761 = vpack.c.b16 %v2741, %v2740
        %v2762 = vpack.c.b16 %v2743, %v2742
        %v2763 = vpack.c.b16 %v2745, %v2744
        %v2764 = vpack.c.b16 %v2747, %v2746
        %v2765 = vpack.c.b16 %v2749, %v2748
        %v2798 = vunpack.c.l.b16 %v2702
        %v2799 = vunpack.c.l.b16 %v2703
        %v2800 = vunpack.c.l.b16 %v2704
        %v2801 = vunpack.c.l.b16 %v2705
        %v2802 = vunpack.c.l.b16 %v2706
        %v2803 = vunpack.c.l.b16 %v2707
        %v2804 = vunpack.c.l.b16 %v2708
        %v2805 = vunpack.c.l.b16 %v2709
        %v2806 = vunpack.c.l.b16 %v2710
        %v2807 = vunpack.c.l.b16 %v2711
        %v2808 = vunpack.c.l.b16 %v2712
        %v2809 = vunpack.c.l.b16 %v2713
        %v2810 = vunpack.c.l.b16 %v2714
        %v2811 = vunpack.c.l.b16 %v2715
        %v2812 = vunpack.c.l.b16 %v2716
        %v2813 = vunpack.c.l.b16 %v2717
        %v2814 = vpack.c.b16 %v2799, %v2798
        %v2815 = vpack.c.b16 %v2801, %v2800
        %v2816 = vpack.c.b16 %v2803, %v2802
        %v2817 = vpack.c.b16 %v2805, %v2804
        %v2818 = vpack.c.b16 %v2807, %v2806
        %v2819 = vpack.c.b16 %v2809, %v2808
        %v2820 = vpack.c.b16 %v2811, %v2810
        %v2821 = vpack.c.b16 %v2813, %v2812
        %2830 = vmatprep.subr.bf16.mxu0 0
        %2831 = vmatpush1.bf16.msra.mxu0 %v2814
        %2832 = vmatprep.subr.bf16.mxu0 0
        %2833 = vmatpush1.bf16.msra.mxu0 %v2815
        %2834 = vmatprep.subr.bf16.mxu0 0
        %2835 = vmatpush1.bf16.msra.mxu0 %v2816
        %2836 = vmatprep.subr.bf16.mxu0 0
        %2837 = vmatpush1.bf16.msra.mxu0 %v2817
        %2838 = vmatprep.subr.bf16.mxu0 0
        %2839 = vmatpush1.bf16.msra.mxu0 %v2818
        %2840 = vmatprep.subr.bf16.mxu0 0
        %2841 = vmatpush1.bf16.msra.mxu0 %v2819
        %2842 = vmatprep.subr.bf16.mxu0 0
        %2843 = vmatpush1.bf16.msra.mxu0 %v2820
        %2844 = vmatprep.subr.bf16.mxu0 0
        %2845 = vmatpush1.bf16.msra.mxu0 %v2821
        %2846 = vmatprep.subr.bf16.mxu0 0
        %2847 = vmatpush1.bf16.msra.mxu0 0
        %2848 = vmatprep.subr.bf16.mxu0 0
        %2849 = vmatpush1.bf16.msra.mxu0 0
        %2850 = vmatprep.subr.bf16.mxu0 0
        %2851 = vmatpush1.bf16.msra.mxu0 0
        %2852 = vmatprep.subr.bf16.mxu0 0
        %2853 = vmatpush1.bf16.msra.mxu0 0
        %2854 = vmatprep.subr.bf16.mxu0 0
        %2855 = vmatpush1.bf16.msra.mxu0 0
        %2856 = vmatprep.subr.bf16.mxu0 0
        %2857 = vmatpush1.bf16.msra.mxu0 0
        %2858 = vmatprep.subr.bf16.mxu0 0
        %2859 = vmatpush1.bf16.msra.mxu0 0
        %2860 = vmatprep.subr.bf16.mxu0 0
        %2861 = vmatpush1.bf16.msra.mxu0 0
        %2862 = vmatprep.mubr.bf16.mxu0 0
        %2863 = vmatmul.mubr.bf16.gmra.mrb[0].mxu0 %v2750
        %v2864 = vpop.f32.mrb[0].mxu0
        %v2865 = vadd.f32 0.0, %v2864
        %v2866 = vpop.f32.mrb[0].mxu0
        %v2867 = vpop.f32.mrb[0].mxu0
        %v2868 = vadd.f32 0.0, %v2867
        %v2869 = vpop.f32.mrb[0].mxu0
        %2870 = vmatprep.mubr.bf16.mxu0 0
        %2871 = vmatmul.mubr.bf16.gmra.mrb[0].mxu0 %v2751
        %v2872 = vpop.f32.mrb[0].mxu0
        %v2873 = vadd.f32 0.0, %v2872
        %v2874 = vpop.f32.mrb[0].mxu0
        %v2875 = vpop.f32.mrb[0].mxu0
        %v2876 = vadd.f32 0.0, %v2875
        %v2877 = vpop.f32.mrb[0].mxu0
        %2878 = vmatprep.mubr.bf16.mxu0 0
        %2879 = vmatmul.mubr.bf16.gmra.mrb[0].mxu0 %v2752
        %v2880 = vpop.f32.mrb[0].mxu0
        %v2881 = vadd.f32 0.0, %v2880
        %v2882 = vpop.f32.mrb[0].mxu0
        %v2883 = vpop.f32.mrb[0].mxu0
        %v2884 = vadd.f32 0.0, %v2883
        %v2885 = vpop.f32.mrb[0].mxu0
        %2886 = vmatprep.mubr.bf16.mxu0 0
        %2887 = vmatmul.mubr.bf16.gmra.mrb[0].mxu0 %v2753
        %v2888 = vpop.f32.mrb[0].mxu0
        %v2889 = vadd.f32 0.0, %v2888
        %v2890 = vpop.f32.mrb[0].mxu0
        %v2891 = vpop.f32.mrb[0].mxu0
        %v2892 = vadd.f32 0.0, %v2891
        %v2893 = vpop.f32.mrb[0].mxu0
        %2894 = vmatprep.mubr.bf16.mxu0 0
        %2895 = vmatmul.mubr.bf16.gmra.mrb[0].mxu0 %v2754
        %v2896 = vpop.f32.mrb[0].mxu0
        %v2897 = vadd.f32 0.0, %v2896
        %v2898 = vpop.f32.mrb[0].mxu0
        %v2899 = vpop.f32.mrb[0].mxu0
        %v2900 = vadd.f32 0.0, %v2899
        %v2901 = vpop.f32.mrb[0].mxu0
        %2902 = vmatprep.mubr.bf16.mxu0 0
        %2903 = vmatmul.mubr.bf16.gmra.mrb[0].mxu0 %v2755
        %v2904 = vpop.f32.mrb[0].mxu0
        %v2905 = vadd.f32 0.0, %v2904
        %v2906 = vpop.f32.mrb[0].mxu0
        %v2907 = vpop.f32.mrb[0].mxu0
        %v2908 = vadd.f32 0.0, %v2907
        %v2909 = vpop.f32.mrb[0].mxu0
        %2910 = vmatprep.mubr.bf16.mxu0 0
        %2911 = vmatmul.mubr.bf16.gmra.mrb[0].mxu0 %v2756
        %v2912 = vpop.f32.mrb[0].mxu0
        %v2913 = vadd.f32 0.0, %v2912
        %v2914 = vpop.f32.mrb[0].mxu0
        %v2915 = vpop.f32.mrb[0].mxu0
        %v2916 = vadd.f32 0.0, %v2915
        %v2917 = vpop.f32.mrb[0].mxu0
        %2918 = vmatprep.mubr.bf16.mxu0 0
        %2919 = vmatmul.mubr.bf16.gmra.mrb[0].mxu0 %v2757
        %v2920 = vpop.f32.mrb[0].mxu0
        %v2921 = vadd.f32 0.0, %v2920
        %v2922 = vpop.f32.mrb[0].mxu0
        %v2923 = vpop.f32.mrb[0].mxu0
        %v2924 = vadd.f32 0.0, %v2923
        %v2925 = vpop.f32.mrb[0].mxu0
        %2926 = vmatprep.mubr.bf16.mxu0 0
        %2927 = vmatmul.mubr.bf16.gmra.mrb[0].mxu0 %v2758
        %v2928 = vpop.f32.mrb[0].mxu0
        %v2929 = vadd.f32 0.0, %v2928
        %v2930 = vpop.f32.mrb[0].mxu0
        %v2931 = vpop.f32.mrb[0].mxu0
        %v2932 = vadd.f32 0.0, %v2931
        %v2933 = vpop.f32.mrb[0].mxu0
        %2934 = vmatprep.mubr.bf16.mxu0 0
        %2935 = vmatmul.mubr.bf16.gmra.mrb[0].mxu0 %v2759
        %v2936 = vpop.f32.mrb[0].mxu0
        %v2937 = vadd.f32 0.0, %v2936
        %v2938 = vpop.f32.mrb[0].mxu0
        %v2939 = vpop.f32.mrb[0].mxu0
        %v2940 = vadd.f32 0.0, %v2939
        %v2941 = vpop.f32.mrb[0].mxu0
        %2942 = vmatprep.mubr.bf16.mxu0 0
        %2943 = vmatmul.mubr.bf16.gmra.mrb[0].mxu0 %v2760
        %v2944 = vpop.f32.mrb[0].mxu0
        %v2945 = vadd.f32 0.0, %v2944
        %v2946 = vpop.f32.mrb[0].mxu0
        %v2947 = vpop.f32.mrb[0].mxu0
        %v2948 = vadd.f32 0.0, %v2947
        %v2949 = vpop.f32.mrb[0].mxu0
        %2950 = vmatprep.mubr.bf16.mxu0 0
        %2951 = vmatmul.mubr.bf16.gmra.mrb[0].mxu0 %v2761
        %v2952 = vpop.f32.mrb[0].mxu0
        %v2953 = vadd.f32 0.0, %v2952
        %v2954 = vpop.f32.mrb[0].mxu0
        %v2955 = vpop.f32.mrb[0].mxu0
        %v2956 = vadd.f32 0.0, %v2955
        %v2957 = vpop.f32.mrb[0].mxu0
        %2958 = vmatprep.mubr.bf16.mxu0 0
        %2959 = vmatmul.mubr.bf16.gmra.mrb[0].mxu0 %v2762
        %v2960 = vpop.f32.mrb[0].mxu0
        %v2961 = vadd.f32 0.0, %v2960
        %v2962 = vpop.f32.mrb[0].mxu0
        %v2963 = vpop.f32.mrb[0].mxu0
        %v2964 = vadd.f32 0.0, %v2963
        %v2965 = vpop.f32.mrb[0].mxu0
        %2966 = vmatprep.mubr.bf16.mxu0 0
        %2967 = vmatmul.mubr.bf16.gmra.mrb[0].mxu0 %v2763
        %v2968 = vpop.f32.mrb[0].mxu0
        %v2969 = vadd.f32 0.0, %v2968
        %v2970 = vpop.f32.mrb[0].mxu0
        %v2971 = vpop.f32.mrb[0].mxu0
        %v2972 = vadd.f32 0.0, %v2971
        %v2973 = vpop.f32.mrb[0].mxu0
        %2974 = vmatprep.mubr.bf16.mxu0 0
        %2975 = vmatmul.mubr.bf16.gmra.mrb[0].mxu0 %v2764
        %v2976 = vpop.f32.mrb[0].mxu0
        %v2977 = vadd.f32 0.0, %v2976
        %v2978 = vpop.f32.mrb[0].mxu0
        %v2979 = vpop.f32.mrb[0].mxu0
        %v2980 = vadd.f32 0.0, %v2979
        %v2981 = vpop.f32.mrb[0].mxu0
        %2982 = vmatprep.mubr.bf16.mxu0 0
        %2983 = vmatmul.mubr.bf16.gmra.mrb[0].mxu0 %v2765
        %v2984 = vpop.f32.mrb[0].mxu0
        %v2985 = vadd.f32 0.0, %v2984
        %v2986 = vpop.f32.mrb[0].mxu0
        %v2987 = vpop.f32.mrb[0].mxu0
        %v2988 = vadd.f32 0.0, %v2987
        %v2989 = vpop.f32.mrb[0].mxu0
        %2990 = vdwg.mxu0
        %v2991 = vadd.f32 %v2237, %v2865
        %v2992 = vadd.f32 %v2238, %v2868
        %v2993 = vadd.f32 %v2239, %v2873
        %v2994 = vadd.f32 %v2240, %v2876
        %v2995 = vadd.f32 %v2241, %v2881
        %v2996 = vadd.f32 %v2242, %v2884
        %v2997 = vadd.f32 %v2243, %v2889
        %v2998 = vadd.f32 %v2244, %v2892
        %v2999 = vadd.f32 %v2245, %v2897
        %v3000 = vadd.f32 %v2246, %v2900
        %v3001 = vadd.f32 %v2247, %v2905
        %v3002 = vadd.f32 %v2248, %v2908
        %v3003 = vadd.f32 %v2249, %v2913
        %v3004 = vadd.f32 %v2250, %v2916
        %v3005 = vadd.f32 %v2251, %v2921
        %v3006 = vadd.f32 %v2252, %v2924
        %v3007 = vadd.f32 %v2253, %v2929
        %v3008 = vadd.f32 %v2254, %v2932
        %v3009 = vadd.f32 %v2255, %v2937
        %v3010 = vadd.f32 %v2256, %v2940
        %v3011 = vadd.f32 %v2257, %v2945
        %v3012 = vadd.f32 %v2258, %v2948
        %v3013 = vadd.f32 %v2259, %v2953
        %v3014 = vadd.f32 %v2260, %v2956
        %v3015 = vadd.f32 %v2261, %v2961
        %v3016 = vadd.f32 %v2262, %v2964
        %v3017 = vadd.f32 %v2263, %v2969
        %v3018 = vadd.f32 %v2264, %v2972
        %v3019 = vadd.f32 %v2265, %v2977
        %v3020 = vadd.f32 %v2266, %v2980
        %v3021 = vadd.f32 %v2267, %v2985
        %v3022 = vadd.f32 %v2268, %v2988
        %v3023 = vld [vmem:[%s1882] sm:$0xe]
        %v3024 = vld [vmem:[%s1882 + $0xc] sm:$0xe]
        %v3025 = vld [vmem:[%s1882 + $0x18] sm:$0xe]
        %v3026 = vld [vmem:[%s1882 + $0x24] sm:$0xe]
        %v3027 = vld [vmem:[%s1882 + $0x30] sm:$0xe]
        %v3028 = vld [vmem:[%s1882 + $0x3c] sm:$0xe]
        %v3029 = vld [vmem:[%s1882 + $0x48] sm:$0xe]
        %v3030 = vld [vmem:[%s1882 + $0x54] sm:$0xe]
        %v3031 = vld [vmem:[%s1882 + $0x60] sm:$0xe]
        %v3032 = vld [vmem:[%s1882 + $0x6c] sm:$0xe]
        %v3033 = vld [vmem:[%s1882 + $0x78] sm:$0xe]
        %v3034 = vld [vmem:[%s1882 + $0x84] sm:$0xe]
        %v3035 = vld [vmem:[%s1882 + $0x90] sm:$0xe]
        %v3036 = vld [vmem:[%s1882 + $0x9c] sm:$0xe]
        %v3037 = vld [vmem:[%s1882 + $0xa8] sm:$0xe]
        %v3038 = vld [vmem:[%s1882 + $0xb4] sm:$0xe]
        %v3087 = vrot.slane %v3023, 5
        %v3088 = vrot.slane %v3087, 4
        %v3089 = vrot.slane %v2270, 5
        %v3090 = vsel %vm1447, %v3088, %v3089
        %v3091 = vrot.slane %v3089, 4
        %v3092 = vrot.slane %v2271, 5
        %v3093 = vsel %vm1447, %v3091, %v3092
        %v3094 = vrot.slane %v3024, 5
        %v3095 = vrot.slane %v3094, 4
        %v3096 = vrot.slane %v2273, 5
        %v3097 = vsel %vm1447, %v3095, %v3096
        %v3098 = vrot.slane %v3096, 4
        %v3099 = vrot.slane %v2274, 5
        %v3100 = vsel %vm1447, %v3098, %v3099
        %v3101 = vrot.slane %v3025, 5
        %v3102 = vrot.slane %v3101, 4
        %v3103 = vrot.slane %v2276, 5
        %v3104 = vsel %vm1447, %v3102, %v3103
        %v3105 = vrot.slane %v3103, 4
        %v3106 = vrot.slane %v2277, 5
        %v3107 = vsel %vm1447, %v3105, %v3106
        %v3108 = vrot.slane %v3026, 5
        %v3109 = vrot.slane %v3108, 4
        %v3110 = vrot.slane %v2279, 5
        %v3111 = vsel %vm1447, %v3109, %v3110
        %v3112 = vrot.slane %v3110, 4
        %v3113 = vrot.slane %v2280, 5
        %v3114 = vsel %vm1447, %v3112, %v3113
        %v3115 = vrot.slane %v3027, 5
        %v3116 = vrot.slane %v3115, 4
        %v3117 = vrot.slane %v2282, 5
        %v3118 = vsel %vm1447, %v3116, %v3117
        %v3119 = vrot.slane %v3117, 4
        %v3120 = vrot.slane %v2283, 5
        %v3121 = vsel %vm1447, %v3119, %v3120
        %v3122 = vrot.slane %v3028, 5
        %v3123 = vrot.slane %v3122, 4
        %v3124 = vrot.slane %v2285, 5
        %v3125 = vsel %vm1447, %v3123, %v3124
        %v3126 = vrot.slane %v3124, 4
        %v3127 = vrot.slane %v2286, 5
        %v3128 = vsel %vm1447, %v3126, %v3127
        %v3129 = vrot.slane %v3029, 5
        %v3130 = vrot.slane %v3129, 4
        %v3131 = vrot.slane %v2288, 5
        %v3132 = vsel %vm1447, %v3130, %v3131
        %v3133 = vrot.slane %v3131, 4
        %v3134 = vrot.slane %v2289, 5
        %v3135 = vsel %vm1447, %v3133, %v3134
        %v3136 = vrot.slane %v3030, 5
        %v3137 = vrot.slane %v3136, 4
        %v3138 = vrot.slane %v2291, 5
        %v3139 = vsel %vm1447, %v3137, %v3138
        %v3140 = vrot.slane %v3138, 4
        %v3141 = vrot.slane %v2292, 5
        %v3142 = vsel %vm1447, %v3140, %v3141
        %v3143 = vrot.slane %v3031, 5
        %v3144 = vrot.slane %v3143, 4
        %v3145 = vrot.slane %v2294, 5
        %v3146 = vsel %vm1447, %v3144, %v3145
        %v3147 = vrot.slane %v3145, 4
        %v3148 = vrot.slane %v2295, 5
        %v3149 = vsel %vm1447, %v3147, %v3148
        %v3150 = vrot.slane %v3032, 5
        %v3151 = vrot.slane %v3150, 4
        %v3152 = vrot.slane %v2297, 5
        %v3153 = vsel %vm1447, %v3151, %v3152
        %v3154 = vrot.slane %v3152, 4
        %v3155 = vrot.slane %v2298, 5
        %v3156 = vsel %vm1447, %v3154, %v3155
        %v3157 = vrot.slane %v3033, 5
        %v3158 = vrot.slane %v3157, 4
        %v3159 = vrot.slane %v2300, 5
        %v3160 = vsel %vm1447, %v3158, %v3159
        %v3161 = vrot.slane %v3159, 4
        %v3162 = vrot.slane %v2301, 5
        %v3163 = vsel %vm1447, %v3161, %v3162
        %v3164 = vrot.slane %v3034, 5
        %v3165 = vrot.slane %v3164, 4
        %v3166 = vrot.slane %v2303, 5
        %v3167 = vsel %vm1447, %v3165, %v3166
        %v3168 = vrot.slane %v3166, 4
        %v3169 = vrot.slane %v2304, 5
        %v3170 = vsel %vm1447, %v3168, %v3169
        %v3171 = vrot.slane %v3035, 5
        %v3172 = vrot.slane %v3171, 4
        %v3173 = vrot.slane %v2306, 5
        %v3174 = vsel %vm1447, %v3172, %v3173
        %v3175 = vrot.slane %v3173, 4
        %v3176 = vrot.slane %v2307, 5
        %v3177 = vsel %vm1447, %v3175, %v3176
        %v3178 = vrot.slane %v3036, 5
        %v3179 = vrot.slane %v3178, 4
        %v3180 = vrot.slane %v2309, 5
        %v3181 = vsel %vm1447, %v3179, %v3180
        %v3182 = vrot.slane %v3180, 4
        %v3183 = vrot.slane %v2310, 5
        %v3184 = vsel %vm1447, %v3182, %v3183
        %v3185 = vrot.slane %v3037, 5
        %v3186 = vrot.slane %v3185, 4
        %v3187 = vrot.slane %v2312, 5
        %v3188 = vsel %vm1447, %v3186, %v3187
        %v3189 = vrot.slane %v3187, 4
        %v3190 = vrot.slane %v2313, 5
        %v3191 = vsel %vm1447, %v3189, %v3190
        %v3192 = vrot.slane %v3038, 5
        %v3193 = vrot.slane %v3192, 4
        %v3194 = vrot.slane %v2315, 5
        %v3195 = vsel %vm1447, %v3193, %v3194
        %v3196 = vrot.slane %v3194, 4
        %v3197 = vrot.slane %v2316, 5
        %v3198 = vsel %vm1447, %v3196, %v3197
        %s3199 = scalar_lea.vmem %s1, 320
        %v3200 = vld [vmem:[%s3199] sm:$0xf]
        %v3201 = vld [vmem:[%s3199 + $0x4] sm:$0xf]
        %v3202 = vld [vmem:[%s3199 + $0x8] sm:$0xf]
        %v3203 = vld [vmem:[%s3199 + $0xc] sm:$0xf]
        %v3204 = vld [vmem:[%s3199 + $0x10] sm:$0xf]
        %v3205 = vld [vmem:[%s3199 + $0x14] sm:$0xf]
        %v3206 = vld [vmem:[%s3199 + $0x18] sm:$0xf]
        %v3207 = vld [vmem:[%s3199 + $0x1c] sm:$0xf]
        %v3208 = vld [vmem:[%s3199 + $0x20] sm:$0xf]
        %v3209 = vld [vmem:[%s3199 + $0x24] sm:$0xf]
        %v3210 = vld [vmem:[%s3199 + $0x28] sm:$0xf]
        %v3211 = vld [vmem:[%s3199 + $0x2c] sm:$0xf]
        %v3212 = vld [vmem:[%s3199 + $0x30] sm:$0xf]
        %v3213 = vld [vmem:[%s3199 + $0x34] sm:$0xf]
        %v3214 = vld [vmem:[%s3199 + $0x38] sm:$0xf]
        %v3215 = vld [vmem:[%s3199 + $0x3c] sm:$0xf]
        %v3216 = vunpack.c.l.b16 %v3090
        %v3217 = vunpack.c.l.b16 %v3093
        %v3218 = vunpack.c.l.b16 %v3097
        %v3219 = vunpack.c.l.b16 %v3100
        %v3220 = vunpack.c.l.b16 %v3104
        %v3221 = vunpack.c.l.b16 %v3107
        %v3222 = vunpack.c.l.b16 %v3111
        %v3223 = vunpack.c.l.b16 %v3114
        %v3224 = vunpack.c.l.b16 %v3118
        %v3225 = vunpack.c.l.b16 %v3121
        %v3226 = vunpack.c.l.b16 %v3125
        %v3227 = vunpack.c.l.b16 %v3128
        %v3228 = vunpack.c.l.b16 %v3132
        %v3229 = vunpack.c.l.b16 %v3135
        %v3230 = vunpack.c.l.b16 %v3139
        %v3231 = vunpack.c.l.b16 %v3142
        %v3232 = vunpack.c.l.b16 %v3146
        %v3233 = vunpack.c.l.b16 %v3149
        %v3234 = vunpack.c.l.b16 %v3153
        %v3235 = vunpack.c.l.b16 %v3156
        %v3236 = vunpack.c.l.b16 %v3160
        %v3237 = vunpack.c.l.b16 %v3163
        %v3238 = vunpack.c.l.b16 %v3167
        %v3239 = vunpack.c.l.b16 %v3170
        %v3240 = vunpack.c.l.b16 %v3174
        %v3241 = vunpack.c.l.b16 %v3177
        %v3242 = vunpack.c.l.b16 %v3181
        %v3243 = vunpack.c.l.b16 %v3184
        %v3244 = vunpack.c.l.b16 %v3188
        %v3245 = vunpack.c.l.b16 %v3191
        %v3246 = vunpack.c.l.b16 %v3195
        %v3247 = vunpack.c.l.b16 %v3198
        %v3248 = vpack.c.b16 %v3217, %v3216
        %v3249 = vpack.c.b16 %v3219, %v3218
        %v3250 = vpack.c.b16 %v3221, %v3220
        %v3251 = vpack.c.b16 %v3223, %v3222
        %v3252 = vpack.c.b16 %v3225, %v3224
        %v3253 = vpack.c.b16 %v3227, %v3226
        %v3254 = vpack.c.b16 %v3229, %v3228
        %v3255 = vpack.c.b16 %v3231, %v3230
        %v3256 = vpack.c.b16 %v3233, %v3232
        %v3257 = vpack.c.b16 %v3235, %v3234
        %v3258 = vpack.c.b16 %v3237, %v3236
        %v3259 = vpack.c.b16 %v3239, %v3238
        %v3260 = vpack.c.b16 %v3241, %v3240
        %v3261 = vpack.c.b16 %v3243, %v3242
        %v3262 = vpack.c.b16 %v3245, %v3244
        %v3263 = vpack.c.b16 %v3247, %v3246
        %v3296 = vunpack.c.l.b16 %v3200
        %v3297 = vunpack.c.l.b16 %v3201
        %v3298 = vunpack.c.l.b16 %v3202
        %v3299 = vunpack.c.l.b16 %v3203
        %v3300 = vunpack.c.l.b16 %v3204
        %v3301 = vunpack.c.l.b16 %v3205
        %v3302 = vunpack.c.l.b16 %v3206
        %v3303 = vunpack.c.l.b16 %v3207
        %v3304 = vunpack.c.l.b16 %v3208
        %v3305 = vunpack.c.l.b16 %v3209
        %v3306 = vunpack.c.l.b16 %v3210
        %v3307 = vunpack.c.l.b16 %v3211
        %v3308 = vunpack.c.l.b16 %v3212
        %v3309 = vunpack.c.l.b16 %v3213
        %v3310 = vunpack.c.l.b16 %v3214
        %v3311 = vunpack.c.l.b16 %v3215
        %v3312 = vpack.c.b16 %v3297, %v3296
        %v3313 = vpack.c.b16 %v3299, %v3298
        %v3314 = vpack.c.b16 %v3301, %v3300
        %v3315 = vpack.c.b16 %v3303, %v3302
        %v3316 = vpack.c.b16 %v3305, %v3304
        %v3317 = vpack.c.b16 %v3307, %v3306
        %v3318 = vpack.c.b16 %v3309, %v3308
        %v3319 = vpack.c.b16 %v3311, %v3310
        %3328 = vmatprep.subr.bf16.mxu0 0
        %3329 = vmatpush1.bf16.msra.mxu0 %v3312
        %3330 = vmatprep.subr.bf16.mxu0 0
        %3331 = vmatpush1.bf16.msra.mxu0 %v3313
        %3332 = vmatprep.subr.bf16.mxu0 0
        %3333 = vmatpush1.bf16.msra.mxu0 %v3314
        %3334 = vmatprep.subr.bf16.mxu0 0
        %3335 = vmatpush1.bf16.msra.mxu0 %v3315
        %3336 = vmatprep.subr.bf16.mxu0 0
        %3337 = vmatpush1.bf16.msra.mxu0 %v3316
        %3338 = vmatprep.subr.bf16.mxu0 0
        %3339 = vmatpush1.bf16.msra.mxu0 %v3317
        %3340 = vmatprep.subr.bf16.mxu0 0
        %3341 = vmatpush1.bf16.msra.mxu0 %v3318
        %3342 = vmatprep.subr.bf16.mxu0 0
        %3343 = vmatpush1.bf16.msra.mxu0 %v3319
        %3344 = vmatprep.subr.bf16.mxu0 0
        %3345 = vmatpush1.bf16.msra.mxu0 0
        %3346 = vmatprep.subr.bf16.mxu0 0
        %3347 = vmatpush1.bf16.msra.mxu0 0
        %3348 = vmatprep.subr.bf16.mxu0 0
        %3349 = vmatpush1.bf16.msra.mxu0 0
        %3350 = vmatprep.subr.bf16.mxu0 0
        %3351 = vmatpush1.bf16.msra.mxu0 0
        %3352 = vmatprep.subr.bf16.mxu0 0
        %3353 = vmatpush1.bf16.msra.mxu0 0
        %3354 = vmatprep.subr.bf16.mxu0 0
        %3355 = vmatpush1.bf16.msra.mxu0 0
        %3356 = vmatprep.subr.bf16.mxu0 0
        %3357 = vmatpush1.bf16.msra.mxu0 0
        %3358 = vmatprep.subr.bf16.mxu0 0
        %3359 = vmatpush1.bf16.msra.mxu0 0
        %3360 = vmatprep.mubr.bf16.mxu0 0
        %3361 = vmatmul.mubr.bf16.gmra.mrb[0].mxu0 %v3248
        %v3362 = vpop.f32.mrb[0].mxu0
        %v3363 = vadd.f32 0.0, %v3362
        %v3364 = vpop.f32.mrb[0].mxu0
        %v3365 = vpop.f32.mrb[0].mxu0
        %v3366 = vadd.f32 0.0, %v3365
        %v3367 = vpop.f32.mrb[0].mxu0
        %3368 = vmatprep.mubr.bf16.mxu0 0
        %3369 = vmatmul.mubr.bf16.gmra.mrb[0].mxu0 %v3249
        %v3370 = vpop.f32.mrb[0].mxu0
        %v3371 = vadd.f32 0.0, %v3370
        %v3372 = vpop.f32.mrb[0].mxu0
        %v3373 = vpop.f32.mrb[0].mxu0
        %v3374 = vadd.f32 0.0, %v3373
        %v3375 = vpop.f32.mrb[0].mxu0
        %3376 = vmatprep.mubr.bf16.mxu0 0
        %3377 = vmatmul.mubr.bf16.gmra.mrb[0].mxu0 %v3250
        %v3378 = vpop.f32.mrb[0].mxu0
        %v3379 = vadd.f32 0.0, %v3378
        %v3380 = vpop.f32.mrb[0].mxu0
        %v3381 = vpop.f32.mrb[0].mxu0
        %v3382 = vadd.f32 0.0, %v3381
        %v3383 = vpop.f32.mrb[0].mxu0
        %3384 = vmatprep.mubr.bf16.mxu0 0
        %3385 = vmatmul.mubr.bf16.gmra.mrb[0].mxu0 %v3251
        %v3386 = vpop.f32.mrb[0].mxu0
        %v3387 = vadd.f32 0.0, %v3386
        %v3388 = vpop.f32.mrb[0].mxu0
        %v3389 = vpop.f32.mrb[0].mxu0
        %v3390 = vadd.f32 0.0, %v3389
        %v3391 = vpop.f32.mrb[0].mxu0
        %3392 = vmatprep.mubr.bf16.mxu0 0
        %3393 = vmatmul.mubr.bf16.gmra.mrb[0].mxu0 %v3252
        %v3394 = vpop.f32.mrb[0].mxu0
        %v3395 = vadd.f32 0.0, %v3394
        %v3396 = vpop.f32.mrb[0].mxu0
        %v3397 = vpop.f32.mrb[0].mxu0
        %v3398 = vadd.f32 0.0, %v3397
        %v3399 = vpop.f32.mrb[0].mxu0
        %3400 = vmatprep.mubr.bf16.mxu0 0
        %3401 = vmatmul.mubr.bf16.gmra.mrb[0].mxu0 %v3253
        %v3402 = vpop.f32.mrb[0].mxu0
        %v3403 = vadd.f32 0.0, %v3402
        %v3404 = vpop.f32.mrb[0].mxu0
        %v3405 = vpop.f32.mrb[0].mxu0
        %v3406 = vadd.f32 0.0, %v3405
        %v3407 = vpop.f32.mrb[0].mxu0
        %3408 = vmatprep.mubr.bf16.mxu0 0
        %3409 = vmatmul.mubr.bf16.gmra.mrb[0].mxu0 %v3254
        %v3410 = vpop.f32.mrb[0].mxu0
        %v3411 = vadd.f32 0.0, %v3410
        %v3412 = vpop.f32.mrb[0].mxu0
        %v3413 = vpop.f32.mrb[0].mxu0
        %v3414 = vadd.f32 0.0, %v3413
        %v3415 = vpop.f32.mrb[0].mxu0
        %3416 = vmatprep.mubr.bf16.mxu0 0
        %3417 = vmatmul.mubr.bf16.gmra.mrb[0].mxu0 %v3255
        %v3418 = vpop.f32.mrb[0].mxu0
        %v3419 = vadd.f32 0.0, %v3418
        %v3420 = vpop.f32.mrb[0].mxu0
        %v3421 = vpop.f32.mrb[0].mxu0
        %v3422 = vadd.f32 0.0, %v3421
        %v3423 = vpop.f32.mrb[0].mxu0
        %3424 = vmatprep.mubr.bf16.mxu0 0
        %3425 = vmatmul.mubr.bf16.gmra.mrb[0].mxu0 %v3256
        %v3426 = vpop.f32.mrb[0].mxu0
        %v3427 = vadd.f32 0.0, %v3426
        %v3428 = vpop.f32.mrb[0].mxu0
        %v3429 = vpop.f32.mrb[0].mxu0
        %v3430 = vadd.f32 0.0, %v3429
        %v3431 = vpop.f32.mrb[0].mxu0
        %3432 = vmatprep.mubr.bf16.mxu0 0
        %3433 = vmatmul.mubr.bf16.gmra.mrb[0].mxu0 %v3257
        %v3434 = vpop.f32.mrb[0].mxu0
        %v3435 = vadd.f32 0.0, %v3434
        %v3436 = vpop.f32.mrb[0].mxu0
        %v3437 = vpop.f32.mrb[0].mxu0
        %v3438 = vadd.f32 0.0, %v3437
        %v3439 = vpop.f32.mrb[0].mxu0
        %3440 = vmatprep.mubr.bf16.mxu0 0
        %3441 = vmatmul.mubr.bf16.gmra.mrb[0].mxu0 %v3258
        %v3442 = vpop.f32.mrb[0].mxu0
        %v3443 = vadd.f32 0.0, %v3442
        %v3444 = vpop.f32.mrb[0].mxu0
        %v3445 = vpop.f32.mrb[0].mxu0
        %v3446 = vadd.f32 0.0, %v3445
        %v3447 = vpop.f32.mrb[0].mxu0
        %3448 = vmatprep.mubr.bf16.mxu0 0
        %3449 = vmatmul.mubr.bf16.gmra.mrb[0].mxu0 %v3259
        %v3450 = vpop.f32.mrb[0].mxu0
        %v3451 = vadd.f32 0.0, %v3450
        %v3452 = vpop.f32.mrb[0].mxu0
        %v3453 = vpop.f32.mrb[0].mxu0
        %v3454 = vadd.f32 0.0, %v3453
        %v3455 = vpop.f32.mrb[0].mxu0
        %3456 = vmatprep.mubr.bf16.mxu0 0
        %3457 = vmatmul.mubr.bf16.gmra.mrb[0].mxu0 %v3260
        %v3458 = vpop.f32.mrb[0].mxu0
        %v3459 = vadd.f32 0.0, %v3458
        %v3460 = vpop.f32.mrb[0].mxu0
        %v3461 = vpop.f32.mrb[0].mxu0
        %v3462 = vadd.f32 0.0, %v3461
        %v3463 = vpop.f32.mrb[0].mxu0
        %3464 = vmatprep.mubr.bf16.mxu0 0
        %3465 = vmatmul.mubr.bf16.gmra.mrb[0].mxu0 %v3261
        %v3466 = vpop.f32.mrb[0].mxu0
        %v3467 = vadd.f32 0.0, %v3466
        %v3468 = vpop.f32.mrb[0].mxu0
        %v3469 = vpop.f32.mrb[0].mxu0
        %v3470 = vadd.f32 0.0, %v3469
        %v3471 = vpop.f32.mrb[0].mxu0
        %3472 = vmatprep.mubr.bf16.mxu0 0
        %3473 = vmatmul.mubr.bf16.gmra.mrb[0].mxu0 %v3262
        %v3474 = vpop.f32.mrb[0].mxu0
        %v3475 = vadd.f32 0.0, %v3474
        %v3476 = vpop.f32.mrb[0].mxu0
        %v3477 = vpop.f32.mrb[0].mxu0
        %v3478 = vadd.f32 0.0, %v3477
        %v3479 = vpop.f32.mrb[0].mxu0
        %3480 = vmatprep.mubr.bf16.mxu0 0
        %3481 = vmatmul.mubr.bf16.gmra.mrb[0].mxu0 %v3263
        %v3482 = vpop.f32.mrb[0].mxu0
        %v3483 = vadd.f32 0.0, %v3482
        %v3484 = vpop.f32.mrb[0].mxu0
        %v3485 = vpop.f32.mrb[0].mxu0
        %v3486 = vadd.f32 0.0, %v3485
        %v3487 = vpop.f32.mrb[0].mxu0
        %3488 = vdwg.mxu0
        %v3489 = vadd.f32 %v2991, %v3363
        %v3490 = vadd.f32 %v2992, %v3366
        %v3491 = vadd.f32 %v2993, %v3371
        %v3492 = vadd.f32 %v2994, %v3374
        %v3493 = vadd.f32 %v2995, %v3379
        %v3494 = vadd.f32 %v2996, %v3382
        %v3495 = vadd.f32 %v2997, %v3387
        %v3496 = vadd.f32 %v2998, %v3390
        %v3497 = vadd.f32 %v2999, %v3395
        %v3498 = vadd.f32 %v3000, %v3398
        %v3499 = vadd.f32 %v3001, %v3403
        %v3500 = vadd.f32 %v3002, %v3406
        %v3501 = vadd.f32 %v3003, %v3411
        %v3502 = vadd.f32 %v3004, %v3414
        %v3503 = vadd.f32 %v3005, %v3419
        %v3504 = vadd.f32 %v3006, %v3422
        %v3505 = vadd.f32 %v3007, %v3427
        %v3506 = vadd.f32 %v3008, %v3430
        %v3507 = vadd.f32 %v3009, %v3435
        %v3508 = vadd.f32 %v3010, %v3438
        %v3509 = vadd.f32 %v3011, %v3443
        %v3510 = vadd.f32 %v3012, %v3446
        %v3511 = vadd.f32 %v3013, %v3451
        %v3512 = vadd.f32 %v3014, %v3454
        %v3513 = vadd.f32 %v3015, %v3459
        %v3514 = vadd.f32 %v3016, %v3462
        %v3515 = vadd.f32 %v3017, %v3467
        %v3516 = vadd.f32 %v3018, %v3470
        %v3517 = vadd.f32 %v3019, %v3475
        %v3518 = vadd.f32 %v3020, %v3478
        %v3519 = vadd.f32 %v3021, %v3483
        %v3520 = vadd.f32 %v3022, %v3486
        %s3521 = scalar_lea.vmem %s291, 24
        %v3522 = vld [vmem:[%s3521] sm:$0xf]
        %v3523 = vld [vmem:[%s3521 + $0x4] sm:$0xf]
        %v3524 = vld [vmem:[%s3521 + $0xc] sm:$0xf]
        %v3525 = vld [vmem:[%s3521 + $0x10] sm:$0xf]
        %v3526 = vld [vmem:[%s3521 + $0x18] sm:$0xf]
        %v3527 = vld [vmem:[%s3521 + $0x1c] sm:$0xf]
        %v3528 = vld [vmem:[%s3521 + $0x24] sm:$0xf]
        %v3529 = vld [vmem:[%s3521 + $0x28] sm:$0xf]
        %v3530 = vld [vmem:[%s3521 + $0x30] sm:$0xf]
        %v3531 = vld [vmem:[%s3521 + $0x34] sm:$0xf]
        %v3532 = vld [vmem:[%s3521 + $0x3c] sm:$0xf]
        %v3533 = vld [vmem:[%s3521 + $0x40] sm:$0xf]
        %v3534 = vld [vmem:[%s3521 + $0x48] sm:$0xf]
        %v3535 = vld [vmem:[%s3521 + $0x4c] sm:$0xf]
        %v3536 = vld [vmem:[%s3521 + $0x54] sm:$0xf]
        %v3537 = vld [vmem:[%s3521 + $0x58] sm:$0xf]
        %v3538 = vld [vmem:[%s3521 + $0x60] sm:$0xf]
        %v3539 = vld [vmem:[%s3521 + $0x64] sm:$0xf]
        %v3540 = vld [vmem:[%s3521 + $0x6c] sm:$0xf]
        %v3541 = vld [vmem:[%s3521 + $0x70] sm:$0xf]
        %v3542 = vld [vmem:[%s3521 + $0x78] sm:$0xf]
        %v3543 = vld [vmem:[%s3521 + $0x7c] sm:$0xf]
        %v3544 = vld [vmem:[%s3521 + $0x84] sm:$0xf]
        %v3545 = vld [vmem:[%s3521 + $0x88] sm:$0xf]
        %v3546 = vld [vmem:[%s3521 + $0x90] sm:$0xf]
        %v3547 = vld [vmem:[%s3521 + $0x94] sm:$0xf]
        %v3548 = vld [vmem:[%s3521 + $0x9c] sm:$0xf]
        %v3549 = vld [vmem:[%s3521 + $0xa0] sm:$0xf]
        %v3550 = vld [vmem:[%s3521 + $0xa8] sm:$0xf]
        %v3551 = vld [vmem:[%s3521 + $0xac] sm:$0xf]
        %v3552 = vld [vmem:[%s3521 + $0xb4] sm:$0xf]
        %v3553 = vld [vmem:[%s3521 + $0xb8] sm:$0xf]
        %s3554 = scalar_lea.vmem %s1, 384
        %v3555 = vld [vmem:[%s3554] sm:$0xf]
        %v3556 = vld [vmem:[%s3554 + $0x4] sm:$0xf]
        %v3557 = vld [vmem:[%s3554 + $0x8] sm:$0xf]
        %v3558 = vld [vmem:[%s3554 + $0xc] sm:$0xf]
        %v3559 = vld [vmem:[%s3554 + $0x10] sm:$0xf]
        %v3560 = vld [vmem:[%s3554 + $0x14] sm:$0xf]
        %v3561 = vld [vmem:[%s3554 + $0x18] sm:$0xf]
        %v3562 = vld [vmem:[%s3554 + $0x1c] sm:$0xf]
        %v3563 = vld [vmem:[%s3554 + $0x20] sm:$0xf]
        %v3564 = vld [vmem:[%s3554 + $0x24] sm:$0xf]
        %v3565 = vld [vmem:[%s3554 + $0x28] sm:$0xf]
        %v3566 = vld [vmem:[%s3554 + $0x2c] sm:$0xf]
        %v3567 = vld [vmem:[%s3554 + $0x30] sm:$0xf]
        %v3568 = vld [vmem:[%s3554 + $0x34] sm:$0xf]
        %v3569 = vld [vmem:[%s3554 + $0x38] sm:$0xf]
        %v3570 = vld [vmem:[%s3554 + $0x3c] sm:$0xf]
        %v3603 = vunpack.c.l.b16 %v3522
        %v3604 = vunpack.c.l.b16 %v3523
        %v3605 = vunpack.c.l.b16 %v3524
        %v3606 = vunpack.c.l.b16 %v3525
        %v3607 = vunpack.c.l.b16 %v3526
        %v3608 = vunpack.c.l.b16 %v3527
        %v3609 = vunpack.c.l.b16 %v3528
        %v3610 = vunpack.c.l.b16 %v3529
        %v3611 = vunpack.c.l.b16 %v3530
        %v3612 = vunpack.c.l.b16 %v3531
        %v3613 = vunpack.c.l.b16 %v3532
        %v3614 = vunpack.c.l.b16 %v3533
        %v3615 = vunpack.c.l.b16 %v3534
        %v3616 = vunpack.c.l.b16 %v3535
        %v3617 = vunpack.c.l.b16 %v3536
        %v3618 = vunpack.c.l.b16 %v3537
        %v3619 = vunpack.c.l.b16 %v3538
        %v3620 = vunpack.c.l.b16 %v3539
        %v3621 = vunpack.c.l.b16 %v3540
        %v3622 = vunpack.c.l.b16 %v3541
        %v3623 = vunpack.c.l.b16 %v3542
        %v3624 = vunpack.c.l.b16 %v3543
        %v3625 = vunpack.c.l.b16 %v3544
        %v3626 = vunpack.c.l.b16 %v3545
        %v3627 = vunpack.c.l.b16 %v3546
        %v3628 = vunpack.c.l.b16 %v3547
        %v3629 = vunpack.c.l.b16 %v3548
        %v3630 = vunpack.c.l.b16 %v3549
        %v3631 = vunpack.c.l.b16 %v3550
        %v3632 = vunpack.c.l.b16 %v3551
        %v3633 = vunpack.c.l.b16 %v3552
        %v3634 = vunpack.c.l.b16 %v3553
        %v3635 = vpack.c.b16 %v3604, %v3603
        %v3636 = vpack.c.b16 %v3606, %v3605
        %v3637 = vpack.c.b16 %v3608, %v3607
        %v3638 = vpack.c.b16 %v3610, %v3609
        %v3639 = vpack.c.b16 %v3612, %v3611
        %v3640 = vpack.c.b16 %v3614, %v3613
        %v3641 = vpack.c.b16 %v3616, %v3615
        %v3642 = vpack.c.b16 %v3618, %v3617
        %v3643 = vpack.c.b16 %v3620, %v3619
        %v3644 = vpack.c.b16 %v3622, %v3621
        %v3645 = vpack.c.b16 %v3624, %v3623
        %v3646 = vpack.c.b16 %v3626, %v3625
        %v3647 = vpack.c.b16 %v3628, %v3627
        %v3648 = vpack.c.b16 %v3630, %v3629
        %v3649 = vpack.c.b16 %v3632, %v3631
        %v3650 = vpack.c.b16 %v3634, %v3633
        %v3683 = vunpack.c.l.b16 %v3555
        %v3684 = vunpack.c.l.b16 %v3556
        %v3685 = vunpack.c.l.b16 %v3557
        %v3686 = vunpack.c.l.b16 %v3558
        %v3687 = vunpack.c.l.b16 %v3559
        %v3688 = vunpack.c.l.b16 %v3560
        %v3689 = vunpack.c.l.b16 %v3561
        %v3690 = vunpack.c.l.b16 %v3562
        %v3691 = vunpack.c.l.b16 %v3563
        %v3692 = vunpack.c.l.b16 %v3564
        %v3693 = vunpack.c.l.b16 %v3565
        %v3694 = vunpack.c.l.b16 %v3566
        %v3695 = vunpack.c.l.b16 %v3567
        %v3696 = vunpack.c.l.b16 %v3568
        %v3697 = vunpack.c.l.b16 %v3569
        %v3698 = vunpack.c.l.b16 %v3570
        %v3699 = vpack.c.b16 %v3684, %v3683
        %v3700 = vpack.c.b16 %v3686, %v3685
        %v3701 = vpack.c.b16 %v3688, %v3687
        %v3702 = vpack.c.b16 %v3690, %v3689
        %v3703 = vpack.c.b16 %v3692, %v3691
        %v3704 = vpack.c.b16 %v3694, %v3693
        %v3705 = vpack.c.b16 %v3696, %v3695
        %v3706 = vpack.c.b16 %v3698, %v3697
        %3715 = vmatprep.subr.bf16.mxu0 0
        %3716 = vmatpush1.bf16.msra.mxu0 %v3699
        %3717 = vmatprep.subr.bf16.mxu0 0
        %3718 = vmatpush1.bf16.msra.mxu0 %v3700
        %3719 = vmatprep.subr.bf16.mxu0 0
        %3720 = vmatpush1.bf16.msra.mxu0 %v3701
        %3721 = vmatprep.subr.bf16.mxu0 0
        %3722 = vmatpush1.bf16.msra.mxu0 %v3702
        %3723 = vmatprep.subr.bf16.mxu0 0
        %3724 = vmatpush1.bf16.msra.mxu0 %v3703
        %3725 = vmatprep.subr.bf16.mxu0 0
        %3726 = vmatpush1.bf16.msra.mxu0 %v3704
        %3727 = vmatprep.subr.bf16.mxu0 0
        %3728 = vmatpush1.bf16.msra.mxu0 %v3705
        %3729 = vmatprep.subr.bf16.mxu0 0
        %3730 = vmatpush1.bf16.msra.mxu0 %v3706
        %3731 = vmatprep.subr.bf16.mxu0 0
        %3732 = vmatpush1.bf16.msra.mxu0 0
        %3733 = vmatprep.subr.bf16.mxu0 0
        %3734 = vmatpush1.bf16.msra.mxu0 0
        %3735 = vmatprep.subr.bf16.mxu0 0
        %3736 = vmatpush1.bf16.msra.mxu0 0
        %3737 = vmatprep.subr.bf16.mxu0 0
        %3738 = vmatpush1.bf16.msra.mxu0 0
        %3739 = vmatprep.subr.bf16.mxu0 0
        %3740 = vmatpush1.bf16.msra.mxu0 0
        %3741 = vmatprep.subr.bf16.mxu0 0
        %3742 = vmatpush1.bf16.msra.mxu0 0
        %3743 = vmatprep.subr.bf16.mxu0 0
        %3744 = vmatpush1.bf16.msra.mxu0 0
        %3745 = vmatprep.subr.bf16.mxu0 0
        %3746 = vmatpush1.bf16.msra.mxu0 0
        %3747 = vmatprep.mubr.bf16.mxu0 0
        %3748 = vmatmul.mubr.bf16.gmra.mrb[0].mxu0 %v3635
        %v3749 = vpop.f32.mrb[0].mxu0
        %v3750 = vadd.f32 0.0, %v3749
        %v3751 = vpop.f32.mrb[0].mxu0
        %v3752 = vpop.f32.mrb[0].mxu0
        %v3753 = vadd.f32 0.0, %v3752
        %v3754 = vpop.f32.mrb[0].mxu0
        %3755 = vmatprep.mubr.bf16.mxu0 0
        %3756 = vmatmul.mubr.bf16.gmra.mrb[0].mxu0 %v3636
        %v3757 = vpop.f32.mrb[0].mxu0
        %v3758 = vadd.f32 0.0, %v3757
        %v3759 = vpop.f32.mrb[0].mxu0
        %v3760 = vpop.f32.mrb[0].mxu0
        %v3761 = vadd.f32 0.0, %v3760
        %v3762 = vpop.f32.mrb[0].mxu0
        %3763 = vmatprep.mubr.bf16.mxu0 0
        %3764 = vmatmul.mubr.bf16.gmra.mrb[0].mxu0 %v3637
        %v3765 = vpop.f32.mrb[0].mxu0
        %v3766 = vadd.f32 0.0, %v3765
        %v3767 = vpop.f32.mrb[0].mxu0
        %v3768 = vpop.f32.mrb[0].mxu0
        %v3769 = vadd.f32 0.0, %v3768
        %v3770 = vpop.f32.mrb[0].mxu0
        %3771 = vmatprep.mubr.bf16.mxu0 0
        %3772 = vmatmul.mubr.bf16.gmra.mrb[0].mxu0 %v3638
        %v3773 = vpop.f32.mrb[0].mxu0
        %v3774 = vadd.f32 0.0, %v3773
        %v3775 = vpop.f32.mrb[0].mxu0
        %v3776 = vpop.f32.mrb[0].mxu0
        %v3777 = vadd.f32 0.0, %v3776
        %v3778 = vpop.f32.mrb[0].mxu0
        %3779 = vmatprep.mubr.bf16.mxu0 0
        %3780 = vmatmul.mubr.bf16.gmra.mrb[0].mxu0 %v3639
        %v3781 = vpop.f32.mrb[0].mxu0
        %v3782 = vadd.f32 0.0, %v3781
        %v3783 = vpop.f32.mrb[0].mxu0
        %v3784 = vpop.f32.mrb[0].mxu0
        %v3785 = vadd.f32 0.0, %v3784
        %v3786 = vpop.f32.mrb[0].mxu0
        %3787 = vmatprep.mubr.bf16.mxu0 0
        %3788 = vmatmul.mubr.bf16.gmra.mrb[0].mxu0 %v3640
        %v3789 = vpop.f32.mrb[0].mxu0
        %v3790 = vadd.f32 0.0, %v3789
        %v3791 = vpop.f32.mrb[0].mxu0
        %v3792 = vpop.f32.mrb[0].mxu0
        %v3793 = vadd.f32 0.0, %v3792
        %v3794 = vpop.f32.mrb[0].mxu0
        %3795 = vmatprep.mubr.bf16.mxu0 0
        %3796 = vmatmul.mubr.bf16.gmra.mrb[0].mxu0 %v3641
        %v3797 = vpop.f32.mrb[0].mxu0
        %v3798 = vadd.f32 0.0, %v3797
        %v3799 = vpop.f32.mrb[0].mxu0
        %v3800 = vpop.f32.mrb[0].mxu0
        %v3801 = vadd.f32 0.0, %v3800
        %v3802 = vpop.f32.mrb[0].mxu0
        %3803 = vmatprep.mubr.bf16.mxu0 0
        %3804 = vmatmul.mubr.bf16.gmra.mrb[0].mxu0 %v3642
        %v3805 = vpop.f32.mrb[0].mxu0
        %v3806 = vadd.f32 0.0, %v3805
        %v3807 = vpop.f32.mrb[0].mxu0
        %v3808 = vpop.f32.mrb[0].mxu0
        %v3809 = vadd.f32 0.0, %v3808
        %v3810 = vpop.f32.mrb[0].mxu0
        %3811 = vmatprep.mubr.bf16.mxu0 0
        %3812 = vmatmul.mubr.bf16.gmra.mrb[0].mxu0 %v3643
        %v3813 = vpop.f32.mrb[0].mxu0
        %v3814 = vadd.f32 0.0, %v3813
        %v3815 = vpop.f32.mrb[0].mxu0
        %v3816 = vpop.f32.mrb[0].mxu0
        %v3817 = vadd.f32 0.0, %v3816
        %v3818 = vpop.f32.mrb[0].mxu0
        %3819 = vmatprep.mubr.bf16.mxu0 0
        %3820 = vmatmul.mubr.bf16.gmra.mrb[0].mxu0 %v3644
        %v3821 = vpop.f32.mrb[0].mxu0
        %v3822 = vadd.f32 0.0, %v3821
        %v3823 = vpop.f32.mrb[0].mxu0
        %v3824 = vpop.f32.mrb[0].mxu0
        %v3825 = vadd.f32 0.0, %v3824
        %v3826 = vpop.f32.mrb[0].mxu0
        %3827 = vmatprep.mubr.bf16.mxu0 0
        %3828 = vmatmul.mubr.bf16.gmra.mrb[0].mxu0 %v3645
        %v3829 = vpop.f32.mrb[0].mxu0
        %v3830 = vadd.f32 0.0, %v3829
        %v3831 = vpop.f32.mrb[0].mxu0
        %v3832 = vpop.f32.mrb[0].mxu0
        %v3833 = vadd.f32 0.0, %v3832
        %v3834 = vpop.f32.mrb[0].mxu0
        %3835 = vmatprep.mubr.bf16.mxu0 0
        %3836 = vmatmul.mubr.bf16.gmra.mrb[0].mxu0 %v3646
        %v3837 = vpop.f32.mrb[0].mxu0
        %v3838 = vadd.f32 0.0, %v3837
        %v3839 = vpop.f32.mrb[0].mxu0
        %v3840 = vpop.f32.mrb[0].mxu0
        %v3841 = vadd.f32 0.0, %v3840
        %v3842 = vpop.f32.mrb[0].mxu0
        %3843 = vmatprep.mubr.bf16.mxu0 0
        %3844 = vmatmul.mubr.bf16.gmra.mrb[0].mxu0 %v3647
        %v3845 = vpop.f32.mrb[0].mxu0
        %v3846 = vadd.f32 0.0, %v3845
        %v3847 = vpop.f32.mrb[0].mxu0
        %v3848 = vpop.f32.mrb[0].mxu0
        %v3849 = vadd.f32 0.0, %v3848
        %v3850 = vpop.f32.mrb[0].mxu0
        %3851 = vmatprep.mubr.bf16.mxu0 0
        %3852 = vmatmul.mubr.bf16.gmra.mrb[0].mxu0 %v3648
        %v3853 = vpop.f32.mrb[0].mxu0
        %v3854 = vadd.f32 0.0, %v3853
        %v3855 = vpop.f32.mrb[0].mxu0
        %v3856 = vpop.f32.mrb[0].mxu0
        %v3857 = vadd.f32 0.0, %v3856
        %v3858 = vpop.f32.mrb[0].mxu0
        %3859 = vmatprep.mubr.bf16.mxu0 0
        %3860 = vmatmul.mubr.bf16.gmra.mrb[0].mxu0 %v3649
        %v3861 = vpop.f32.mrb[0].mxu0
        %v3862 = vadd.f32 0.0, %v3861
        %v3863 = vpop.f32.mrb[0].mxu0
        %v3864 = vpop.f32.mrb[0].mxu0
        %v3865 = vadd.f32 0.0, %v3864
        %v3866 = vpop.f32.mrb[0].mxu0
        %3867 = vmatprep.mubr.bf16.mxu0 0
        %3868 = vmatmul.mubr.bf16.gmra.mrb[0].mxu0 %v3650
        %v3869 = vpop.f32.mrb[0].mxu0
        %v3870 = vadd.f32 0.0, %v3869
        %v3871 = vpop.f32.mrb[0].mxu0
        %v3872 = vpop.f32.mrb[0].mxu0
        %v3873 = vadd.f32 0.0, %v3872
        %v3874 = vpop.f32.mrb[0].mxu0
        %3875 = vdwg.mxu0
        %v3876 = vadd.f32 %v3489, %v3750
        %v3877 = vadd.f32 %v3490, %v3753
        %v3878 = vadd.f32 %v3491, %v3758
        %v3879 = vadd.f32 %v3492, %v3761
        %v3880 = vadd.f32 %v3493, %v3766
        %v3881 = vadd.f32 %v3494, %v3769
        %v3882 = vadd.f32 %v3495, %v3774
        %v3883 = vadd.f32 %v3496, %v3777
        %v3884 = vadd.f32 %v3497, %v3782
        %v3885 = vadd.f32 %v3498, %v3785
        %v3886 = vadd.f32 %v3499, %v3790
        %v3887 = vadd.f32 %v3500, %v3793
        %v3888 = vadd.f32 %v3501, %v3798
        %v3889 = vadd.f32 %v3502, %v3801
        %v3890 = vadd.f32 %v3503, %v3806
        %v3891 = vadd.f32 %v3504, %v3809
        %v3892 = vadd.f32 %v3505, %v3814
        %v3893 = vadd.f32 %v3506, %v3817
        %v3894 = vadd.f32 %v3507, %v3822
        %v3895 = vadd.f32 %v3508, %v3825
        %v3896 = vadd.f32 %v3509, %v3830
        %v3897 = vadd.f32 %v3510, %v3833
        %v3898 = vadd.f32 %v3511, %v3838
        %v3899 = vadd.f32 %v3512, %v3841
        %v3900 = vadd.f32 %v3513, %v3846
        %v3901 = vadd.f32 %v3514, %v3849
        %v3902 = vadd.f32 %v3515, %v3854
        %v3903 = vadd.f32 %v3516, %v3857
        %v3904 = vadd.f32 %v3517, %v3862
        %v3905 = vadd.f32 %v3518, %v3865
        %v3906 = vadd.f32 %v3519, %v3870
        %v3907 = vadd.f32 %v3520, %v3873
        %v3908 = vld [vmem:[%s3521] sm:$0xf]
        %v3909 = vld [vmem:[%s3521 + $0x4] sm:$0xf]
        %v3910 = vld [vmem:[%s3521 + $0x8] sm:$0x1]
        %v3911 = vld [vmem:[%s3521 + $0xc] sm:$0xf]
        %v3912 = vld [vmem:[%s3521 + $0x10] sm:$0xf]
        %v3913 = vld [vmem:[%s3521 + $0x14] sm:$0x1]
        %v3914 = vld [vmem:[%s3521 + $0x18] sm:$0xf]
        %v3915 = vld [vmem:[%s3521 + $0x1c] sm:$0xf]
        %v3916 = vld [vmem:[%s3521 + $0x20] sm:$0x1]
        %v3917 = vld [vmem:[%s3521 + $0x24] sm:$0xf]
        %v3918 = vld [vmem:[%s3521 + $0x28] sm:$0xf]
        %v3919 = vld [vmem:[%s3521 + $0x2c] sm:$0x1]
        %v3920 = vld [vmem:[%s3521 + $0x30] sm:$0xf]
        %v3921 = vld [vmem:[%s3521 + $0x34] sm:$0xf]
        %v3922 = vld [vmem:[%s3521 + $0x38] sm:$0x1]
        %v3923 = vld [vmem:[%s3521 + $0x3c] sm:$0xf]
        %v3924 = vld [vmem:[%s3521 + $0x40] sm:$0xf]
        %v3925 = vld [vmem:[%s3521 + $0x44] sm:$0x1]
        %v3926 = vld [vmem:[%s3521 + $0x48] sm:$0xf]
        %v3927 = vld [vmem:[%s3521 + $0x4c] sm:$0xf]
        %v3928 = vld [vmem:[%s3521 + $0x50] sm:$0x1]
        %v3929 = vld [vmem:[%s3521 + $0x54] sm:$0xf]
        %v3930 = vld [vmem:[%s3521 + $0x58] sm:$0xf]
        %v3931 = vld [vmem:[%s3521 + $0x5c] sm:$0x1]
        %v3932 = vld [vmem:[%s3521 + $0x60] sm:$0xf]
        %v3933 = vld [vmem:[%s3521 + $0x64] sm:$0xf]
        %v3934 = vld [vmem:[%s3521 + $0x68] sm:$0x1]
        %v3935 = vld [vmem:[%s3521 + $0x6c] sm:$0xf]
        %v3936 = vld [vmem:[%s3521 + $0x70] sm:$0xf]
        %v3937 = vld [vmem:[%s3521 + $0x74] sm:$0x1]
        %v3938 = vld [vmem:[%s3521 + $0x78] sm:$0xf]
        %v3939 = vld [vmem:[%s3521 + $0x7c] sm:$0xf]
        %v3940 = vld [vmem:[%s3521 + $0x80] sm:$0x1]
        %v3941 = vld [vmem:[%s3521 + $0x84] sm:$0xf]
        %v3942 = vld [vmem:[%s3521 + $0x88] sm:$0xf]
        %v3943 = vld [vmem:[%s3521 + $0x8c] sm:$0x1]
        %v3944 = vld [vmem:[%s3521 + $0x90] sm:$0xf]
        %v3945 = vld [vmem:[%s3521 + $0x94] sm:$0xf]
        %v3946 = vld [vmem:[%s3521 + $0x98] sm:$0x1]
        %v3947 = vld [vmem:[%s3521 + $0x9c] sm:$0xf]
        %v3948 = vld [vmem:[%s3521 + $0xa0] sm:$0xf]
        %v3949 = vld [vmem:[%s3521 + $0xa4] sm:$0x1]
        %v3950 = vld [vmem:[%s3521 + $0xa8] sm:$0xf]
        %v3951 = vld [vmem:[%s3521 + $0xac] sm:$0xf]
        %v3952 = vld [vmem:[%s3521 + $0xb0] sm:$0x1]
        %v3953 = vld [vmem:[%s3521 + $0xb4] sm:$0xf]
        %v3954 = vld [vmem:[%s3521 + $0xb8] sm:$0xf]
        %v3955 = vld [vmem:[%s3521 + $0xbc] sm:$0x1]
        %v3957 = vshrl.u32 %v3908, 16
        %v3959 = vrot.slane %v3957, 4
        %v3960 = vshll.u32 %v3908, 16
        %v3962 = vrot.slane %v3960, 5
        %v3963 = vor.u32 %v3959, %v3962
        %v3964 = vrot.slane %v3963, 4
        %v3966 = vshll.u32 %v3909, 16
        %v3968 = vrot.slane %v3966, 5
        %v3969 = vsel %vm417, %v3964, %v3968
        %v3970 = vshrl.u32 %v3909, 16
        %v3972 = vrot.slane %v3970, 4
        %v3973 = vor.u32 %v3972, %v3968
        %v3974 = vrot.slane %v3973, 4
        %v3976 = vshll.u32 %v3910, 16
        %v3978 = vrot.slane %v3976, 5
        %v3979 = vsel %vm417, %v3974, %v3978
        %v3981 = vshrl.u32 %v3911, 16
        %v3983 = vrot.slane %v3981, 4
        %v3984 = vshll.u32 %v3911, 16
        %v3986 = vrot.slane %v3984, 5
        %v3987 = vor.u32 %v3983, %v3986
        %v3988 = vrot.slane %v3987, 4
        %v3990 = vshll.u32 %v3912, 16
        %v3992 = vrot.slane %v3990, 5
        %v3993 = vsel %vm417, %v3988, %v3992
        %v3994 = vshrl.u32 %v3912, 16
        %v3996 = vrot.slane %v3994, 4
        %v3997 = vor.u32 %v3996, %v3992
        %v3998 = vrot.slane %v3997, 4
        %v4000 = vshll.u32 %v3913, 16
        %v4002 = vrot.slane %v4000, 5
        %v4003 = vsel %vm417, %v3998, %v4002
        %v4005 = vshrl.u32 %v3914, 16
        %v4007 = vrot.slane %v4005, 4
        %v4008 = vshll.u32 %v3914, 16
        %v4010 = vrot.slane %v4008, 5
        %v4011 = vor.u32 %v4007, %v4010
        %v4012 = vrot.slane %v4011, 4
        %v4014 = vshll.u32 %v3915, 16
        %v4016 = vrot.slane %v4014, 5
        %v4017 = vsel %vm417, %v4012, %v4016
        %v4018 = vshrl.u32 %v3915, 16
        %v4020 = vrot.slane %v4018, 4
        %v4021 = vor.u32 %v4020, %v4016
        %v4022 = vrot.slane %v4021, 4
        %v4024 = vshll.u32 %v3916, 16
        %v4026 = vrot.slane %v4024, 5
        %v4027 = vsel %vm417, %v4022, %v4026
        %v4029 = vshrl.u32 %v3917, 16
        %v4031 = vrot.slane %v4029, 4
        %v4032 = vshll.u32 %v3917, 16
        %v4034 = vrot.slane %v4032, 5
        %v4035 = vor.u32 %v4031, %v4034
        %v4036 = vrot.slane %v4035, 4
        %v4038 = vshll.u32 %v3918, 16
        %v4040 = vrot.slane %v4038, 5
        %v4041 = vsel %vm417, %v4036, %v4040
        %v4042 = vshrl.u32 %v3918, 16
        %v4044 = vrot.slane %v4042, 4
        %v4045 = vor.u32 %v4044, %v4040
        %v4046 = vrot.slane %v4045, 4
        %v4048 = vshll.u32 %v3919, 16
        %v4050 = vrot.slane %v4048, 5
        %v4051 = vsel %vm417, %v4046, %v4050
        %v4053 = vshrl.u32 %v3920, 16
        %v4055 = vrot.slane %v4053, 4
        %v4056 = vshll.u32 %v3920, 16
        %v4058 = vrot.slane %v4056, 5
        %v4059 = vor.u32 %v4055, %v4058
        %v4060 = vrot.slane %v4059, 4
        %v4062 = vshll.u32 %v3921, 16
        %v4064 = vrot.slane %v4062, 5
        %v4065 = vsel %vm417, %v4060, %v4064
        %v4066 = vshrl.u32 %v3921, 16
        %v4068 = vrot.slane %v4066, 4
        %v4069 = vor.u32 %v4068, %v4064
        %v4070 = vrot.slane %v4069, 4
        %v4072 = vshll.u32 %v3922, 16
        %v4074 = vrot.slane %v4072, 5
        %v4075 = vsel %vm417, %v4070, %v4074
        %v4077 = vshrl.u32 %v3923, 16
        %v4079 = vrot.slane %v4077, 4
        %v4080 = vshll.u32 %v3923, 16
        %v4082 = vrot.slane %v4080, 5
        %v4083 = vor.u32 %v4079, %v4082
        %v4084 = vrot.slane %v4083, 4
        %v4086 = vshll.u32 %v3924, 16
        %v4088 = vrot.slane %v4086, 5
        %v4089 = vsel %vm417, %v4084, %v4088
        %v4090 = vshrl.u32 %v3924, 16
        %v4092 = vrot.slane %v4090, 4
        %v4093 = vor.u32 %v4092, %v4088
        %v4094 = vrot.slane %v4093, 4
        %v4096 = vshll.u32 %v3925, 16
        %v4098 = vrot.slane %v4096, 5
        %v4099 = vsel %vm417, %v4094, %v4098
        %v4101 = vshrl.u32 %v3926, 16
        %v4103 = vrot.slane %v4101, 4
        %v4104 = vshll.u32 %v3926, 16
        %v4106 = vrot.slane %v4104, 5
        %v4107 = vor.u32 %v4103, %v4106
        %v4108 = vrot.slane %v4107, 4
        %v4110 = vshll.u32 %v3927, 16
        %v4112 = vrot.slane %v4110, 5
        %v4113 = vsel %vm417, %v4108, %v4112
        %v4114 = vshrl.u32 %v3927, 16
        %v4116 = vrot.slane %v4114, 4
        %v4117 = vor.u32 %v4116, %v4112
        %v4118 = vrot.slane %v4117, 4
        %v4120 = vshll.u32 %v3928, 16
        %v4122 = vrot.slane %v4120, 5
        %v4123 = vsel %vm417, %v4118, %v4122
        %v4125 = vshrl.u32 %v3929, 16
        %v4127 = vrot.slane %v4125, 4
        %v4128 = vshll.u32 %v3929, 16
        %v4130 = vrot.slane %v4128, 5
        %v4131 = vor.u32 %v4127, %v4130
        %v4132 = vrot.slane %v4131, 4
        %v4134 = vshll.u32 %v3930, 16
        %v4136 = vrot.slane %v4134, 5
        %v4137 = vsel %vm417, %v4132, %v4136
        %v4138 = vshrl.u32 %v3930, 16
        %v4140 = vrot.slane %v4138, 4
        %v4141 = vor.u32 %v4140, %v4136
        %v4142 = vrot.slane %v4141, 4
        %v4144 = vshll.u32 %v3931, 16
        %v4146 = vrot.slane %v4144, 5
        %v4147 = vsel %vm417, %v4142, %v4146
        %v4149 = vshrl.u32 %v3932, 16
        %v4151 = vrot.slane %v4149, 4
        %v4152 = vshll.u32 %v3932, 16
        %v4154 = vrot.slane %v4152, 5
        %v4155 = vor.u32 %v4151, %v4154
        %v4156 = vrot.slane %v4155, 4
        %v4158 = vshll.u32 %v3933, 16
        %v4160 = vrot.slane %v4158, 5
        %v4161 = vsel %vm417, %v4156, %v4160
        %v4162 = vshrl.u32 %v3933, 16
        %v4164 = vrot.slane %v4162, 4
        %v4165 = vor.u32 %v4164, %v4160
        %v4166 = vrot.slane %v4165, 4
        %v4168 = vshll.u32 %v3934, 16
        %v4170 = vrot.slane %v4168, 5
        %v4171 = vsel %vm417, %v4166, %v4170
        %v4173 = vshrl.u32 %v3935, 16
        %v4175 = vrot.slane %v4173, 4
        %v4176 = vshll.u32 %v3935, 16
        %v4178 = vrot.slane %v4176, 5
        %v4179 = vor.u32 %v4175, %v4178
        %v4180 = vrot.slane %v4179, 4
        %v4182 = vshll.u32 %v3936, 16
        %v4184 = vrot.slane %v4182, 5
        %v4185 = vsel %vm417, %v4180, %v4184
        %v4186 = vshrl.u32 %v3936, 16
        %v4188 = vrot.slane %v4186, 4
        %v4189 = vor.u32 %v4188, %v4184
        %v4190 = vrot.slane %v4189, 4
        %v4192 = vshll.u32 %v3937, 16
        %v4194 = vrot.slane %v4192, 5
        %v4195 = vsel %vm417, %v4190, %v4194
        %v4197 = vshrl.u32 %v3938, 16
        %v4199 = vrot.slane %v4197, 4
        %v4200 = vshll.u32 %v3938, 16
        %v4202 = vrot.slane %v4200, 5
        %v4203 = vor.u32 %v4199, %v4202
        %v4204 = vrot.slane %v4203, 4
        %v4206 = vshll.u32 %v3939, 16
        %v4208 = vrot.slane %v4206, 5
        %v4209 = vsel %vm417, %v4204, %v4208
        %v4210 = vshrl.u32 %v3939, 16
        %v4212 = vrot.slane %v4210, 4
        %v4213 = vor.u32 %v4212, %v4208
        %v4214 = vrot.slane %v4213, 4
        %v4216 = vshll.u32 %v3940, 16
        %v4218 = vrot.slane %v4216, 5
        %v4219 = vsel %vm417, %v4214, %v4218
        %v4221 = vshrl.u32 %v3941, 16
        %v4223 = vrot.slane %v4221, 4
        %v4224 = vshll.u32 %v3941, 16
        %v4226 = vrot.slane %v4224, 5
        %v4227 = vor.u32 %v4223, %v4226
        %v4228 = vrot.slane %v4227, 4
        %v4230 = vshll.u32 %v3942, 16
        %v4232 = vrot.slane %v4230, 5
        %v4233 = vsel %vm417, %v4228, %v4232
        %v4234 = vshrl.u32 %v3942, 16
        %v4236 = vrot.slane %v4234, 4
        %v4237 = vor.u32 %v4236, %v4232
        %v4238 = vrot.slane %v4237, 4
        %v4240 = vshll.u32 %v3943, 16
        %v4242 = vrot.slane %v4240, 5
        %v4243 = vsel %vm417, %v4238, %v4242
        %v4245 = vshrl.u32 %v3944, 16
        %v4247 = vrot.slane %v4245, 4
        %v4248 = vshll.u32 %v3944, 16
        %v4250 = vrot.slane %v4248, 5
        %v4251 = vor.u32 %v4247, %v4250
        %v4252 = vrot.slane %v4251, 4
        %v4254 = vshll.u32 %v3945, 16
        %v4256 = vrot.slane %v4254, 5
        %v4257 = vsel %vm417, %v4252, %v4256
        %v4258 = vshrl.u32 %v3945, 16
        %v4260 = vrot.slane %v4258, 4
        %v4261 = vor.u32 %v4260, %v4256
        %v4262 = vrot.slane %v4261, 4
        %v4264 = vshll.u32 %v3946, 16
        %v4266 = vrot.slane %v4264, 5
        %v4267 = vsel %vm417, %v4262, %v4266
        %v4269 = vshrl.u32 %v3947, 16
        %v4271 = vrot.slane %v4269, 4
        %v4272 = vshll.u32 %v3947, 16
        %v4274 = vrot.slane %v4272, 5
        %v4275 = vor.u32 %v4271, %v4274
        %v4276 = vrot.slane %v4275, 4
        %v4278 = vshll.u32 %v3948, 16
        %v4280 = vrot.slane %v4278, 5
        %v4281 = vsel %vm417, %v4276, %v4280
        %v4282 = vshrl.u32 %v3948, 16
        %v4284 = vrot.slane %v4282, 4
        %v4285 = vor.u32 %v4284, %v4280
        %v4286 = vrot.slane %v4285, 4
        %v4288 = vshll.u32 %v3949, 16
        %v4290 = vrot.slane %v4288, 5
        %v4291 = vsel %vm417, %v4286, %v4290
        %v4293 = vshrl.u32 %v3950, 16
        %v4295 = vrot.slane %v4293, 4
        %v4296 = vshll.u32 %v3950, 16
        %v4298 = vrot.slane %v4296, 5
        %v4299 = vor.u32 %v4295, %v4298
        %v4300 = vrot.slane %v4299, 4
        %v4302 = vshll.u32 %v3951, 16
        %v4304 = vrot.slane %v4302, 5
        %v4305 = vsel %vm417, %v4300, %v4304
        %v4306 = vshrl.u32 %v3951, 16
        %v4308 = vrot.slane %v4306, 4
        %v4309 = vor.u32 %v4308, %v4304
        %v4310 = vrot.slane %v4309, 4
        %v4312 = vshll.u32 %v3952, 16
        %v4314 = vrot.slane %v4312, 5
        %v4315 = vsel %vm417, %v4310, %v4314
        %v4317 = vshrl.u32 %v3953, 16
        %v4319 = vrot.slane %v4317, 4
        %v4320 = vshll.u32 %v3953, 16
        %v4322 = vrot.slane %v4320, 5
        %v4323 = vor.u32 %v4319, %v4322
        %v4324 = vrot.slane %v4323, 4
        %v4326 = vshll.u32 %v3954, 16
        %v4328 = vrot.slane %v4326, 5
        %v4329 = vsel %vm417, %v4324, %v4328
        %v4330 = vshrl.u32 %v3954, 16
        %v4332 = vrot.slane %v4330, 4
        %v4333 = vor.u32 %v4332, %v4328
        %v4334 = vrot.slane %v4333, 4
        %v4336 = vshll.u32 %v3955, 16
        %v4338 = vrot.slane %v4336, 5
        %v4339 = vsel %vm417, %v4334, %v4338
        %s4340 = scalar_lea.vmem %s1, 448
        %v4341 = vld [vmem:[%s4340] sm:$0xf]
        %v4342 = vld [vmem:[%s4340 + $0x4] sm:$0xf]
        %v4343 = vld [vmem:[%s4340 + $0x8] sm:$0xf]
        %v4344 = vld [vmem:[%s4340 + $0xc] sm:$0xf]
        %v4345 = vld [vmem:[%s4340 + $0x10] sm:$0xf]
        %v4346 = vld [vmem:[%s4340 + $0x14] sm:$0xf]
        %v4347 = vld [vmem:[%s4340 + $0x18] sm:$0xf]
        %v4348 = vld [vmem:[%s4340 + $0x1c] sm:$0xf]
        %v4349 = vld [vmem:[%s4340 + $0x20] sm:$0xf]
        %v4350 = vld [vmem:[%s4340 + $0x24] sm:$0xf]
        %v4351 = vld [vmem:[%s4340 + $0x28] sm:$0xf]
        %v4352 = vld [vmem:[%s4340 + $0x2c] sm:$0xf]
        %v4353 = vld [vmem:[%s4340 + $0x30] sm:$0xf]
        %v4354 = vld [vmem:[%s4340 + $0x34] sm:$0xf]
        %v4355 = vld [vmem:[%s4340 + $0x38] sm:$0xf]
        %v4356 = vld [vmem:[%s4340 + $0x3c] sm:$0xf]
        %v4357 = vunpack.c.l.b16 %v3969
        %v4358 = vunpack.c.l.b16 %v3979
        %v4359 = vunpack.c.l.b16 %v3993
        %v4360 = vunpack.c.l.b16 %v4003
        %v4361 = vunpack.c.l.b16 %v4017
        %v4362 = vunpack.c.l.b16 %v4027
        %v4363 = vunpack.c.l.b16 %v4041
        %v4364 = vunpack.c.l.b16 %v4051
        %v4365 = vunpack.c.l.b16 %v4065
        %v4366 = vunpack.c.l.b16 %v4075
        %v4367 = vunpack.c.l.b16 %v4089
        %v4368 = vunpack.c.l.b16 %v4099
        %v4369 = vunpack.c.l.b16 %v4113
        %v4370 = vunpack.c.l.b16 %v4123
        %v4371 = vunpack.c.l.b16 %v4137
        %v4372 = vunpack.c.l.b16 %v4147
        %v4373 = vunpack.c.l.b16 %v4161
        %v4374 = vunpack.c.l.b16 %v4171
        %v4375 = vunpack.c.l.b16 %v4185
        %v4376 = vunpack.c.l.b16 %v4195
        %v4377 = vunpack.c.l.b16 %v4209
        %v4378 = vunpack.c.l.b16 %v4219
        %v4379 = vunpack.c.l.b16 %v4233
        %v4380 = vunpack.c.l.b16 %v4243
        %v4381 = vunpack.c.l.b16 %v4257
        %v4382 = vunpack.c.l.b16 %v4267
        %v4383 = vunpack.c.l.b16 %v4281
        %v4384 = vunpack.c.l.b16 %v4291
        %v4385 = vunpack.c.l.b16 %v4305
        %v4386 = vunpack.c.l.b16 %v4315
        %v4387 = vunpack.c.l.b16 %v4329
        %v4388 = vunpack.c.l.b16 %v4339
        %v4389 = vpack.c.b16 %v4358, %v4357
        %v4390 = vpack.c.b16 %v4360, %v4359
        %v4391 = vpack.c.b16 %v4362, %v4361
        %v4392 = vpack.c.b16 %v4364, %v4363
        %v4393 = vpack.c.b16 %v4366, %v4365
        %v4394 = vpack.c.b16 %v4368, %v4367
        %v4395 = vpack.c.b16 %v4370, %v4369
        %v4396 = vpack.c.b16 %v4372, %v4371
        %v4397 = vpack.c.b16 %v4374, %v4373
        %v4398 = vpack.c.b16 %v4376, %v4375
        %v4399 = vpack.c.b16 %v4378, %v4377
        %v4400 = vpack.c.b16 %v4380, %v4379
        %v4401 = vpack.c.b16 %v4382, %v4381
        %v4402 = vpack.c.b16 %v4384, %v4383
        %v4403 = vpack.c.b16 %v4386, %v4385
        %v4404 = vpack.c.b16 %v4388, %v4387
        %v4437 = vunpack.c.l.b16 %v4341
        %v4438 = vunpack.c.l.b16 %v4342
        %v4439 = vunpack.c.l.b16 %v4343
        %v4440 = vunpack.c.l.b16 %v4344
        %v4441 = vunpack.c.l.b16 %v4345
        %v4442 = vunpack.c.l.b16 %v4346
        %v4443 = vunpack.c.l.b16 %v4347
        %v4444 = vunpack.c.l.b16 %v4348
        %v4445 = vunpack.c.l.b16 %v4349
        %v4446 = vunpack.c.l.b16 %v4350
        %v4447 = vunpack.c.l.b16 %v4351
        %v4448 = vunpack.c.l.b16 %v4352
        %v4449 = vunpack.c.l.b16 %v4353
        %v4450 = vunpack.c.l.b16 %v4354
        %v4451 = vunpack.c.l.b16 %v4355
        %v4452 = vunpack.c.l.b16 %v4356
        %v4453 = vpack.c.b16 %v4438, %v4437
        %v4454 = vpack.c.b16 %v4440, %v4439
        %v4455 = vpack.c.b16 %v4442, %v4441
        %v4456 = vpack.c.b16 %v4444, %v4443
        %v4457 = vpack.c.b16 %v4446, %v4445
        %v4458 = vpack.c.b16 %v4448, %v4447
        %v4459 = vpack.c.b16 %v4450, %v4449
        %v4460 = vpack.c.b16 %v4452, %v4451
        %4469 = vmatprep.subr.bf16.mxu0 0
        %4470 = vmatpush1.bf16.msra.mxu0 %v4453
        %4471 = vmatprep.subr.bf16.mxu0 0
        %4472 = vmatpush1.bf16.msra.mxu0 %v4454
        %4473 = vmatprep.subr.bf16.mxu0 0
        %4474 = vmatpush1.bf16.msra.mxu0 %v4455
        %4475 = vmatprep.subr.bf16.mxu0 0
        %4476 = vmatpush1.bf16.msra.mxu0 %v4456
        %4477 = vmatprep.subr.bf16.mxu0 0
        %4478 = vmatpush1.bf16.msra.mxu0 %v4457
        %4479 = vmatprep.subr.bf16.mxu0 0
        %4480 = vmatpush1.bf16.msra.mxu0 %v4458
        %4481 = vmatprep.subr.bf16.mxu0 0
        %4482 = vmatpush1.bf16.msra.mxu0 %v4459
        %4483 = vmatprep.subr.bf16.mxu0 0
        %4484 = vmatpush1.bf16.msra.mxu0 %v4460
        %4485 = vmatprep.subr.bf16.mxu0 0
        %4486 = vmatpush1.bf16.msra.mxu0 0
        %4487 = vmatprep.subr.bf16.mxu0 0
        %4488 = vmatpush1.bf16.msra.mxu0 0
        %4489 = vmatprep.subr.bf16.mxu0 0
        %4490 = vmatpush1.bf16.msra.mxu0 0
        %4491 = vmatprep.subr.bf16.mxu0 0
        %4492 = vmatpush1.bf16.msra.mxu0 0
        %4493 = vmatprep.subr.bf16.mxu0 0
        %4494 = vmatpush1.bf16.msra.mxu0 0
        %4495 = vmatprep.subr.bf16.mxu0 0
        %4496 = vmatpush1.bf16.msra.mxu0 0
        %4497 = vmatprep.subr.bf16.mxu0 0
        %4498 = vmatpush1.bf16.msra.mxu0 0
        %4499 = vmatprep.subr.bf16.mxu0 0
        %4500 = vmatpush1.bf16.msra.mxu0 0
        %4501 = vmatprep.mubr.bf16.mxu0 0
        %4502 = vmatmul.mubr.bf16.gmra.mrb[0].mxu0 %v4389
        %v4503 = vpop.f32.mrb[0].mxu0
        %v4504 = vadd.f32 0.0, %v4503
        %v4505 = vpop.f32.mrb[0].mxu0
        %v4506 = vpop.f32.mrb[0].mxu0
        %v4507 = vadd.f32 0.0, %v4506
        %v4508 = vpop.f32.mrb[0].mxu0
        %4509 = vmatprep.mubr.bf16.mxu0 0
        %4510 = vmatmul.mubr.bf16.gmra.mrb[0].mxu0 %v4390
        %v4511 = vpop.f32.mrb[0].mxu0
        %v4512 = vadd.f32 0.0, %v4511
        %v4513 = vpop.f32.mrb[0].mxu0
        %v4514 = vpop.f32.mrb[0].mxu0
        %v4515 = vadd.f32 0.0, %v4514
        %v4516 = vpop.f32.mrb[0].mxu0
        %4517 = vmatprep.mubr.bf16.mxu0 0
        %4518 = vmatmul.mubr.bf16.gmra.mrb[0].mxu0 %v4391
        %v4519 = vpop.f32.mrb[0].mxu0
        %v4520 = vadd.f32 0.0, %v4519
        %v4521 = vpop.f32.mrb[0].mxu0
        %v4522 = vpop.f32.mrb[0].mxu0
        %v4523 = vadd.f32 0.0, %v4522
        %v4524 = vpop.f32.mrb[0].mxu0
        %4525 = vmatprep.mubr.bf16.mxu0 0
        %4526 = vmatmul.mubr.bf16.gmra.mrb[0].mxu0 %v4392
        %v4527 = vpop.f32.mrb[0].mxu0
        %v4528 = vadd.f32 0.0, %v4527
        %v4529 = vpop.f32.mrb[0].mxu0
        %v4530 = vpop.f32.mrb[0].mxu0
        %v4531 = vadd.f32 0.0, %v4530
        %v4532 = vpop.f32.mrb[0].mxu0
        %4533 = vmatprep.mubr.bf16.mxu0 0
        %4534 = vmatmul.mubr.bf16.gmra.mrb[0].mxu0 %v4393
        %v4535 = vpop.f32.mrb[0].mxu0
        %v4536 = vadd.f32 0.0, %v4535
        %v4537 = vpop.f32.mrb[0].mxu0
        %v4538 = vpop.f32.mrb[0].mxu0
        %v4539 = vadd.f32 0.0, %v4538
        %v4540 = vpop.f32.mrb[0].mxu0
        %4541 = vmatprep.mubr.bf16.mxu0 0
        %4542 = vmatmul.mubr.bf16.gmra.mrb[0].mxu0 %v4394
        %v4543 = vpop.f32.mrb[0].mxu0
        %v4544 = vadd.f32 0.0, %v4543
        %v4545 = vpop.f32.mrb[0].mxu0
        %v4546 = vpop.f32.mrb[0].mxu0
        %v4547 = vadd.f32 0.0, %v4546
        %v4548 = vpop.f32.mrb[0].mxu0
        %4549 = vmatprep.mubr.bf16.mxu0 0
        %4550 = vmatmul.mubr.bf16.gmra.mrb[0].mxu0 %v4395
        %v4551 = vpop.f32.mrb[0].mxu0
        %v4552 = vadd.f32 0.0, %v4551
        %v4553 = vpop.f32.mrb[0].mxu0
        %v4554 = vpop.f32.mrb[0].mxu0
        %v4555 = vadd.f32 0.0, %v4554
        %v4556 = vpop.f32.mrb[0].mxu0
        %4557 = vmatprep.mubr.bf16.mxu0 0
        %4558 = vmatmul.mubr.bf16.gmra.mrb[0].mxu0 %v4396
        %v4559 = vpop.f32.mrb[0].mxu0
        %v4560 = vadd.f32 0.0, %v4559
        %v4561 = vpop.f32.mrb[0].mxu0
        %v4562 = vpop.f32.mrb[0].mxu0
        %v4563 = vadd.f32 0.0, %v4562
        %v4564 = vpop.f32.mrb[0].mxu0
        %4565 = vmatprep.mubr.bf16.mxu0 0
        %4566 = vmatmul.mubr.bf16.gmra.mrb[0].mxu0 %v4397
        %v4567 = vpop.f32.mrb[0].mxu0
        %v4568 = vadd.f32 0.0, %v4567
        %v4569 = vpop.f32.mrb[0].mxu0
        %v4570 = vpop.f32.mrb[0].mxu0
        %v4571 = vadd.f32 0.0, %v4570
        %v4572 = vpop.f32.mrb[0].mxu0
        %4573 = vmatprep.mubr.bf16.mxu0 0
        %4574 = vmatmul.mubr.bf16.gmra.mrb[0].mxu0 %v4398
        %v4575 = vpop.f32.mrb[0].mxu0
        %v4576 = vadd.f32 0.0, %v4575
        %v4577 = vpop.f32.mrb[0].mxu0
        %v4578 = vpop.f32.mrb[0].mxu0
        %v4579 = vadd.f32 0.0, %v4578
        %v4580 = vpop.f32.mrb[0].mxu0
        %4581 = vmatprep.mubr.bf16.mxu0 0
        %4582 = vmatmul.mubr.bf16.gmra.mrb[0].mxu0 %v4399
        %v4583 = vpop.f32.mrb[0].mxu0
        %v4584 = vadd.f32 0.0, %v4583
        %v4585 = vpop.f32.mrb[0].mxu0
        %v4586 = vpop.f32.mrb[0].mxu0
        %v4587 = vadd.f32 0.0, %v4586
        %v4588 = vpop.f32.mrb[0].mxu0
        %4589 = vmatprep.mubr.bf16.mxu0 0
        %4590 = vmatmul.mubr.bf16.gmra.mrb[0].mxu0 %v4400
        %v4591 = vpop.f32.mrb[0].mxu0
        %v4592 = vadd.f32 0.0, %v4591
        %v4593 = vpop.f32.mrb[0].mxu0
        %v4594 = vpop.f32.mrb[0].mxu0
        %v4595 = vadd.f32 0.0, %v4594
        %v4596 = vpop.f32.mrb[0].mxu0
        %4597 = vmatprep.mubr.bf16.mxu0 0
        %4598 = vmatmul.mubr.bf16.gmra.mrb[0].mxu0 %v4401
        %v4599 = vpop.f32.mrb[0].mxu0
        %v4600 = vadd.f32 0.0, %v4599
        %v4601 = vpop.f32.mrb[0].mxu0
        %v4602 = vpop.f32.mrb[0].mxu0
        %v4603 = vadd.f32 0.0, %v4602
        %v4604 = vpop.f32.mrb[0].mxu0
        %4605 = vmatprep.mubr.bf16.mxu0 0
        %4606 = vmatmul.mubr.bf16.gmra.mrb[0].mxu0 %v4402
        %v4607 = vpop.f32.mrb[0].mxu0
        %v4608 = vadd.f32 0.0, %v4607
        %v4609 = vpop.f32.mrb[0].mxu0
        %v4610 = vpop.f32.mrb[0].mxu0
        %v4611 = vadd.f32 0.0, %v4610
        %v4612 = vpop.f32.mrb[0].mxu0
        %4613 = vmatprep.mubr.bf16.mxu0 0
        %4614 = vmatmul.mubr.bf16.gmra.mrb[0].mxu0 %v4403
        %v4615 = vpop.f32.mrb[0].mxu0
        %v4616 = vadd.f32 0.0, %v4615
        %v4617 = vpop.f32.mrb[0].mxu0
        %v4618 = vpop.f32.mrb[0].mxu0
        %v4619 = vadd.f32 0.0, %v4618
        %v4620 = vpop.f32.mrb[0].mxu0
        %4621 = vmatprep.mubr.bf16.mxu0 0
        %4622 = vmatmul.mubr.bf16.gmra.mrb[0].mxu0 %v4404
        %v4623 = vpop.f32.mrb[0].mxu0
        %v4624 = vadd.f32 0.0, %v4623
        %v4625 = vpop.f32.mrb[0].mxu0
        %v4626 = vpop.f32.mrb[0].mxu0
        %v4627 = vadd.f32 0.0, %v4626
        %v4628 = vpop.f32.mrb[0].mxu0
        %4629 = vdwg.mxu0
        %v4630 = vadd.f32 %v3876, %v4504
        %v4631 = vadd.f32 %v3877, %v4507
        %v4632 = vadd.f32 %v3878, %v4512
        %v4633 = vadd.f32 %v3879, %v4515
        %v4634 = vadd.f32 %v3880, %v4520
        %v4635 = vadd.f32 %v3881, %v4523
        %v4636 = vadd.f32 %v3882, %v4528
        %v4637 = vadd.f32 %v3883, %v4531
        %v4638 = vadd.f32 %v3884, %v4536
        %v4639 = vadd.f32 %v3885, %v4539
        %v4640 = vadd.f32 %v3886, %v4544
        %v4641 = vadd.f32 %v3887, %v4547
        %v4642 = vadd.f32 %v3888, %v4552
        %v4643 = vadd.f32 %v3889, %v4555
        %v4644 = vadd.f32 %v3890, %v4560
        %v4645 = vadd.f32 %v3891, %v4563
        %v4646 = vadd.f32 %v3892, %v4568
        %v4647 = vadd.f32 %v3893, %v4571
        %v4648 = vadd.f32 %v3894, %v4576
        %v4649 = vadd.f32 %v3895, %v4579
        %v4650 = vadd.f32 %v3896, %v4584
        %v4651 = vadd.f32 %v3897, %v4587
        %v4652 = vadd.f32 %v3898, %v4592
        %v4653 = vadd.f32 %v3899, %v4595
        %v4654 = vadd.f32 %v3900, %v4600
        %v4655 = vadd.f32 %v3901, %v4603
        %v4656 = vadd.f32 %v3902, %v4608
        %v4657 = vadd.f32 %v3903, %v4611
        %v4658 = vadd.f32 %v3904, %v4616
        %v4659 = vadd.f32 %v3905, %v4619
        %v4660 = vadd.f32 %v3906, %v4624
        %v4661 = vadd.f32 %v3907, %v4627
        %v4662 = vld [vmem:[%s3521] sm:$0xe]
        %v4663 = vld [vmem:[%s3521 + $0xc] sm:$0xe]
        %v4664 = vld [vmem:[%s3521 + $0x18] sm:$0xe]
        %v4665 = vld [vmem:[%s3521 + $0x24] sm:$0xe]
        %v4666 = vld [vmem:[%s3521 + $0x30] sm:$0xe]
        %v4667 = vld [vmem:[%s3521 + $0x3c] sm:$0xe]
        %v4668 = vld [vmem:[%s3521 + $0x48] sm:$0xe]
        %v4669 = vld [vmem:[%s3521 + $0x54] sm:$0xe]
        %v4670 = vld [vmem:[%s3521 + $0x60] sm:$0xe]
        %v4671 = vld [vmem:[%s3521 + $0x6c] sm:$0xe]
        %v4672 = vld [vmem:[%s3521 + $0x78] sm:$0xe]
        %v4673 = vld [vmem:[%s3521 + $0x84] sm:$0xe]
        %v4674 = vld [vmem:[%s3521 + $0x90] sm:$0xe]
        %v4675 = vld [vmem:[%s3521 + $0x9c] sm:$0xe]
        %v4676 = vld [vmem:[%s3521 + $0xa8] sm:$0xe]
        %v4677 = vld [vmem:[%s3521 + $0xb4] sm:$0xe]
        %v4726 = vrot.slane %v4662, 5
        %v4727 = vrot.slane %v4726, 4
        %v4728 = vrot.slane %v3909, 5
        %v4729 = vsel %vm1447, %v4727, %v4728
        %v4730 = vrot.slane %v4728, 4
        %v4731 = vrot.slane %v3910, 5
        %v4732 = vsel %vm1447, %v4730, %v4731
        %v4733 = vrot.slane %v4663, 5
        %v4734 = vrot.slane %v4733, 4
        %v4735 = vrot.slane %v3912, 5
        %v4736 = vsel %vm1447, %v4734, %v4735
        %v4737 = vrot.slane %v4735, 4
        %v4738 = vrot.slane %v3913, 5
        %v4739 = vsel %vm1447, %v4737, %v4738
        %v4740 = vrot.slane %v4664, 5
        %v4741 = vrot.slane %v4740, 4
        %v4742 = vrot.slane %v3915, 5
        %v4743 = vsel %vm1447, %v4741, %v4742
        %v4744 = vrot.slane %v4742, 4
        %v4745 = vrot.slane %v3916, 5
        %v4746 = vsel %vm1447, %v4744, %v4745
        %v4747 = vrot.slane %v4665, 5
        %v4748 = vrot.slane %v4747, 4
        %v4749 = vrot.slane %v3918, 5
        %v4750 = vsel %vm1447, %v4748, %v4749
        %v4751 = vrot.slane %v4749, 4
        %v4752 = vrot.slane %v3919, 5
        %v4753 = vsel %vm1447, %v4751, %v4752
        %v4754 = vrot.slane %v4666, 5
        %v4755 = vrot.slane %v4754, 4
        %v4756 = vrot.slane %v3921, 5
        %v4757 = vsel %vm1447, %v4755, %v4756
        %v4758 = vrot.slane %v4756, 4
        %v4759 = vrot.slane %v3922, 5
        %v4760 = vsel %vm1447, %v4758, %v4759
        %v4761 = vrot.slane %v4667, 5
        %v4762 = vrot.slane %v4761, 4
        %v4763 = vrot.slane %v3924, 5
        %v4764 = vsel %vm1447, %v4762, %v4763
        %v4765 = vrot.slane %v4763, 4
        %v4766 = vrot.slane %v3925, 5
        %v4767 = vsel %vm1447, %v4765, %v4766
        %v4768 = vrot.slane %v4668, 5
        %v4769 = vrot.slane %v4768, 4
        %v4770 = vrot.slane %v3927, 5
        %v4771 = vsel %vm1447, %v4769, %v4770
        %v4772 = vrot.slane %v4770, 4
        %v4773 = vrot.slane %v3928, 5
        %v4774 = vsel %vm1447, %v4772, %v4773
        %v4775 = vrot.slane %v4669, 5
        %v4776 = vrot.slane %v4775, 4
        %v4777 = vrot.slane %v3930, 5
        %v4778 = vsel %vm1447, %v4776, %v4777
        %v4779 = vrot.slane %v4777, 4
        %v4780 = vrot.slane %v3931, 5
        %v4781 = vsel %vm1447, %v4779, %v4780
        %v4782 = vrot.slane %v4670, 5
        %v4783 = vrot.slane %v4782, 4
        %v4784 = vrot.slane %v3933, 5
        %v4785 = vsel %vm1447, %v4783, %v4784
        %v4786 = vrot.slane %v4784, 4
        %v4787 = vrot.slane %v3934, 5
        %v4788 = vsel %vm1447, %v4786, %v4787
        %v4789 = vrot.slane %v4671, 5
        %v4790 = vrot.slane %v4789, 4
        %v4791 = vrot.slane %v3936, 5
        %v4792 = vsel %vm1447, %v4790, %v4791
        %v4793 = vrot.slane %v4791, 4
        %v4794 = vrot.slane %v3937, 5
        %v4795 = vsel %vm1447, %v4793, %v4794
        %v4796 = vrot.slane %v4672, 5
        %v4797 = vrot.slane %v4796, 4
        %v4798 = vrot.slane %v3939, 5
        %v4799 = vsel %vm1447, %v4797, %v4798
        %v4800 = vrot.slane %v4798, 4
        %v4801 = vrot.slane %v3940, 5
        %v4802 = vsel %vm1447, %v4800, %v4801
        %v4803 = vrot.slane %v4673, 5
        %v4804 = vrot.slane %v4803, 4
        %v4805 = vrot.slane %v3942, 5
        %v4806 = vsel %vm1447, %v4804, %v4805
        %v4807 = vrot.slane %v4805, 4
        %v4808 = vrot.slane %v3943, 5
        %v4809 = vsel %vm1447, %v4807, %v4808
        %v4810 = vrot.slane %v4674, 5
        %v4811 = vrot.slane %v4810, 4
        %v4812 = vrot.slane %v3945, 5
        %v4813 = vsel %vm1447, %v4811, %v4812
        %v4814 = vrot.slane %v4812, 4
        %v4815 = vrot.slane %v3946, 5
        %v4816 = vsel %vm1447, %v4814, %v4815
        %v4817 = vrot.slane %v4675, 5
        %v4818 = vrot.slane %v4817, 4
        %v4819 = vrot.slane %v3948, 5
        %v4820 = vsel %vm1447, %v4818, %v4819
        %v4821 = vrot.slane %v4819, 4
        %v4822 = vrot.slane %v3949, 5
        %v4823 = vsel %vm1447, %v4821, %v4822
        %v4824 = vrot.slane %v4676, 5
        %v4825 = vrot.slane %v4824, 4
        %v4826 = vrot.slane %v3951, 5
        %v4827 = vsel %vm1447, %v4825, %v4826
        %v4828 = vrot.slane %v4826, 4
        %v4829 = vrot.slane %v3952, 5
        %v4830 = vsel %vm1447, %v4828, %v4829
        %v4831 = vrot.slane %v4677, 5
        %v4832 = vrot.slane %v4831, 4
        %v4833 = vrot.slane %v3954, 5
        %v4834 = vsel %vm1447, %v4832, %v4833
        %v4835 = vrot.slane %v4833, 4
        %v4836 = vrot.slane %v3955, 5
        %v4837 = vsel %vm1447, %v4835, %v4836
        %s4838 = scalar_lea.vmem %s1, 512
        %v4839 = vld [vmem:[%s4838] sm:$0xf]
        %v4840 = vld [vmem:[%s4838 + $0x4] sm:$0xf]
        %v4841 = vld [vmem:[%s4838 + $0x8] sm:$0xf]
        %v4842 = vld [vmem:[%s4838 + $0xc] sm:$0xf]
        %v4843 = vld [vmem:[%s4838 + $0x10] sm:$0xf]
        %v4844 = vld [vmem:[%s4838 + $0x14] sm:$0xf]
        %v4845 = vld [vmem:[%s4838 + $0x18] sm:$0xf]
        %v4846 = vld [vmem:[%s4838 + $0x1c] sm:$0xf]
        %v4847 = vld [vmem:[%s4838 + $0x20] sm:$0xf]
        %v4848 = vld [vmem:[%s4838 + $0x24] sm:$0xf]
        %v4849 = vld [vmem:[%s4838 + $0x28] sm:$0xf]
        %v4850 = vld [vmem:[%s4838 + $0x2c] sm:$0xf]
        %v4851 = vld [vmem:[%s4838 + $0x30] sm:$0xf]
        %v4852 = vld [vmem:[%s4838 + $0x34] sm:$0xf]
        %v4853 = vld [vmem:[%s4838 + $0x38] sm:$0xf]
        %v4854 = vld [vmem:[%s4838 + $0x3c] sm:$0xf]
        %v4855 = vunpack.c.l.b16 %v4729
        %v4856 = vunpack.c.l.b16 %v4732
        %v4857 = vunpack.c.l.b16 %v4736
        %v4858 = vunpack.c.l.b16 %v4739
        %v4859 = vunpack.c.l.b16 %v4743
        %v4860 = vunpack.c.l.b16 %v4746
        %v4861 = vunpack.c.l.b16 %v4750
        %v4862 = vunpack.c.l.b16 %v4753
        %v4863 = vunpack.c.l.b16 %v4757
        %v4864 = vunpack.c.l.b16 %v4760
        %v4865 = vunpack.c.l.b16 %v4764
        %v4866 = vunpack.c.l.b16 %v4767
        %v4867 = vunpack.c.l.b16 %v4771
        %v4868 = vunpack.c.l.b16 %v4774
        %v4869 = vunpack.c.l.b16 %v4778
        %v4870 = vunpack.c.l.b16 %v4781
        %v4871 = vunpack.c.l.b16 %v4785
        %v4872 = vunpack.c.l.b16 %v4788
        %v4873 = vunpack.c.l.b16 %v4792
        %v4874 = vunpack.c.l.b16 %v4795
        %v4875 = vunpack.c.l.b16 %v4799
        %v4876 = vunpack.c.l.b16 %v4802
        %v4877 = vunpack.c.l.b16 %v4806
        %v4878 = vunpack.c.l.b16 %v4809
        %v4879 = vunpack.c.l.b16 %v4813
        %v4880 = vunpack.c.l.b16 %v4816
        %v4881 = vunpack.c.l.b16 %v4820
        %v4882 = vunpack.c.l.b16 %v4823
        %v4883 = vunpack.c.l.b16 %v4827
        %v4884 = vunpack.c.l.b16 %v4830
        %v4885 = vunpack.c.l.b16 %v4834
        %v4886 = vunpack.c.l.b16 %v4837
        %v4887 = vpack.c.b16 %v4856, %v4855
        %v4888 = vpack.c.b16 %v4858, %v4857
        %v4889 = vpack.c.b16 %v4860, %v4859
        %v4890 = vpack.c.b16 %v4862, %v4861
        %v4891 = vpack.c.b16 %v4864, %v4863
        %v4892 = vpack.c.b16 %v4866, %v4865
        %v4893 = vpack.c.b16 %v4868, %v4867
        %v4894 = vpack.c.b16 %v4870, %v4869
        %v4895 = vpack.c.b16 %v4872, %v4871
        %v4896 = vpack.c.b16 %v4874, %v4873
        %v4897 = vpack.c.b16 %v4876, %v4875
        %v4898 = vpack.c.b16 %v4878, %v4877
        %v4899 = vpack.c.b16 %v4880, %v4879
        %v4900 = vpack.c.b16 %v4882, %v4881
        %v4901 = vpack.c.b16 %v4884, %v4883
        %v4902 = vpack.c.b16 %v4886, %v4885
        %v4935 = vunpack.c.l.b16 %v4839
        %v4936 = vunpack.c.l.b16 %v4840
        %v4937 = vunpack.c.l.b16 %v4841
        %v4938 = vunpack.c.l.b16 %v4842
        %v4939 = vunpack.c.l.b16 %v4843
        %v4940 = vunpack.c.l.b16 %v4844
        %v4941 = vunpack.c.l.b16 %v4845
        %v4942 = vunpack.c.l.b16 %v4846
        %v4943 = vunpack.c.l.b16 %v4847
        %v4944 = vunpack.c.l.b16 %v4848
        %v4945 = vunpack.c.l.b16 %v4849
        %v4946 = vunpack.c.l.b16 %v4850
        %v4947 = vunpack.c.l.b16 %v4851
        %v4948 = vunpack.c.l.b16 %v4852
        %v4949 = vunpack.c.l.b16 %v4853
        %v4950 = vunpack.c.l.b16 %v4854
        %v4951 = vpack.c.b16 %v4936, %v4935
        %v4952 = vpack.c.b16 %v4938, %v4937
        %v4953 = vpack.c.b16 %v4940, %v4939
        %v4954 = vpack.c.b16 %v4942, %v4941
        %v4955 = vpack.c.b16 %v4944, %v4943
        %v4956 = vpack.c.b16 %v4946, %v4945
        %v4957 = vpack.c.b16 %v4948, %v4947
        %v4958 = vpack.c.b16 %v4950, %v4949
        %4967 = vmatprep.subr.bf16.mxu0 0
        %4968 = vmatpush1.bf16.msra.mxu0 %v4951
        %4969 = vmatprep.subr.bf16.mxu0 0
        %4970 = vmatpush1.bf16.msra.mxu0 %v4952
        %4971 = vmatprep.subr.bf16.mxu0 0
        %4972 = vmatpush1.bf16.msra.mxu0 %v4953
        %4973 = vmatprep.subr.bf16.mxu0 0
        %4974 = vmatpush1.bf16.msra.mxu0 %v4954
        %4975 = vmatprep.subr.bf16.mxu0 0
        %4976 = vmatpush1.bf16.msra.mxu0 %v4955
        %4977 = vmatprep.subr.bf16.mxu0 0
        %4978 = vmatpush1.bf16.msra.mxu0 %v4956
        %4979 = vmatprep.subr.bf16.mxu0 0
        %4980 = vmatpush1.bf16.msra.mxu0 %v4957
        %4981 = vmatprep.subr.bf16.mxu0 0
        %4982 = vmatpush1.bf16.msra.mxu0 %v4958
        %4983 = vmatprep.subr.bf16.mxu0 0
        %4984 = vmatpush1.bf16.msra.mxu0 0
        %4985 = vmatprep.subr.bf16.mxu0 0
        %4986 = vmatpush1.bf16.msra.mxu0 0
        %4987 = vmatprep.subr.bf16.mxu0 0
        %4988 = vmatpush1.bf16.msra.mxu0 0
        %4989 = vmatprep.subr.bf16.mxu0 0
        %4990 = vmatpush1.bf16.msra.mxu0 0
        %4991 = vmatprep.subr.bf16.mxu0 0
        %4992 = vmatpush1.bf16.msra.mxu0 0
        %4993 = vmatprep.subr.bf16.mxu0 0
        %4994 = vmatpush1.bf16.msra.mxu0 0
        %4995 = vmatprep.subr.bf16.mxu0 0
        %4996 = vmatpush1.bf16.msra.mxu0 0
        %4997 = vmatprep.subr.bf16.mxu0 0
        %4998 = vmatpush1.bf16.msra.mxu0 0
        %4999 = vmatprep.mubr.bf16.mxu0 0
        %5000 = vmatmul.mubr.bf16.gmra.mrb[0].mxu0 %v4887
        %v5001 = vpop.f32.mrb[0].mxu0
        %v5002 = vadd.f32 0.0, %v5001
        %v5003 = vpop.f32.mrb[0].mxu0
        %v5004 = vpop.f32.mrb[0].mxu0
        %v5005 = vadd.f32 0.0, %v5004
        %v5006 = vpop.f32.mrb[0].mxu0
        %5007 = vmatprep.mubr.bf16.mxu0 0
        %5008 = vmatmul.mubr.bf16.gmra.mrb[0].mxu0 %v4888
        %v5009 = vpop.f32.mrb[0].mxu0
        %v5010 = vadd.f32 0.0, %v5009
        %v5011 = vpop.f32.mrb[0].mxu0
        %v5012 = vpop.f32.mrb[0].mxu0
        %v5013 = vadd.f32 0.0, %v5012
        %v5014 = vpop.f32.mrb[0].mxu0
        %5015 = vmatprep.mubr.bf16.mxu0 0
        %5016 = vmatmul.mubr.bf16.gmra.mrb[0].mxu0 %v4889
        %v5017 = vpop.f32.mrb[0].mxu0
        %v5018 = vadd.f32 0.0, %v5017
        %v5019 = vpop.f32.mrb[0].mxu0
        %v5020 = vpop.f32.mrb[0].mxu0
        %v5021 = vadd.f32 0.0, %v5020
        %v5022 = vpop.f32.mrb[0].mxu0
        %5023 = vmatprep.mubr.bf16.mxu0 0
        %5024 = vmatmul.mubr.bf16.gmra.mrb[0].mxu0 %v4890
        %v5025 = vpop.f32.mrb[0].mxu0
        %v5026 = vadd.f32 0.0, %v5025
        %v5027 = vpop.f32.mrb[0].mxu0
        %v5028 = vpop.f32.mrb[0].mxu0
        %v5029 = vadd.f32 0.0, %v5028
        %v5030 = vpop.f32.mrb[0].mxu0
        %5031 = vmatprep.mubr.bf16.mxu0 0
        %5032 = vmatmul.mubr.bf16.gmra.mrb[0].mxu0 %v4891
        %v5033 = vpop.f32.mrb[0].mxu0
        %v5034 = vadd.f32 0.0, %v5033
        %v5035 = vpop.f32.mrb[0].mxu0
        %v5036 = vpop.f32.mrb[0].mxu0
        %v5037 = vadd.f32 0.0, %v5036
        %v5038 = vpop.f32.mrb[0].mxu0
        %5039 = vmatprep.mubr.bf16.mxu0 0
        %5040 = vmatmul.mubr.bf16.gmra.mrb[0].mxu0 %v4892
        %v5041 = vpop.f32.mrb[0].mxu0
        %v5042 = vadd.f32 0.0, %v5041
        %v5043 = vpop.f32.mrb[0].mxu0
        %v5044 = vpop.f32.mrb[0].mxu0
        %v5045 = vadd.f32 0.0, %v5044
        %v5046 = vpop.f32.mrb[0].mxu0
        %5047 = vmatprep.mubr.bf16.mxu0 0
        %5048 = vmatmul.mubr.bf16.gmra.mrb[0].mxu0 %v4893
        %v5049 = vpop.f32.mrb[0].mxu0
        %v5050 = vadd.f32 0.0, %v5049
        %v5051 = vpop.f32.mrb[0].mxu0
        %v5052 = vpop.f32.mrb[0].mxu0
        %v5053 = vadd.f32 0.0, %v5052
        %v5054 = vpop.f32.mrb[0].mxu0
        %5055 = vmatprep.mubr.bf16.mxu0 0
        %5056 = vmatmul.mubr.bf16.gmra.mrb[0].mxu0 %v4894
        %v5057 = vpop.f32.mrb[0].mxu0
        %v5058 = vadd.f32 0.0, %v5057
        %v5059 = vpop.f32.mrb[0].mxu0
        %v5060 = vpop.f32.mrb[0].mxu0
        %v5061 = vadd.f32 0.0, %v5060
        %v5062 = vpop.f32.mrb[0].mxu0
        %5063 = vmatprep.mubr.bf16.mxu0 0
        %5064 = vmatmul.mubr.bf16.gmra.mrb[0].mxu0 %v4895
        %v5065 = vpop.f32.mrb[0].mxu0
        %v5066 = vadd.f32 0.0, %v5065
        %v5067 = vpop.f32.mrb[0].mxu0
        %v5068 = vpop.f32.mrb[0].mxu0
        %v5069 = vadd.f32 0.0, %v5068
        %v5070 = vpop.f32.mrb[0].mxu0
        %5071 = vmatprep.mubr.bf16.mxu0 0
        %5072 = vmatmul.mubr.bf16.gmra.mrb[0].mxu0 %v4896
        %v5073 = vpop.f32.mrb[0].mxu0
        %v5074 = vadd.f32 0.0, %v5073
        %v5075 = vpop.f32.mrb[0].mxu0
        %v5076 = vpop.f32.mrb[0].mxu0
        %v5077 = vadd.f32 0.0, %v5076
        %v5078 = vpop.f32.mrb[0].mxu0
        %5079 = vmatprep.mubr.bf16.mxu0 0
        %5080 = vmatmul.mubr.bf16.gmra.mrb[0].mxu0 %v4897
        %v5081 = vpop.f32.mrb[0].mxu0
        %v5082 = vadd.f32 0.0, %v5081
        %v5083 = vpop.f32.mrb[0].mxu0
        %v5084 = vpop.f32.mrb[0].mxu0
        %v5085 = vadd.f32 0.0, %v5084
        %v5086 = vpop.f32.mrb[0].mxu0
        %5087 = vmatprep.mubr.bf16.mxu0 0
        %5088 = vmatmul.mubr.bf16.gmra.mrb[0].mxu0 %v4898
        %v5089 = vpop.f32.mrb[0].mxu0
        %v5090 = vadd.f32 0.0, %v5089
        %v5091 = vpop.f32.mrb[0].mxu0
        %v5092 = vpop.f32.mrb[0].mxu0
        %v5093 = vadd.f32 0.0, %v5092
        %v5094 = vpop.f32.mrb[0].mxu0
        %5095 = vmatprep.mubr.bf16.mxu0 0
        %5096 = vmatmul.mubr.bf16.gmra.mrb[0].mxu0 %v4899
        %v5097 = vpop.f32.mrb[0].mxu0
        %v5098 = vadd.f32 0.0, %v5097
        %v5099 = vpop.f32.mrb[0].mxu0
        %v5100 = vpop.f32.mrb[0].mxu0
        %v5101 = vadd.f32 0.0, %v5100
        %v5102 = vpop.f32.mrb[0].mxu0
        %5103 = vmatprep.mubr.bf16.mxu0 0
        %5104 = vmatmul.mubr.bf16.gmra.mrb[0].mxu0 %v4900
        %v5105 = vpop.f32.mrb[0].mxu0
        %v5106 = vadd.f32 0.0, %v5105
        %v5107 = vpop.f32.mrb[0].mxu0
        %v5108 = vpop.f32.mrb[0].mxu0
        %v5109 = vadd.f32 0.0, %v5108
        %v5110 = vpop.f32.mrb[0].mxu0
        %5111 = vmatprep.mubr.bf16.mxu0 0
        %5112 = vmatmul.mubr.bf16.gmra.mrb[0].mxu0 %v4901
        %v5113 = vpop.f32.mrb[0].mxu0
        %v5114 = vadd.f32 0.0, %v5113
        %v5115 = vpop.f32.mrb[0].mxu0
        %v5116 = vpop.f32.mrb[0].mxu0
        %v5117 = vadd.f32 0.0, %v5116
        %v5118 = vpop.f32.mrb[0].mxu0
        %5119 = vmatprep.mubr.bf16.mxu0 0
        %5120 = vmatmul.mubr.bf16.gmra.mrb[0].mxu0 %v4902
        %v5121 = vpop.f32.mrb[0].mxu0
        %v5122 = vadd.f32 0.0, %v5121
        %v5123 = vpop.f32.mrb[0].mxu0
        %v5124 = vpop.f32.mrb[0].mxu0
        %v5125 = vadd.f32 0.0, %v5124
        %v5126 = vpop.f32.mrb[0].mxu0
        %5127 = vdwg.mxu0
        %v5128 = vadd.f32 %v4630, %v5002
        %v5129 = vadd.f32 %v4631, %v5005
        %v5130 = vadd.f32 %v4632, %v5010
        %v5131 = vadd.f32 %v4633, %v5013
        %v5132 = vadd.f32 %v4634, %v5018
        %v5133 = vadd.f32 %v4635, %v5021
        %v5134 = vadd.f32 %v4636, %v5026
        %v5135 = vadd.f32 %v4637, %v5029
        %v5136 = vadd.f32 %v4638, %v5034
        %v5137 = vadd.f32 %v4639, %v5037
        %v5138 = vadd.f32 %v4640, %v5042
        %v5139 = vadd.f32 %v4641, %v5045
        %v5140 = vadd.f32 %v4642, %v5050
        %v5141 = vadd.f32 %v4643, %v5053
        %v5142 = vadd.f32 %v4644, %v5058
        %v5143 = vadd.f32 %v4645, %v5061
        %v5144 = vadd.f32 %v4646, %v5066
        %v5145 = vadd.f32 %v4647, %v5069
        %v5146 = vadd.f32 %v4648, %v5074
        %v5147 = vadd.f32 %v4649, %v5077
        %v5148 = vadd.f32 %v4650, %v5082
        %v5149 = vadd.f32 %v4651, %v5085
        %v5150 = vadd.f32 %v4652, %v5090
        %v5151 = vadd.f32 %v4653, %v5093
        %v5152 = vadd.f32 %v4654, %v5098
        %v5153 = vadd.f32 %v4655, %v5101
        %v5154 = vadd.f32 %v4656, %v5106
        %v5155 = vadd.f32 %v4657, %v5109
        %v5156 = vadd.f32 %v4658, %v5114
        %v5157 = vadd.f32 %v4659, %v5117
        %v5158 = vadd.f32 %v4660, %v5122
        %v5159 = vadd.f32 %v4661, %v5125
        %v5160 = vld [vmem:[%s2] sm:$0x1]
        %v5162 = vlaneseq
        %v5163 = vshrl.u32 %v5162, 7
        %v5164 = vsub.s32 0, %v5163
        %v5165 = vrot.slane %v5160, %v5164
        %v5167 = vmul.f32 %v5128, %v5165
        %v5168 = vmul.f32 %v5129, %v5165
        %v5169 = vmul.f32 %v5130, %v5165
        %v5170 = vmul.f32 %v5131, %v5165
        %v5171 = vmul.f32 %v5132, %v5165
        %v5172 = vmul.f32 %v5133, %v5165
        %v5173 = vmul.f32 %v5134, %v5165
        %v5174 = vmul.f32 %v5135, %v5165
        %v5175 = vmul.f32 %v5136, %v5165
        %v5176 = vmul.f32 %v5137, %v5165
        %v5177 = vmul.f32 %v5138, %v5165
        %v5178 = vmul.f32 %v5139, %v5165
        %v5179 = vmul.f32 %v5140, %v5165
        %v5180 = vmul.f32 %v5141, %v5165
        %v5181 = vmul.f32 %v5142, %v5165
        %v5182 = vmul.f32 %v5143, %v5165
        %v5183 = vmul.f32 %v5144, %v5165
        %v5184 = vmul.f32 %v5145, %v5165
        %v5185 = vmul.f32 %v5146, %v5165
        %v5186 = vmul.f32 %v5147, %v5165
        %v5187 = vmul.f32 %v5148, %v5165
        %v5188 = vmul.f32 %v5149, %v5165
        %v5189 = vmul.f32 %v5150, %v5165
        %v5190 = vmul.f32 %v5151, %v5165
        %v5191 = vmul.f32 %v5152, %v5165
        %v5192 = vmul.f32 %v5153, %v5165
        %v5193 = vmul.f32 %v5154, %v5165
        %v5194 = vmul.f32 %v5155, %v5165
        %v5195 = vmul.f32 %v5156, %v5165
        %v5196 = vmul.f32 %v5157, %v5165
        %v5197 = vmul.f32 %v5158, %v5165
        %v5198 = vmul.f32 %v5159, %v5165
        %v5199 = vld [vmem:[%s3] sm:$0x1]
        %v5201 = vlaneseq
        %v5202 = vshrl.u32 %v5201, 7
        %v5203 = vsub.s32 0, %v5202
        %v5204 = vrot.slane %v5199, %v5203
        %v5206 = vadd.f32 %v5167, %v5204
        %v5207 = vadd.f32 %v5168, %v5204
        %v5208 = vadd.f32 %v5169, %v5204
        %v5209 = vadd.f32 %v5170, %v5204
        %v5210 = vadd.f32 %v5171, %v5204
        %v5211 = vadd.f32 %v5172, %v5204
        %v5212 = vadd.f32 %v5173, %v5204
        %v5213 = vadd.f32 %v5174, %v5204
        %v5214 = vadd.f32 %v5175, %v5204
        %v5215 = vadd.f32 %v5176, %v5204
        %v5216 = vadd.f32 %v5177, %v5204
        %v5217 = vadd.f32 %v5178, %v5204
        %v5218 = vadd.f32 %v5179, %v5204
        %v5219 = vadd.f32 %v5180, %v5204
        %v5220 = vadd.f32 %v5181, %v5204
        %v5221 = vadd.f32 %v5182, %v5204
        %v5222 = vadd.f32 %v5183, %v5204
        %v5223 = vadd.f32 %v5184, %v5204
        %v5224 = vadd.f32 %v5185, %v5204
        %v5225 = vadd.f32 %v5186, %v5204
        %v5226 = vadd.f32 %v5187, %v5204
        %v5227 = vadd.f32 %v5188, %v5204
        %v5228 = vadd.f32 %v5189, %v5204
        %v5229 = vadd.f32 %v5190, %v5204
        %v5230 = vadd.f32 %v5191, %v5204
        %v5231 = vadd.f32 %v5192, %v5204
        %v5232 = vadd.f32 %v5193, %v5204
        %v5233 = vadd.f32 %v5194, %v5204
        %v5234 = vadd.f32 %v5195, %v5204
        %v5235 = vadd.f32 %v5196, %v5204
        %v5236 = vadd.f32 %v5197, %v5204
        %v5237 = vadd.f32 %v5198, %v5204
        %v5238 = vmax.f32 %v5206, 0.0
        %v5239 = vmax.f32 %v5207, 0.0
        %v5240 = vmax.f32 %v5208, 0.0
        %v5241 = vmax.f32 %v5209, 0.0
        %v5242 = vmax.f32 %v5210, 0.0
        %v5243 = vmax.f32 %v5211, 0.0
        %v5244 = vmax.f32 %v5212, 0.0
        %v5245 = vmax.f32 %v5213, 0.0
        %v5246 = vmax.f32 %v5214, 0.0
        %v5247 = vmax.f32 %v5215, 0.0
        %v5248 = vmax.f32 %v5216, 0.0
        %v5249 = vmax.f32 %v5217, 0.0
        %v5250 = vmax.f32 %v5218, 0.0
        %v5251 = vmax.f32 %v5219, 0.0
        %v5252 = vmax.f32 %v5220, 0.0
        %v5253 = vmax.f32 %v5221, 0.0
        %v5254 = vmax.f32 %v5222, 0.0
        %v5255 = vmax.f32 %v5223, 0.0
        %v5256 = vmax.f32 %v5224, 0.0
        %v5257 = vmax.f32 %v5225, 0.0
        %v5258 = vmax.f32 %v5226, 0.0
        %v5259 = vmax.f32 %v5227, 0.0
        %v5260 = vmax.f32 %v5228, 0.0
        %v5261 = vmax.f32 %v5229, 0.0
        %v5262 = vmax.f32 %v5230, 0.0
        %v5263 = vmax.f32 %v5231, 0.0
        %v5264 = vmax.f32 %v5232, 0.0
        %v5265 = vmax.f32 %v5233, 0.0
        %v5266 = vmax.f32 %v5234, 0.0
        %v5267 = vmax.f32 %v5235, 0.0
        %v5268 = vmax.f32 %v5236, 0.0
        %v5269 = vmax.f32 %v5237, 0.0
        %v5270 = vpack.c.bf16 %v5239, %v5238
        %v5271 = vpack.c.bf16 %v5241, %v5240
        %v5272 = vpack.c.bf16 %v5243, %v5242
        %v5273 = vpack.c.bf16 %v5245, %v5244
        %v5274 = vpack.c.bf16 %v5247, %v5246
        %v5275 = vpack.c.bf16 %v5249, %v5248
        %v5276 = vpack.c.bf16 %v5251, %v5250
        %v5277 = vpack.c.bf16 %v5253, %v5252
        %v5278 = vpack.c.bf16 %v5255, %v5254
        %v5279 = vpack.c.bf16 %v5257, %v5256
        %v5280 = vpack.c.bf16 %v5259, %v5258
        %v5281 = vpack.c.bf16 %v5261, %v5260
        %v5282 = vpack.c.bf16 %v5263, %v5262
        %v5283 = vpack.c.bf16 %v5265, %v5264
        %v5284 = vpack.c.bf16 %v5267, %v5266
        %v5285 = vpack.c.bf16 %v5269, %v5268
        %v5302 = vunpack.c.l.b16 %v5270
        %v5303 = vunpack.c.h.b16 %v5270
        %v5304 = vunpack.c.l.b16 %v5271
        %v5305 = vunpack.c.h.b16 %v5271
        %v5306 = vunpack.c.l.b16 %v5272
        %v5307 = vunpack.c.h.b16 %v5272
        %v5308 = vunpack.c.l.b16 %v5273
        %v5309 = vunpack.c.h.b16 %v5273
        %v5310 = vunpack.c.l.b16 %v5274
        %v5311 = vunpack.c.h.b16 %v5274
        %v5312 = vunpack.c.l.b16 %v5275
        %v5313 = vunpack.c.h.b16 %v5275
        %v5314 = vunpack.c.l.b16 %v5276
        %v5315 = vunpack.c.h.b16 %v5276
        %v5316 = vunpack.c.l.b16 %v5277
        %v5317 = vunpack.c.h.b16 %v5277
        %v5318 = vunpack.c.l.b16 %v5278
        %v5319 = vunpack.c.h.b16 %v5278
        %v5320 = vunpack.c.l.b16 %v5279
        %v5321 = vunpack.c.h.b16 %v5279
        %v5322 = vunpack.c.l.b16 %v5280
        %v5323 = vunpack.c.h.b16 %v5280
        %v5324 = vunpack.c.l.b16 %v5281
        %v5325 = vunpack.c.h.b16 %v5281
        %v5326 = vunpack.c.l.b16 %v5282
        %v5327 = vunpack.c.h.b16 %v5282
        %v5328 = vunpack.c.l.b16 %v5283
        %v5329 = vunpack.c.h.b16 %v5283
        %v5330 = vunpack.c.l.b16 %v5284
        %v5331 = vunpack.c.h.b16 %v5284
        %v5332 = vunpack.c.l.b16 %v5285
        %v5333 = vunpack.c.h.b16 %v5285
        %v5334 = vpack.c.b16 %v5302, %v5302
        %v5335 = vpack.c.b16 %v5303, %v5303
        %v5336 = vpack.c.b16 %v5304, %v5304
        %v5337 = vpack.c.b16 %v5305, %v5305
        %v5338 = vpack.c.b16 %v5306, %v5306
        %v5339 = vpack.c.b16 %v5307, %v5307
        %v5340 = vpack.c.b16 %v5308, %v5308
        %v5341 = vpack.c.b16 %v5309, %v5309
        %v5342 = vpack.c.b16 %v5310, %v5310
        %v5343 = vpack.c.b16 %v5311, %v5311
        %v5344 = vpack.c.b16 %v5312, %v5312
        %v5345 = vpack.c.b16 %v5313, %v5313
        %v5346 = vpack.c.b16 %v5314, %v5314
        %v5347 = vpack.c.b16 %v5315, %v5315
        %v5348 = vpack.c.b16 %v5316, %v5316
        %v5349 = vpack.c.b16 %v5317, %v5317
        %v5350 = vpack.c.b16 %v5318, %v5318
        %v5351 = vpack.c.b16 %v5319, %v5319
        %v5352 = vpack.c.b16 %v5320, %v5320
        %v5353 = vpack.c.b16 %v5321, %v5321
        %v5354 = vpack.c.b16 %v5322, %v5322
        %v5355 = vpack.c.b16 %v5323, %v5323
        %v5356 = vpack.c.b16 %v5324, %v5324
        %v5357 = vpack.c.b16 %v5325, %v5325
        %v5358 = vpack.c.b16 %v5326, %v5326
        %v5359 = vpack.c.b16 %v5327, %v5327
        %v5360 = vpack.c.b16 %v5328, %v5328
        %v5361 = vpack.c.b16 %v5329, %v5329
        %v5362 = vpack.c.b16 %v5330, %v5330
        %v5363 = vpack.c.b16 %v5331, %v5331
        %v5364 = vpack.c.b16 %v5332, %v5332
        %v5365 = vpack.c.b16 %v5333, %v5333
        %vm5366 = vsmask.f32 256
        %vm5367 = vsmask.f32 4368
        %vm5368 = vmor %vm5366, %vm5367
        %v5370 = vshrl.u32 %v5334, 16
        %v5372 = vrot.slane %v5370, 7
        %v5373 = vshll.u32 %v5334, 16
        %v5375 = vor.u32 %v5372, %v5373
        %v5376 = vrot.slane %v5372, 4
        %v5378 = vshrl.u32 %v5335, 16
        %v5380 = vrot.slane %v5378, 7
        %v5381 = vshll.u32 %v5335, 16
        %v5383 = vor.u32 %v5380, %v5381
        %v5384 = vsel %vm5368, %v5376, %v5383
        %v5385 = vrot.slane %v5380, 4
        %v5387 = vshrl.u32 %v5336, 16
        %v5389 = vrot.slane %v5387, 7
        %v5390 = vshll.u32 %v5336, 16
        %v5392 = vor.u32 %v5389, %v5390
        %v5393 = vrot.slane %v5389, 4
        %v5395 = vshrl.u32 %v5337, 16
        %v5397 = vrot.slane %v5395, 7
        %v5398 = vshll.u32 %v5337, 16
        %v5400 = vor.u32 %v5397, %v5398
        %v5401 = vsel %vm5368, %v5393, %v5400
        %v5402 = vrot.slane %v5397, 4
        %v5404 = vshrl.u32 %v5338, 16
        %v5406 = vrot.slane %v5404, 7
        %v5407 = vshll.u32 %v5338, 16
        %v5409 = vor.u32 %v5406, %v5407
        %v5410 = vrot.slane %v5406, 4
        %v5412 = vshrl.u32 %v5339, 16
        %v5414 = vrot.slane %v5412, 7
        %v5415 = vshll.u32 %v5339, 16
        %v5417 = vor.u32 %v5414, %v5415
        %v5418 = vsel %vm5368, %v5410, %v5417
        %v5419 = vrot.slane %v5414, 4
        %v5421 = vshrl.u32 %v5340, 16
        %v5423 = vrot.slane %v5421, 7
        %v5424 = vshll.u32 %v5340, 16
        %v5426 = vor.u32 %v5423, %v5424
        %v5427 = vrot.slane %v5423, 4
        %v5429 = vshrl.u32 %v5341, 16
        %v5431 = vrot.slane %v5429, 7
        %v5432 = vshll.u32 %v5341, 16
        %v5434 = vor.u32 %v5431, %v5432
        %v5435 = vsel %vm5368, %v5427, %v5434
        %v5436 = vrot.slane %v5431, 4
        %v5438 = vshrl.u32 %v5342, 16
        %v5440 = vrot.slane %v5438, 7
        %v5441 = vshll.u32 %v5342, 16
        %v5443 = vor.u32 %v5440, %v5441
        %v5444 = vrot.slane %v5440, 4
        %v5446 = vshrl.u32 %v5343, 16
        %v5448 = vrot.slane %v5446, 7
        %v5449 = vshll.u32 %v5343, 16
        %v5451 = vor.u32 %v5448, %v5449
        %v5452 = vsel %vm5368, %v5444, %v5451
        %v5453 = vrot.slane %v5448, 4
        %v5455 = vshrl.u32 %v5344, 16
        %v5457 = vrot.slane %v5455, 7
        %v5458 = vshll.u32 %v5344, 16
        %v5460 = vor.u32 %v5457, %v5458
        %v5461 = vrot.slane %v5457, 4
        %v5463 = vshrl.u32 %v5345, 16
        %v5465 = vrot.slane %v5463, 7
        %v5466 = vshll.u32 %v5345, 16
        %v5468 = vor.u32 %v5465, %v5466
        %v5469 = vsel %vm5368, %v5461, %v5468
        %v5470 = vrot.slane %v5465, 4
        %v5472 = vshrl.u32 %v5346, 16
        %v5474 = vrot.slane %v5472, 7
        %v5475 = vshll.u32 %v5346, 16
        %v5477 = vor.u32 %v5474, %v5475
        %v5478 = vrot.slane %v5474, 4
        %v5480 = vshrl.u32 %v5347, 16
        %v5482 = vrot.slane %v5480, 7
        %v5483 = vshll.u32 %v5347, 16
        %v5485 = vor.u32 %v5482, %v5483
        %v5486 = vsel %vm5368, %v5478, %v5485
        %v5487 = vrot.slane %v5482, 4
        %v5489 = vshrl.u32 %v5348, 16
        %v5491 = vrot.slane %v5489, 7
        %v5492 = vshll.u32 %v5348, 16
        %v5494 = vor.u32 %v5491, %v5492
        %v5495 = vrot.slane %v5491, 4
        %v5497 = vshrl.u32 %v5349, 16
        %v5499 = vrot.slane %v5497, 7
        %v5500 = vshll.u32 %v5349, 16
        %v5502 = vor.u32 %v5499, %v5500
        %v5503 = vsel %vm5368, %v5495, %v5502
        %v5504 = vrot.slane %v5499, 4
        %v5506 = vshrl.u32 %v5350, 16
        %v5508 = vrot.slane %v5506, 7
        %v5509 = vshll.u32 %v5350, 16
        %v5511 = vor.u32 %v5508, %v5509
        %v5512 = vrot.slane %v5508, 4
        %v5514 = vshrl.u32 %v5351, 16
        %v5516 = vrot.slane %v5514, 7
        %v5517 = vshll.u32 %v5351, 16
        %v5519 = vor.u32 %v5516, %v5517
        %v5520 = vsel %vm5368, %v5512, %v5519
        %v5521 = vrot.slane %v5516, 4
        %v5523 = vshrl.u32 %v5352, 16
        %v5525 = vrot.slane %v5523, 7
        %v5526 = vshll.u32 %v5352, 16
        %v5528 = vor.u32 %v5525, %v5526
        %v5529 = vrot.slane %v5525, 4
        %v5531 = vshrl.u32 %v5353, 16
        %v5533 = vrot.slane %v5531, 7
        %v5534 = vshll.u32 %v5353, 16
        %v5536 = vor.u32 %v5533, %v5534
        %v5537 = vsel %vm5368, %v5529, %v5536
        %v5538 = vrot.slane %v5533, 4
        %v5540 = vshrl.u32 %v5354, 16
        %v5542 = vrot.slane %v5540, 7
        %v5543 = vshll.u32 %v5354, 16
        %v5545 = vor.u32 %v5542, %v5543
        %v5546 = vrot.slane %v5542, 4
        %v5548 = vshrl.u32 %v5355, 16
        %v5550 = vrot.slane %v5548, 7
        %v5551 = vshll.u32 %v5355, 16
        %v5553 = vor.u32 %v5550, %v5551
        %v5554 = vsel %vm5368, %v5546, %v5553
        %v5555 = vrot.slane %v5550, 4
        %v5557 = vshrl.u32 %v5356, 16
        %v5559 = vrot.slane %v5557, 7
        %v5560 = vshll.u32 %v5356, 16
        %v5562 = vor.u32 %v5559, %v5560
        %v5563 = vrot.slane %v5559, 4
        %v5565 = vshrl.u32 %v5357, 16
        %v5567 = vrot.slane %v5565, 7
        %v5568 = vshll.u32 %v5357, 16
        %v5570 = vor.u32 %v5567, %v5568
        %v5571 = vsel %vm5368, %v5563, %v5570
        %v5572 = vrot.slane %v5567, 4
        %v5574 = vshrl.u32 %v5358, 16
        %v5576 = vrot.slane %v5574, 7
        %v5577 = vshll.u32 %v5358, 16
        %v5579 = vor.u32 %v5576, %v5577
        %v5580 = vrot.slane %v5576, 4
        %v5582 = vshrl.u32 %v5359, 16
        %v5584 = vrot.slane %v5582, 7
        %v5585 = vshll.u32 %v5359, 16
        %v5587 = vor.u32 %v5584, %v5585
        %v5588 = vsel %vm5368, %v5580, %v5587
        %v5589 = vrot.slane %v5584, 4
        %v5591 = vshrl.u32 %v5360, 16
        %v5593 = vrot.slane %v5591, 7
        %v5594 = vshll.u32 %v5360, 16
        %v5596 = vor.u32 %v5593, %v5594
        %v5597 = vrot.slane %v5593, 4
        %v5599 = vshrl.u32 %v5361, 16
        %v5601 = vrot.slane %v5599, 7
        %v5602 = vshll.u32 %v5361, 16
        %v5604 = vor.u32 %v5601, %v5602
        %v5605 = vsel %vm5368, %v5597, %v5604
        %v5606 = vrot.slane %v5601, 4
        %v5608 = vshrl.u32 %v5362, 16
        %v5610 = vrot.slane %v5608, 7
        %v5611 = vshll.u32 %v5362, 16
        %v5613 = vor.u32 %v5610, %v5611
        %v5614 = vrot.slane %v5610, 4
        %v5616 = vshrl.u32 %v5363, 16
        %v5618 = vrot.slane %v5616, 7
        %v5619 = vshll.u32 %v5363, 16
        %v5621 = vor.u32 %v5618, %v5619
        %v5622 = vsel %vm5368, %v5614, %v5621
        %v5623 = vrot.slane %v5618, 4
        %v5625 = vshrl.u32 %v5364, 16
        %v5627 = vrot.slane %v5625, 7
        %v5628 = vshll.u32 %v5364, 16
        %v5630 = vor.u32 %v5627, %v5628
        %v5631 = vrot.slane %v5627, 4
        %v5633 = vshrl.u32 %v5365, 16
        %v5635 = vrot.slane %v5633, 7
        %v5636 = vshll.u32 %v5365, 16
        %v5638 = vor.u32 %v5635, %v5636
        %v5639 = vsel %vm5368, %v5631, %v5638
        %v5640 = vrot.slane %v5635, 4
        %s5689 = scalar_lea.vmem [#allocation2], 12
        %vm5690 = vcmask 1043456
        %vm5691 = vsmask.f32 7938
        %vm5692 = vmand %vm5690, %vm5691
        %v5693 = vld [vmem:[%s5689] sm:$0xf]
        %v5694 = vsel %vm5692, %v5375, %v5693
        %5695 = vst [vmem:[%s5689] sm:$0xf] %v5694
        %5696 = vst [vmem:[%s5689 + $0x4] sm:$0xf] %v5384
        %vm5697 = vcmask 1040384
        %vm5698 = vmand %vm5697, %vm5366
        %v5699 = vld [vmem:[%s5689 + $0x8] sm:$0x1]
        %v5700 = vsel %vm5698, %v5385, %v5699
        %5701 = vst [vmem:[%s5689 + $0x8] sm:$0x1] %v5700
        %v5702 = vld [vmem:[%s5689 + $0xc] sm:$0xf]
        %v5703 = vsel %vm5692, %v5392, %v5702
        %5704 = vst [vmem:[%s5689 + $0xc] sm:$0xf] %v5703
        %5705 = vst [vmem:[%s5689 + $0x10] sm:$0xf] %v5401
        %v5706 = vld [vmem:[%s5689 + $0x14] sm:$0x1]
        %v5707 = vsel %vm5698, %v5402, %v5706
        %5708 = vst [vmem:[%s5689 + $0x14] sm:$0x1] %v5707
        %v5709 = vld [vmem:[%s5689 + $0x18] sm:$0xf]
        %v5710 = vsel %vm5692, %v5409, %v5709
        %5711 = vst [vmem:[%s5689 + $0x18] sm:$0xf] %v5710
        %5712 = vst [vmem:[%s5689 + $0x1c] sm:$0xf] %v5418
        %v5713 = vld [vmem:[%s5689 + $0x20] sm:$0x1]
        %v5714 = vsel %vm5698, %v5419, %v5713
        %5715 = vst [vmem:[%s5689 + $0x20] sm:$0x1] %v5714
        %v5716 = vld [vmem:[%s5689 + $0x24] sm:$0xf]
        %v5717 = vsel %vm5692, %v5426, %v5716
        %5718 = vst [vmem:[%s5689 + $0x24] sm:$0xf] %v5717
        %5719 = vst [vmem:[%s5689 + $0x28] sm:$0xf] %v5435
        %v5720 = vld [vmem:[%s5689 + $0x2c] sm:$0x1]
        %v5721 = vsel %vm5698, %v5436, %v5720
        %5722 = vst [vmem:[%s5689 + $0x2c] sm:$0x1] %v5721
        %v5723 = vld [vmem:[%s5689 + $0x30] sm:$0xf]
        %v5724 = vsel %vm5692, %v5443, %v5723
        %5725 = vst [vmem:[%s5689 + $0x30] sm:$0xf] %v5724
        %5726 = vst [vmem:[%s5689 + $0x34] sm:$0xf] %v5452
        %v5727 = vld [vmem:[%s5689 + $0x38] sm:$0x1]
        %v5728 = vsel %vm5698, %v5453, %v5727
        %5729 = vst [vmem:[%s5689 + $0x38] sm:$0x1] %v5728
        %v5730 = vld [vmem:[%s5689 + $0x3c] sm:$0xf]
        %v5731 = vsel %vm5692, %v5460, %v5730
        %5732 = vst [vmem:[%s5689 + $0x3c] sm:$0xf] %v5731
        %5733 = vst [vmem:[%s5689 + $0x40] sm:$0xf] %v5469
        %v5734 = vld [vmem:[%s5689 + $0x44] sm:$0x1]
        %v5735 = vsel %vm5698, %v5470, %v5734
        %5736 = vst [vmem:[%s5689 + $0x44] sm:$0x1] %v5735
        %v5737 = vld [vmem:[%s5689 + $0x48] sm:$0xf]
        %v5738 = vsel %vm5692, %v5477, %v5737
        %5739 = vst [vmem:[%s5689 + $0x48] sm:$0xf] %v5738
        %5740 = vst [vmem:[%s5689 + $0x4c] sm:$0xf] %v5486
        %v5741 = vld [vmem:[%s5689 + $0x50] sm:$0x1]
        %v5742 = vsel %vm5698, %v5487, %v5741
        %5743 = vst [vmem:[%s5689 + $0x50] sm:$0x1] %v5742
        %v5744 = vld [vmem:[%s5689 + $0x54] sm:$0xf]
        %v5745 = vsel %vm5692, %v5494, %v5744
        %5746 = vst [vmem:[%s5689 + $0x54] sm:$0xf] %v5745
        %5747 = vst [vmem:[%s5689 + $0x58] sm:$0xf] %v5503
        %v5748 = vld [vmem:[%s5689 + $0x5c] sm:$0x1]
        %v5749 = vsel %vm5698, %v5504, %v5748
        %5750 = vst [vmem:[%s5689 + $0x5c] sm:$0x1] %v5749
        %v5751 = vld [vmem:[%s5689 + $0x60] sm:$0xf]
        %v5752 = vsel %vm5692, %v5511, %v5751
        %5753 = vst [vmem:[%s5689 + $0x60] sm:$0xf] %v5752
        %5754 = vst [vmem:[%s5689 + $0x64] sm:$0xf] %v5520
        %v5755 = vld [vmem:[%s5689 + $0x68] sm:$0x1]
        %v5756 = vsel %vm5698, %v5521, %v5755
        %5757 = vst [vmem:[%s5689 + $0x68] sm:$0x1] %v5756
        %v5758 = vld [vmem:[%s5689 + $0x6c] sm:$0xf]
        %v5759 = vsel %vm5692, %v5528, %v5758
        %5760 = vst [vmem:[%s5689 + $0x6c] sm:$0xf] %v5759
        %5761 = vst [vmem:[%s5689 + $0x70] sm:$0xf] %v5537
        %v5762 = vld [vmem:[%s5689 + $0x74] sm:$0x1]
        %v5763 = vsel %vm5698, %v5538, %v5762
        %5764 = vst [vmem:[%s5689 + $0x74] sm:$0x1] %v5763
        %v5765 = vld [vmem:[%s5689 + $0x78] sm:$0xf]
        %v5766 = vsel %vm5692, %v5545, %v5765
        %5767 = vst [vmem:[%s5689 + $0x78] sm:$0xf] %v5766
        %5768 = vst [vmem:[%s5689 + $0x7c] sm:$0xf] %v5554
        %v5769 = vld [vmem:[%s5689 + $0x80] sm:$0x1]
        %v5770 = vsel %vm5698, %v5555, %v5769
        %5771 = vst [vmem:[%s5689 + $0x80] sm:$0x1] %v5770
        %v5772 = vld [vmem:[%s5689 + $0x84] sm:$0xf]
        %v5773 = vsel %vm5692, %v5562, %v5772
        %5774 = vst [vmem:[%s5689 + $0x84] sm:$0xf] %v5773
        %5775 = vst [vmem:[%s5689 + $0x88] sm:$0xf] %v5571
        %v5776 = vld [vmem:[%s5689 + $0x8c] sm:$0x1]
        %v5777 = vsel %vm5698, %v5572, %v5776
        %5778 = vst [vmem:[%s5689 + $0x8c] sm:$0x1] %v5777
        %v5779 = vld [vmem:[%s5689 + $0x90] sm:$0xf]
        %v5780 = vsel %vm5692, %v5579, %v5779
        %5781 = vst [vmem:[%s5689 + $0x90] sm:$0xf] %v5780
        %5782 = vst [vmem:[%s5689 + $0x94] sm:$0xf] %v5588
        %v5783 = vld [vmem:[%s5689 + $0x98] sm:$0x1]
        %v5784 = vsel %vm5698, %v5589, %v5783
        %5785 = vst [vmem:[%s5689 + $0x98] sm:$0x1] %v5784
        %v5786 = vld [vmem:[%s5689 + $0x9c] sm:$0xf]
        %v5787 = vsel %vm5692, %v5596, %v5786
        %5788 = vst [vmem:[%s5689 + $0x9c] sm:$0xf] %v5787
        %5789 = vst [vmem:[%s5689 + $0xa0] sm:$0xf] %v5605
        %v5790 = vld [vmem:[%s5689 + $0xa4] sm:$0x1]
        %v5791 = vsel %vm5698, %v5606, %v5790
        %5792 = vst [vmem:[%s5689 + $0xa4] sm:$0x1] %v5791
        %v5793 = vld [vmem:[%s5689 + $0xa8] sm:$0xf]
        %v5794 = vsel %vm5692, %v5613, %v5793
        %5795 = vst [vmem:[%s5689 + $0xa8] sm:$0xf] %v5794
        %5796 = vst [vmem:[%s5689 + $0xac] sm:$0xf] %v5622
        %v5797 = vld [vmem:[%s5689 + $0xb0] sm:$0x1]
        %v5798 = vsel %vm5698, %v5623, %v5797
        %5799 = vst [vmem:[%s5689 + $0xb0] sm:$0x1] %v5798
        %v5800 = vld [vmem:[%s5689 + $0xb4] sm:$0xf]
        %v5801 = vsel %vm5692, %v5630, %v5800
        %5802 = vst [vmem:[%s5689 + $0xb4] sm:$0xf] %v5801
        %5803 = vst [vmem:[%s5689 + $0xb8] sm:$0xf] %v5639
        %v5804 = vld [vmem:[%s5689 + $0xbc] sm:$0x1]
        %v5805 = vsel %vm5698, %v5640, %v5804
        %5806 = vst [vmem:[%s5689 + $0xbc] sm:$0x1] %v5805
        %v5807 = vld [vmem:[#allocation2] sm:$0xf]
        %v5808 = vld [vmem:[#allocation2 + $0x4] sm:$0xf]
        %v5809 = vld [vmem:[#allocation2 + $0xc] sm:$0xf]
        %v5810 = vld [vmem:[#allocation2 + $0x10] sm:$0xf]
        %v5811 = vld [vmem:[#allocation2 + $0x18] sm:$0xf]
        %v5812 = vld [vmem:[#allocation2 + $0x1c] sm:$0xf]
        %v5813 = vld [vmem:[#allocation2 + $0x24] sm:$0xf]
        %v5814 = vld [vmem:[#allocation2 + $0x28] sm:$0xf]
        %v5815 = vld [vmem:[#allocation2 + $0x30] sm:$0xf]
        %v5816 = vld [vmem:[#allocation2 + $0x34] sm:$0xf]
        %v5817 = vld [vmem:[#allocation2 + $0x3c] sm:$0xf]
        %v5818 = vld [vmem:[#allocation2 + $0x40] sm:$0xf]
        %v5819 = vld [vmem:[#allocation2 + $0x48] sm:$0xf]
        %v5820 = vld [vmem:[#allocation2 + $0x4c] sm:$0xf]
        %v5821 = vld [vmem:[#allocation2 + $0x54] sm:$0xf]
        %v5822 = vld [vmem:[#allocation2 + $0x58] sm:$0xf]
        %v5823 = vld [vmem:[#allocation2 + $0x60] sm:$0xf]
        %v5824 = vld [vmem:[#allocation2 + $0x64] sm:$0xf]
        %v5825 = vld [vmem:[#allocation2 + $0x6c] sm:$0xf]
        %v5826 = vld [vmem:[#allocation2 + $0x70] sm:$0xf]
        %v5827 = vld [vmem:[#allocation2 + $0x78] sm:$0xf]
        %v5828 = vld [vmem:[#allocation2 + $0x7c] sm:$0xf]
        %v5829 = vld [vmem:[#allocation2 + $0x84] sm:$0xf]
        %v5830 = vld [vmem:[#allocation2 + $0x88] sm:$0xf]
        %v5831 = vld [vmem:[#allocation2 + $0x90] sm:$0xf]
        %v5832 = vld [vmem:[#allocation2 + $0x94] sm:$0xf]
        %v5833 = vld [vmem:[#allocation2 + $0x9c] sm:$0xf]
        %v5834 = vld [vmem:[#allocation2 + $0xa0] sm:$0xf]
        %v5835 = vld [vmem:[#allocation2 + $0xa8] sm:$0xf]
        %v5836 = vld [vmem:[#allocation2 + $0xac] sm:$0xf]
        %v5837 = vld [vmem:[#allocation2 + $0xb4] sm:$0xf]
        %v5838 = vld [vmem:[#allocation2 + $0xb8] sm:$0xf]
        %v5839 = vld [vmem:[#allocation3] sm:$0xf]
        %v5840 = vld [vmem:[#allocation3 + $0x4] sm:$0xf]
        %v5841 = vld [vmem:[#allocation3 + $0x8] sm:$0xf]
        %v5842 = vld [vmem:[#allocation3 + $0xc] sm:$0xf]
        %v5843 = vld [vmem:[#allocation3 + $0x10] sm:$0xf]
        %v5844 = vld [vmem:[#allocation3 + $0x14] sm:$0xf]
        %v5845 = vld [vmem:[#allocation3 + $0x18] sm:$0xf]
        %v5846 = vld [vmem:[#allocation3 + $0x1c] sm:$0xf]
        %v5847 = vld [vmem:[#allocation3 + $0x20] sm:$0xf]
        %v5848 = vld [vmem:[#allocation3 + $0x24] sm:$0xf]
        %v5849 = vld [vmem:[#allocation3 + $0x28] sm:$0xf]
        %v5850 = vld [vmem:[#allocation3 + $0x2c] sm:$0xf]
        %v5851 = vld [vmem:[#allocation3 + $0x30] sm:$0xf]
        %v5852 = vld [vmem:[#allocation3 + $0x34] sm:$0xf]
        %v5853 = vld [vmem:[#allocation3 + $0x38] sm:$0xf]
        %v5854 = vld [vmem:[#allocation3 + $0x3c] sm:$0xf]
        %v5855 = vld [vmem:[#allocation2 + $0x8] sm:$0x1]
        %v5856 = vld [vmem:[#allocation2 + $0x14] sm:$0x1]
        %v5857 = vld [vmem:[#allocation2 + $0x20] sm:$0x1]
        %v5858 = vld [vmem:[#allocation2 + $0x2c] sm:$0x1]
        %v5859 = vld [vmem:[#allocation2 + $0x38] sm:$0x1]
        %v5860 = vld [vmem:[#allocation2 + $0x44] sm:$0x1]
        %v5861 = vld [vmem:[#allocation2 + $0x50] sm:$0x1]
        %v5862 = vld [vmem:[#allocation2 + $0x5c] sm:$0x1]
        %v5863 = vld [vmem:[#allocation2 + $0x68] sm:$0x1]
        %v5864 = vld [vmem:[#allocation2 + $0x74] sm:$0x1]
        %v5865 = vld [vmem:[#allocation2 + $0x80] sm:$0x1]
        %v5866 = vld [vmem:[#allocation2 + $0x8c] sm:$0x1]
        %v5867 = vld [vmem:[#allocation2 + $0x98] sm:$0x1]
        %v5868 = vld [vmem:[#allocation2 + $0xa4] sm:$0x1]
        %v5869 = vld [vmem:[#allocation2 + $0xb0] sm:$0x1]
        %v5870 = vld [vmem:[#allocation2 + $0xbc] sm:$0x1]
        %v5872 = vshrl.u32 %v5807, 16
        %v5874 = vrot.slane %v5872, 4
        %v5875 = vshll.u32 %v5807, 16
        %v5877 = vrot.slane %v5875, 5
        %v5878 = vor.u32 %v5874, %v5877
        %v5879 = vrot.slane %v5878, 4
        %v5881 = vshll.u32 %v5808, 16
        %v5883 = vrot.slane %v5881, 5
        %v5884 = vsel %vm417, %v5879, %v5883
        %v5885 = vshrl.u32 %v5808, 16
        %v5887 = vrot.slane %v5885, 4
        %v5888 = vor.u32 %v5887, %v5883
        %v5889 = vrot.slane %v5888, 4
        %v5891 = vshll.u32 %v5855, 16
        %v5893 = vrot.slane %v5891, 5
        %v5894 = vsel %vm417, %v5889, %v5893
        %v5896 = vshrl.u32 %v5809, 16
        %v5898 = vrot.slane %v5896, 4
        %v5899 = vshll.u32 %v5809, 16
        %v5901 = vrot.slane %v5899, 5
        %v5902 = vor.u32 %v5898, %v5901
        %v5903 = vrot.slane %v5902, 4
        %v5905 = vshll.u32 %v5810, 16
        %v5907 = vrot.slane %v5905, 5
        %v5908 = vsel %vm417, %v5903, %v5907
        %v5909 = vshrl.u32 %v5810, 16
        %v5911 = vrot.slane %v5909, 4
        %v5912 = vor.u32 %v5911, %v5907
        %v5913 = vrot.slane %v5912, 4
        %v5915 = vshll.u32 %v5856, 16
        %v5917 = vrot.slane %v5915, 5
        %v5918 = vsel %vm417, %v5913, %v5917
        %v5920 = vshrl.u32 %v5811, 16
        %v5922 = vrot.slane %v5920, 4
        %v5923 = vshll.u32 %v5811, 16
        %v5925 = vrot.slane %v5923, 5
        %v5926 = vor.u32 %v5922, %v5925
        %v5927 = vrot.slane %v5926, 4
        %v5929 = vshll.u32 %v5812, 16
        %v5931 = vrot.slane %v5929, 5
        %v5932 = vsel %vm417, %v5927, %v5931
        %v5933 = vshrl.u32 %v5812, 16
        %v5935 = vrot.slane %v5933, 4
        %v5936 = vor.u32 %v5935, %v5931
        %v5937 = vrot.slane %v5936, 4
        %v5939 = vshll.u32 %v5857, 16
        %v5941 = vrot.slane %v5939, 5
        %v5942 = vsel %vm417, %v5937, %v5941
        %v5944 = vshrl.u32 %v5813, 16
        %v5946 = vrot.slane %v5944, 4
        %v5947 = vshll.u32 %v5813, 16
        %v5949 = vrot.slane %v5947, 5
        %v5950 = vor.u32 %v5946, %v5949
        %v5951 = vrot.slane %v5950, 4
        %v5953 = vshll.u32 %v5814, 16
        %v5955 = vrot.slane %v5953, 5
        %v5956 = vsel %vm417, %v5951, %v5955
        %v5957 = vshrl.u32 %v5814, 16
        %v5959 = vrot.slane %v5957, 4
        %v5960 = vor.u32 %v5959, %v5955
        %v5961 = vrot.slane %v5960, 4
        %v5963 = vshll.u32 %v5858, 16
        %v5965 = vrot.slane %v5963, 5
        %v5966 = vsel %vm417, %v5961, %v5965
        %v5968 = vshrl.u32 %v5815, 16
        %v5970 = vrot.slane %v5968, 4
        %v5971 = vshll.u32 %v5815, 16
        %v5973 = vrot.slane %v5971, 5
        %v5974 = vor.u32 %v5970, %v5973
        %v5975 = vrot.slane %v5974, 4
        %v5977 = vshll.u32 %v5816, 16
        %v5979 = vrot.slane %v5977, 5
        %v5980 = vsel %vm417, %v5975, %v5979
        %v5981 = vshrl.u32 %v5816, 16
        %v5983 = vrot.slane %v5981, 4
        %v5984 = vor.u32 %v5983, %v5979
        %v5985 = vrot.slane %v5984, 4
        %v5987 = vshll.u32 %v5859, 16
        %v5989 = vrot.slane %v5987, 5
        %v5990 = vsel %vm417, %v5985, %v5989
        %v5992 = vshrl.u32 %v5817, 16
        %v5994 = vrot.slane %v5992, 4
        %v5995 = vshll.u32 %v5817, 16
        %v5997 = vrot.slane %v5995, 5
        %v5998 = vor.u32 %v5994, %v5997
        %v5999 = vrot.slane %v5998, 4
        %v6001 = vshll.u32 %v5818, 16
        %v6003 = vrot.slane %v6001, 5
        %v6004 = vsel %vm417, %v5999, %v6003
        %v6005 = vshrl.u32 %v5818, 16
        %v6007 = vrot.slane %v6005, 4
        %v6008 = vor.u32 %v6007, %v6003
        %v6009 = vrot.slane %v6008, 4
        %v6011 = vshll.u32 %v5860, 16
        %v6013 = vrot.slane %v6011, 5
        %v6014 = vsel %vm417, %v6009, %v6013
        %v6016 = vshrl.u32 %v5819, 16
        %v6018 = vrot.slane %v6016, 4
        %v6019 = vshll.u32 %v5819, 16
        %v6021 = vrot.slane %v6019, 5
        %v6022 = vor.u32 %v6018, %v6021
        %v6023 = vrot.slane %v6022, 4
        %v6025 = vshll.u32 %v5820, 16
        %v6027 = vrot.slane %v6025, 5
        %v6028 = vsel %vm417, %v6023, %v6027
        %v6029 = vshrl.u32 %v5820, 16
        %v6031 = vrot.slane %v6029, 4
        %v6032 = vor.u32 %v6031, %v6027
        %v6033 = vrot.slane %v6032, 4
        %v6035 = vshll.u32 %v5861, 16
        %v6037 = vrot.slane %v6035, 5
        %v6038 = vsel %vm417, %v6033, %v6037
        %v6040 = vshrl.u32 %v5821, 16
        %v6042 = vrot.slane %v6040, 4
        %v6043 = vshll.u32 %v5821, 16
        %v6045 = vrot.slane %v6043, 5
        %v6046 = vor.u32 %v6042, %v6045
        %v6047 = vrot.slane %v6046, 4
        %v6049 = vshll.u32 %v5822, 16
        %v6051 = vrot.slane %v6049, 5
        %v6052 = vsel %vm417, %v6047, %v6051
        %v6053 = vshrl.u32 %v5822, 16
        %v6055 = vrot.slane %v6053, 4
        %v6056 = vor.u32 %v6055, %v6051
        %v6057 = vrot.slane %v6056, 4
        %v6059 = vshll.u32 %v5862, 16
        %v6061 = vrot.slane %v6059, 5
        %v6062 = vsel %vm417, %v6057, %v6061
        %v6064 = vshrl.u32 %v5823, 16
        %v6066 = vrot.slane %v6064, 4
        %v6067 = vshll.u32 %v5823, 16
        %v6069 = vrot.slane %v6067, 5
        %v6070 = vor.u32 %v6066, %v6069
        %v6071 = vrot.slane %v6070, 4
        %v6073 = vshll.u32 %v5824, 16
        %v6075 = vrot.slane %v6073, 5
        %v6076 = vsel %vm417, %v6071, %v6075
        %v6077 = vshrl.u32 %v5824, 16
        %v6079 = vrot.slane %v6077, 4
        %v6080 = vor.u32 %v6079, %v6075
        %v6081 = vrot.slane %v6080, 4
        %v6083 = vshll.u32 %v5863, 16
        %v6085 = vrot.slane %v6083, 5
        %v6086 = vsel %vm417, %v6081, %v6085
        %v6088 = vshrl.u32 %v5825, 16
        %v6090 = vrot.slane %v6088, 4
        %v6091 = vshll.u32 %v5825, 16
        %v6093 = vrot.slane %v6091, 5
        %v6094 = vor.u32 %v6090, %v6093
        %v6095 = vrot.slane %v6094, 4
        %v6097 = vshll.u32 %v5826, 16
        %v6099 = vrot.slane %v6097, 5
        %v6100 = vsel %vm417, %v6095, %v6099
        %v6101 = vshrl.u32 %v5826, 16
        %v6103 = vrot.slane %v6101, 4
        %v6104 = vor.u32 %v6103, %v6099
        %v6105 = vrot.slane %v6104, 4
        %v6107 = vshll.u32 %v5864, 16
        %v6109 = vrot.slane %v6107, 5
        %v6110 = vsel %vm417, %v6105, %v6109
        %v6112 = vshrl.u32 %v5827, 16
        %v6114 = vrot.slane %v6112, 4
        %v6115 = vshll.u32 %v5827, 16
        %v6117 = vrot.slane %v6115, 5
        %v6118 = vor.u32 %v6114, %v6117
        %v6119 = vrot.slane %v6118, 4
        %v6121 = vshll.u32 %v5828, 16
        %v6123 = vrot.slane %v6121, 5
        %v6124 = vsel %vm417, %v6119, %v6123
        %v6125 = vshrl.u32 %v5828, 16
        %v6127 = vrot.slane %v6125, 4
        %v6128 = vor.u32 %v6127, %v6123
        %v6129 = vrot.slane %v6128, 4
        %v6131 = vshll.u32 %v5865, 16
        %v6133 = vrot.slane %v6131, 5
        %v6134 = vsel %vm417, %v6129, %v6133
        %v6136 = vshrl.u32 %v5829, 16
        %v6138 = vrot.slane %v6136, 4
        %v6139 = vshll.u32 %v5829, 16
        %v6141 = vrot.slane %v6139, 5
        %v6142 = vor.u32 %v6138, %v6141
        %v6143 = vrot.slane %v6142, 4
        %v6145 = vshll.u32 %v5830, 16
        %v6147 = vrot.slane %v6145, 5
        %v6148 = vsel %vm417, %v6143, %v6147
        %v6149 = vshrl.u32 %v5830, 16
        %v6151 = vrot.slane %v6149, 4
        %v6152 = vor.u32 %v6151, %v6147
        %v6153 = vrot.slane %v6152, 4
        %v6155 = vshll.u32 %v5866, 16
        %v6157 = vrot.slane %v6155, 5
        %v6158 = vsel %vm417, %v6153, %v6157
        %v6160 = vshrl.u32 %v5831, 16
        %v6162 = vrot.slane %v6160, 4
        %v6163 = vshll.u32 %v5831, 16
        %v6165 = vrot.slane %v6163, 5
        %v6166 = vor.u32 %v6162, %v6165
        %v6167 = vrot.slane %v6166, 4
        %v6169 = vshll.u32 %v5832, 16
        %v6171 = vrot.slane %v6169, 5
        %v6172 = vsel %vm417, %v6167, %v6171
        %v6173 = vshrl.u32 %v5832, 16
        %v6175 = vrot.slane %v6173, 4
        %v6176 = vor.u32 %v6175, %v6171
        %v6177 = vrot.slane %v6176, 4
        %v6179 = vshll.u32 %v5867, 16
        %v6181 = vrot.slane %v6179, 5
        %v6182 = vsel %vm417, %v6177, %v6181
        %v6184 = vshrl.u32 %v5833, 16
        %v6186 = vrot.slane %v6184, 4
        %v6187 = vshll.u32 %v5833, 16
        %v6189 = vrot.slane %v6187, 5
        %v6190 = vor.u32 %v6186, %v6189
        %v6191 = vrot.slane %v6190, 4
        %v6193 = vshll.u32 %v5834, 16
        %v6195 = vrot.slane %v6193, 5
        %v6196 = vsel %vm417, %v6191, %v6195
        %v6197 = vshrl.u32 %v5834, 16
        %v6199 = vrot.slane %v6197, 4
        %v6200 = vor.u32 %v6199, %v6195
        %v6201 = vrot.slane %v6200, 4
        %v6203 = vshll.u32 %v5868, 16
        %v6205 = vrot.slane %v6203, 5
        %v6206 = vsel %vm417, %v6201, %v6205
        %v6208 = vshrl.u32 %v5835, 16
        %v6210 = vrot.slane %v6208, 4
        %v6211 = vshll.u32 %v5835, 16
        %v6213 = vrot.slane %v6211, 5
        %v6214 = vor.u32 %v6210, %v6213
        %v6215 = vrot.slane %v6214, 4
        %v6217 = vshll.u32 %v5836, 16
        %v6219 = vrot.slane %v6217, 5
        %v6220 = vsel %vm417, %v6215, %v6219
        %v6221 = vshrl.u32 %v5836, 16
        %v6223 = vrot.slane %v6221, 4
        %v6224 = vor.u32 %v6223, %v6219
        %v6225 = vrot.slane %v6224, 4
        %v6227 = vshll.u32 %v5869, 16
        %v6229 = vrot.slane %v6227, 5
        %v6230 = vsel %vm417, %v6225, %v6229
        %v6232 = vshrl.u32 %v5837, 16
        %v6234 = vrot.slane %v6232, 4
        %v6235 = vshll.u32 %v5837, 16
        %v6237 = vrot.slane %v6235, 5
        %v6238 = vor.u32 %v6234, %v6237
        %v6239 = vrot.slane %v6238, 4
        %v6241 = vshll.u32 %v5838, 16
        %v6243 = vrot.slane %v6241, 5
        %v6244 = vsel %vm417, %v6239, %v6243
        %v6245 = vshrl.u32 %v5838, 16
        %v6247 = vrot.slane %v6245, 4
        %v6248 = vor.u32 %v6247, %v6243
        %v6249 = vrot.slane %v6248, 4
        %v6251 = vshll.u32 %v5870, 16
        %v6253 = vrot.slane %v6251, 5
        %v6254 = vsel %vm417, %v6249, %v6253
        %s6255 = scalar_lea.vmem [#allocation3], 64
        %v6256 = vld [vmem:[%s6255] sm:$0xf]
        %v6257 = vld [vmem:[%s6255 + $0x4] sm:$0xf]
        %v6258 = vld [vmem:[%s6255 + $0x8] sm:$0xf]
        %v6259 = vld [vmem:[%s6255 + $0xc] sm:$0xf]
        %v6260 = vld [vmem:[%s6255 + $0x10] sm:$0xf]
        %v6261 = vld [vmem:[%s6255 + $0x14] sm:$0xf]
        %v6262 = vld [vmem:[%s6255 + $0x18] sm:$0xf]
        %v6263 = vld [vmem:[%s6255 + $0x1c] sm:$0xf]
        %v6264 = vld [vmem:[%s6255 + $0x20] sm:$0xf]
        %v6265 = vld [vmem:[%s6255 + $0x24] sm:$0xf]
        %v6266 = vld [vmem:[%s6255 + $0x28] sm:$0xf]
        %v6267 = vld [vmem:[%s6255 + $0x2c] sm:$0xf]
        %v6268 = vld [vmem:[%s6255 + $0x30] sm:$0xf]
        %v6269 = vld [vmem:[%s6255 + $0x34] sm:$0xf]
        %v6270 = vld [vmem:[%s6255 + $0x38] sm:$0xf]
        %v6271 = vld [vmem:[%s6255 + $0x3c] sm:$0xf]
        %v6272 = vunpack.c.l.b16 %v5884
        %v6273 = vunpack.c.l.b16 %v5894
        %v6274 = vunpack.c.l.b16 %v5908
        %v6275 = vunpack.c.l.b16 %v5918
        %v6276 = vunpack.c.l.b16 %v5932
        %v6277 = vunpack.c.l.b16 %v5942
        %v6278 = vunpack.c.l.b16 %v5956
        %v6279 = vunpack.c.l.b16 %v5966
        %v6280 = vunpack.c.l.b16 %v5980
        %v6281 = vunpack.c.l.b16 %v5990
        %v6282 = vunpack.c.l.b16 %v6004
        %v6283 = vunpack.c.l.b16 %v6014
        %v6284 = vunpack.c.l.b16 %v6028
        %v6285 = vunpack.c.l.b16 %v6038
        %v6286 = vunpack.c.l.b16 %v6052
        %v6287 = vunpack.c.l.b16 %v6062
        %v6288 = vunpack.c.l.b16 %v6076
        %v6289 = vunpack.c.l.b16 %v6086
        %v6290 = vunpack.c.l.b16 %v6100
        %v6291 = vunpack.c.l.b16 %v6110
        %v6292 = vunpack.c.l.b16 %v6124
        %v6293 = vunpack.c.l.b16 %v6134
        %v6294 = vunpack.c.l.b16 %v6148
        %v6295 = vunpack.c.l.b16 %v6158
        %v6296 = vunpack.c.l.b16 %v6172
        %v6297 = vunpack.c.l.b16 %v6182
        %v6298 = vunpack.c.l.b16 %v6196
        %v6299 = vunpack.c.l.b16 %v6206
        %v6300 = vunpack.c.l.b16 %v6220
        %v6301 = vunpack.c.l.b16 %v6230
        %v6302 = vunpack.c.l.b16 %v6244
        %v6303 = vunpack.c.l.b16 %v6254
        %v6304 = vpack.c.b16 %v6273, %v6272
        %v6305 = vpack.c.b16 %v6275, %v6274
        %v6306 = vpack.c.b16 %v6277, %v6276
        %v6307 = vpack.c.b16 %v6279, %v6278
        %v6308 = vpack.c.b16 %v6281, %v6280
        %v6309 = vpack.c.b16 %v6283, %v6282
        %v6310 = vpack.c.b16 %v6285, %v6284
        %v6311 = vpack.c.b16 %v6287, %v6286
        %v6312 = vpack.c.b16 %v6289, %v6288
        %v6313 = vpack.c.b16 %v6291, %v6290
        %v6314 = vpack.c.b16 %v6293, %v6292
        %v6315 = vpack.c.b16 %v6295, %v6294
        %v6316 = vpack.c.b16 %v6297, %v6296
        %v6317 = vpack.c.b16 %v6299, %v6298
        %v6318 = vpack.c.b16 %v6301, %v6300
        %v6319 = vpack.c.b16 %v6303, %v6302
        %v6352 = vunpack.c.l.b16 %v6256
        %v6353 = vunpack.c.l.b16 %v6257
        %v6354 = vunpack.c.l.b16 %v6258
        %v6355 = vunpack.c.l.b16 %v6259
        %v6356 = vunpack.c.l.b16 %v6260
        %v6357 = vunpack.c.l.b16 %v6261
        %v6358 = vunpack.c.l.b16 %v6262
        %v6359 = vunpack.c.l.b16 %v6263
        %v6360 = vunpack.c.l.b16 %v6264
        %v6361 = vunpack.c.l.b16 %v6265
        %v6362 = vunpack.c.l.b16 %v6266
        %v6363 = vunpack.c.l.b16 %v6267
        %v6364 = vunpack.c.l.b16 %v6268
        %v6365 = vunpack.c.l.b16 %v6269
        %v6366 = vunpack.c.l.b16 %v6270
        %v6367 = vunpack.c.l.b16 %v6271
        %v6368 = vpack.c.b16 %v6353, %v6352
        %v6369 = vpack.c.b16 %v6355, %v6354
        %v6370 = vpack.c.b16 %v6357, %v6356
        %v6371 = vpack.c.b16 %v6359, %v6358
        %v6372 = vpack.c.b16 %v6361, %v6360
        %v6373 = vpack.c.b16 %v6363, %v6362
        %v6374 = vpack.c.b16 %v6365, %v6364
        %v6375 = vpack.c.b16 %v6367, %v6366
        %6384 = vmatprep.subr.bf16.mxu0 0
        %6385 = vmatpush1.bf16.msra.mxu0 %v6368
        %6386 = vmatprep.subr.bf16.mxu0 0
        %6387 = vmatpush1.bf16.msra.mxu0 %v6369
        %6388 = vmatprep.subr.bf16.mxu0 0
        %6389 = vmatpush1.bf16.msra.mxu0 %v6370
        %6390 = vmatprep.subr.bf16.mxu0 0
        %6391 = vmatpush1.bf16.msra.mxu0 %v6371
        %6392 = vmatprep.subr.bf16.mxu0 0
        %6393 = vmatpush1.bf16.msra.mxu0 %v6372
        %6394 = vmatprep.subr.bf16.mxu0 0
        %6395 = vmatpush1.bf16.msra.mxu0 %v6373
        %6396 = vmatprep.subr.bf16.mxu0 0
        %6397 = vmatpush1.bf16.msra.mxu0 %v6374
        %6398 = vmatprep.subr.bf16.mxu0 0
        %6399 = vmatpush1.bf16.msra.mxu0 %v6375
        %6400 = vmatprep.subr.bf16.mxu0 0
        %6401 = vmatpush1.bf16.msra.mxu0 0
        %6402 = vmatprep.subr.bf16.mxu0 0
        %6403 = vmatpush1.bf16.msra.mxu0 0
        %6404 = vmatprep.subr.bf16.mxu0 0
        %6405 = vmatpush1.bf16.msra.mxu0 0
        %6406 = vmatprep.subr.bf16.mxu0 0
        %6407 = vmatpush1.bf16.msra.mxu0 0
        %6408 = vmatprep.subr.bf16.mxu0 0
        %6409 = vmatpush1.bf16.msra.mxu0 0
        %6410 = vmatprep.subr.bf16.mxu0 0
        %6411 = vmatpush1.bf16.msra.mxu0 0
        %6412 = vmatprep.subr.bf16.mxu0 0
        %6413 = vmatpush1.bf16.msra.mxu0 0
        %6414 = vmatprep.subr.bf16.mxu0 0
        %6415 = vmatpush1.bf16.msra.mxu0 0
        %6416 = vmatprep.mubr.bf16.mxu0 0
        %6417 = vmatmul.mubr.bf16.gmra.mrb[0].mxu0 %v6304
        %v6418 = vpop.f32.mrb[0].mxu0
        %v6419 = vadd.f32 0.0, %v6418
        %v6420 = vpop.f32.mrb[0].mxu0
        %v6421 = vpop.f32.mrb[0].mxu0
        %v6422 = vadd.f32 0.0, %v6421
        %v6423 = vpop.f32.mrb[0].mxu0
        %6424 = vmatprep.mubr.bf16.mxu0 0
        %6425 = vmatmul.mubr.bf16.gmra.mrb[0].mxu0 %v6305
        %v6426 = vpop.f32.mrb[0].mxu0
        %v6427 = vadd.f32 0.0, %v6426
        %v6428 = vpop.f32.mrb[0].mxu0
        %v6429 = vpop.f32.mrb[0].mxu0
        %v6430 = vadd.f32 0.0, %v6429
        %v6431 = vpop.f32.mrb[0].mxu0
        %6432 = vmatprep.mubr.bf16.mxu0 0
        %6433 = vmatmul.mubr.bf16.gmra.mrb[0].mxu0 %v6306
        %v6434 = vpop.f32.mrb[0].mxu0
        %v6435 = vadd.f32 0.0, %v6434
        %v6436 = vpop.f32.mrb[0].mxu0
        %v6437 = vpop.f32.mrb[0].mxu0
        %v6438 = vadd.f32 0.0, %v6437
        %v6439 = vpop.f32.mrb[0].mxu0
        %6440 = vmatprep.mubr.bf16.mxu0 0
        %6441 = vmatmul.mubr.bf16.gmra.mrb[0].mxu0 %v6307
        %v6442 = vpop.f32.mrb[0].mxu0
        %v6443 = vadd.f32 0.0, %v6442
        %v6444 = vpop.f32.mrb[0].mxu0
        %v6445 = vpop.f32.mrb[0].mxu0
        %v6446 = vadd.f32 0.0, %v6445
        %v6447 = vpop.f32.mrb[0].mxu0
        %6448 = vmatprep.mubr.bf16.mxu0 0
        %6449 = vmatmul.mubr.bf16.gmra.mrb[0].mxu0 %v6308
        %v6450 = vpop.f32.mrb[0].mxu0
        %v6451 = vadd.f32 0.0, %v6450
        %v6452 = vpop.f32.mrb[0].mxu0
        %v6453 = vpop.f32.mrb[0].mxu0
        %v6454 = vadd.f32 0.0, %v6453
        %v6455 = vpop.f32.mrb[0].mxu0
        %6456 = vmatprep.mubr.bf16.mxu0 0
        %6457 = vmatmul.mubr.bf16.gmra.mrb[0].mxu0 %v6309
        %v6458 = vpop.f32.mrb[0].mxu0
        %v6459 = vadd.f32 0.0, %v6458
        %v6460 = vpop.f32.mrb[0].mxu0
        %v6461 = vpop.f32.mrb[0].mxu0
        %v6462 = vadd.f32 0.0, %v6461
        %v6463 = vpop.f32.mrb[0].mxu0
        %6464 = vmatprep.mubr.bf16.mxu0 0
        %6465 = vmatmul.mubr.bf16.gmra.mrb[0].mxu0 %v6310
        %v6466 = vpop.f32.mrb[0].mxu0
        %v6467 = vadd.f32 0.0, %v6466
        %v6468 = vpop.f32.mrb[0].mxu0
        %v6469 = vpop.f32.mrb[0].mxu0
        %v6470 = vadd.f32 0.0, %v6469
        %v6471 = vpop.f32.mrb[0].mxu0
        %6472 = vmatprep.mubr.bf16.mxu0 0
        %6473 = vmatmul.mubr.bf16.gmra.mrb[0].mxu0 %v6311
        %v6474 = vpop.f32.mrb[0].mxu0
        %v6475 = vadd.f32 0.0, %v6474
        %v6476 = vpop.f32.mrb[0].mxu0
        %v6477 = vpop.f32.mrb[0].mxu0
        %v6478 = vadd.f32 0.0, %v6477
        %v6479 = vpop.f32.mrb[0].mxu0
        %6480 = vmatprep.mubr.bf16.mxu0 0
        %6481 = vmatmul.mubr.bf16.gmra.mrb[0].mxu0 %v6312
        %v6482 = vpop.f32.mrb[0].mxu0
        %v6483 = vadd.f32 0.0, %v6482
        %v6484 = vpop.f32.mrb[0].mxu0
        %v6485 = vpop.f32.mrb[0].mxu0
        %v6486 = vadd.f32 0.0, %v6485
        %v6487 = vpop.f32.mrb[0].mxu0
        %6488 = vmatprep.mubr.bf16.mxu0 0
        %6489 = vmatmul.mubr.bf16.gmra.mrb[0].mxu0 %v6313
        %v6490 = vpop.f32.mrb[0].mxu0
        %v6491 = vadd.f32 0.0, %v6490
        %v6492 = vpop.f32.mrb[0].mxu0
        %v6493 = vpop.f32.mrb[0].mxu0
        %v6494 = vadd.f32 0.0, %v6493
        %v6495 = vpop.f32.mrb[0].mxu0
        %6496 = vmatprep.mubr.bf16.mxu0 0
        %6497 = vmatmul.mubr.bf16.gmra.mrb[0].mxu0 %v6314
        %v6498 = vpop.f32.mrb[0].mxu0
        %v6499 = vadd.f32 0.0, %v6498
        %v6500 = vpop.f32.mrb[0].mxu0
        %v6501 = vpop.f32.mrb[0].mxu0
        %v6502 = vadd.f32 0.0, %v6501
        %v6503 = vpop.f32.mrb[0].mxu0
        %6504 = vmatprep.mubr.bf16.mxu0 0
        %6505 = vmatmul.mubr.bf16.gmra.mrb[0].mxu0 %v6315
        %v6506 = vpop.f32.mrb[0].mxu0
        %v6507 = vadd.f32 0.0, %v6506
        %v6508 = vpop.f32.mrb[0].mxu0
        %v6509 = vpop.f32.mrb[0].mxu0
        %v6510 = vadd.f32 0.0, %v6509
        %v6511 = vpop.f32.mrb[0].mxu0
        %6512 = vmatprep.mubr.bf16.mxu0 0
        %6513 = vmatmul.mubr.bf16.gmra.mrb[0].mxu0 %v6316
        %v6514 = vpop.f32.mrb[0].mxu0
        %v6515 = vadd.f32 0.0, %v6514
        %v6516 = vpop.f32.mrb[0].mxu0
        %v6517 = vpop.f32.mrb[0].mxu0
        %v6518 = vadd.f32 0.0, %v6517
        %v6519 = vpop.f32.mrb[0].mxu0
        %6520 = vmatprep.mubr.bf16.mxu0 0
        %6521 = vmatmul.mubr.bf16.gmra.mrb[0].mxu0 %v6317
        %v6522 = vpop.f32.mrb[0].mxu0
        %v6523 = vadd.f32 0.0, %v6522
        %v6524 = vpop.f32.mrb[0].mxu0
        %v6525 = vpop.f32.mrb[0].mxu0
        %v6526 = vadd.f32 0.0, %v6525
        %v6527 = vpop.f32.mrb[0].mxu0
        %6528 = vmatprep.mubr.bf16.mxu0 0
        %6529 = vmatmul.mubr.bf16.gmra.mrb[0].mxu0 %v6318
        %v6530 = vpop.f32.mrb[0].mxu0
        %v6531 = vadd.f32 0.0, %v6530
        %v6532 = vpop.f32.mrb[0].mxu0
        %v6533 = vpop.f32.mrb[0].mxu0
        %v6534 = vadd.f32 0.0, %v6533
        %v6535 = vpop.f32.mrb[0].mxu0
        %6536 = vmatprep.mubr.bf16.mxu0 0
        %6537 = vmatmul.mubr.bf16.gmra.mrb[0].mxu0 %v6319
        %v6538 = vpop.f32.mrb[0].mxu0
        %v6539 = vadd.f32 0.0, %v6538
        %v6540 = vpop.f32.mrb[0].mxu0
        %v6541 = vpop.f32.mrb[0].mxu0
        %v6542 = vadd.f32 0.0, %v6541
        %v6543 = vpop.f32.mrb[0].mxu0
        %6544 = vdwg.mxu0
        %v6577 = vunpack.c.l.b16 %v5807
        %v6578 = vunpack.c.l.b16 %v5808
        %v6579 = vunpack.c.l.b16 %v5809
        %v6580 = vunpack.c.l.b16 %v5810
        %v6581 = vunpack.c.l.b16 %v5811
        %v6582 = vunpack.c.l.b16 %v5812
        %v6583 = vunpack.c.l.b16 %v5813
        %v6584 = vunpack.c.l.b16 %v5814
        %v6585 = vunpack.c.l.b16 %v5815
        %v6586 = vunpack.c.l.b16 %v5816
        %v6587 = vunpack.c.l.b16 %v5817
        %v6588 = vunpack.c.l.b16 %v5818
        %v6589 = vunpack.c.l.b16 %v5819
        %v6590 = vunpack.c.l.b16 %v5820
        %v6591 = vunpack.c.l.b16 %v5821
        %v6592 = vunpack.c.l.b16 %v5822
        %v6593 = vunpack.c.l.b16 %v5823
        %v6594 = vunpack.c.l.b16 %v5824
        %v6595 = vunpack.c.l.b16 %v5825
        %v6596 = vunpack.c.l.b16 %v5826
        %v6597 = vunpack.c.l.b16 %v5827
        %v6598 = vunpack.c.l.b16 %v5828
        %v6599 = vunpack.c.l.b16 %v5829
        %v6600 = vunpack.c.l.b16 %v5830
        %v6601 = vunpack.c.l.b16 %v5831
        %v6602 = vunpack.c.l.b16 %v5832
        %v6603 = vunpack.c.l.b16 %v5833
        %v6604 = vunpack.c.l.b16 %v5834
        %v6605 = vunpack.c.l.b16 %v5835
        %v6606 = vunpack.c.l.b16 %v5836
        %v6607 = vunpack.c.l.b16 %v5837
        %v6608 = vunpack.c.l.b16 %v5838
        %v6609 = vpack.c.b16 %v6578, %v6577
        %v6610 = vpack.c.b16 %v6580, %v6579
        %v6611 = vpack.c.b16 %v6582, %v6581
        %v6612 = vpack.c.b16 %v6584, %v6583
        %v6613 = vpack.c.b16 %v6586, %v6585
        %v6614 = vpack.c.b16 %v6588, %v6587
        %v6615 = vpack.c.b16 %v6590, %v6589
        %v6616 = vpack.c.b16 %v6592, %v6591
        %v6617 = vpack.c.b16 %v6594, %v6593
        %v6618 = vpack.c.b16 %v6596, %v6595
        %v6619 = vpack.c.b16 %v6598, %v6597
        %v6620 = vpack.c.b16 %v6600, %v6599
        %v6621 = vpack.c.b16 %v6602, %v6601
        %v6622 = vpack.c.b16 %v6604, %v6603
        %v6623 = vpack.c.b16 %v6606, %v6605
        %v6624 = vpack.c.b16 %v6608, %v6607
        %v6657 = vunpack.c.l.b16 %v5839
        %v6658 = vunpack.c.l.b16 %v5840
        %v6659 = vunpack.c.l.b16 %v5841
        %v6660 = vunpack.c.l.b16 %v5842
        %v6661 = vunpack.c.l.b16 %v5843
        %v6662 = vunpack.c.l.b16 %v5844
        %v6663 = vunpack.c.l.b16 %v5845
        %v6664 = vunpack.c.l.b16 %v5846
        %v6665 = vunpack.c.l.b16 %v5847
        %v6666 = vunpack.c.l.b16 %v5848
        %v6667 = vunpack.c.l.b16 %v5849
        %v6668 = vunpack.c.l.b16 %v5850
        %v6669 = vunpack.c.l.b16 %v5851
        %v6670 = vunpack.c.l.b16 %v5852
        %v6671 = vunpack.c.l.b16 %v5853
        %v6672 = vunpack.c.l.b16 %v5854
        %v6673 = vpack.c.b16 %v6658, %v6657
        %v6674 = vpack.c.b16 %v6660, %v6659
        %v6675 = vpack.c.b16 %v6662, %v6661
        %v6676 = vpack.c.b16 %v6664, %v6663
        %v6677 = vpack.c.b16 %v6666, %v6665
        %v6678 = vpack.c.b16 %v6668, %v6667
        %v6679 = vpack.c.b16 %v6670, %v6669
        %v6680 = vpack.c.b16 %v6672, %v6671
        %6689 = vmatprep.subr.bf16.mxu0 0
        %6690 = vmatpush1.bf16.msra.mxu0 %v6673
        %6691 = vmatprep.subr.bf16.mxu0 0
        %6692 = vmatpush1.bf16.msra.mxu0 %v6674
        %6693 = vmatprep.subr.bf16.mxu0 0
        %6694 = vmatpush1.bf16.msra.mxu0 %v6675
        %6695 = vmatprep.subr.bf16.mxu0 0
        %6696 = vmatpush1.bf16.msra.mxu0 %v6676
        %6697 = vmatprep.subr.bf16.mxu0 0
        %6698 = vmatpush1.bf16.msra.mxu0 %v6677
        %6699 = vmatprep.subr.bf16.mxu0 0
        %6700 = vmatpush1.bf16.msra.mxu0 %v6678
        %6701 = vmatprep.subr.bf16.mxu0 0
        %6702 = vmatpush1.bf16.msra.mxu0 %v6679
        %6703 = vmatprep.subr.bf16.mxu0 0
        %6704 = vmatpush1.bf16.msra.mxu0 %v6680
        %6705 = vmatprep.subr.bf16.mxu0 0
        %6706 = vmatpush1.bf16.msra.mxu0 0
        %6707 = vmatprep.subr.bf16.mxu0 0
        %6708 = vmatpush1.bf16.msra.mxu0 0
        %6709 = vmatprep.subr.bf16.mxu0 0
        %6710 = vmatpush1.bf16.msra.mxu0 0
        %6711 = vmatprep.subr.bf16.mxu0 0
        %6712 = vmatpush1.bf16.msra.mxu0 0
        %6713 = vmatprep.subr.bf16.mxu0 0
        %6714 = vmatpush1.bf16.msra.mxu0 0
        %6715 = vmatprep.subr.bf16.mxu0 0
        %6716 = vmatpush1.bf16.msra.mxu0 0
        %6717 = vmatprep.subr.bf16.mxu0 0
        %6718 = vmatpush1.bf16.msra.mxu0 0
        %6719 = vmatprep.subr.bf16.mxu0 0
        %6720 = vmatpush1.bf16.msra.mxu0 0
        %6721 = vmatprep.mubr.bf16.mxu0 0
        %6722 = vmatmul.mubr.bf16.gmra.mrb[0].mxu0 %v6609
        %v6723 = vpop.f32.mrb[0].mxu0
        %v6724 = vadd.f32 %v6419, %v6723
        %v6725 = vpop.f32.mrb[0].mxu0
        %v6726 = vpop.f32.mrb[0].mxu0
        %v6727 = vadd.f32 %v6422, %v6726
        %v6728 = vpop.f32.mrb[0].mxu0
        %6729 = vmatprep.mubr.bf16.mxu0 0
        %6730 = vmatmul.mubr.bf16.gmra.mrb[0].mxu0 %v6610
        %v6731 = vpop.f32.mrb[0].mxu0
        %v6732 = vadd.f32 %v6427, %v6731
        %v6733 = vpop.f32.mrb[0].mxu0
        %v6734 = vpop.f32.mrb[0].mxu0
        %v6735 = vadd.f32 %v6430, %v6734
        %v6736 = vpop.f32.mrb[0].mxu0
        %6737 = vmatprep.mubr.bf16.mxu0 0
        %6738 = vmatmul.mubr.bf16.gmra.mrb[0].mxu0 %v6611
        %v6739 = vpop.f32.mrb[0].mxu0
        %v6740 = vadd.f32 %v6435, %v6739
        %v6741 = vpop.f32.mrb[0].mxu0
        %v6742 = vpop.f32.mrb[0].mxu0
        %v6743 = vadd.f32 %v6438, %v6742
        %v6744 = vpop.f32.mrb[0].mxu0
        %6745 = vmatprep.mubr.bf16.mxu0 0
        %6746 = vmatmul.mubr.bf16.gmra.mrb[0].mxu0 %v6612
        %v6747 = vpop.f32.mrb[0].mxu0
        %v6748 = vadd.f32 %v6443, %v6747
        %v6749 = vpop.f32.mrb[0].mxu0
        %v6750 = vpop.f32.mrb[0].mxu0
        %v6751 = vadd.f32 %v6446, %v6750
        %v6752 = vpop.f32.mrb[0].mxu0
        %6753 = vmatprep.mubr.bf16.mxu0 0
        %6754 = vmatmul.mubr.bf16.gmra.mrb[0].mxu0 %v6613
        %v6755 = vpop.f32.mrb[0].mxu0
        %v6756 = vadd.f32 %v6451, %v6755
        %v6757 = vpop.f32.mrb[0].mxu0
        %v6758 = vpop.f32.mrb[0].mxu0
        %v6759 = vadd.f32 %v6454, %v6758
        %v6760 = vpop.f32.mrb[0].mxu0
        %6761 = vmatprep.mubr.bf16.mxu0 0
        %6762 = vmatmul.mubr.bf16.gmra.mrb[0].mxu0 %v6614
        %v6763 = vpop.f32.mrb[0].mxu0
        %v6764 = vadd.f32 %v6459, %v6763
        %v6765 = vpop.f32.mrb[0].mxu0
        %v6766 = vpop.f32.mrb[0].mxu0
        %v6767 = vadd.f32 %v6462, %v6766
        %v6768 = vpop.f32.mrb[0].mxu0
        %6769 = vmatprep.mubr.bf16.mxu0 0
        %6770 = vmatmul.mubr.bf16.gmra.mrb[0].mxu0 %v6615
        %v6771 = vpop.f32.mrb[0].mxu0
        %v6772 = vadd.f32 %v6467, %v6771
        %v6773 = vpop.f32.mrb[0].mxu0
        %v6774 = vpop.f32.mrb[0].mxu0
        %v6775 = vadd.f32 %v6470, %v6774
        %v6776 = vpop.f32.mrb[0].mxu0
        %6777 = vmatprep.mubr.bf16.mxu0 0
        %6778 = vmatmul.mubr.bf16.gmra.mrb[0].mxu0 %v6616
        %v6779 = vpop.f32.mrb[0].mxu0
        %v6780 = vadd.f32 %v6475, %v6779
        %v6781 = vpop.f32.mrb[0].mxu0
        %v6782 = vpop.f32.mrb[0].mxu0
        %v6783 = vadd.f32 %v6478, %v6782
        %v6784 = vpop.f32.mrb[0].mxu0
        %6785 = vmatprep.mubr.bf16.mxu0 0
        %6786 = vmatmul.mubr.bf16.gmra.mrb[0].mxu0 %v6617
        %v6787 = vpop.f32.mrb[0].mxu0
        %v6788 = vadd.f32 %v6483, %v6787
        %v6789 = vpop.f32.mrb[0].mxu0
        %v6790 = vpop.f32.mrb[0].mxu0
        %v6791 = vadd.f32 %v6486, %v6790
        %v6792 = vpop.f32.mrb[0].mxu0
        %6793 = vmatprep.mubr.bf16.mxu0 0
        %6794 = vmatmul.mubr.bf16.gmra.mrb[0].mxu0 %v6618
        %v6795 = vpop.f32.mrb[0].mxu0
        %v6796 = vadd.f32 %v6491, %v6795
        %v6797 = vpop.f32.mrb[0].mxu0
        %v6798 = vpop.f32.mrb[0].mxu0
        %v6799 = vadd.f32 %v6494, %v6798
        %v6800 = vpop.f32.mrb[0].mxu0
        %6801 = vmatprep.mubr.bf16.mxu0 0
        %6802 = vmatmul.mubr.bf16.gmra.mrb[0].mxu0 %v6619
        %v6803 = vpop.f32.mrb[0].mxu0
        %v6804 = vadd.f32 %v6499, %v6803
        %v6805 = vpop.f32.mrb[0].mxu0
        %v6806 = vpop.f32.mrb[0].mxu0
        %v6807 = vadd.f32 %v6502, %v6806
        %v6808 = vpop.f32.mrb[0].mxu0
        %6809 = vmatprep.mubr.bf16.mxu0 0
        %6810 = vmatmul.mubr.bf16.gmra.mrb[0].mxu0 %v6620
        %v6811 = vpop.f32.mrb[0].mxu0
        %v6812 = vadd.f32 %v6507, %v6811
        %v6813 = vpop.f32.mrb[0].mxu0
        %v6814 = vpop.f32.mrb[0].mxu0
        %v6815 = vadd.f32 %v6510, %v6814
        %v6816 = vpop.f32.mrb[0].mxu0
        %6817 = vmatprep.mubr.bf16.mxu0 0
        %6818 = vmatmul.mubr.bf16.gmra.mrb[0].mxu0 %v6621
        %v6819 = vpop.f32.mrb[0].mxu0
        %v6820 = vadd.f32 %v6515, %v6819
        %v6821 = vpop.f32.mrb[0].mxu0
        %v6822 = vpop.f32.mrb[0].mxu0
        %v6823 = vadd.f32 %v6518, %v6822
        %v6824 = vpop.f32.mrb[0].mxu0
        %6825 = vmatprep.mubr.bf16.mxu0 0
        %6826 = vmatmul.mubr.bf16.gmra.mrb[0].mxu0 %v6622
        %v6827 = vpop.f32.mrb[0].mxu0
        %v6828 = vadd.f32 %v6523, %v6827
        %v6829 = vpop.f32.mrb[0].mxu0
        %v6830 = vpop.f32.mrb[0].mxu0
        %v6831 = vadd.f32 %v6526, %v6830
        %v6832 = vpop.f32.mrb[0].mxu0
        %6833 = vmatprep.mubr.bf16.mxu0 0
        %6834 = vmatmul.mubr.bf16.gmra.mrb[0].mxu0 %v6623
        %v6835 = vpop.f32.mrb[0].mxu0
        %v6836 = vadd.f32 %v6531, %v6835
        %v6837 = vpop.f32.mrb[0].mxu0
        %v6838 = vpop.f32.mrb[0].mxu0
        %v6839 = vadd.f32 %v6534, %v6838
        %v6840 = vpop.f32.mrb[0].mxu0
        %6841 = vmatprep.mubr.bf16.mxu0 0
        %6842 = vmatmul.mubr.bf16.gmra.mrb[0].mxu0 %v6624
        %v6843 = vpop.f32.mrb[0].mxu0
        %v6844 = vadd.f32 %v6539, %v6843
        %v6845 = vpop.f32.mrb[0].mxu0
        %v6846 = vpop.f32.mrb[0].mxu0
        %v6847 = vadd.f32 %v6542, %v6846
        %v6848 = vpop.f32.mrb[0].mxu0
        %6849 = vdwg.mxu0
        %v6850 = vld [vmem:[#allocation2] sm:$0xe]
        %v6851 = vld [vmem:[#allocation2 + $0xc] sm:$0xe]
        %v6852 = vld [vmem:[#allocation2 + $0x18] sm:$0xe]
        %v6853 = vld [vmem:[#allocation2 + $0x24] sm:$0xe]
        %v6854 = vld [vmem:[#allocation2 + $0x30] sm:$0xe]
        %v6855 = vld [vmem:[#allocation2 + $0x3c] sm:$0xe]
        %v6856 = vld [vmem:[#allocation2 + $0x48] sm:$0xe]
        %v6857 = vld [vmem:[#allocation2 + $0x54] sm:$0xe]
        %v6858 = vld [vmem:[#allocation2 + $0x60] sm:$0xe]
        %v6859 = vld [vmem:[#allocation2 + $0x6c] sm:$0xe]
        %v6860 = vld [vmem:[#allocation2 + $0x78] sm:$0xe]
        %v6861 = vld [vmem:[#allocation2 + $0x84] sm:$0xe]
        %v6862 = vld [vmem:[#allocation2 + $0x90] sm:$0xe]
        %v6863 = vld [vmem:[#allocation2 + $0x9c] sm:$0xe]
        %v6864 = vld [vmem:[#allocation2 + $0xa8] sm:$0xe]
        %v6865 = vld [vmem:[#allocation2 + $0xb4] sm:$0xe]
        %v6898 = vrot.slane %v6850, 5
        %v6899 = vrot.slane %v6898, 4
        %v6900 = vrot.slane %v5808, 5
        %v6901 = vsel %vm1447, %v6899, %v6900
        %v6902 = vrot.slane %v6900, 4
        %v6903 = vrot.slane %v5855, 5
        %v6904 = vsel %vm1447, %v6902, %v6903
        %v6905 = vrot.slane %v6851, 5
        %v6906 = vrot.slane %v6905, 4
        %v6907 = vrot.slane %v5810, 5
        %v6908 = vsel %vm1447, %v6906, %v6907
        %v6909 = vrot.slane %v6907, 4
        %v6910 = vrot.slane %v5856, 5
        %v6911 = vsel %vm1447, %v6909, %v6910
        %v6912 = vrot.slane %v6852, 5
        %v6913 = vrot.slane %v6912, 4
        %v6914 = vrot.slane %v5812, 5
        %v6915 = vsel %vm1447, %v6913, %v6914
        %v6916 = vrot.slane %v6914, 4
        %v6917 = vrot.slane %v5857, 5
        %v6918 = vsel %vm1447, %v6916, %v6917
        %v6919 = vrot.slane %v6853, 5
        %v6920 = vrot.slane %v6919, 4
        %v6921 = vrot.slane %v5814, 5
        %v6922 = vsel %vm1447, %v6920, %v6921
        %v6923 = vrot.slane %v6921, 4
        %v6924 = vrot.slane %v5858, 5
        %v6925 = vsel %vm1447, %v6923, %v6924
        %v6926 = vrot.slane %v6854, 5
        %v6927 = vrot.slane %v6926, 4
        %v6928 = vrot.slane %v5816, 5
        %v6929 = vsel %vm1447, %v6927, %v6928
        %v6930 = vrot.slane %v6928, 4
        %v6931 = vrot.slane %v5859, 5
        %v6932 = vsel %vm1447, %v6930, %v6931
        %v6933 = vrot.slane %v6855, 5
        %v6934 = vrot.slane %v6933, 4
        %v6935 = vrot.slane %v5818, 5
        %v6936 = vsel %vm1447, %v6934, %v6935
        %v6937 = vrot.slane %v6935, 4
        %v6938 = vrot.slane %v5860, 5
        %v6939 = vsel %vm1447, %v6937, %v6938
        %v6940 = vrot.slane %v6856, 5
        %v6941 = vrot.slane %v6940, 4
        %v6942 = vrot.slane %v5820, 5
        %v6943 = vsel %vm1447, %v6941, %v6942
        %v6944 = vrot.slane %v6942, 4
        %v6945 = vrot.slane %v5861, 5
        %v6946 = vsel %vm1447, %v6944, %v6945
        %v6947 = vrot.slane %v6857, 5
        %v6948 = vrot.slane %v6947, 4
        %v6949 = vrot.slane %v5822, 5
        %v6950 = vsel %vm1447, %v6948, %v6949
        %v6951 = vrot.slane %v6949, 4
        %v6952 = vrot.slane %v5862, 5
        %v6953 = vsel %vm1447, %v6951, %v6952
        %v6954 = vrot.slane %v6858, 5
        %v6955 = vrot.slane %v6954, 4
        %v6956 = vrot.slane %v5824, 5
        %v6957 = vsel %vm1447, %v6955, %v6956
        %v6958 = vrot.slane %v6956, 4
        %v6959 = vrot.slane %v5863, 5
        %v6960 = vsel %vm1447, %v6958, %v6959
        %v6961 = vrot.slane %v6859, 5
        %v6962 = vrot.slane %v6961, 4
        %v6963 = vrot.slane %v5826, 5
        %v6964 = vsel %vm1447, %v6962, %v6963
        %v6965 = vrot.slane %v6963, 4
        %v6966 = vrot.slane %v5864, 5
        %v6967 = vsel %vm1447, %v6965, %v6966
        %v6968 = vrot.slane %v6860, 5
        %v6969 = vrot.slane %v6968, 4
        %v6970 = vrot.slane %v5828, 5
        %v6971 = vsel %vm1447, %v6969, %v6970
        %v6972 = vrot.slane %v6970, 4
        %v6973 = vrot.slane %v5865, 5
        %v6974 = vsel %vm1447, %v6972, %v6973
        %v6975 = vrot.slane %v6861, 5
        %v6976 = vrot.slane %v6975, 4
        %v6977 = vrot.slane %v5830, 5
        %v6978 = vsel %vm1447, %v6976, %v6977
        %v6979 = vrot.slane %v6977, 4
        %v6980 = vrot.slane %v5866, 5
        %v6981 = vsel %vm1447, %v6979, %v6980
        %v6982 = vrot.slane %v6862, 5
        %v6983 = vrot.slane %v6982, 4
        %v6984 = vrot.slane %v5832, 5
        %v6985 = vsel %vm1447, %v6983, %v6984
        %v6986 = vrot.slane %v6984, 4
        %v6987 = vrot.slane %v5867, 5
        %v6988 = vsel %vm1447, %v6986, %v6987
        %v6989 = vrot.slane %v6863, 5
        %v6990 = vrot.slane %v6989, 4
        %v6991 = vrot.slane %v5834, 5
        %v6992 = vsel %vm1447, %v6990, %v6991
        %v6993 = vrot.slane %v6991, 4
        %v6994 = vrot.slane %v5868, 5
        %v6995 = vsel %vm1447, %v6993, %v6994
        %v6996 = vrot.slane %v6864, 5
        %v6997 = vrot.slane %v6996, 4
        %v6998 = vrot.slane %v5836, 5
        %v6999 = vsel %vm1447, %v6997, %v6998
        %v7000 = vrot.slane %v6998, 4
        %v7001 = vrot.slane %v5869, 5
        %v7002 = vsel %vm1447, %v7000, %v7001
        %v7003 = vrot.slane %v6865, 5
        %v7004 = vrot.slane %v7003, 4
        %v7005 = vrot.slane %v5838, 5
        %v7006 = vsel %vm1447, %v7004, %v7005
        %v7007 = vrot.slane %v7005, 4
        %v7008 = vrot.slane %v5870, 5
        %v7009 = vsel %vm1447, %v7007, %v7008
        %s7010 = scalar_lea.vmem [#allocation3], 128
        %v7011 = vld [vmem:[%s7010] sm:$0xf]
        %v7012 = vld [vmem:[%s7010 + $0x4] sm:$0xf]
        %v7013 = vld [vmem:[%s7010 + $0x8] sm:$0xf]
        %v7014 = vld [vmem:[%s7010 + $0xc] sm:$0xf]
        %v7015 = vld [vmem:[%s7010 + $0x10] sm:$0xf]
        %v7016 = vld [vmem:[%s7010 + $0x14] sm:$0xf]
        %v7017 = vld [vmem:[%s7010 + $0x18] sm:$0xf]
        %v7018 = vld [vmem:[%s7010 + $0x1c] sm:$0xf]
        %v7019 = vld [vmem:[%s7010 + $0x20] sm:$0xf]
        %v7020 = vld [vmem:[%s7010 + $0x24] sm:$0xf]
        %v7021 = vld [vmem:[%s7010 + $0x28] sm:$0xf]
        %v7022 = vld [vmem:[%s7010 + $0x2c] sm:$0xf]
        %v7023 = vld [vmem:[%s7010 + $0x30] sm:$0xf]
        %v7024 = vld [vmem:[%s7010 + $0x34] sm:$0xf]
        %v7025 = vld [vmem:[%s7010 + $0x38] sm:$0xf]
        %v7026 = vld [vmem:[%s7010 + $0x3c] sm:$0xf]
        %v7027 = vunpack.c.l.b16 %v6901
        %v7028 = vunpack.c.l.b16 %v6904
        %v7029 = vunpack.c.l.b16 %v6908
        %v7030 = vunpack.c.l.b16 %v6911
        %v7031 = vunpack.c.l.b16 %v6915
        %v7032 = vunpack.c.l.b16 %v6918
        %v7033 = vunpack.c.l.b16 %v6922
        %v7034 = vunpack.c.l.b16 %v6925
        %v7035 = vunpack.c.l.b16 %v6929
        %v7036 = vunpack.c.l.b16 %v6932
        %v7037 = vunpack.c.l.b16 %v6936
        %v7038 = vunpack.c.l.b16 %v6939
        %v7039 = vunpack.c.l.b16 %v6943
        %v7040 = vunpack.c.l.b16 %v6946
        %v7041 = vunpack.c.l.b16 %v6950
        %v7042 = vunpack.c.l.b16 %v6953
        %v7043 = vunpack.c.l.b16 %v6957
        %v7044 = vunpack.c.l.b16 %v6960
        %v7045 = vunpack.c.l.b16 %v6964
        %v7046 = vunpack.c.l.b16 %v6967
        %v7047 = vunpack.c.l.b16 %v6971
        %v7048 = vunpack.c.l.b16 %v6974
        %v7049 = vunpack.c.l.b16 %v6978
        %v7050 = vunpack.c.l.b16 %v6981
        %v7051 = vunpack.c.l.b16 %v6985
        %v7052 = vunpack.c.l.b16 %v6988
        %v7053 = vunpack.c.l.b16 %v6992
        %v7054 = vunpack.c.l.b16 %v6995
        %v7055 = vunpack.c.l.b16 %v6999
        %v7056 = vunpack.c.l.b16 %v7002
        %v7057 = vunpack.c.l.b16 %v7006
        %v7058 = vunpack.c.l.b16 %v7009
        %v7059 = vpack.c.b16 %v7028, %v7027
        %v7060 = vpack.c.b16 %v7030, %v7029
        %v7061 = vpack.c.b16 %v7032, %v7031
        %v7062 = vpack.c.b16 %v7034, %v7033
        %v7063 = vpack.c.b16 %v7036, %v7035
        %v7064 = vpack.c.b16 %v7038, %v7037
        %v7065 = vpack.c.b16 %v7040, %v7039
        %v7066 = vpack.c.b16 %v7042, %v7041
        %v7067 = vpack.c.b16 %v7044, %v7043
        %v7068 = vpack.c.b16 %v7046, %v7045
        %v7069 = vpack.c.b16 %v7048, %v7047
        %v7070 = vpack.c.b16 %v7050, %v7049
        %v7071 = vpack.c.b16 %v7052, %v7051
        %v7072 = vpack.c.b16 %v7054, %v7053
        %v7073 = vpack.c.b16 %v7056, %v7055
        %v7074 = vpack.c.b16 %v7058, %v7057
        %v7107 = vunpack.c.l.b16 %v7011
        %v7108 = vunpack.c.l.b16 %v7012
        %v7109 = vunpack.c.l.b16 %v7013
        %v7110 = vunpack.c.l.b16 %v7014
        %v7111 = vunpack.c.l.b16 %v7015
        %v7112 = vunpack.c.l.b16 %v7016
        %v7113 = vunpack.c.l.b16 %v7017
        %v7114 = vunpack.c.l.b16 %v7018
        %v7115 = vunpack.c.l.b16 %v7019
        %v7116 = vunpack.c.l.b16 %v7020
        %v7117 = vunpack.c.l.b16 %v7021
        %v7118 = vunpack.c.l.b16 %v7022
        %v7119 = vunpack.c.l.b16 %v7023
        %v7120 = vunpack.c.l.b16 %v7024
        %v7121 = vunpack.c.l.b16 %v7025
        %v7122 = vunpack.c.l.b16 %v7026
        %v7123 = vpack.c.b16 %v7108, %v7107
        %v7124 = vpack.c.b16 %v7110, %v7109
        %v7125 = vpack.c.b16 %v7112, %v7111
        %v7126 = vpack.c.b16 %v7114, %v7113
        %v7127 = vpack.c.b16 %v7116, %v7115
        %v7128 = vpack.c.b16 %v7118, %v7117
        %v7129 = vpack.c.b16 %v7120, %v7119
        %v7130 = vpack.c.b16 %v7122, %v7121
        %7139 = vmatprep.subr.bf16.mxu0 0
        %7140 = vmatpush1.bf16.msra.mxu0 %v7123
        %7141 = vmatprep.subr.bf16.mxu0 0
        %7142 = vmatpush1.bf16.msra.mxu0 %v7124
        %7143 = vmatprep.subr.bf16.mxu0 0
        %7144 = vmatpush1.bf16.msra.mxu0 %v7125
        %7145 = vmatprep.subr.bf16.mxu0 0
        %7146 = vmatpush1.bf16.msra.mxu0 %v7126
        %7147 = vmatprep.subr.bf16.mxu0 0
        %7148 = vmatpush1.bf16.msra.mxu0 %v7127
        %7149 = vmatprep.subr.bf16.mxu0 0
        %7150 = vmatpush1.bf16.msra.mxu0 %v7128
        %7151 = vmatprep.subr.bf16.mxu0 0
        %7152 = vmatpush1.bf16.msra.mxu0 %v7129
        %7153 = vmatprep.subr.bf16.mxu0 0
        %7154 = vmatpush1.bf16.msra.mxu0 %v7130
        %7155 = vmatprep.subr.bf16.mxu0 0
        %7156 = vmatpush1.bf16.msra.mxu0 0
        %7157 = vmatprep.subr.bf16.mxu0 0
        %7158 = vmatpush1.bf16.msra.mxu0 0
        %7159 = vmatprep.subr.bf16.mxu0 0
        %7160 = vmatpush1.bf16.msra.mxu0 0
        %7161 = vmatprep.subr.bf16.mxu0 0
        %7162 = vmatpush1.bf16.msra.mxu0 0
        %7163 = vmatprep.subr.bf16.mxu0 0
        %7164 = vmatpush1.bf16.msra.mxu0 0
        %7165 = vmatprep.subr.bf16.mxu0 0
        %7166 = vmatpush1.bf16.msra.mxu0 0
        %7167 = vmatprep.subr.bf16.mxu0 0
        %7168 = vmatpush1.bf16.msra.mxu0 0
        %7169 = vmatprep.subr.bf16.mxu0 0
        %7170 = vmatpush1.bf16.msra.mxu0 0
        %7171 = vmatprep.mubr.bf16.mxu0 0
        %7172 = vmatmul.mubr.bf16.gmra.mrb[0].mxu0 %v7059
        %v7173 = vpop.f32.mrb[0].mxu0
        %v7174 = vadd.f32 0.0, %v7173
        %v7175 = vpop.f32.mrb[0].mxu0
        %v7176 = vpop.f32.mrb[0].mxu0
        %v7177 = vadd.f32 0.0, %v7176
        %v7178 = vpop.f32.mrb[0].mxu0
        %7179 = vmatprep.mubr.bf16.mxu0 0
        %7180 = vmatmul.mubr.bf16.gmra.mrb[0].mxu0 %v7060
        %v7181 = vpop.f32.mrb[0].mxu0
        %v7182 = vadd.f32 0.0, %v7181
        %v7183 = vpop.f32.mrb[0].mxu0
        %v7184 = vpop.f32.mrb[0].mxu0
        %v7185 = vadd.f32 0.0, %v7184
        %v7186 = vpop.f32.mrb[0].mxu0
        %7187 = vmatprep.mubr.bf16.mxu0 0
        %7188 = vmatmul.mubr.bf16.gmra.mrb[0].mxu0 %v7061
        %v7189 = vpop.f32.mrb[0].mxu0
        %v7190 = vadd.f32 0.0, %v7189
        %v7191 = vpop.f32.mrb[0].mxu0
        %v7192 = vpop.f32.mrb[0].mxu0
        %v7193 = vadd.f32 0.0, %v7192
        %v7194 = vpop.f32.mrb[0].mxu0
        %7195 = vmatprep.mubr.bf16.mxu0 0
        %7196 = vmatmul.mubr.bf16.gmra.mrb[0].mxu0 %v7062
        %v7197 = vpop.f32.mrb[0].mxu0
        %v7198 = vadd.f32 0.0, %v7197
        %v7199 = vpop.f32.mrb[0].mxu0
        %v7200 = vpop.f32.mrb[0].mxu0
        %v7201 = vadd.f32 0.0, %v7200
        %v7202 = vpop.f32.mrb[0].mxu0
        %7203 = vmatprep.mubr.bf16.mxu0 0
        %7204 = vmatmul.mubr.bf16.gmra.mrb[0].mxu0 %v7063
        %v7205 = vpop.f32.mrb[0].mxu0
        %v7206 = vadd.f32 0.0, %v7205
        %v7207 = vpop.f32.mrb[0].mxu0
        %v7208 = vpop.f32.mrb[0].mxu0
        %v7209 = vadd.f32 0.0, %v7208
        %v7210 = vpop.f32.mrb[0].mxu0
        %7211 = vmatprep.mubr.bf16.mxu0 0
        %7212 = vmatmul.mubr.bf16.gmra.mrb[0].mxu0 %v7064
        %v7213 = vpop.f32.mrb[0].mxu0
        %v7214 = vadd.f32 0.0, %v7213
        %v7215 = vpop.f32.mrb[0].mxu0
        %v7216 = vpop.f32.mrb[0].mxu0
        %v7217 = vadd.f32 0.0, %v7216
        %v7218 = vpop.f32.mrb[0].mxu0
        %7219 = vmatprep.mubr.bf16.mxu0 0
        %7220 = vmatmul.mubr.bf16.gmra.mrb[0].mxu0 %v7065
        %v7221 = vpop.f32.mrb[0].mxu0
        %v7222 = vadd.f32 0.0, %v7221
        %v7223 = vpop.f32.mrb[0].mxu0
        %v7224 = vpop.f32.mrb[0].mxu0
        %v7225 = vadd.f32 0.0, %v7224
        %v7226 = vpop.f32.mrb[0].mxu0
        %7227 = vmatprep.mubr.bf16.mxu0 0
        %7228 = vmatmul.mubr.bf16.gmra.mrb[0].mxu0 %v7066
        %v7229 = vpop.f32.mrb[0].mxu0
        %v7230 = vadd.f32 0.0, %v7229
        %v7231 = vpop.f32.mrb[0].mxu0
        %v7232 = vpop.f32.mrb[0].mxu0
        %v7233 = vadd.f32 0.0, %v7232
        %v7234 = vpop.f32.mrb[0].mxu0
        %7235 = vmatprep.mubr.bf16.mxu0 0
        %7236 = vmatmul.mubr.bf16.gmra.mrb[0].mxu0 %v7067
        %v7237 = vpop.f32.mrb[0].mxu0
        %v7238 = vadd.f32 0.0, %v7237
        %v7239 = vpop.f32.mrb[0].mxu0
        %v7240 = vpop.f32.mrb[0].mxu0
        %v7241 = vadd.f32 0.0, %v7240
        %v7242 = vpop.f32.mrb[0].mxu0
        %7243 = vmatprep.mubr.bf16.mxu0 0
        %7244 = vmatmul.mubr.bf16.gmra.mrb[0].mxu0 %v7068
        %v7245 = vpop.f32.mrb[0].mxu0
        %v7246 = vadd.f32 0.0, %v7245
        %v7247 = vpop.f32.mrb[0].mxu0
        %v7248 = vpop.f32.mrb[0].mxu0
        %v7249 = vadd.f32 0.0, %v7248
        %v7250 = vpop.f32.mrb[0].mxu0
        %7251 = vmatprep.mubr.bf16.mxu0 0
        %7252 = vmatmul.mubr.bf16.gmra.mrb[0].mxu0 %v7069
        %v7253 = vpop.f32.mrb[0].mxu0
        %v7254 = vadd.f32 0.0, %v7253
        %v7255 = vpop.f32.mrb[0].mxu0
        %v7256 = vpop.f32.mrb[0].mxu0
        %v7257 = vadd.f32 0.0, %v7256
        %v7258 = vpop.f32.mrb[0].mxu0
        %7259 = vmatprep.mubr.bf16.mxu0 0
        %7260 = vmatmul.mubr.bf16.gmra.mrb[0].mxu0 %v7070
        %v7261 = vpop.f32.mrb[0].mxu0
        %v7262 = vadd.f32 0.0, %v7261
        %v7263 = vpop.f32.mrb[0].mxu0
        %v7264 = vpop.f32.mrb[0].mxu0
        %v7265 = vadd.f32 0.0, %v7264
        %v7266 = vpop.f32.mrb[0].mxu0
        %7267 = vmatprep.mubr.bf16.mxu0 0
        %7268 = vmatmul.mubr.bf16.gmra.mrb[0].mxu0 %v7071
        %v7269 = vpop.f32.mrb[0].mxu0
        %v7270 = vadd.f32 0.0, %v7269
        %v7271 = vpop.f32.mrb[0].mxu0
        %v7272 = vpop.f32.mrb[0].mxu0
        %v7273 = vadd.f32 0.0, %v7272
        %v7274 = vpop.f32.mrb[0].mxu0
        %7275 = vmatprep.mubr.bf16.mxu0 0
        %7276 = vmatmul.mubr.bf16.gmra.mrb[0].mxu0 %v7072
        %v7277 = vpop.f32.mrb[0].mxu0
        %v7278 = vadd.f32 0.0, %v7277
        %v7279 = vpop.f32.mrb[0].mxu0
        %v7280 = vpop.f32.mrb[0].mxu0
        %v7281 = vadd.f32 0.0, %v7280
        %v7282 = vpop.f32.mrb[0].mxu0
        %7283 = vmatprep.mubr.bf16.mxu0 0
        %7284 = vmatmul.mubr.bf16.gmra.mrb[0].mxu0 %v7073
        %v7285 = vpop.f32.mrb[0].mxu0
        %v7286 = vadd.f32 0.0, %v7285
        %v7287 = vpop.f32.mrb[0].mxu0
        %v7288 = vpop.f32.mrb[0].mxu0
        %v7289 = vadd.f32 0.0, %v7288
        %v7290 = vpop.f32.mrb[0].mxu0
        %7291 = vmatprep.mubr.bf16.mxu0 0
        %7292 = vmatmul.mubr.bf16.gmra.mrb[0].mxu0 %v7074
        %v7293 = vpop.f32.mrb[0].mxu0
        %v7294 = vadd.f32 0.0, %v7293
        %v7295 = vpop.f32.mrb[0].mxu0
        %v7296 = vpop.f32.mrb[0].mxu0
        %v7297 = vadd.f32 0.0, %v7296
        %v7298 = vpop.f32.mrb[0].mxu0
        %7299 = vdwg.mxu0
        %v7300 = vadd.f32 %v6724, %v7174
        %v7301 = vadd.f32 %v6727, %v7177
        %v7302 = vadd.f32 %v6732, %v7182
        %v7303 = vadd.f32 %v6735, %v7185
        %v7304 = vadd.f32 %v6740, %v7190
        %v7305 = vadd.f32 %v6743, %v7193
        %v7306 = vadd.f32 %v6748, %v7198
        %v7307 = vadd.f32 %v6751, %v7201
        %v7308 = vadd.f32 %v6756, %v7206
        %v7309 = vadd.f32 %v6759, %v7209
        %v7310 = vadd.f32 %v6764, %v7214
        %v7311 = vadd.f32 %v6767, %v7217
        %v7312 = vadd.f32 %v6772, %v7222
        %v7313 = vadd.f32 %v6775, %v7225
        %v7314 = vadd.f32 %v6780, %v7230
        %v7315 = vadd.f32 %v6783, %v7233
        %v7316 = vadd.f32 %v6788, %v7238
        %v7317 = vadd.f32 %v6791, %v7241
        %v7318 = vadd.f32 %v6796, %v7246
        %v7319 = vadd.f32 %v6799, %v7249
        %v7320 = vadd.f32 %v6804, %v7254
        %v7321 = vadd.f32 %v6807, %v7257
        %v7322 = vadd.f32 %v6812, %v7262
        %v7323 = vadd.f32 %v6815, %v7265
        %v7324 = vadd.f32 %v6820, %v7270
        %v7325 = vadd.f32 %v6823, %v7273
        %v7326 = vadd.f32 %v6828, %v7278
        %v7327 = vadd.f32 %v6831, %v7281
        %v7328 = vadd.f32 %v6836, %v7286
        %v7329 = vadd.f32 %v6839, %v7289
        %v7330 = vadd.f32 %v6844, %v7294
        %v7331 = vadd.f32 %v6847, %v7297
        %v7332 = vld [vmem:[%s5689] sm:$0xf]
        %v7333 = vld [vmem:[%s5689 + $0x4] sm:$0xf]
        %v7334 = vld [vmem:[%s5689 + $0xc] sm:$0xf]
        %v7335 = vld [vmem:[%s5689 + $0x10] sm:$0xf]
        %v7336 = vld [vmem:[%s5689 + $0x18] sm:$0xf]
        %v7337 = vld [vmem:[%s5689 + $0x1c] sm:$0xf]
        %v7338 = vld [vmem:[%s5689 + $0x24] sm:$0xf]
        %v7339 = vld [vmem:[%s5689 + $0x28] sm:$0xf]
        %v7340 = vld [vmem:[%s5689 + $0x30] sm:$0xf]
        %v7341 = vld [vmem:[%s5689 + $0x34] sm:$0xf]
        %v7342 = vld [vmem:[%s5689 + $0x3c] sm:$0xf]
        %v7343 = vld [vmem:[%s5689 + $0x40] sm:$0xf]
        %v7344 = vld [vmem:[%s5689 + $0x48] sm:$0xf]
        %v7345 = vld [vmem:[%s5689 + $0x4c] sm:$0xf]
        %v7346 = vld [vmem:[%s5689 + $0x54] sm:$0xf]
        %v7347 = vld [vmem:[%s5689 + $0x58] sm:$0xf]
        %v7348 = vld [vmem:[%s5689 + $0x60] sm:$0xf]
        %v7349 = vld [vmem:[%s5689 + $0x64] sm:$0xf]
        %v7350 = vld [vmem:[%s5689 + $0x6c] sm:$0xf]
        %v7351 = vld [vmem:[%s5689 + $0x70] sm:$0xf]
        %v7352 = vld [vmem:[%s5689 + $0x78] sm:$0xf]
        %v7353 = vld [vmem:[%s5689 + $0x7c] sm:$0xf]
        %v7354 = vld [vmem:[%s5689 + $0x84] sm:$0xf]
        %v7355 = vld [vmem:[%s5689 + $0x88] sm:$0xf]
        %v7356 = vld [vmem:[%s5689 + $0x90] sm:$0xf]
        %v7357 = vld [vmem:[%s5689 + $0x94] sm:$0xf]
        %v7358 = vld [vmem:[%s5689 + $0x9c] sm:$0xf]
        %v7359 = vld [vmem:[%s5689 + $0xa0] sm:$0xf]
        %v7360 = vld [vmem:[%s5689 + $0xa8] sm:$0xf]
        %v7361 = vld [vmem:[%s5689 + $0xac] sm:$0xf]
        %v7362 = vld [vmem:[%s5689 + $0xb4] sm:$0xf]
        %v7363 = vld [vmem:[%s5689 + $0xb8] sm:$0xf]
        %s7364 = scalar_lea.vmem [#allocation3], 192
        %v7365 = vld [vmem:[%s7364] sm:$0xf]
        %v7366 = vld [vmem:[%s7364 + $0x4] sm:$0xf]
        %v7367 = vld [vmem:[%s7364 + $0x8] sm:$0xf]
        %v7368 = vld [vmem:[%s7364 + $0xc] sm:$0xf]
        %v7369 = vld [vmem:[%s7364 + $0x10] sm:$0xf]
        %v7370 = vld [vmem:[%s7364 + $0x14] sm:$0xf]
        %v7371 = vld [vmem:[%s7364 + $0x18] sm:$0xf]
        %v7372 = vld [vmem:[%s7364 + $0x1c] sm:$0xf]
        %v7373 = vld [vmem:[%s7364 + $0x20] sm:$0xf]
        %v7374 = vld [vmem:[%s7364 + $0x24] sm:$0xf]
        %v7375 = vld [vmem:[%s7364 + $0x28] sm:$0xf]
        %v7376 = vld [vmem:[%s7364 + $0x2c] sm:$0xf]
        %v7377 = vld [vmem:[%s7364 + $0x30] sm:$0xf]
        %v7378 = vld [vmem:[%s7364 + $0x34] sm:$0xf]
        %v7379 = vld [vmem:[%s7364 + $0x38] sm:$0xf]
        %v7380 = vld [vmem:[%s7364 + $0x3c] sm:$0xf]
        %v7413 = vunpack.c.l.b16 %v7332
        %v7414 = vunpack.c.l.b16 %v7333
        %v7415 = vunpack.c.l.b16 %v7334
        %v7416 = vunpack.c.l.b16 %v7335
        %v7417 = vunpack.c.l.b16 %v7336
        %v7418 = vunpack.c.l.b16 %v7337
        %v7419 = vunpack.c.l.b16 %v7338
        %v7420 = vunpack.c.l.b16 %v7339
        %v7421 = vunpack.c.l.b16 %v7340
        %v7422 = vunpack.c.l.b16 %v7341
        %v7423 = vunpack.c.l.b16 %v7342
        %v7424 = vunpack.c.l.b16 %v7343
        %v7425 = vunpack.c.l.b16 %v7344
        %v7426 = vunpack.c.l.b16 %v7345
        %v7427 = vunpack.c.l.b16 %v7346
        %v7428 = vunpack.c.l.b16 %v7347
        %v7429 = vunpack.c.l.b16 %v7348
        %v7430 = vunpack.c.l.b16 %v7349
        %v7431 = vunpack.c.l.b16 %v7350
        %v7432 = vunpack.c.l.b16 %v7351
        %v7433 = vunpack.c.l.b16 %v7352
        %v7434 = vunpack.c.l.b16 %v7353
        %v7435 = vunpack.c.l.b16 %v7354
        %v7436 = vunpack.c.l.b16 %v7355
        %v7437 = vunpack.c.l.b16 %v7356
        %v7438 = vunpack.c.l.b16 %v7357
        %v7439 = vunpack.c.l.b16 %v7358
        %v7440 = vunpack.c.l.b16 %v7359
        %v7441 = vunpack.c.l.b16 %v7360
        %v7442 = vunpack.c.l.b16 %v7361
        %v7443 = vunpack.c.l.b16 %v7362
        %v7444 = vunpack.c.l.b16 %v7363
        %v7445 = vpack.c.b16 %v7414, %v7413
        %v7446 = vpack.c.b16 %v7416, %v7415
        %v7447 = vpack.c.b16 %v7418, %v7417
        %v7448 = vpack.c.b16 %v7420, %v7419
        %v7449 = vpack.c.b16 %v7422, %v7421
        %v7450 = vpack.c.b16 %v7424, %v7423
        %v7451 = vpack.c.b16 %v7426, %v7425
        %v7452 = vpack.c.b16 %v7428, %v7427
        %v7453 = vpack.c.b16 %v7430, %v7429
        %v7454 = vpack.c.b16 %v7432, %v7431
        %v7455 = vpack.c.b16 %v7434, %v7433
        %v7456 = vpack.c.b16 %v7436, %v7435
        %v7457 = vpack.c.b16 %v7438, %v7437
        %v7458 = vpack.c.b16 %v7440, %v7439
        %v7459 = vpack.c.b16 %v7442, %v7441
        %v7460 = vpack.c.b16 %v7444, %v7443
        %v7493 = vunpack.c.l.b16 %v7365
        %v7494 = vunpack.c.l.b16 %v7366
        %v7495 = vunpack.c.l.b16 %v7367
        %v7496 = vunpack.c.l.b16 %v7368
        %v7497 = vunpack.c.l.b16 %v7369
        %v7498 = vunpack.c.l.b16 %v7370
        %v7499 = vunpack.c.l.b16 %v7371
        %v7500 = vunpack.c.l.b16 %v7372
        %v7501 = vunpack.c.l.b16 %v7373
        %v7502 = vunpack.c.l.b16 %v7374
        %v7503 = vunpack.c.l.b16 %v7375
        %v7504 = vunpack.c.l.b16 %v7376
        %v7505 = vunpack.c.l.b16 %v7377
        %v7506 = vunpack.c.l.b16 %v7378
        %v7507 = vunpack.c.l.b16 %v7379
        %v7508 = vunpack.c.l.b16 %v7380
        %v7509 = vpack.c.b16 %v7494, %v7493
        %v7510 = vpack.c.b16 %v7496, %v7495
        %v7511 = vpack.c.b16 %v7498, %v7497
        %v7512 = vpack.c.b16 %v7500, %v7499
        %v7513 = vpack.c.b16 %v7502, %v7501
        %v7514 = vpack.c.b16 %v7504, %v7503
        %v7515 = vpack.c.b16 %v7506, %v7505
        %v7516 = vpack.c.b16 %v7508, %v7507
        %7525 = vmatprep.subr.bf16.mxu0 0
        %7526 = vmatpush1.bf16.msra.mxu0 %v7509
        %7527 = vmatprep.subr.bf16.mxu0 0
        %7528 = vmatpush1.bf16.msra.mxu0 %v7510
        %7529 = vmatprep.subr.bf16.mxu0 0
        %7530 = vmatpush1.bf16.msra.mxu0 %v7511
        %7531 = vmatprep.subr.bf16.mxu0 0
        %7532 = vmatpush1.bf16.msra.mxu0 %v7512
        %7533 = vmatprep.subr.bf16.mxu0 0
        %7534 = vmatpush1.bf16.msra.mxu0 %v7513
        %7535 = vmatprep.subr.bf16.mxu0 0
        %7536 = vmatpush1.bf16.msra.mxu0 %v7514
        %7537 = vmatprep.subr.bf16.mxu0 0
        %7538 = vmatpush1.bf16.msra.mxu0 %v7515
        %7539 = vmatprep.subr.bf16.mxu0 0
        %7540 = vmatpush1.bf16.msra.mxu0 %v7516
        %7541 = vmatprep.subr.bf16.mxu0 0
        %7542 = vmatpush1.bf16.msra.mxu0 0
        %7543 = vmatprep.subr.bf16.mxu0 0
        %7544 = vmatpush1.bf16.msra.mxu0 0
        %7545 = vmatprep.subr.bf16.mxu0 0
        %7546 = vmatpush1.bf16.msra.mxu0 0
        %7547 = vmatprep.subr.bf16.mxu0 0
        %7548 = vmatpush1.bf16.msra.mxu0 0
        %7549 = vmatprep.subr.bf16.mxu0 0
        %7550 = vmatpush1.bf16.msra.mxu0 0
        %7551 = vmatprep.subr.bf16.mxu0 0
        %7552 = vmatpush1.bf16.msra.mxu0 0
        %7553 = vmatprep.subr.bf16.mxu0 0
        %7554 = vmatpush1.bf16.msra.mxu0 0
        %7555 = vmatprep.subr.bf16.mxu0 0
        %7556 = vmatpush1.bf16.msra.mxu0 0
        %7557 = vmatprep.mubr.bf16.mxu0 0
        %7558 = vmatmul.mubr.bf16.gmra.mrb[0].mxu0 %v7445
        %v7559 = vpop.f32.mrb[0].mxu0
        %v7560 = vadd.f32 0.0, %v7559
        %v7561 = vpop.f32.mrb[0].mxu0
        %v7562 = vpop.f32.mrb[0].mxu0
        %v7563 = vadd.f32 0.0, %v7562
        %v7564 = vpop.f32.mrb[0].mxu0
        %7565 = vmatprep.mubr.bf16.mxu0 0
        %7566 = vmatmul.mubr.bf16.gmra.mrb[0].mxu0 %v7446
        %v7567 = vpop.f32.mrb[0].mxu0
        %v7568 = vadd.f32 0.0, %v7567
        %v7569 = vpop.f32.mrb[0].mxu0
        %v7570 = vpop.f32.mrb[0].mxu0
        %v7571 = vadd.f32 0.0, %v7570
        %v7572 = vpop.f32.mrb[0].mxu0
        %7573 = vmatprep.mubr.bf16.mxu0 0
        %7574 = vmatmul.mubr.bf16.gmra.mrb[0].mxu0 %v7447
        %v7575 = vpop.f32.mrb[0].mxu0
        %v7576 = vadd.f32 0.0, %v7575
        %v7577 = vpop.f32.mrb[0].mxu0
        %v7578 = vpop.f32.mrb[0].mxu0
        %v7579 = vadd.f32 0.0, %v7578
        %v7580 = vpop.f32.mrb[0].mxu0
        %7581 = vmatprep.mubr.bf16.mxu0 0
        %7582 = vmatmul.mubr.bf16.gmra.mrb[0].mxu0 %v7448
        %v7583 = vpop.f32.mrb[0].mxu0
        %v7584 = vadd.f32 0.0, %v7583
        %v7585 = vpop.f32.mrb[0].mxu0
        %v7586 = vpop.f32.mrb[0].mxu0
        %v7587 = vadd.f32 0.0, %v7586
        %v7588 = vpop.f32.mrb[0].mxu0
        %7589 = vmatprep.mubr.bf16.mxu0 0
        %7590 = vmatmul.mubr.bf16.gmra.mrb[0].mxu0 %v7449
        %v7591 = vpop.f32.mrb[0].mxu0
        %v7592 = vadd.f32 0.0, %v7591
        %v7593 = vpop.f32.mrb[0].mxu0
        %v7594 = vpop.f32.mrb[0].mxu0
        %v7595 = vadd.f32 0.0, %v7594
        %v7596 = vpop.f32.mrb[0].mxu0
        %7597 = vmatprep.mubr.bf16.mxu0 0
        %7598 = vmatmul.mubr.bf16.gmra.mrb[0].mxu0 %v7450
        %v7599 = vpop.f32.mrb[0].mxu0
        %v7600 = vadd.f32 0.0, %v7599
        %v7601 = vpop.f32.mrb[0].mxu0
        %v7602 = vpop.f32.mrb[0].mxu0
        %v7603 = vadd.f32 0.0, %v7602
        %v7604 = vpop.f32.mrb[0].mxu0
        %7605 = vmatprep.mubr.bf16.mxu0 0
        %7606 = vmatmul.mubr.bf16.gmra.mrb[0].mxu0 %v7451
        %v7607 = vpop.f32.mrb[0].mxu0
        %v7608 = vadd.f32 0.0, %v7607
        %v7609 = vpop.f32.mrb[0].mxu0
        %v7610 = vpop.f32.mrb[0].mxu0
        %v7611 = vadd.f32 0.0, %v7610
        %v7612 = vpop.f32.mrb[0].mxu0
        %7613 = vmatprep.mubr.bf16.mxu0 0
        %7614 = vmatmul.mubr.bf16.gmra.mrb[0].mxu0 %v7452
        %v7615 = vpop.f32.mrb[0].mxu0
        %v7616 = vadd.f32 0.0, %v7615
        %v7617 = vpop.f32.mrb[0].mxu0
        %v7618 = vpop.f32.mrb[0].mxu0
        %v7619 = vadd.f32 0.0, %v7618
        %v7620 = vpop.f32.mrb[0].mxu0
        %7621 = vmatprep.mubr.bf16.mxu0 0
        %7622 = vmatmul.mubr.bf16.gmra.mrb[0].mxu0 %v7453
        %v7623 = vpop.f32.mrb[0].mxu0
        %v7624 = vadd.f32 0.0, %v7623
        %v7625 = vpop.f32.mrb[0].mxu0
        %v7626 = vpop.f32.mrb[0].mxu0
        %v7627 = vadd.f32 0.0, %v7626
        %v7628 = vpop.f32.mrb[0].mxu0
        %7629 = vmatprep.mubr.bf16.mxu0 0
        %7630 = vmatmul.mubr.bf16.gmra.mrb[0].mxu0 %v7454
        %v7631 = vpop.f32.mrb[0].mxu0
        %v7632 = vadd.f32 0.0, %v7631
        %v7633 = vpop.f32.mrb[0].mxu0
        %v7634 = vpop.f32.mrb[0].mxu0
        %v7635 = vadd.f32 0.0, %v7634
        %v7636 = vpop.f32.mrb[0].mxu0
        %7637 = vmatprep.mubr.bf16.mxu0 0
        %7638 = vmatmul.mubr.bf16.gmra.mrb[0].mxu0 %v7455
        %v7639 = vpop.f32.mrb[0].mxu0
        %v7640 = vadd.f32 0.0, %v7639
        %v7641 = vpop.f32.mrb[0].mxu0
        %v7642 = vpop.f32.mrb[0].mxu0
        %v7643 = vadd.f32 0.0, %v7642
        %v7644 = vpop.f32.mrb[0].mxu0
        %7645 = vmatprep.mubr.bf16.mxu0 0
        %7646 = vmatmul.mubr.bf16.gmra.mrb[0].mxu0 %v7456
        %v7647 = vpop.f32.mrb[0].mxu0
        %v7648 = vadd.f32 0.0, %v7647
        %v7649 = vpop.f32.mrb[0].mxu0
        %v7650 = vpop.f32.mrb[0].mxu0
        %v7651 = vadd.f32 0.0, %v7650
        %v7652 = vpop.f32.mrb[0].mxu0
        %7653 = vmatprep.mubr.bf16.mxu0 0
        %7654 = vmatmul.mubr.bf16.gmra.mrb[0].mxu0 %v7457
        %v7655 = vpop.f32.mrb[0].mxu0
        %v7656 = vadd.f32 0.0, %v7655
        %v7657 = vpop.f32.mrb[0].mxu0
        %v7658 = vpop.f32.mrb[0].mxu0
        %v7659 = vadd.f32 0.0, %v7658
        %v7660 = vpop.f32.mrb[0].mxu0
        %7661 = vmatprep.mubr.bf16.mxu0 0
        %7662 = vmatmul.mubr.bf16.gmra.mrb[0].mxu0 %v7458
        %v7663 = vpop.f32.mrb[0].mxu0
        %v7664 = vadd.f32 0.0, %v7663
        %v7665 = vpop.f32.mrb[0].mxu0
        %v7666 = vpop.f32.mrb[0].mxu0
        %v7667 = vadd.f32 0.0, %v7666
        %v7668 = vpop.f32.mrb[0].mxu0
        %7669 = vmatprep.mubr.bf16.mxu0 0
        %7670 = vmatmul.mubr.bf16.gmra.mrb[0].mxu0 %v7459
        %v7671 = vpop.f32.mrb[0].mxu0
        %v7672 = vadd.f32 0.0, %v7671
        %v7673 = vpop.f32.mrb[0].mxu0
        %v7674 = vpop.f32.mrb[0].mxu0
        %v7675 = vadd.f32 0.0, %v7674
        %v7676 = vpop.f32.mrb[0].mxu0
        %7677 = vmatprep.mubr.bf16.mxu0 0
        %7678 = vmatmul.mubr.bf16.gmra.mrb[0].mxu0 %v7460
        %v7679 = vpop.f32.mrb[0].mxu0
        %v7680 = vadd.f32 0.0, %v7679
        %v7681 = vpop.f32.mrb[0].mxu0
        %v7682 = vpop.f32.mrb[0].mxu0
        %v7683 = vadd.f32 0.0, %v7682
        %v7684 = vpop.f32.mrb[0].mxu0
        %7685 = vdwg.mxu0
        %v7686 = vadd.f32 %v7300, %v7560
        %v7687 = vadd.f32 %v7301, %v7563
        %v7688 = vadd.f32 %v7302, %v7568
        %v7689 = vadd.f32 %v7303, %v7571
        %v7690 = vadd.f32 %v7304, %v7576
        %v7691 = vadd.f32 %v7305, %v7579
        %v7692 = vadd.f32 %v7306, %v7584
        %v7693 = vadd.f32 %v7307, %v7587
        %v7694 = vadd.f32 %v7308, %v7592
        %v7695 = vadd.f32 %v7309, %v7595
        %v7696 = vadd.f32 %v7310, %v7600
        %v7697 = vadd.f32 %v7311, %v7603
        %v7698 = vadd.f32 %v7312, %v7608
        %v7699 = vadd.f32 %v7313, %v7611
        %v7700 = vadd.f32 %v7314, %v7616
        %v7701 = vadd.f32 %v7315, %v7619
        %v7702 = vadd.f32 %v7316, %v7624
        %v7703 = vadd.f32 %v7317, %v7627
        %v7704 = vadd.f32 %v7318, %v7632
        %v7705 = vadd.f32 %v7319, %v7635
        %v7706 = vadd.f32 %v7320, %v7640
        %v7707 = vadd.f32 %v7321, %v7643
        %v7708 = vadd.f32 %v7322, %v7648
        %v7709 = vadd.f32 %v7323, %v7651
        %v7710 = vadd.f32 %v7324, %v7656
        %v7711 = vadd.f32 %v7325, %v7659
        %v7712 = vadd.f32 %v7326, %v7664
        %v7713 = vadd.f32 %v7327, %v7667
        %v7714 = vadd.f32 %v7328, %v7672
        %v7715 = vadd.f32 %v7329, %v7675
        %v7716 = vadd.f32 %v7330, %v7680
        %v7717 = vadd.f32 %v7331, %v7683
        %v7718 = vld [vmem:[%s5689] sm:$0xf]
        %v7719 = vld [vmem:[%s5689 + $0x4] sm:$0xf]
        %v7720 = vld [vmem:[%s5689 + $0x8] sm:$0x1]
        %v7721 = vld [vmem:[%s5689 + $0xc] sm:$0xf]
        %v7722 = vld [vmem:[%s5689 + $0x10] sm:$0xf]
        %v7723 = vld [vmem:[%s5689 + $0x14] sm:$0x1]
        %v7724 = vld [vmem:[%s5689 + $0x18] sm:$0xf]
        %v7725 = vld [vmem:[%s5689 + $0x1c] sm:$0xf]
        %v7726 = vld [vmem:[%s5689 + $0x20] sm:$0x1]
        %v7727 = vld [vmem:[%s5689 + $0x24] sm:$0xf]
        %v7728 = vld [vmem:[%s5689 + $0x28] sm:$0xf]
        %v7729 = vld [vmem:[%s5689 + $0x2c] sm:$0x1]
        %v7730 = vld [vmem:[%s5689 + $0x30] sm:$0xf]
        %v7731 = vld [vmem:[%s5689 + $0x34] sm:$0xf]
        %v7732 = vld [vmem:[%s5689 + $0x38] sm:$0x1]
        %v7733 = vld [vmem:[%s5689 + $0x3c] sm:$0xf]
        %v7734 = vld [vmem:[%s5689 + $0x40] sm:$0xf]
        %v7735 = vld [vmem:[%s5689 + $0x44] sm:$0x1]
        %v7736 = vld [vmem:[%s5689 + $0x48] sm:$0xf]
        %v7737 = vld [vmem:[%s5689 + $0x4c] sm:$0xf]
        %v7738 = vld [vmem:[%s5689 + $0x50] sm:$0x1]
        %v7739 = vld [vmem:[%s5689 + $0x54] sm:$0xf]
        %v7740 = vld [vmem:[%s5689 + $0x58] sm:$0xf]
        %v7741 = vld [vmem:[%s5689 + $0x5c] sm:$0x1]
        %v7742 = vld [vmem:[%s5689 + $0x60] sm:$0xf]
        %v7743 = vld [vmem:[%s5689 + $0x64] sm:$0xf]
        %v7744 = vld [vmem:[%s5689 + $0x68] sm:$0x1]
        %v7745 = vld [vmem:[%s5689 + $0x6c] sm:$0xf]
        %v7746 = vld [vmem:[%s5689 + $0x70] sm:$0xf]
        %v7747 = vld [vmem:[%s5689 + $0x74] sm:$0x1]
        %v7748 = vld [vmem:[%s5689 + $0x78] sm:$0xf]
        %v7749 = vld [vmem:[%s5689 + $0x7c] sm:$0xf]
        %v7750 = vld [vmem:[%s5689 + $0x80] sm:$0x1]
        %v7751 = vld [vmem:[%s5689 + $0x84] sm:$0xf]
        %v7752 = vld [vmem:[%s5689 + $0x88] sm:$0xf]
        %v7753 = vld [vmem:[%s5689 + $0x8c] sm:$0x1]
        %v7754 = vld [vmem:[%s5689 + $0x90] sm:$0xf]
        %v7755 = vld [vmem:[%s5689 + $0x94] sm:$0xf]
        %v7756 = vld [vmem:[%s5689 + $0x98] sm:$0x1]
        %v7757 = vld [vmem:[%s5689 + $0x9c] sm:$0xf]
        %v7758 = vld [vmem:[%s5689 + $0xa0] sm:$0xf]
        %v7759 = vld [vmem:[%s5689 + $0xa4] sm:$0x1]
        %v7760 = vld [vmem:[%s5689 + $0xa8] sm:$0xf]
        %v7761 = vld [vmem:[%s5689 + $0xac] sm:$0xf]
        %v7762 = vld [vmem:[%s5689 + $0xb0] sm:$0x1]
        %v7763 = vld [vmem:[%s5689 + $0xb4] sm:$0xf]
        %v7764 = vld [vmem:[%s5689 + $0xb8] sm:$0xf]
        %v7765 = vld [vmem:[%s5689 + $0xbc] sm:$0x1]
        %v7767 = vshrl.u32 %v7718, 16
        %v7769 = vrot.slane %v7767, 4
        %v7770 = vshll.u32 %v7718, 16
        %v7772 = vrot.slane %v7770, 5
        %v7773 = vor.u32 %v7769, %v7772
        %v7774 = vrot.slane %v7773, 4
        %v7776 = vshll.u32 %v7719, 16
        %v7778 = vrot.slane %v7776, 5
        %v7779 = vsel %vm417, %v7774, %v7778
        %v7780 = vshrl.u32 %v7719, 16
        %v7782 = vrot.slane %v7780, 4
        %v7783 = vor.u32 %v7782, %v7778
        %v7784 = vrot.slane %v7783, 4
        %v7786 = vshll.u32 %v7720, 16
        %v7788 = vrot.slane %v7786, 5
        %v7789 = vsel %vm417, %v7784, %v7788
        %v7791 = vshrl.u32 %v7721, 16
        %v7793 = vrot.slane %v7791, 4
        %v7794 = vshll.u32 %v7721, 16
        %v7796 = vrot.slane %v7794, 5
        %v7797 = vor.u32 %v7793, %v7796
        %v7798 = vrot.slane %v7797, 4
        %v7800 = vshll.u32 %v7722, 16
        %v7802 = vrot.slane %v7800, 5
        %v7803 = vsel %vm417, %v7798, %v7802
        %v7804 = vshrl.u32 %v7722, 16
        %v7806 = vrot.slane %v7804, 4
        %v7807 = vor.u32 %v7806, %v7802
        %v7808 = vrot.slane %v7807, 4
        %v7810 = vshll.u32 %v7723, 16
        %v7812 = vrot.slane %v7810, 5
        %v7813 = vsel %vm417, %v7808, %v7812
        %v7815 = vshrl.u32 %v7724, 16
        %v7817 = vrot.slane %v7815, 4
        %v7818 = vshll.u32 %v7724, 16
        %v7820 = vrot.slane %v7818, 5
        %v7821 = vor.u32 %v7817, %v7820
        %v7822 = vrot.slane %v7821, 4
        %v7824 = vshll.u32 %v7725, 16
        %v7826 = vrot.slane %v7824, 5
        %v7827 = vsel %vm417, %v7822, %v7826
        %v7828 = vshrl.u32 %v7725, 16
        %v7830 = vrot.slane %v7828, 4
        %v7831 = vor.u32 %v7830, %v7826
        %v7832 = vrot.slane %v7831, 4
        %v7834 = vshll.u32 %v7726, 16
        %v7836 = vrot.slane %v7834, 5
        %v7837 = vsel %vm417, %v7832, %v7836
        %v7839 = vshrl.u32 %v7727, 16
        %v7841 = vrot.slane %v7839, 4
        %v7842 = vshll.u32 %v7727, 16
        %v7844 = vrot.slane %v7842, 5
        %v7845 = vor.u32 %v7841, %v7844
        %v7846 = vrot.slane %v7845, 4
        %v7848 = vshll.u32 %v7728, 16
        %v7850 = vrot.slane %v7848, 5
        %v7851 = vsel %vm417, %v7846, %v7850
        %v7852 = vshrl.u32 %v7728, 16
        %v7854 = vrot.slane %v7852, 4
        %v7855 = vor.u32 %v7854, %v7850
        %v7856 = vrot.slane %v7855, 4
        %v7858 = vshll.u32 %v7729, 16
        %v7860 = vrot.slane %v7858, 5
        %v7861 = vsel %vm417, %v7856, %v7860
        %v7863 = vshrl.u32 %v7730, 16
        %v7865 = vrot.slane %v7863, 4
        %v7866 = vshll.u32 %v7730, 16
        %v7868 = vrot.slane %v7866, 5
        %v7869 = vor.u32 %v7865, %v7868
        %v7870 = vrot.slane %v7869, 4
        %v7872 = vshll.u32 %v7731, 16
        %v7874 = vrot.slane %v7872, 5
        %v7875 = vsel %vm417, %v7870, %v7874
        %v7876 = vshrl.u32 %v7731, 16
        %v7878 = vrot.slane %v7876, 4
        %v7879 = vor.u32 %v7878, %v7874
        %v7880 = vrot.slane %v7879, 4
        %v7882 = vshll.u32 %v7732, 16
        %v7884 = vrot.slane %v7882, 5
        %v7885 = vsel %vm417, %v7880, %v7884
        %v7887 = vshrl.u32 %v7733, 16
        %v7889 = vrot.slane %v7887, 4
        %v7890 = vshll.u32 %v7733, 16
        %v7892 = vrot.slane %v7890, 5
        %v7893 = vor.u32 %v7889, %v7892
        %v7894 = vrot.slane %v7893, 4
        %v7896 = vshll.u32 %v7734, 16
        %v7898 = vrot.slane %v7896, 5
        %v7899 = vsel %vm417, %v7894, %v7898
        %v7900 = vshrl.u32 %v7734, 16
        %v7902 = vrot.slane %v7900, 4
        %v7903 = vor.u32 %v7902, %v7898
        %v7904 = vrot.slane %v7903, 4
        %v7906 = vshll.u32 %v7735, 16
        %v7908 = vrot.slane %v7906, 5
        %v7909 = vsel %vm417, %v7904, %v7908
        %v7911 = vshrl.u32 %v7736, 16
        %v7913 = vrot.slane %v7911, 4
        %v7914 = vshll.u32 %v7736, 16
        %v7916 = vrot.slane %v7914, 5
        %v7917 = vor.u32 %v7913, %v7916
        %v7918 = vrot.slane %v7917, 4
        %v7920 = vshll.u32 %v7737, 16
        %v7922 = vrot.slane %v7920, 5
        %v7923 = vsel %vm417, %v7918, %v7922
        %v7924 = vshrl.u32 %v7737, 16
        %v7926 = vrot.slane %v7924, 4
        %v7927 = vor.u32 %v7926, %v7922
        %v7928 = vrot.slane %v7927, 4
        %v7930 = vshll.u32 %v7738, 16
        %v7932 = vrot.slane %v7930, 5
        %v7933 = vsel %vm417, %v7928, %v7932
        %v7935 = vshrl.u32 %v7739, 16
        %v7937 = vrot.slane %v7935, 4
        %v7938 = vshll.u32 %v7739, 16
        %v7940 = vrot.slane %v7938, 5
        %v7941 = vor.u32 %v7937, %v7940
        %v7942 = vrot.slane %v7941, 4
        %v7944 = vshll.u32 %v7740, 16
        %v7946 = vrot.slane %v7944, 5
        %v7947 = vsel %vm417, %v7942, %v7946
        %v7948 = vshrl.u32 %v7740, 16
        %v7950 = vrot.slane %v7948, 4
        %v7951 = vor.u32 %v7950, %v7946
        %v7952 = vrot.slane %v7951, 4
        %v7954 = vshll.u32 %v7741, 16
        %v7956 = vrot.slane %v7954, 5
        %v7957 = vsel %vm417, %v7952, %v7956
        %v7959 = vshrl.u32 %v7742, 16
        %v7961 = vrot.slane %v7959, 4
        %v7962 = vshll.u32 %v7742, 16
        %v7964 = vrot.slane %v7962, 5
        %v7965 = vor.u32 %v7961, %v7964
        %v7966 = vrot.slane %v7965, 4
        %v7968 = vshll.u32 %v7743, 16
        %v7970 = vrot.slane %v7968, 5
        %v7971 = vsel %vm417, %v7966, %v7970
        %v7972 = vshrl.u32 %v7743, 16
        %v7974 = vrot.slane %v7972, 4
        %v7975 = vor.u32 %v7974, %v7970
        %v7976 = vrot.slane %v7975, 4
        %v7978 = vshll.u32 %v7744, 16
        %v7980 = vrot.slane %v7978, 5
        %v7981 = vsel %vm417, %v7976, %v7980
        %v7983 = vshrl.u32 %v7745, 16
        %v7985 = vrot.slane %v7983, 4
        %v7986 = vshll.u32 %v7745, 16
        %v7988 = vrot.slane %v7986, 5
        %v7989 = vor.u32 %v7985, %v7988
        %v7990 = vrot.slane %v7989, 4
        %v7992 = vshll.u32 %v7746, 16
        %v7994 = vrot.slane %v7992, 5
        %v7995 = vsel %vm417, %v7990, %v7994
        %v7996 = vshrl.u32 %v7746, 16
        %v7998 = vrot.slane %v7996, 4
        %v7999 = vor.u32 %v7998, %v7994
        %v8000 = vrot.slane %v7999, 4
        %v8002 = vshll.u32 %v7747, 16
        %v8004 = vrot.slane %v8002, 5
        %v8005 = vsel %vm417, %v8000, %v8004
        %v8007 = vshrl.u32 %v7748, 16
        %v8009 = vrot.slane %v8007, 4
        %v8010 = vshll.u32 %v7748, 16
        %v8012 = vrot.slane %v8010, 5
        %v8013 = vor.u32 %v8009, %v8012
        %v8014 = vrot.slane %v8013, 4
        %v8016 = vshll.u32 %v7749, 16
        %v8018 = vrot.slane %v8016, 5
        %v8019 = vsel %vm417, %v8014, %v8018
        %v8020 = vshrl.u32 %v7749, 16
        %v8022 = vrot.slane %v8020, 4
        %v8023 = vor.u32 %v8022, %v8018
        %v8024 = vrot.slane %v8023, 4
        %v8026 = vshll.u32 %v7750, 16
        %v8028 = vrot.slane %v8026, 5
        %v8029 = vsel %vm417, %v8024, %v8028
        %v8031 = vshrl.u32 %v7751, 16
        %v8033 = vrot.slane %v8031, 4
        %v8034 = vshll.u32 %v7751, 16
        %v8036 = vrot.slane %v8034, 5
        %v8037 = vor.u32 %v8033, %v8036
        %v8038 = vrot.slane %v8037, 4
        %v8040 = vshll.u32 %v7752, 16
        %v8042 = vrot.slane %v8040, 5
        %v8043 = vsel %vm417, %v8038, %v8042
        %v8044 = vshrl.u32 %v7752, 16
        %v8046 = vrot.slane %v8044, 4
        %v8047 = vor.u32 %v8046, %v8042
        %v8048 = vrot.slane %v8047, 4
        %v8050 = vshll.u32 %v7753, 16
        %v8052 = vrot.slane %v8050, 5
        %v8053 = vsel %vm417, %v8048, %v8052
        %v8055 = vshrl.u32 %v7754, 16
        %v8057 = vrot.slane %v8055, 4
        %v8058 = vshll.u32 %v7754, 16
        %v8060 = vrot.slane %v8058, 5
        %v8061 = vor.u32 %v8057, %v8060
        %v8062 = vrot.slane %v8061, 4
        %v8064 = vshll.u32 %v7755, 16
        %v8066 = vrot.slane %v8064, 5
        %v8067 = vsel %vm417, %v8062, %v8066
        %v8068 = vshrl.u32 %v7755, 16
        %v8070 = vrot.slane %v8068, 4
        %v8071 = vor.u32 %v8070, %v8066
        %v8072 = vrot.slane %v8071, 4
        %v8074 = vshll.u32 %v7756, 16
        %v8076 = vrot.slane %v8074, 5
        %v8077 = vsel %vm417, %v8072, %v8076
        %v8079 = vshrl.u32 %v7757, 16
        %v8081 = vrot.slane %v8079, 4
        %v8082 = vshll.u32 %v7757, 16
        %v8084 = vrot.slane %v8082, 5
        %v8085 = vor.u32 %v8081, %v8084
        %v8086 = vrot.slane %v8085, 4
        %v8088 = vshll.u32 %v7758, 16
        %v8090 = vrot.slane %v8088, 5
        %v8091 = vsel %vm417, %v8086, %v8090
        %v8092 = vshrl.u32 %v7758, 16
        %v8094 = vrot.slane %v8092, 4
        %v8095 = vor.u32 %v8094, %v8090
        %v8096 = vrot.slane %v8095, 4
        %v8098 = vshll.u32 %v7759, 16
        %v8100 = vrot.slane %v8098, 5
        %v8101 = vsel %vm417, %v8096, %v8100
        %v8103 = vshrl.u32 %v7760, 16
        %v8105 = vrot.slane %v8103, 4
        %v8106 = vshll.u32 %v7760, 16
        %v8108 = vrot.slane %v8106, 5
        %v8109 = vor.u32 %v8105, %v8108
        %v8110 = vrot.slane %v8109, 4
        %v8112 = vshll.u32 %v7761, 16
        %v8114 = vrot.slane %v8112, 5
        %v8115 = vsel %vm417, %v8110, %v8114
        %v8116 = vshrl.u32 %v7761, 16
        %v8118 = vrot.slane %v8116, 4
        %v8119 = vor.u32 %v8118, %v8114
        %v8120 = vrot.slane %v8119, 4
        %v8122 = vshll.u32 %v7762, 16
        %v8124 = vrot.slane %v8122, 5
        %v8125 = vsel %vm417, %v8120, %v8124
        %v8127 = vshrl.u32 %v7763, 16
        %v8129 = vrot.slane %v8127, 4
        %v8130 = vshll.u32 %v7763, 16
        %v8132 = vrot.slane %v8130, 5
        %v8133 = vor.u32 %v8129, %v8132
        %v8134 = vrot.slane %v8133, 4
        %v8136 = vshll.u32 %v7764, 16
        %v8138 = vrot.slane %v8136, 5
        %v8139 = vsel %vm417, %v8134, %v8138
        %v8140 = vshrl.u32 %v7764, 16
        %v8142 = vrot.slane %v8140, 4
        %v8143 = vor.u32 %v8142, %v8138
        %v8144 = vrot.slane %v8143, 4
        %v8146 = vshll.u32 %v7765, 16
        %v8148 = vrot.slane %v8146, 5
        %v8149 = vsel %vm417, %v8144, %v8148
        %s8150 = scalar_lea.vmem [#allocation3], 256
        %v8151 = vld [vmem:[%s8150] sm:$0xf]
        %v8152 = vld [vmem:[%s8150 + $0x4] sm:$0xf]
        %v8153 = vld [vmem:[%s8150 + $0x8] sm:$0xf]
        %v8154 = vld [vmem:[%s8150 + $0xc] sm:$0xf]
        %v8155 = vld [vmem:[%s8150 + $0x10] sm:$0xf]
        %v8156 = vld [vmem:[%s8150 + $0x14] sm:$0xf]
        %v8157 = vld [vmem:[%s8150 + $0x18] sm:$0xf]
        %v8158 = vld [vmem:[%s8150 + $0x1c] sm:$0xf]
        %v8159 = vld [vmem:[%s8150 + $0x20] sm:$0xf]
        %v8160 = vld [vmem:[%s8150 + $0x24] sm:$0xf]
        %v8161 = vld [vmem:[%s8150 + $0x28] sm:$0xf]
        %v8162 = vld [vmem:[%s8150 + $0x2c] sm:$0xf]
        %v8163 = vld [vmem:[%s8150 + $0x30] sm:$0xf]
        %v8164 = vld [vmem:[%s8150 + $0x34] sm:$0xf]
        %v8165 = vld [vmem:[%s8150 + $0x38] sm:$0xf]
        %v8166 = vld [vmem:[%s8150 + $0x3c] sm:$0xf]
        %v8167 = vunpack.c.l.b16 %v7779
        %v8168 = vunpack.c.l.b16 %v7789
        %v8169 = vunpack.c.l.b16 %v7803
        %v8170 = vunpack.c.l.b16 %v7813
        %v8171 = vunpack.c.l.b16 %v7827
        %v8172 = vunpack.c.l.b16 %v7837
        %v8173 = vunpack.c.l.b16 %v7851
        %v8174 = vunpack.c.l.b16 %v7861
        %v8175 = vunpack.c.l.b16 %v7875
        %v8176 = vunpack.c.l.b16 %v7885
        %v8177 = vunpack.c.l.b16 %v7899
        %v8178 = vunpack.c.l.b16 %v7909
        %v8179 = vunpack.c.l.b16 %v7923
        %v8180 = vunpack.c.l.b16 %v7933
        %v8181 = vunpack.c.l.b16 %v7947
        %v8182 = vunpack.c.l.b16 %v7957
        %v8183 = vunpack.c.l.b16 %v7971
        %v8184 = vunpack.c.l.b16 %v7981
        %v8185 = vunpack.c.l.b16 %v7995
        %v8186 = vunpack.c.l.b16 %v8005
        %v8187 = vunpack.c.l.b16 %v8019
        %v8188 = vunpack.c.l.b16 %v8029
        %v8189 = vunpack.c.l.b16 %v8043
        %v8190 = vunpack.c.l.b16 %v8053
        %v8191 = vunpack.c.l.b16 %v8067
        %v8192 = vunpack.c.l.b16 %v8077
        %v8193 = vunpack.c.l.b16 %v8091
        %v8194 = vunpack.c.l.b16 %v8101
        %v8195 = vunpack.c.l.b16 %v8115
        %v8196 = vunpack.c.l.b16 %v8125
        %v8197 = vunpack.c.l.b16 %v8139
        %v8198 = vunpack.c.l.b16 %v8149
        %v8199 = vpack.c.b16 %v8168, %v8167
        %v8200 = vpack.c.b16 %v8170, %v8169
        %v8201 = vpack.c.b16 %v8172, %v8171
        %v8202 = vpack.c.b16 %v8174, %v8173
        %v8203 = vpack.c.b16 %v8176, %v8175
        %v8204 = vpack.c.b16 %v8178, %v8177
        %v8205 = vpack.c.b16 %v8180, %v8179
        %v8206 = vpack.c.b16 %v8182, %v8181
        %v8207 = vpack.c.b16 %v8184, %v8183
        %v8208 = vpack.c.b16 %v8186, %v8185
        %v8209 = vpack.c.b16 %v8188, %v8187
        %v8210 = vpack.c.b16 %v8190, %v8189
        %v8211 = vpack.c.b16 %v8192, %v8191
        %v8212 = vpack.c.b16 %v8194, %v8193
        %v8213 = vpack.c.b16 %v8196, %v8195
        %v8214 = vpack.c.b16 %v8198, %v8197
        %v8247 = vunpack.c.l.b16 %v8151
        %v8248 = vunpack.c.l.b16 %v8152
        %v8249 = vunpack.c.l.b16 %v8153
        %v8250 = vunpack.c.l.b16 %v8154
        %v8251 = vunpack.c.l.b16 %v8155
        %v8252 = vunpack.c.l.b16 %v8156
        %v8253 = vunpack.c.l.b16 %v8157
        %v8254 = vunpack.c.l.b16 %v8158
        %v8255 = vunpack.c.l.b16 %v8159
        %v8256 = vunpack.c.l.b16 %v8160
        %v8257 = vunpack.c.l.b16 %v8161
        %v8258 = vunpack.c.l.b16 %v8162
        %v8259 = vunpack.c.l.b16 %v8163
        %v8260 = vunpack.c.l.b16 %v8164
        %v8261 = vunpack.c.l.b16 %v8165
        %v8262 = vunpack.c.l.b16 %v8166
        %v8263 = vpack.c.b16 %v8248, %v8247
        %v8264 = vpack.c.b16 %v8250, %v8249
        %v8265 = vpack.c.b16 %v8252, %v8251
        %v8266 = vpack.c.b16 %v8254, %v8253
        %v8267 = vpack.c.b16 %v8256, %v8255
        %v8268 = vpack.c.b16 %v8258, %v8257
        %v8269 = vpack.c.b16 %v8260, %v8259
        %v8270 = vpack.c.b16 %v8262, %v8261
        %8279 = vmatprep.subr.bf16.mxu0 0
        %8280 = vmatpush1.bf16.msra.mxu0 %v8263
        %8281 = vmatprep.subr.bf16.mxu0 0
        %8282 = vmatpush1.bf16.msra.mxu0 %v8264
        %8283 = vmatprep.subr.bf16.mxu0 0
        %8284 = vmatpush1.bf16.msra.mxu0 %v8265
        %8285 = vmatprep.subr.bf16.mxu0 0
        %8286 = vmatpush1.bf16.msra.mxu0 %v8266
        %8287 = vmatprep.subr.bf16.mxu0 0
        %8288 = vmatpush1.bf16.msra.mxu0 %v8267
        %8289 = vmatprep.subr.bf16.mxu0 0
        %8290 = vmatpush1.bf16.msra.mxu0 %v8268
        %8291 = vmatprep.subr.bf16.mxu0 0
        %8292 = vmatpush1.bf16.msra.mxu0 %v8269
        %8293 = vmatprep.subr.bf16.mxu0 0
        %8294 = vmatpush1.bf16.msra.mxu0 %v8270
        %8295 = vmatprep.subr.bf16.mxu0 0
        %8296 = vmatpush1.bf16.msra.mxu0 0
        %8297 = vmatprep.subr.bf16.mxu0 0
        %8298 = vmatpush1.bf16.msra.mxu0 0
        %8299 = vmatprep.subr.bf16.mxu0 0
        %8300 = vmatpush1.bf16.msra.mxu0 0
        %8301 = vmatprep.subr.bf16.mxu0 0
        %8302 = vmatpush1.bf16.msra.mxu0 0
        %8303 = vmatprep.subr.bf16.mxu0 0
        %8304 = vmatpush1.bf16.msra.mxu0 0
        %8305 = vmatprep.subr.bf16.mxu0 0
        %8306 = vmatpush1.bf16.msra.mxu0 0
        %8307 = vmatprep.subr.bf16.mxu0 0
        %8308 = vmatpush1.bf16.msra.mxu0 0
        %8309 = vmatprep.subr.bf16.mxu0 0
        %8310 = vmatpush1.bf16.msra.mxu0 0
        %8311 = vmatprep.mubr.bf16.mxu0 0
        %8312 = vmatmul.mubr.bf16.gmra.mrb[0].mxu0 %v8199
        %v8313 = vpop.f32.mrb[0].mxu0
        %v8314 = vadd.f32 0.0, %v8313
        %v8315 = vpop.f32.mrb[0].mxu0
        %v8316 = vpop.f32.mrb[0].mxu0
        %v8317 = vadd.f32 0.0, %v8316
        %v8318 = vpop.f32.mrb[0].mxu0
        %8319 = vmatprep.mubr.bf16.mxu0 0
        %8320 = vmatmul.mubr.bf16.gmra.mrb[0].mxu0 %v8200
        %v8321 = vpop.f32.mrb[0].mxu0
        %v8322 = vadd.f32 0.0, %v8321
        %v8323 = vpop.f32.mrb[0].mxu0
        %v8324 = vpop.f32.mrb[0].mxu0
        %v8325 = vadd.f32 0.0, %v8324
        %v8326 = vpop.f32.mrb[0].mxu0
        %8327 = vmatprep.mubr.bf16.mxu0 0
        %8328 = vmatmul.mubr.bf16.gmra.mrb[0].mxu0 %v8201
        %v8329 = vpop.f32.mrb[0].mxu0
        %v8330 = vadd.f32 0.0, %v8329
        %v8331 = vpop.f32.mrb[0].mxu0
        %v8332 = vpop.f32.mrb[0].mxu0
        %v8333 = vadd.f32 0.0, %v8332
        %v8334 = vpop.f32.mrb[0].mxu0
        %8335 = vmatprep.mubr.bf16.mxu0 0
        %8336 = vmatmul.mubr.bf16.gmra.mrb[0].mxu0 %v8202
        %v8337 = vpop.f32.mrb[0].mxu0
        %v8338 = vadd.f32 0.0, %v8337
        %v8339 = vpop.f32.mrb[0].mxu0
        %v8340 = vpop.f32.mrb[0].mxu0
        %v8341 = vadd.f32 0.0, %v8340
        %v8342 = vpop.f32.mrb[0].mxu0
        %8343 = vmatprep.mubr.bf16.mxu0 0
        %8344 = vmatmul.mubr.bf16.gmra.mrb[0].mxu0 %v8203
        %v8345 = vpop.f32.mrb[0].mxu0
        %v8346 = vadd.f32 0.0, %v8345
        %v8347 = vpop.f32.mrb[0].mxu0
        %v8348 = vpop.f32.mrb[0].mxu0
        %v8349 = vadd.f32 0.0, %v8348
        %v8350 = vpop.f32.mrb[0].mxu0
        %8351 = vmatprep.mubr.bf16.mxu0 0
        %8352 = vmatmul.mubr.bf16.gmra.mrb[0].mxu0 %v8204
        %v8353 = vpop.f32.mrb[0].mxu0
        %v8354 = vadd.f32 0.0, %v8353
        %v8355 = vpop.f32.mrb[0].mxu0
        %v8356 = vpop.f32.mrb[0].mxu0
        %v8357 = vadd.f32 0.0, %v8356
        %v8358 = vpop.f32.mrb[0].mxu0
        %8359 = vmatprep.mubr.bf16.mxu0 0
        %8360 = vmatmul.mubr.bf16.gmra.mrb[0].mxu0 %v8205
        %v8361 = vpop.f32.mrb[0].mxu0
        %v8362 = vadd.f32 0.0, %v8361
        %v8363 = vpop.f32.mrb[0].mxu0
        %v8364 = vpop.f32.mrb[0].mxu0
        %v8365 = vadd.f32 0.0, %v8364
        %v8366 = vpop.f32.mrb[0].mxu0
        %8367 = vmatprep.mubr.bf16.mxu0 0
        %8368 = vmatmul.mubr.bf16.gmra.mrb[0].mxu0 %v8206
        %v8369 = vpop.f32.mrb[0].mxu0
        %v8370 = vadd.f32 0.0, %v8369
        %v8371 = vpop.f32.mrb[0].mxu0
        %v8372 = vpop.f32.mrb[0].mxu0
        %v8373 = vadd.f32 0.0, %v8372
        %v8374 = vpop.f32.mrb[0].mxu0
        %8375 = vmatprep.mubr.bf16.mxu0 0
        %8376 = vmatmul.mubr.bf16.gmra.mrb[0].mxu0 %v8207
        %v8377 = vpop.f32.mrb[0].mxu0
        %v8378 = vadd.f32 0.0, %v8377
        %v8379 = vpop.f32.mrb[0].mxu0
        %v8380 = vpop.f32.mrb[0].mxu0
        %v8381 = vadd.f32 0.0, %v8380
        %v8382 = vpop.f32.mrb[0].mxu0
        %8383 = vmatprep.mubr.bf16.mxu0 0
        %8384 = vmatmul.mubr.bf16.gmra.mrb[0].mxu0 %v8208
        %v8385 = vpop.f32.mrb[0].mxu0
        %v8386 = vadd.f32 0.0, %v8385
        %v8387 = vpop.f32.mrb[0].mxu0
        %v8388 = vpop.f32.mrb[0].mxu0
        %v8389 = vadd.f32 0.0, %v8388
        %v8390 = vpop.f32.mrb[0].mxu0
        %8391 = vmatprep.mubr.bf16.mxu0 0
        %8392 = vmatmul.mubr.bf16.gmra.mrb[0].mxu0 %v8209
        %v8393 = vpop.f32.mrb[0].mxu0
        %v8394 = vadd.f32 0.0, %v8393
        %v8395 = vpop.f32.mrb[0].mxu0
        %v8396 = vpop.f32.mrb[0].mxu0
        %v8397 = vadd.f32 0.0, %v8396
        %v8398 = vpop.f32.mrb[0].mxu0
        %8399 = vmatprep.mubr.bf16.mxu0 0
        %8400 = vmatmul.mubr.bf16.gmra.mrb[0].mxu0 %v8210
        %v8401 = vpop.f32.mrb[0].mxu0
        %v8402 = vadd.f32 0.0, %v8401
        %v8403 = vpop.f32.mrb[0].mxu0
        %v8404 = vpop.f32.mrb[0].mxu0
        %v8405 = vadd.f32 0.0, %v8404
        %v8406 = vpop.f32.mrb[0].mxu0
        %8407 = vmatprep.mubr.bf16.mxu0 0
        %8408 = vmatmul.mubr.bf16.gmra.mrb[0].mxu0 %v8211
        %v8409 = vpop.f32.mrb[0].mxu0
        %v8410 = vadd.f32 0.0, %v8409
        %v8411 = vpop.f32.mrb[0].mxu0
        %v8412 = vpop.f32.mrb[0].mxu0
        %v8413 = vadd.f32 0.0, %v8412
        %v8414 = vpop.f32.mrb[0].mxu0
        %8415 = vmatprep.mubr.bf16.mxu0 0
        %8416 = vmatmul.mubr.bf16.gmra.mrb[0].mxu0 %v8212
        %v8417 = vpop.f32.mrb[0].mxu0
        %v8418 = vadd.f32 0.0, %v8417
        %v8419 = vpop.f32.mrb[0].mxu0
        %v8420 = vpop.f32.mrb[0].mxu0
        %v8421 = vadd.f32 0.0, %v8420
        %v8422 = vpop.f32.mrb[0].mxu0
        %8423 = vmatprep.mubr.bf16.mxu0 0
        %8424 = vmatmul.mubr.bf16.gmra.mrb[0].mxu0 %v8213
        %v8425 = vpop.f32.mrb[0].mxu0
        %v8426 = vadd.f32 0.0, %v8425
        %v8427 = vpop.f32.mrb[0].mxu0
        %v8428 = vpop.f32.mrb[0].mxu0
        %v8429 = vadd.f32 0.0, %v8428
        %v8430 = vpop.f32.mrb[0].mxu0
        %8431 = vmatprep.mubr.bf16.mxu0 0
        %8432 = vmatmul.mubr.bf16.gmra.mrb[0].mxu0 %v8214
        %v8433 = vpop.f32.mrb[0].mxu0
        %v8434 = vadd.f32 0.0, %v8433
        %v8435 = vpop.f32.mrb[0].mxu0
        %v8436 = vpop.f32.mrb[0].mxu0
        %v8437 = vadd.f32 0.0, %v8436
        %v8438 = vpop.f32.mrb[0].mxu0
        %8439 = vdwg.mxu0
        %v8440 = vadd.f32 %v7686, %v8314
        %v8441 = vadd.f32 %v7687, %v8317
        %v8442 = vadd.f32 %v7688, %v8322
        %v8443 = vadd.f32 %v7689, %v8325
        %v8444 = vadd.f32 %v7690, %v8330
        %v8445 = vadd.f32 %v7691, %v8333
        %v8446 = vadd.f32 %v7692, %v8338
        %v8447 = vadd.f32 %v7693, %v8341
        %v8448 = vadd.f32 %v7694, %v8346
        %v8449 = vadd.f32 %v7695, %v8349
        %v8450 = vadd.f32 %v7696, %v8354
        %v8451 = vadd.f32 %v7697, %v8357
        %v8452 = vadd.f32 %v7698, %v8362
        %v8453 = vadd.f32 %v7699, %v8365
        %v8454 = vadd.f32 %v7700, %v8370
        %v8455 = vadd.f32 %v7701, %v8373
        %v8456 = vadd.f32 %v7702, %v8378
        %v8457 = vadd.f32 %v7703, %v8381
        %v8458 = vadd.f32 %v7704, %v8386
        %v8459 = vadd.f32 %v7705, %v8389
        %v8460 = vadd.f32 %v7706, %v8394
        %v8461 = vadd.f32 %v7707, %v8397
        %v8462 = vadd.f32 %v7708, %v8402
        %v8463 = vadd.f32 %v7709, %v8405
        %v8464 = vadd.f32 %v7710, %v8410
        %v8465 = vadd.f32 %v7711, %v8413
        %v8466 = vadd.f32 %v7712, %v8418
        %v8467 = vadd.f32 %v7713, %v8421
        %v8468 = vadd.f32 %v7714, %v8426
        %v8469 = vadd.f32 %v7715, %v8429
        %v8470 = vadd.f32 %v7716, %v8434
        %v8471 = vadd.f32 %v7717, %v8437
        %v8472 = vld [vmem:[%s5689] sm:$0xe]
        %v8473 = vld [vmem:[%s5689 + $0xc] sm:$0xe]
        %v8474 = vld [vmem:[%s5689 + $0x18] sm:$0xe]
        %v8475 = vld [vmem:[%s5689 + $0x24] sm:$0xe]
        %v8476 = vld [vmem:[%s5689 + $0x30] sm:$0xe]
        %v8477 = vld [vmem:[%s5689 + $0x3c] sm:$0xe]
        %v8478 = vld [vmem:[%s5689 + $0x48] sm:$0xe]
        %v8479 = vld [vmem:[%s5689 + $0x54] sm:$0xe]
        %v8480 = vld [vmem:[%s5689 + $0x60] sm:$0xe]
        %v8481 = vld [vmem:[%s5689 + $0x6c] sm:$0xe]
        %v8482 = vld [vmem:[%s5689 + $0x78] sm:$0xe]
        %v8483 = vld [vmem:[%s5689 + $0x84] sm:$0xe]
        %v8484 = vld [vmem:[%s5689 + $0x90] sm:$0xe]
        %v8485 = vld [vmem:[%s5689 + $0x9c] sm:$0xe]
        %v8486 = vld [vmem:[%s5689 + $0xa8] sm:$0xe]
        %v8487 = vld [vmem:[%s5689 + $0xb4] sm:$0xe]
        %v8536 = vrot.slane %v8472, 5
        %v8537 = vrot.slane %v8536, 4
        %v8538 = vrot.slane %v7719, 5
        %v8539 = vsel %vm1447, %v8537, %v8538
        %v8540 = vrot.slane %v8538, 4
        %v8541 = vrot.slane %v7720, 5
        %v8542 = vsel %vm1447, %v8540, %v8541
        %v8543 = vrot.slane %v8473, 5
        %v8544 = vrot.slane %v8543, 4
        %v8545 = vrot.slane %v7722, 5
        %v8546 = vsel %vm1447, %v8544, %v8545
        %v8547 = vrot.slane %v8545, 4
        %v8548 = vrot.slane %v7723, 5
        %v8549 = vsel %vm1447, %v8547, %v8548
        %v8550 = vrot.slane %v8474, 5
        %v8551 = vrot.slane %v8550, 4
        %v8552 = vrot.slane %v7725, 5
        %v8553 = vsel %vm1447, %v8551, %v8552
        %v8554 = vrot.slane %v8552, 4
        %v8555 = vrot.slane %v7726, 5
        %v8556 = vsel %vm1447, %v8554, %v8555
        %v8557 = vrot.slane %v8475, 5
        %v8558 = vrot.slane %v8557, 4
        %v8559 = vrot.slane %v7728, 5
        %v8560 = vsel %vm1447, %v8558, %v8559
        %v8561 = vrot.slane %v8559, 4
        %v8562 = vrot.slane %v7729, 5
        %v8563 = vsel %vm1447, %v8561, %v8562
        %v8564 = vrot.slane %v8476, 5
        %v8565 = vrot.slane %v8564, 4
        %v8566 = vrot.slane %v7731, 5
        %v8567 = vsel %vm1447, %v8565, %v8566
        %v8568 = vrot.slane %v8566, 4
        %v8569 = vrot.slane %v7732, 5
        %v8570 = vsel %vm1447, %v8568, %v8569
        %v8571 = vrot.slane %v8477, 5
        %v8572 = vrot.slane %v8571, 4
        %v8573 = vrot.slane %v7734, 5
        %v8574 = vsel %vm1447, %v8572, %v8573
        %v8575 = vrot.slane %v8573, 4
        %v8576 = vrot.slane %v7735, 5
        %v8577 = vsel %vm1447, %v8575, %v8576
        %v8578 = vrot.slane %v8478, 5
        %v8579 = vrot.slane %v8578, 4
        %v8580 = vrot.slane %v7737, 5
        %v8581 = vsel %vm1447, %v8579, %v8580
        %v8582 = vrot.slane %v8580, 4
        %v8583 = vrot.slane %v7738, 5
        %v8584 = vsel %vm1447, %v8582, %v8583
        %v8585 = vrot.slane %v8479, 5
        %v8586 = vrot.slane %v8585, 4
        %v8587 = vrot.slane %v7740, 5
        %v8588 = vsel %vm1447, %v8586, %v8587
        %v8589 = vrot.slane %v8587, 4
        %v8590 = vrot.slane %v7741, 5
        %v8591 = vsel %vm1447, %v8589, %v8590
        %v8592 = vrot.slane %v8480, 5
        %v8593 = vrot.slane %v8592, 4
        %v8594 = vrot.slane %v7743, 5
        %v8595 = vsel %vm1447, %v8593, %v8594
        %v8596 = vrot.slane %v8594, 4
        %v8597 = vrot.slane %v7744, 5
        %v8598 = vsel %vm1447, %v8596, %v8597
        %v8599 = vrot.slane %v8481, 5
        %v8600 = vrot.slane %v8599, 4
        %v8601 = vrot.slane %v7746, 5
        %v8602 = vsel %vm1447, %v8600, %v8601
        %v8603 = vrot.slane %v8601, 4
        %v8604 = vrot.slane %v7747, 5
        %v8605 = vsel %vm1447, %v8603, %v8604
        %v8606 = vrot.slane %v8482, 5
        %v8607 = vrot.slane %v8606, 4
        %v8608 = vrot.slane %v7749, 5
        %v8609 = vsel %vm1447, %v8607, %v8608
        %v8610 = vrot.slane %v8608, 4
        %v8611 = vrot.slane %v7750, 5
        %v8612 = vsel %vm1447, %v8610, %v8611
        %v8613 = vrot.slane %v8483, 5
        %v8614 = vrot.slane %v8613, 4
        %v8615 = vrot.slane %v7752, 5
        %v8616 = vsel %vm1447, %v8614, %v8615
        %v8617 = vrot.slane %v8615, 4
        %v8618 = vrot.slane %v7753, 5
        %v8619 = vsel %vm1447, %v8617, %v8618
        %v8620 = vrot.slane %v8484, 5
        %v8621 = vrot.slane %v8620, 4
        %v8622 = vrot.slane %v7755, 5
        %v8623 = vsel %vm1447, %v8621, %v8622
        %v8624 = vrot.slane %v8622, 4
        %v8625 = vrot.slane %v7756, 5
        %v8626 = vsel %vm1447, %v8624, %v8625
        %v8627 = vrot.slane %v8485, 5
        %v8628 = vrot.slane %v8627, 4
        %v8629 = vrot.slane %v7758, 5
        %v8630 = vsel %vm1447, %v8628, %v8629
        %v8631 = vrot.slane %v8629, 4
        %v8632 = vrot.slane %v7759, 5
        %v8633 = vsel %vm1447, %v8631, %v8632
        %v8634 = vrot.slane %v8486, 5
        %v8635 = vrot.slane %v8634, 4
        %v8636 = vrot.slane %v7761, 5
        %v8637 = vsel %vm1447, %v8635, %v8636
        %v8638 = vrot.slane %v8636, 4
        %v8639 = vrot.slane %v7762, 5
        %v8640 = vsel %vm1447, %v8638, %v8639
        %v8641 = vrot.slane %v8487, 5
        %v8642 = vrot.slane %v8641, 4
        %v8643 = vrot.slane %v7764, 5
        %v8644 = vsel %vm1447, %v8642, %v8643
        %v8645 = vrot.slane %v8643, 4
        %v8646 = vrot.slane %v7765, 5
        %v8647 = vsel %vm1447, %v8645, %v8646
        %s8648 = scalar_lea.vmem [#allocation3], 320
        %v8649 = vld [vmem:[%s8648] sm:$0xf]
        %v8650 = vld [vmem:[%s8648 + $0x4] sm:$0xf]
        %v8651 = vld [vmem:[%s8648 + $0x8] sm:$0xf]
        %v8652 = vld [vmem:[%s8648 + $0xc] sm:$0xf]
        %v8653 = vld [vmem:[%s8648 + $0x10] sm:$0xf]
        %v8654 = vld [vmem:[%s8648 + $0x14] sm:$0xf]
        %v8655 = vld [vmem:[%s8648 + $0x18] sm:$0xf]
        %v8656 = vld [vmem:[%s8648 + $0x1c] sm:$0xf]
        %v8657 = vld [vmem:[%s8648 + $0x20] sm:$0xf]
        %v8658 = vld [vmem:[%s8648 + $0x24] sm:$0xf]
        %v8659 = vld [vmem:[%s8648 + $0x28] sm:$0xf]
        %v8660 = vld [vmem:[%s8648 + $0x2c] sm:$0xf]
        %v8661 = vld [vmem:[%s8648 + $0x30] sm:$0xf]
        %v8662 = vld [vmem:[%s8648 + $0x34] sm:$0xf]
        %v8663 = vld [vmem:[%s8648 + $0x38] sm:$0xf]
        %v8664 = vld [vmem:[%s8648 + $0x3c] sm:$0xf]
        %v8665 = vunpack.c.l.b16 %v8539
        %v8666 = vunpack.c.l.b16 %v8542
        %v8667 = vunpack.c.l.b16 %v8546
        %v8668 = vunpack.c.l.b16 %v8549
        %v8669 = vunpack.c.l.b16 %v8553
        %v8670 = vunpack.c.l.b16 %v8556
        %v8671 = vunpack.c.l.b16 %v8560
        %v8672 = vunpack.c.l.b16 %v8563
        %v8673 = vunpack.c.l.b16 %v8567
        %v8674 = vunpack.c.l.b16 %v8570
        %v8675 = vunpack.c.l.b16 %v8574
        %v8676 = vunpack.c.l.b16 %v8577
        %v8677 = vunpack.c.l.b16 %v8581
        %v8678 = vunpack.c.l.b16 %v8584
        %v8679 = vunpack.c.l.b16 %v8588
        %v8680 = vunpack.c.l.b16 %v8591
        %v8681 = vunpack.c.l.b16 %v8595
        %v8682 = vunpack.c.l.b16 %v8598
        %v8683 = vunpack.c.l.b16 %v8602
        %v8684 = vunpack.c.l.b16 %v8605
        %v8685 = vunpack.c.l.b16 %v8609
        %v8686 = vunpack.c.l.b16 %v8612
        %v8687 = vunpack.c.l.b16 %v8616
        %v8688 = vunpack.c.l.b16 %v8619
        %v8689 = vunpack.c.l.b16 %v8623
        %v8690 = vunpack.c.l.b16 %v8626
        %v8691 = vunpack.c.l.b16 %v8630
        %v8692 = vunpack.c.l.b16 %v8633
        %v8693 = vunpack.c.l.b16 %v8637
        %v8694 = vunpack.c.l.b16 %v8640
        %v8695 = vunpack.c.l.b16 %v8644
        %v8696 = vunpack.c.l.b16 %v8647
        %v8697 = vpack.c.b16 %v8666, %v8665
        %v8698 = vpack.c.b16 %v8668, %v8667
        %v8699 = vpack.c.b16 %v8670, %v8669
        %v8700 = vpack.c.b16 %v8672, %v8671
        %v8701 = vpack.c.b16 %v8674, %v8673
        %v8702 = vpack.c.b16 %v8676, %v8675
        %v8703 = vpack.c.b16 %v8678, %v8677
        %v8704 = vpack.c.b16 %v8680, %v8679
        %v8705 = vpack.c.b16 %v8682, %v8681
        %v8706 = vpack.c.b16 %v8684, %v8683
        %v8707 = vpack.c.b16 %v8686, %v8685
        %v8708 = vpack.c.b16 %v8688, %v8687
        %v8709 = vpack.c.b16 %v8690, %v8689
        %v8710 = vpack.c.b16 %v8692, %v8691
        %v8711 = vpack.c.b16 %v8694, %v8693
        %v8712 = vpack.c.b16 %v8696, %v8695
        %v8745 = vunpack.c.l.b16 %v8649
        %v8746 = vunpack.c.l.b16 %v8650
        %v8747 = vunpack.c.l.b16 %v8651
        %v8748 = vunpack.c.l.b16 %v8652
        %v8749 = vunpack.c.l.b16 %v8653
        %v8750 = vunpack.c.l.b16 %v8654
        %v8751 = vunpack.c.l.b16 %v8655
        %v8752 = vunpack.c.l.b16 %v8656
        %v8753 = vunpack.c.l.b16 %v8657
        %v8754 = vunpack.c.l.b16 %v8658
        %v8755 = vunpack.c.l.b16 %v8659
        %v8756 = vunpack.c.l.b16 %v8660
        %v8757 = vunpack.c.l.b16 %v8661
        %v8758 = vunpack.c.l.b16 %v8662
        %v8759 = vunpack.c.l.b16 %v8663
        %v8760 = vunpack.c.l.b16 %v8664
        %v8761 = vpack.c.b16 %v8746, %v8745
        %v8762 = vpack.c.b16 %v8748, %v8747
        %v8763 = vpack.c.b16 %v8750, %v8749
        %v8764 = vpack.c.b16 %v8752, %v8751
        %v8765 = vpack.c.b16 %v8754, %v8753
        %v8766 = vpack.c.b16 %v8756, %v8755
        %v8767 = vpack.c.b16 %v8758, %v8757
        %v8768 = vpack.c.b16 %v8760, %v8759
        %8777 = vmatprep.subr.bf16.mxu0 0
        %8778 = vmatpush1.bf16.msra.mxu0 %v8761
        %8779 = vmatprep.subr.bf16.mxu0 0
        %8780 = vmatpush1.bf16.msra.mxu0 %v8762
        %8781 = vmatprep.subr.bf16.mxu0 0
        %8782 = vmatpush1.bf16.msra.mxu0 %v8763
        %8783 = vmatprep.subr.bf16.mxu0 0
        %8784 = vmatpush1.bf16.msra.mxu0 %v8764
        %8785 = vmatprep.subr.bf16.mxu0 0
        %8786 = vmatpush1.bf16.msra.mxu0 %v8765
        %8787 = vmatprep.subr.bf16.mxu0 0
        %8788 = vmatpush1.bf16.msra.mxu0 %v8766
        %8789 = vmatprep.subr.bf16.mxu0 0
        %8790 = vmatpush1.bf16.msra.mxu0 %v8767
        %8791 = vmatprep.subr.bf16.mxu0 0
        %8792 = vmatpush1.bf16.msra.mxu0 %v8768
        %8793 = vmatprep.subr.bf16.mxu0 0
        %8794 = vmatpush1.bf16.msra.mxu0 0
        %8795 = vmatprep.subr.bf16.mxu0 0
        %8796 = vmatpush1.bf16.msra.mxu0 0
        %8797 = vmatprep.subr.bf16.mxu0 0
        %8798 = vmatpush1.bf16.msra.mxu0 0
        %8799 = vmatprep.subr.bf16.mxu0 0
        %8800 = vmatpush1.bf16.msra.mxu0 0
        %8801 = vmatprep.subr.bf16.mxu0 0
        %8802 = vmatpush1.bf16.msra.mxu0 0
        %8803 = vmatprep.subr.bf16.mxu0 0
        %8804 = vmatpush1.bf16.msra.mxu0 0
        %8805 = vmatprep.subr.bf16.mxu0 0
        %8806 = vmatpush1.bf16.msra.mxu0 0
        %8807 = vmatprep.subr.bf16.mxu0 0
        %8808 = vmatpush1.bf16.msra.mxu0 0
        %8809 = vmatprep.mubr.bf16.mxu0 0
        %8810 = vmatmul.mubr.bf16.gmra.mrb[0].mxu0 %v8697
        %v8811 = vpop.f32.mrb[0].mxu0
        %v8812 = vadd.f32 0.0, %v8811
        %v8813 = vpop.f32.mrb[0].mxu0
        %v8814 = vpop.f32.mrb[0].mxu0
        %v8815 = vadd.f32 0.0, %v8814
        %v8816 = vpop.f32.mrb[0].mxu0
        %8817 = vmatprep.mubr.bf16.mxu0 0
        %8818 = vmatmul.mubr.bf16.gmra.mrb[0].mxu0 %v8698
        %v8819 = vpop.f32.mrb[0].mxu0
        %v8820 = vadd.f32 0.0, %v8819
        %v8821 = vpop.f32.mrb[0].mxu0
        %v8822 = vpop.f32.mrb[0].mxu0
        %v8823 = vadd.f32 0.0, %v8822
        %v8824 = vpop.f32.mrb[0].mxu0
        %8825 = vmatprep.mubr.bf16.mxu0 0
        %8826 = vmatmul.mubr.bf16.gmra.mrb[0].mxu0 %v8699
        %v8827 = vpop.f32.mrb[0].mxu0
        %v8828 = vadd.f32 0.0, %v8827
        %v8829 = vpop.f32.mrb[0].mxu0
        %v8830 = vpop.f32.mrb[0].mxu0
        %v8831 = vadd.f32 0.0, %v8830
        %v8832 = vpop.f32.mrb[0].mxu0
        %8833 = vmatprep.mubr.bf16.mxu0 0
        %8834 = vmatmul.mubr.bf16.gmra.mrb[0].mxu0 %v8700
        %v8835 = vpop.f32.mrb[0].mxu0
        %v8836 = vadd.f32 0.0, %v8835
        %v8837 = vpop.f32.mrb[0].mxu0
        %v8838 = vpop.f32.mrb[0].mxu0
        %v8839 = vadd.f32 0.0, %v8838
        %v8840 = vpop.f32.mrb[0].mxu0
        %8841 = vmatprep.mubr.bf16.mxu0 0
        %8842 = vmatmul.mubr.bf16.gmra.mrb[0].mxu0 %v8701
        %v8843 = vpop.f32.mrb[0].mxu0
        %v8844 = vadd.f32 0.0, %v8843
        %v8845 = vpop.f32.mrb[0].mxu0
        %v8846 = vpop.f32.mrb[0].mxu0
        %v8847 = vadd.f32 0.0, %v8846
        %v8848 = vpop.f32.mrb[0].mxu0
        %8849 = vmatprep.mubr.bf16.mxu0 0
        %8850 = vmatmul.mubr.bf16.gmra.mrb[0].mxu0 %v8702
        %v8851 = vpop.f32.mrb[0].mxu0
        %v8852 = vadd.f32 0.0, %v8851
        %v8853 = vpop.f32.mrb[0].mxu0
        %v8854 = vpop.f32.mrb[0].mxu0
        %v8855 = vadd.f32 0.0, %v8854
        %v8856 = vpop.f32.mrb[0].mxu0
        %8857 = vmatprep.mubr.bf16.mxu0 0
        %8858 = vmatmul.mubr.bf16.gmra.mrb[0].mxu0 %v8703
        %v8859 = vpop.f32.mrb[0].mxu0
        %v8860 = vadd.f32 0.0, %v8859
        %v8861 = vpop.f32.mrb[0].mxu0
        %v8862 = vpop.f32.mrb[0].mxu0
        %v8863 = vadd.f32 0.0, %v8862
        %v8864 = vpop.f32.mrb[0].mxu0
        %8865 = vmatprep.mubr.bf16.mxu0 0
        %8866 = vmatmul.mubr.bf16.gmra.mrb[0].mxu0 %v8704
        %v8867 = vpop.f32.mrb[0].mxu0
        %v8868 = vadd.f32 0.0, %v8867
        %v8869 = vpop.f32.mrb[0].mxu0
        %v8870 = vpop.f32.mrb[0].mxu0
        %v8871 = vadd.f32 0.0, %v8870
        %v8872 = vpop.f32.mrb[0].mxu0
        %8873 = vmatprep.mubr.bf16.mxu0 0
        %8874 = vmatmul.mubr.bf16.gmra.mrb[0].mxu0 %v8705
        %v8875 = vpop.f32.mrb[0].mxu0
        %v8876 = vadd.f32 0.0, %v8875
        %v8877 = vpop.f32.mrb[0].mxu0
        %v8878 = vpop.f32.mrb[0].mxu0
        %v8879 = vadd.f32 0.0, %v8878
        %v8880 = vpop.f32.mrb[0].mxu0
        %8881 = vmatprep.mubr.bf16.mxu0 0
        %8882 = vmatmul.mubr.bf16.gmra.mrb[0].mxu0 %v8706
        %v8883 = vpop.f32.mrb[0].mxu0
        %v8884 = vadd.f32 0.0, %v8883
        %v8885 = vpop.f32.mrb[0].mxu0
        %v8886 = vpop.f32.mrb[0].mxu0
        %v8887 = vadd.f32 0.0, %v8886
        %v8888 = vpop.f32.mrb[0].mxu0
        %8889 = vmatprep.mubr.bf16.mxu0 0
        %8890 = vmatmul.mubr.bf16.gmra.mrb[0].mxu0 %v8707
        %v8891 = vpop.f32.mrb[0].mxu0
        %v8892 = vadd.f32 0.0, %v8891
        %v8893 = vpop.f32.mrb[0].mxu0
        %v8894 = vpop.f32.mrb[0].mxu0
        %v8895 = vadd.f32 0.0, %v8894
        %v8896 = vpop.f32.mrb[0].mxu0
        %8897 = vmatprep.mubr.bf16.mxu0 0
        %8898 = vmatmul.mubr.bf16.gmra.mrb[0].mxu0 %v8708
        %v8899 = vpop.f32.mrb[0].mxu0
        %v8900 = vadd.f32 0.0, %v8899
        %v8901 = vpop.f32.mrb[0].mxu0
        %v8902 = vpop.f32.mrb[0].mxu0
        %v8903 = vadd.f32 0.0, %v8902
        %v8904 = vpop.f32.mrb[0].mxu0
        %8905 = vmatprep.mubr.bf16.mxu0 0
        %8906 = vmatmul.mubr.bf16.gmra.mrb[0].mxu0 %v8709
        %v8907 = vpop.f32.mrb[0].mxu0
        %v8908 = vadd.f32 0.0, %v8907
        %v8909 = vpop.f32.mrb[0].mxu0
        %v8910 = vpop.f32.mrb[0].mxu0
        %v8911 = vadd.f32 0.0, %v8910
        %v8912 = vpop.f32.mrb[0].mxu0
        %8913 = vmatprep.mubr.bf16.mxu0 0
        %8914 = vmatmul.mubr.bf16.gmra.mrb[0].mxu0 %v8710
        %v8915 = vpop.f32.mrb[0].mxu0
        %v8916 = vadd.f32 0.0, %v8915
        %v8917 = vpop.f32.mrb[0].mxu0
        %v8918 = vpop.f32.mrb[0].mxu0
        %v8919 = vadd.f32 0.0, %v8918
        %v8920 = vpop.f32.mrb[0].mxu0
        %8921 = vmatprep.mubr.bf16.mxu0 0
        %8922 = vmatmul.mubr.bf16.gmra.mrb[0].mxu0 %v8711
        %v8923 = vpop.f32.mrb[0].mxu0
        %v8924 = vadd.f32 0.0, %v8923
        %v8925 = vpop.f32.mrb[0].mxu0
        %v8926 = vpop.f32.mrb[0].mxu0
        %v8927 = vadd.f32 0.0, %v8926
        %v8928 = vpop.f32.mrb[0].mxu0
        %8929 = vmatprep.mubr.bf16.mxu0 0
        %8930 = vmatmul.mubr.bf16.gmra.mrb[0].mxu0 %v8712
        %v8931 = vpop.f32.mrb[0].mxu0
        %v8932 = vadd.f32 0.0, %v8931
        %v8933 = vpop.f32.mrb[0].mxu0
        %v8934 = vpop.f32.mrb[0].mxu0
        %v8935 = vadd.f32 0.0, %v8934
        %v8936 = vpop.f32.mrb[0].mxu0
        %8937 = vdwg.mxu0
        %v8938 = vadd.f32 %v8440, %v8812
        %v8939 = vadd.f32 %v8441, %v8815
        %v8940 = vadd.f32 %v8442, %v8820
        %v8941 = vadd.f32 %v8443, %v8823
        %v8942 = vadd.f32 %v8444, %v8828
        %v8943 = vadd.f32 %v8445, %v8831
        %v8944 = vadd.f32 %v8446, %v8836
        %v8945 = vadd.f32 %v8447, %v8839
        %v8946 = vadd.f32 %v8448, %v8844
        %v8947 = vadd.f32 %v8449, %v8847
        %v8948 = vadd.f32 %v8450, %v8852
        %v8949 = vadd.f32 %v8451, %v8855
        %v8950 = vadd.f32 %v8452, %v8860
        %v8951 = vadd.f32 %v8453, %v8863
        %v8952 = vadd.f32 %v8454, %v8868
        %v8953 = vadd.f32 %v8455, %v8871
        %v8954 = vadd.f32 %v8456, %v8876
        %v8955 = vadd.f32 %v8457, %v8879
        %v8956 = vadd.f32 %v8458, %v8884
        %v8957 = vadd.f32 %v8459, %v8887
        %v8958 = vadd.f32 %v8460, %v8892
        %v8959 = vadd.f32 %v8461, %v8895
        %v8960 = vadd.f32 %v8462, %v8900
        %v8961 = vadd.f32 %v8463, %v8903
        %v8962 = vadd.f32 %v8464, %v8908
        %v8963 = vadd.f32 %v8465, %v8911
        %v8964 = vadd.f32 %v8466, %v8916
        %v8965 = vadd.f32 %v8467, %v8919
        %v8966 = vadd.f32 %v8468, %v8924
        %v8967 = vadd.f32 %v8469, %v8927
        %v8968 = vadd.f32 %v8470, %v8932
        %v8969 = vadd.f32 %v8471, %v8935
        %s8970 = scalar_lea.vmem [#allocation2], 24
        %v8971 = vld [vmem:[%s8970] sm:$0xf]
        %v8972 = vld [vmem:[%s8970 + $0x4] sm:$0xf]
        %v8973 = vld [vmem:[%s8970 + $0xc] sm:$0xf]
        %v8974 = vld [vmem:[%s8970 + $0x10] sm:$0xf]
        %v8975 = vld [vmem:[%s8970 + $0x18] sm:$0xf]
        %v8976 = vld [vmem:[%s8970 + $0x1c] sm:$0xf]
        %v8977 = vld [vmem:[%s8970 + $0x24] sm:$0xf]
        %v8978 = vld [vmem:[%s8970 + $0x28] sm:$0xf]
        %v8979 = vld [vmem:[%s8970 + $0x30] sm:$0xf]
        %v8980 = vld [vmem:[%s8970 + $0x34] sm:$0xf]
        %v8981 = vld [vmem:[%s8970 + $0x3c] sm:$0xf]
        %v8982 = vld [vmem:[%s8970 + $0x40] sm:$0xf]
        %v8983 = vld [vmem:[%s8970 + $0x48] sm:$0xf]
        %v8984 = vld [vmem:[%s8970 + $0x4c] sm:$0xf]
        %v8985 = vld [vmem:[%s8970 + $0x54] sm:$0xf]
        %v8986 = vld [vmem:[%s8970 + $0x58] sm:$0xf]
        %v8987 = vld [vmem:[%s8970 + $0x60] sm:$0xf]
        %v8988 = vld [vmem:[%s8970 + $0x64] sm:$0xf]
        %v8989 = vld [vmem:[%s8970 + $0x6c] sm:$0xf]
        %v8990 = vld [vmem:[%s8970 + $0x70] sm:$0xf]
        %v8991 = vld [vmem:[%s8970 + $0x78] sm:$0xf]
        %v8992 = vld [vmem:[%s8970 + $0x7c] sm:$0xf]
        %v8993 = vld [vmem:[%s8970 + $0x84] sm:$0xf]
        %v8994 = vld [vmem:[%s8970 + $0x88] sm:$0xf]
        %v8995 = vld [vmem:[%s8970 + $0x90] sm:$0xf]
        %v8996 = vld [vmem:[%s8970 + $0x94] sm:$0xf]
        %v8997 = vld [vmem:[%s8970 + $0x9c] sm:$0xf]
        %v8998 = vld [vmem:[%s8970 + $0xa0] sm:$0xf]
        %v8999 = vld [vmem:[%s8970 + $0xa8] sm:$0xf]
        %v9000 = vld [vmem:[%s8970 + $0xac] sm:$0xf]
        %v9001 = vld [vmem:[%s8970 + $0xb4] sm:$0xf]
        %v9002 = vld [vmem:[%s8970 + $0xb8] sm:$0xf]
        %s9003 = scalar_lea.vmem [#allocation3], 384
        %v9004 = vld [vmem:[%s9003] sm:$0xf]
        %v9005 = vld [vmem:[%s9003 + $0x4] sm:$0xf]
        %v9006 = vld [vmem:[%s9003 + $0x8] sm:$0xf]
        %v9007 = vld [vmem:[%s9003 + $0xc] sm:$0xf]
        %v9008 = vld [vmem:[%s9003 + $0x10] sm:$0xf]
        %v9009 = vld [vmem:[%s9003 + $0x14] sm:$0xf]
        %v9010 = vld [vmem:[%s9003 + $0x18] sm:$0xf]
        %v9011 = vld [vmem:[%s9003 + $0x1c] sm:$0xf]
        %v9012 = vld [vmem:[%s9003 + $0x20] sm:$0xf]
        %v9013 = vld [vmem:[%s9003 + $0x24] sm:$0xf]
        %v9014 = vld [vmem:[%s9003 + $0x28] sm:$0xf]
        %v9015 = vld [vmem:[%s9003 + $0x2c] sm:$0xf]
        %v9016 = vld [vmem:[%s9003 + $0x30] sm:$0xf]
        %v9017 = vld [vmem:[%s9003 + $0x34] sm:$0xf]
        %v9018 = vld [vmem:[%s9003 + $0x38] sm:$0xf]
        %v9019 = vld [vmem:[%s9003 + $0x3c] sm:$0xf]
        %v9052 = vunpack.c.l.b16 %v8971
        %v9053 = vunpack.c.l.b16 %v8972
        %v9054 = vunpack.c.l.b16 %v8973
        %v9055 = vunpack.c.l.b16 %v8974
        %v9056 = vunpack.c.l.b16 %v8975
        %v9057 = vunpack.c.l.b16 %v8976
        %v9058 = vunpack.c.l.b16 %v8977
        %v9059 = vunpack.c.l.b16 %v8978
        %v9060 = vunpack.c.l.b16 %v8979
        %v9061 = vunpack.c.l.b16 %v8980
        %v9062 = vunpack.c.l.b16 %v8981
        %v9063 = vunpack.c.l.b16 %v8982
        %v9064 = vunpack.c.l.b16 %v8983
        %v9065 = vunpack.c.l.b16 %v8984
        %v9066 = vunpack.c.l.b16 %v8985
        %v9067 = vunpack.c.l.b16 %v8986
        %v9068 = vunpack.c.l.b16 %v8987
        %v9069 = vunpack.c.l.b16 %v8988
        %v9070 = vunpack.c.l.b16 %v8989
        %v9071 = vunpack.c.l.b16 %v8990
        %v9072 = vunpack.c.l.b16 %v8991
        %v9073 = vunpack.c.l.b16 %v8992
        %v9074 = vunpack.c.l.b16 %v8993
        %v9075 = vunpack.c.l.b16 %v8994
        %v9076 = vunpack.c.l.b16 %v8995
        %v9077 = vunpack.c.l.b16 %v8996
        %v9078 = vunpack.c.l.b16 %v8997
        %v9079 = vunpack.c.l.b16 %v8998
        %v9080 = vunpack.c.l.b16 %v8999
        %v9081 = vunpack.c.l.b16 %v9000
        %v9082 = vunpack.c.l.b16 %v9001
        %v9083 = vunpack.c.l.b16 %v9002
        %v9084 = vpack.c.b16 %v9053, %v9052
        %v9085 = vpack.c.b16 %v9055, %v9054
        %v9086 = vpack.c.b16 %v9057, %v9056
        %v9087 = vpack.c.b16 %v9059, %v9058
        %v9088 = vpack.c.b16 %v9061, %v9060
        %v9089 = vpack.c.b16 %v9063, %v9062
        %v9090 = vpack.c.b16 %v9065, %v9064
        %v9091 = vpack.c.b16 %v9067, %v9066
        %v9092 = vpack.c.b16 %v9069, %v9068
        %v9093 = vpack.c.b16 %v9071, %v9070
        %v9094 = vpack.c.b16 %v9073, %v9072
        %v9095 = vpack.c.b16 %v9075, %v9074
        %v9096 = vpack.c.b16 %v9077, %v9076
        %v9097 = vpack.c.b16 %v9079, %v9078
        %v9098 = vpack.c.b16 %v9081, %v9080
        %v9099 = vpack.c.b16 %v9083, %v9082
        %v9132 = vunpack.c.l.b16 %v9004
        %v9133 = vunpack.c.l.b16 %v9005
        %v9134 = vunpack.c.l.b16 %v9006
        %v9135 = vunpack.c.l.b16 %v9007
        %v9136 = vunpack.c.l.b16 %v9008
        %v9137 = vunpack.c.l.b16 %v9009
        %v9138 = vunpack.c.l.b16 %v9010
        %v9139 = vunpack.c.l.b16 %v9011
        %v9140 = vunpack.c.l.b16 %v9012
        %v9141 = vunpack.c.l.b16 %v9013
        %v9142 = vunpack.c.l.b16 %v9014
        %v9143 = vunpack.c.l.b16 %v9015
        %v9144 = vunpack.c.l.b16 %v9016
        %v9145 = vunpack.c.l.b16 %v9017
        %v9146 = vunpack.c.l.b16 %v9018
        %v9147 = vunpack.c.l.b16 %v9019
        %v9148 = vpack.c.b16 %v9133, %v9132
        %v9149 = vpack.c.b16 %v9135, %v9134
        %v9150 = vpack.c.b16 %v9137, %v9136
        %v9151 = vpack.c.b16 %v9139, %v9138
        %v9152 = vpack.c.b16 %v9141, %v9140
        %v9153 = vpack.c.b16 %v9143, %v9142
        %v9154 = vpack.c.b16 %v9145, %v9144
        %v9155 = vpack.c.b16 %v9147, %v9146
        %9164 = vmatprep.subr.bf16.mxu0 0
        %9165 = vmatpush1.bf16.msra.mxu0 %v9148
        %9166 = vmatprep.subr.bf16.mxu0 0
        %9167 = vmatpush1.bf16.msra.mxu0 %v9149
        %9168 = vmatprep.subr.bf16.mxu0 0
        %9169 = vmatpush1.bf16.msra.mxu0 %v9150
        %9170 = vmatprep.subr.bf16.mxu0 0
        %9171 = vmatpush1.bf16.msra.mxu0 %v9151
        %9172 = vmatprep.subr.bf16.mxu0 0
        %9173 = vmatpush1.bf16.msra.mxu0 %v9152
        %9174 = vmatprep.subr.bf16.mxu0 0
        %9175 = vmatpush1.bf16.msra.mxu0 %v9153
        %9176 = vmatprep.subr.bf16.mxu0 0
        %9177 = vmatpush1.bf16.msra.mxu0 %v9154
        %9178 = vmatprep.subr.bf16.mxu0 0
        %9179 = vmatpush1.bf16.msra.mxu0 %v9155
        %9180 = vmatprep.subr.bf16.mxu0 0
        %9181 = vmatpush1.bf16.msra.mxu0 0
        %9182 = vmatprep.subr.bf16.mxu0 0
        %9183 = vmatpush1.bf16.msra.mxu0 0
        %9184 = vmatprep.subr.bf16.mxu0 0
        %9185 = vmatpush1.bf16.msra.mxu0 0
        %9186 = vmatprep.subr.bf16.mxu0 0
        %9187 = vmatpush1.bf16.msra.mxu0 0
        %9188 = vmatprep.subr.bf16.mxu0 0
        %9189 = vmatpush1.bf16.msra.mxu0 0
        %9190 = vmatprep.subr.bf16.mxu0 0
        %9191 = vmatpush1.bf16.msra.mxu0 0
        %9192 = vmatprep.subr.bf16.mxu0 0
        %9193 = vmatpush1.bf16.msra.mxu0 0
        %9194 = vmatprep.subr.bf16.mxu0 0
        %9195 = vmatpush1.bf16.msra.mxu0 0
        %9196 = vmatprep.mubr.bf16.mxu0 0
        %9197 = vmatmul.mubr.bf16.gmra.mrb[0].mxu0 %v9084
        %v9198 = vpop.f32.mrb[0].mxu0
        %v9199 = vadd.f32 0.0, %v9198
        %v9200 = vpop.f32.mrb[0].mxu0
        %v9201 = vpop.f32.mrb[0].mxu0
        %v9202 = vadd.f32 0.0, %v9201
        %v9203 = vpop.f32.mrb[0].mxu0
        %9204 = vmatprep.mubr.bf16.mxu0 0
        %9205 = vmatmul.mubr.bf16.gmra.mrb[0].mxu0 %v9085
        %v9206 = vpop.f32.mrb[0].mxu0
        %v9207 = vadd.f32 0.0, %v9206
        %v9208 = vpop.f32.mrb[0].mxu0
        %v9209 = vpop.f32.mrb[0].mxu0
        %v9210 = vadd.f32 0.0, %v9209
        %v9211 = vpop.f32.mrb[0].mxu0
        %9212 = vmatprep.mubr.bf16.mxu0 0
        %9213 = vmatmul.mubr.bf16.gmra.mrb[0].mxu0 %v9086
        %v9214 = vpop.f32.mrb[0].mxu0
        %v9215 = vadd.f32 0.0, %v9214
        %v9216 = vpop.f32.mrb[0].mxu0
        %v9217 = vpop.f32.mrb[0].mxu0
        %v9218 = vadd.f32 0.0, %v9217
        %v9219 = vpop.f32.mrb[0].mxu0
        %9220 = vmatprep.mubr.bf16.mxu0 0
        %9221 = vmatmul.mubr.bf16.gmra.mrb[0].mxu0 %v9087
        %v9222 = vpop.f32.mrb[0].mxu0
        %v9223 = vadd.f32 0.0, %v9222
        %v9224 = vpop.f32.mrb[0].mxu0
        %v9225 = vpop.f32.mrb[0].mxu0
        %v9226 = vadd.f32 0.0, %v9225
        %v9227 = vpop.f32.mrb[0].mxu0
        %9228 = vmatprep.mubr.bf16.mxu0 0
        %9229 = vmatmul.mubr.bf16.gmra.mrb[0].mxu0 %v9088
        %v9230 = vpop.f32.mrb[0].mxu0
        %v9231 = vadd.f32 0.0, %v9230
        %v9232 = vpop.f32.mrb[0].mxu0
        %v9233 = vpop.f32.mrb[0].mxu0
        %v9234 = vadd.f32 0.0, %v9233
        %v9235 = vpop.f32.mrb[0].mxu0
        %9236 = vmatprep.mubr.bf16.mxu0 0
        %9237 = vmatmul.mubr.bf16.gmra.mrb[0].mxu0 %v9089
        %v9238 = vpop.f32.mrb[0].mxu0
        %v9239 = vadd.f32 0.0, %v9238
        %v9240 = vpop.f32.mrb[0].mxu0
        %v9241 = vpop.f32.mrb[0].mxu0
        %v9242 = vadd.f32 0.0, %v9241
        %v9243 = vpop.f32.mrb[0].mxu0
        %9244 = vmatprep.mubr.bf16.mxu0 0
        %9245 = vmatmul.mubr.bf16.gmra.mrb[0].mxu0 %v9090
        %v9246 = vpop.f32.mrb[0].mxu0
        %v9247 = vadd.f32 0.0, %v9246
        %v9248 = vpop.f32.mrb[0].mxu0
        %v9249 = vpop.f32.mrb[0].mxu0
        %v9250 = vadd.f32 0.0, %v9249
        %v9251 = vpop.f32.mrb[0].mxu0
        %9252 = vmatprep.mubr.bf16.mxu0 0
        %9253 = vmatmul.mubr.bf16.gmra.mrb[0].mxu0 %v9091
        %v9254 = vpop.f32.mrb[0].mxu0
        %v9255 = vadd.f32 0.0, %v9254
        %v9256 = vpop.f32.mrb[0].mxu0
        %v9257 = vpop.f32.mrb[0].mxu0
        %v9258 = vadd.f32 0.0, %v9257
        %v9259 = vpop.f32.mrb[0].mxu0
        %9260 = vmatprep.mubr.bf16.mxu0 0
        %9261 = vmatmul.mubr.bf16.gmra.mrb[0].mxu0 %v9092
        %v9262 = vpop.f32.mrb[0].mxu0
        %v9263 = vadd.f32 0.0, %v9262
        %v9264 = vpop.f32.mrb[0].mxu0
        %v9265 = vpop.f32.mrb[0].mxu0
        %v9266 = vadd.f32 0.0, %v9265
        %v9267 = vpop.f32.mrb[0].mxu0
        %9268 = vmatprep.mubr.bf16.mxu0 0
        %9269 = vmatmul.mubr.bf16.gmra.mrb[0].mxu0 %v9093
        %v9270 = vpop.f32.mrb[0].mxu0
        %v9271 = vadd.f32 0.0, %v9270
        %v9272 = vpop.f32.mrb[0].mxu0
        %v9273 = vpop.f32.mrb[0].mxu0
        %v9274 = vadd.f32 0.0, %v9273
        %v9275 = vpop.f32.mrb[0].mxu0
        %9276 = vmatprep.mubr.bf16.mxu0 0
        %9277 = vmatmul.mubr.bf16.gmra.mrb[0].mxu0 %v9094
        %v9278 = vpop.f32.mrb[0].mxu0
        %v9279 = vadd.f32 0.0, %v9278
        %v9280 = vpop.f32.mrb[0].mxu0
        %v9281 = vpop.f32.mrb[0].mxu0
        %v9282 = vadd.f32 0.0, %v9281
        %v9283 = vpop.f32.mrb[0].mxu0
        %9284 = vmatprep.mubr.bf16.mxu0 0
        %9285 = vmatmul.mubr.bf16.gmra.mrb[0].mxu0 %v9095
        %v9286 = vpop.f32.mrb[0].mxu0
        %v9287 = vadd.f32 0.0, %v9286
        %v9288 = vpop.f32.mrb[0].mxu0
        %v9289 = vpop.f32.mrb[0].mxu0
        %v9290 = vadd.f32 0.0, %v9289
        %v9291 = vpop.f32.mrb[0].mxu0
        %9292 = vmatprep.mubr.bf16.mxu0 0
        %9293 = vmatmul.mubr.bf16.gmra.mrb[0].mxu0 %v9096
        %v9294 = vpop.f32.mrb[0].mxu0
        %v9295 = vadd.f32 0.0, %v9294
        %v9296 = vpop.f32.mrb[0].mxu0
        %v9297 = vpop.f32.mrb[0].mxu0
        %v9298 = vadd.f32 0.0, %v9297
        %v9299 = vpop.f32.mrb[0].mxu0
        %9300 = vmatprep.mubr.bf16.mxu0 0
        %9301 = vmatmul.mubr.bf16.gmra.mrb[0].mxu0 %v9097
        %v9302 = vpop.f32.mrb[0].mxu0
        %v9303 = vadd.f32 0.0, %v9302
        %v9304 = vpop.f32.mrb[0].mxu0
        %v9305 = vpop.f32.mrb[0].mxu0
        %v9306 = vadd.f32 0.0, %v9305
        %v9307 = vpop.f32.mrb[0].mxu0
        %9308 = vmatprep.mubr.bf16.mxu0 0
        %9309 = vmatmul.mubr.bf16.gmra.mrb[0].mxu0 %v9098
        %v9310 = vpop.f32.mrb[0].mxu0
        %v9311 = vadd.f32 0.0, %v9310
        %v9312 = vpop.f32.mrb[0].mxu0
        %v9313 = vpop.f32.mrb[0].mxu0
        %v9314 = vadd.f32 0.0, %v9313
        %v9315 = vpop.f32.mrb[0].mxu0
        %9316 = vmatprep.mubr.bf16.mxu0 0
        %9317 = vmatmul.mubr.bf16.gmra.mrb[0].mxu0 %v9099
        %v9318 = vpop.f32.mrb[0].mxu0
        %v9319 = vadd.f32 0.0, %v9318
        %v9320 = vpop.f32.mrb[0].mxu0
        %v9321 = vpop.f32.mrb[0].mxu0
        %v9322 = vadd.f32 0.0, %v9321
        %v9323 = vpop.f32.mrb[0].mxu0
        %9324 = vdwg.mxu0
        %v9325 = vadd.f32 %v8938, %v9199
        %v9326 = vadd.f32 %v8939, %v9202
        %v9327 = vadd.f32 %v8940, %v9207
        %v9328 = vadd.f32 %v8941, %v9210
        %v9329 = vadd.f32 %v8942, %v9215
        %v9330 = vadd.f32 %v8943, %v9218
        %v9331 = vadd.f32 %v8944, %v9223
        %v9332 = vadd.f32 %v8945, %v9226
        %v9333 = vadd.f32 %v8946, %v9231
        %v9334 = vadd.f32 %v8947, %v9234
        %v9335 = vadd.f32 %v8948, %v9239
        %v9336 = vadd.f32 %v8949, %v9242
        %v9337 = vadd.f32 %v8950, %v9247
        %v9338 = vadd.f32 %v8951, %v9250
        %v9339 = vadd.f32 %v8952, %v9255
        %v9340 = vadd.f32 %v8953, %v9258
        %v9341 = vadd.f32 %v8954, %v9263
        %v9342 = vadd.f32 %v8955, %v9266
        %v9343 = vadd.f32 %v8956, %v9271
        %v9344 = vadd.f32 %v8957, %v9274
        %v9345 = vadd.f32 %v8958, %v9279
        %v9346 = vadd.f32 %v8959, %v9282
        %v9347 = vadd.f32 %v8960, %v9287
        %v9348 = vadd.f32 %v8961, %v9290
        %v9349 = vadd.f32 %v8962, %v9295
        %v9350 = vadd.f32 %v8963, %v9298
        %v9351 = vadd.f32 %v8964, %v9303
        %v9352 = vadd.f32 %v8965, %v9306
        %v9353 = vadd.f32 %v8966, %v9311
        %v9354 = vadd.f32 %v8967, %v9314
        %v9355 = vadd.f32 %v8968, %v9319
        %v9356 = vadd.f32 %v8969, %v9322
        %v9357 = vld [vmem:[%s8970] sm:$0xf]
        %v9358 = vld [vmem:[%s8970 + $0x4] sm:$0xf]
        %v9359 = vld [vmem:[%s8970 + $0x8] sm:$0x1]
        %v9360 = vld [vmem:[%s8970 + $0xc] sm:$0xf]
        %v9361 = vld [vmem:[%s8970 + $0x10] sm:$0xf]
        %v9362 = vld [vmem:[%s8970 + $0x14] sm:$0x1]
        %v9363 = vld [vmem:[%s8970 + $0x18] sm:$0xf]
        %v9364 = vld [vmem:[%s8970 + $0x1c] sm:$0xf]
        %v9365 = vld [vmem:[%s8970 + $0x20] sm:$0x1]
        %v9366 = vld [vmem:[%s8970 + $0x24] sm:$0xf]
        %v9367 = vld [vmem:[%s8970 + $0x28] sm:$0xf]
        %v9368 = vld [vmem:[%s8970 + $0x2c] sm:$0x1]
        %v9369 = vld [vmem:[%s8970 + $0x30] sm:$0xf]
        %v9370 = vld [vmem:[%s8970 + $0x34] sm:$0xf]
        %v9371 = vld [vmem:[%s8970 + $0x38] sm:$0x1]
        %v9372 = vld [vmem:[%s8970 + $0x3c] sm:$0xf]
        %v9373 = vld [vmem:[%s8970 + $0x40] sm:$0xf]
        %v9374 = vld [vmem:[%s8970 + $0x44] sm:$0x1]
        %v9375 = vld [vmem:[%s8970 + $0x48] sm:$0xf]
        %v9376 = vld [vmem:[%s8970 + $0x4c] sm:$0xf]
        %v9377 = vld [vmem:[%s8970 + $0x50] sm:$0x1]
        %v9378 = vld [vmem:[%s8970 + $0x54] sm:$0xf]
        %v9379 = vld [vmem:[%s8970 + $0x58] sm:$0xf]
        %v9380 = vld [vmem:[%s8970 + $0x5c] sm:$0x1]
        %v9381 = vld [vmem:[%s8970 + $0x60] sm:$0xf]
        %v9382 = vld [vmem:[%s8970 + $0x64] sm:$0xf]
        %v9383 = vld [vmem:[%s8970 + $0x68] sm:$0x1]
        %v9384 = vld [vmem:[%s8970 + $0x6c] sm:$0xf]
        %v9385 = vld [vmem:[%s8970 + $0x70] sm:$0xf]
        %v9386 = vld [vmem:[%s8970 + $0x74] sm:$0x1]
        %v9387 = vld [vmem:[%s8970 + $0x78] sm:$0xf]
        %v9388 = vld [vmem:[%s8970 + $0x7c] sm:$0xf]
        %v9389 = vld [vmem:[%s8970 + $0x80] sm:$0x1]
        %v9390 = vld [vmem:[%s8970 + $0x84] sm:$0xf]
        %v9391 = vld [vmem:[%s8970 + $0x88] sm:$0xf]
        %v9392 = vld [vmem:[%s8970 + $0x8c] sm:$0x1]
        %v9393 = vld [vmem:[%s8970 + $0x90] sm:$0xf]
        %v9394 = vld [vmem:[%s8970 + $0x94] sm:$0xf]
        %v9395 = vld [vmem:[%s8970 + $0x98] sm:$0x1]
        %v9396 = vld [vmem:[%s8970 + $0x9c] sm:$0xf]
        %v9397 = vld [vmem:[%s8970 + $0xa0] sm:$0xf]
        %v9398 = vld [vmem:[%s8970 + $0xa4] sm:$0x1]
        %v9399 = vld [vmem:[%s8970 + $0xa8] sm:$0xf]
        %v9400 = vld [vmem:[%s8970 + $0xac] sm:$0xf]
        %v9401 = vld [vmem:[%s8970 + $0xb0] sm:$0x1]
        %v9402 = vld [vmem:[%s8970 + $0xb4] sm:$0xf]
        %v9403 = vld [vmem:[%s8970 + $0xb8] sm:$0xf]
        %v9404 = vld [vmem:[%s8970 + $0xbc] sm:$0x1]
        %v9406 = vshrl.u32 %v9357, 16
        %v9408 = vrot.slane %v9406, 4
        %v9409 = vshll.u32 %v9357, 16
        %v9411 = vrot.slane %v9409, 5
        %v9412 = vor.u32 %v9408, %v9411
        %v9413 = vrot.slane %v9412, 4
        %v9415 = vshll.u32 %v9358, 16
        %v9417 = vrot.slane %v9415, 5
        %v9418 = vsel %vm417, %v9413, %v9417
        %v9419 = vshrl.u32 %v9358, 16
        %v9421 = vrot.slane %v9419, 4
        %v9422 = vor.u32 %v9421, %v9417
        %v9423 = vrot.slane %v9422, 4
        %v9425 = vshll.u32 %v9359, 16
        %v9427 = vrot.slane %v9425, 5
        %v9428 = vsel %vm417, %v9423, %v9427
        %v9430 = vshrl.u32 %v9360, 16
        %v9432 = vrot.slane %v9430, 4
        %v9433 = vshll.u32 %v9360, 16
        %v9435 = vrot.slane %v9433, 5
        %v9436 = vor.u32 %v9432, %v9435
        %v9437 = vrot.slane %v9436, 4
        %v9439 = vshll.u32 %v9361, 16
        %v9441 = vrot.slane %v9439, 5
        %v9442 = vsel %vm417, %v9437, %v9441
        %v9443 = vshrl.u32 %v9361, 16
        %v9445 = vrot.slane %v9443, 4
        %v9446 = vor.u32 %v9445, %v9441
        %v9447 = vrot.slane %v9446, 4
        %v9449 = vshll.u32 %v9362, 16
        %v9451 = vrot.slane %v9449, 5
        %v9452 = vsel %vm417, %v9447, %v9451
        %v9454 = vshrl.u32 %v9363, 16
        %v9456 = vrot.slane %v9454, 4
        %v9457 = vshll.u32 %v9363, 16
        %v9459 = vrot.slane %v9457, 5
        %v9460 = vor.u32 %v9456, %v9459
        %v9461 = vrot.slane %v9460, 4
        %v9463 = vshll.u32 %v9364, 16
        %v9465 = vrot.slane %v9463, 5
        %v9466 = vsel %vm417, %v9461, %v9465
        %v9467 = vshrl.u32 %v9364, 16
        %v9469 = vrot.slane %v9467, 4
        %v9470 = vor.u32 %v9469, %v9465
        %v9471 = vrot.slane %v9470, 4
        %v9473 = vshll.u32 %v9365, 16
        %v9475 = vrot.slane %v9473, 5
        %v9476 = vsel %vm417, %v9471, %v9475
        %v9478 = vshrl.u32 %v9366, 16
        %v9480 = vrot.slane %v9478, 4
        %v9481 = vshll.u32 %v9366, 16
        %v9483 = vrot.slane %v9481, 5
        %v9484 = vor.u32 %v9480, %v9483
        %v9485 = vrot.slane %v9484, 4
        %v9487 = vshll.u32 %v9367, 16
        %v9489 = vrot.slane %v9487, 5
        %v9490 = vsel %vm417, %v9485, %v9489
        %v9491 = vshrl.u32 %v9367, 16
        %v9493 = vrot.slane %v9491, 4
        %v9494 = vor.u32 %v9493, %v9489
        %v9495 = vrot.slane %v9494, 4
        %v9497 = vshll.u32 %v9368, 16
        %v9499 = vrot.slane %v9497, 5
        %v9500 = vsel %vm417, %v9495, %v9499
        %v9502 = vshrl.u32 %v9369, 16
        %v9504 = vrot.slane %v9502, 4
        %v9505 = vshll.u32 %v9369, 16
        %v9507 = vrot.slane %v9505, 5
        %v9508 = vor.u32 %v9504, %v9507
        %v9509 = vrot.slane %v9508, 4
        %v9511 = vshll.u32 %v9370, 16
        %v9513 = vrot.slane %v9511, 5
        %v9514 = vsel %vm417, %v9509, %v9513
        %v9515 = vshrl.u32 %v9370, 16
        %v9517 = vrot.slane %v9515, 4
        %v9518 = vor.u32 %v9517, %v9513
        %v9519 = vrot.slane %v9518, 4
        %v9521 = vshll.u32 %v9371, 16
        %v9523 = vrot.slane %v9521, 5
        %v9524 = vsel %vm417, %v9519, %v9523
        %v9526 = vshrl.u32 %v9372, 16
        %v9528 = vrot.slane %v9526, 4
        %v9529 = vshll.u32 %v9372, 16
        %v9531 = vrot.slane %v9529, 5
        %v9532 = vor.u32 %v9528, %v9531
        %v9533 = vrot.slane %v9532, 4
        %v9535 = vshll.u32 %v9373, 16
        %v9537 = vrot.slane %v9535, 5
        %v9538 = vsel %vm417, %v9533, %v9537
        %v9539 = vshrl.u32 %v9373, 16
        %v9541 = vrot.slane %v9539, 4
        %v9542 = vor.u32 %v9541, %v9537
        %v9543 = vrot.slane %v9542, 4
        %v9545 = vshll.u32 %v9374, 16
        %v9547 = vrot.slane %v9545, 5
        %v9548 = vsel %vm417, %v9543, %v9547
        %v9550 = vshrl.u32 %v9375, 16
        %v9552 = vrot.slane %v9550, 4
        %v9553 = vshll.u32 %v9375, 16
        %v9555 = vrot.slane %v9553, 5
        %v9556 = vor.u32 %v9552, %v9555
        %v9557 = vrot.slane %v9556, 4
        %v9559 = vshll.u32 %v9376, 16
        %v9561 = vrot.slane %v9559, 5
        %v9562 = vsel %vm417, %v9557, %v9561
        %v9563 = vshrl.u32 %v9376, 16
        %v9565 = vrot.slane %v9563, 4
        %v9566 = vor.u32 %v9565, %v9561
        %v9567 = vrot.slane %v9566, 4
        %v9569 = vshll.u32 %v9377, 16
        %v9571 = vrot.slane %v9569, 5
        %v9572 = vsel %vm417, %v9567, %v9571
        %v9574 = vshrl.u32 %v9378, 16
        %v9576 = vrot.slane %v9574, 4
        %v9577 = vshll.u32 %v9378, 16
        %v9579 = vrot.slane %v9577, 5
        %v9580 = vor.u32 %v9576, %v9579
        %v9581 = vrot.slane %v9580, 4
        %v9583 = vshll.u32 %v9379, 16
        %v9585 = vrot.slane %v9583, 5
        %v9586 = vsel %vm417, %v9581, %v9585
        %v9587 = vshrl.u32 %v9379, 16
        %v9589 = vrot.slane %v9587, 4
        %v9590 = vor.u32 %v9589, %v9585
        %v9591 = vrot.slane %v9590, 4
        %v9593 = vshll.u32 %v9380, 16
        %v9595 = vrot.slane %v9593, 5
        %v9596 = vsel %vm417, %v9591, %v9595
        %v9598 = vshrl.u32 %v9381, 16
        %v9600 = vrot.slane %v9598, 4
        %v9601 = vshll.u32 %v9381, 16
        %v9603 = vrot.slane %v9601, 5
        %v9604 = vor.u32 %v9600, %v9603
        %v9605 = vrot.slane %v9604, 4
        %v9607 = vshll.u32 %v9382, 16
        %v9609 = vrot.slane %v9607, 5
        %v9610 = vsel %vm417, %v9605, %v9609
        %v9611 = vshrl.u32 %v9382, 16
        %v9613 = vrot.slane %v9611, 4
        %v9614 = vor.u32 %v9613, %v9609
        %v9615 = vrot.slane %v9614, 4
        %v9617 = vshll.u32 %v9383, 16
        %v9619 = vrot.slane %v9617, 5
        %v9620 = vsel %vm417, %v9615, %v9619
        %v9622 = vshrl.u32 %v9384, 16
        %v9624 = vrot.slane %v9622, 4
        %v9625 = vshll.u32 %v9384, 16
        %v9627 = vrot.slane %v9625, 5
        %v9628 = vor.u32 %v9624, %v9627
        %v9629 = vrot.slane %v9628, 4
        %v9631 = vshll.u32 %v9385, 16
        %v9633 = vrot.slane %v9631, 5
        %v9634 = vsel %vm417, %v9629, %v9633
        %v9635 = vshrl.u32 %v9385, 16
        %v9637 = vrot.slane %v9635, 4
        %v9638 = vor.u32 %v9637, %v9633
        %v9639 = vrot.slane %v9638, 4
        %v9641 = vshll.u32 %v9386, 16
        %v9643 = vrot.slane %v9641, 5
        %v9644 = vsel %vm417, %v9639, %v9643
        %v9646 = vshrl.u32 %v9387, 16
        %v9648 = vrot.slane %v9646, 4
        %v9649 = vshll.u32 %v9387, 16
        %v9651 = vrot.slane %v9649, 5
        %v9652 = vor.u32 %v9648, %v9651
        %v9653 = vrot.slane %v9652, 4
        %v9655 = vshll.u32 %v9388, 16
        %v9657 = vrot.slane %v9655, 5
        %v9658 = vsel %vm417, %v9653, %v9657
        %v9659 = vshrl.u32 %v9388, 16
        %v9661 = vrot.slane %v9659, 4
        %v9662 = vor.u32 %v9661, %v9657
        %v9663 = vrot.slane %v9662, 4
        %v9665 = vshll.u32 %v9389, 16
        %v9667 = vrot.slane %v9665, 5
        %v9668 = vsel %vm417, %v9663, %v9667
        %v9670 = vshrl.u32 %v9390, 16
        %v9672 = vrot.slane %v9670, 4
        %v9673 = vshll.u32 %v9390, 16
        %v9675 = vrot.slane %v9673, 5
        %v9676 = vor.u32 %v9672, %v9675
        %v9677 = vrot.slane %v9676, 4
        %v9679 = vshll.u32 %v9391, 16
        %v9681 = vrot.slane %v9679, 5
        %v9682 = vsel %vm417, %v9677, %v9681
        %v9683 = vshrl.u32 %v9391, 16
        %v9685 = vrot.slane %v9683, 4
        %v9686 = vor.u32 %v9685, %v9681
        %v9687 = vrot.slane %v9686, 4
        %v9689 = vshll.u32 %v9392, 16
        %v9691 = vrot.slane %v9689, 5
        %v9692 = vsel %vm417, %v9687, %v9691
        %v9694 = vshrl.u32 %v9393, 16
        %v9696 = vrot.slane %v9694, 4
        %v9697 = vshll.u32 %v9393, 16
        %v9699 = vrot.slane %v9697, 5
        %v9700 = vor.u32 %v9696, %v9699
        %v9701 = vrot.slane %v9700, 4
        %v9703 = vshll.u32 %v9394, 16
        %v9705 = vrot.slane %v9703, 5
        %v9706 = vsel %vm417, %v9701, %v9705
        %v9707 = vshrl.u32 %v9394, 16
        %v9709 = vrot.slane %v9707, 4
        %v9710 = vor.u32 %v9709, %v9705
        %v9711 = vrot.slane %v9710, 4
        %v9713 = vshll.u32 %v9395, 16
        %v9715 = vrot.slane %v9713, 5
        %v9716 = vsel %vm417, %v9711, %v9715
        %v9718 = vshrl.u32 %v9396, 16
        %v9720 = vrot.slane %v9718, 4
        %v9721 = vshll.u32 %v9396, 16
        %v9723 = vrot.slane %v9721, 5
        %v9724 = vor.u32 %v9720, %v9723
        %v9725 = vrot.slane %v9724, 4
        %v9727 = vshll.u32 %v9397, 16
        %v9729 = vrot.slane %v9727, 5
        %v9730 = vsel %vm417, %v9725, %v9729
        %v9731 = vshrl.u32 %v9397, 16
        %v9733 = vrot.slane %v9731, 4
        %v9734 = vor.u32 %v9733, %v9729
        %v9735 = vrot.slane %v9734, 4
        %v9737 = vshll.u32 %v9398, 16
        %v9739 = vrot.slane %v9737, 5
        %v9740 = vsel %vm417, %v9735, %v9739
        %v9742 = vshrl.u32 %v9399, 16
        %v9744 = vrot.slane %v9742, 4
        %v9745 = vshll.u32 %v9399, 16
        %v9747 = vrot.slane %v9745, 5
        %v9748 = vor.u32 %v9744, %v9747
        %v9749 = vrot.slane %v9748, 4
        %v9751 = vshll.u32 %v9400, 16
        %v9753 = vrot.slane %v9751, 5
        %v9754 = vsel %vm417, %v9749, %v9753
        %v9755 = vshrl.u32 %v9400, 16
        %v9757 = vrot.slane %v9755, 4
        %v9758 = vor.u32 %v9757, %v9753
        %v9759 = vrot.slane %v9758, 4
        %v9761 = vshll.u32 %v9401, 16
        %v9763 = vrot.slane %v9761, 5
        %v9764 = vsel %vm417, %v9759, %v9763
        %v9766 = vshrl.u32 %v9402, 16
        %v9768 = vrot.slane %v9766, 4
        %v9769 = vshll.u32 %v9402, 16
        %v9771 = vrot.slane %v9769, 5
        %v9772 = vor.u32 %v9768, %v9771
        %v9773 = vrot.slane %v9772, 4
        %v9775 = vshll.u32 %v9403, 16
        %v9777 = vrot.slane %v9775, 5
        %v9778 = vsel %vm417, %v9773, %v9777
        %v9779 = vshrl.u32 %v9403, 16
        %v9781 = vrot.slane %v9779, 4
        %v9782 = vor.u32 %v9781, %v9777
        %v9783 = vrot.slane %v9782, 4
        %v9785 = vshll.u32 %v9404, 16
        %v9787 = vrot.slane %v9785, 5
        %v9788 = vsel %vm417, %v9783, %v9787
        %s9789 = scalar_lea.vmem [#allocation3], 448
        %v9790 = vld [vmem:[%s9789] sm:$0xf]
        %v9791 = vld [vmem:[%s9789 + $0x4] sm:$0xf]
        %v9792 = vld [vmem:[%s9789 + $0x8] sm:$0xf]
        %v9793 = vld [vmem:[%s9789 + $0xc] sm:$0xf]
        %v9794 = vld [vmem:[%s9789 + $0x10] sm:$0xf]
        %v9795 = vld [vmem:[%s9789 + $0x14] sm:$0xf]
        %v9796 = vld [vmem:[%s9789 + $0x18] sm:$0xf]
        %v9797 = vld [vmem:[%s9789 + $0x1c] sm:$0xf]
        %v9798 = vld [vmem:[%s9789 + $0x20] sm:$0xf]
        %v9799 = vld [vmem:[%s9789 + $0x24] sm:$0xf]
        %v9800 = vld [vmem:[%s9789 + $0x28] sm:$0xf]
        %v9801 = vld [vmem:[%s9789 + $0x2c] sm:$0xf]
        %v9802 = vld [vmem:[%s9789 + $0x30] sm:$0xf]
        %v9803 = vld [vmem:[%s9789 + $0x34] sm:$0xf]
        %v9804 = vld [vmem:[%s9789 + $0x38] sm:$0xf]
        %v9805 = vld [vmem:[%s9789 + $0x3c] sm:$0xf]
        %v9806 = vunpack.c.l.b16 %v9418
        %v9807 = vunpack.c.l.b16 %v9428
        %v9808 = vunpack.c.l.b16 %v9442
        %v9809 = vunpack.c.l.b16 %v9452
        %v9810 = vunpack.c.l.b16 %v9466
        %v9811 = vunpack.c.l.b16 %v9476
        %v9812 = vunpack.c.l.b16 %v9490
        %v9813 = vunpack.c.l.b16 %v9500
        %v9814 = vunpack.c.l.b16 %v9514
        %v9815 = vunpack.c.l.b16 %v9524
        %v9816 = vunpack.c.l.b16 %v9538
        %v9817 = vunpack.c.l.b16 %v9548
        %v9818 = vunpack.c.l.b16 %v9562
        %v9819 = vunpack.c.l.b16 %v9572
        %v9820 = vunpack.c.l.b16 %v9586
        %v9821 = vunpack.c.l.b16 %v9596
        %v9822 = vunpack.c.l.b16 %v9610
        %v9823 = vunpack.c.l.b16 %v9620
        %v9824 = vunpack.c.l.b16 %v9634
        %v9825 = vunpack.c.l.b16 %v9644
        %v9826 = vunpack.c.l.b16 %v9658
        %v9827 = vunpack.c.l.b16 %v9668
        %v9828 = vunpack.c.l.b16 %v9682
        %v9829 = vunpack.c.l.b16 %v9692
        %v9830 = vunpack.c.l.b16 %v9706
        %v9831 = vunpack.c.l.b16 %v9716
        %v9832 = vunpack.c.l.b16 %v9730
        %v9833 = vunpack.c.l.b16 %v9740
        %v9834 = vunpack.c.l.b16 %v9754
        %v9835 = vunpack.c.l.b16 %v9764
        %v9836 = vunpack.c.l.b16 %v9778
        %v9837 = vunpack.c.l.b16 %v9788
        %v9838 = vpack.c.b16 %v9807, %v9806
        %v9839 = vpack.c.b16 %v9809, %v9808
        %v9840 = vpack.c.b16 %v9811, %v9810
        %v9841 = vpack.c.b16 %v9813, %v9812
        %v9842 = vpack.c.b16 %v9815, %v9814
        %v9843 = vpack.c.b16 %v9817, %v9816
        %v9844 = vpack.c.b16 %v9819, %v9818
        %v9845 = vpack.c.b16 %v9821, %v9820
        %v9846 = vpack.c.b16 %v9823, %v9822
        %v9847 = vpack.c.b16 %v9825, %v9824
        %v9848 = vpack.c.b16 %v9827, %v9826
        %v9849 = vpack.c.b16 %v9829, %v9828
        %v9850 = vpack.c.b16 %v9831, %v9830
        %v9851 = vpack.c.b16 %v9833, %v9832
        %v9852 = vpack.c.b16 %v9835, %v9834
        %v9853 = vpack.c.b16 %v9837, %v9836
        %v9886 = vunpack.c.l.b16 %v9790
        %v9887 = vunpack.c.l.b16 %v9791
        %v9888 = vunpack.c.l.b16 %v9792
        %v9889 = vunpack.c.l.b16 %v9793
        %v9890 = vunpack.c.l.b16 %v9794
        %v9891 = vunpack.c.l.b16 %v9795
        %v9892 = vunpack.c.l.b16 %v9796
        %v9893 = vunpack.c.l.b16 %v9797
        %v9894 = vunpack.c.l.b16 %v9798
        %v9895 = vunpack.c.l.b16 %v9799
        %v9896 = vunpack.c.l.b16 %v9800
        %v9897 = vunpack.c.l.b16 %v9801
        %v9898 = vunpack.c.l.b16 %v9802
        %v9899 = vunpack.c.l.b16 %v9803
        %v9900 = vunpack.c.l.b16 %v9804
        %v9901 = vunpack.c.l.b16 %v9805
        %v9902 = vpack.c.b16 %v9887, %v9886
        %v9903 = vpack.c.b16 %v9889, %v9888
        %v9904 = vpack.c.b16 %v9891, %v9890
        %v9905 = vpack.c.b16 %v9893, %v9892
        %v9906 = vpack.c.b16 %v9895, %v9894
        %v9907 = vpack.c.b16 %v9897, %v9896
        %v9908 = vpack.c.b16 %v9899, %v9898
        %v9909 = vpack.c.b16 %v9901, %v9900
        %9918 = vmatprep.subr.bf16.mxu0 0
        %9919 = vmatpush1.bf16.msra.mxu0 %v9902
        %9920 = vmatprep.subr.bf16.mxu0 0
        %9921 = vmatpush1.bf16.msra.mxu0 %v9903
        %9922 = vmatprep.subr.bf16.mxu0 0
        %9923 = vmatpush1.bf16.msra.mxu0 %v9904
        %9924 = vmatprep.subr.bf16.mxu0 0
        %9925 = vmatpush1.bf16.msra.mxu0 %v9905
        %9926 = vmatprep.subr.bf16.mxu0 0
        %9927 = vmatpush1.bf16.msra.mxu0 %v9906
        %9928 = vmatprep.subr.bf16.mxu0 0
        %9929 = vmatpush1.bf16.msra.mxu0 %v9907
        %9930 = vmatprep.subr.bf16.mxu0 0
        %9931 = vmatpush1.bf16.msra.mxu0 %v9908
        %9932 = vmatprep.subr.bf16.mxu0 0
        %9933 = vmatpush1.bf16.msra.mxu0 %v9909
        %9934 = vmatprep.subr.bf16.mxu0 0
        %9935 = vmatpush1.bf16.msra.mxu0 0
        %9936 = vmatprep.subr.bf16.mxu0 0
        %9937 = vmatpush1.bf16.msra.mxu0 0
        %9938 = vmatprep.subr.bf16.mxu0 0
        %9939 = vmatpush1.bf16.msra.mxu0 0
        %9940 = vmatprep.subr.bf16.mxu0 0
        %9941 = vmatpush1.bf16.msra.mxu0 0
        %9942 = vmatprep.subr.bf16.mxu0 0
        %9943 = vmatpush1.bf16.msra.mxu0 0
        %9944 = vmatprep.subr.bf16.mxu0 0
        %9945 = vmatpush1.bf16.msra.mxu0 0
        %9946 = vmatprep.subr.bf16.mxu0 0
        %9947 = vmatpush1.bf16.msra.mxu0 0
        %9948 = vmatprep.subr.bf16.mxu0 0
        %9949 = vmatpush1.bf16.msra.mxu0 0
        %9950 = vmatprep.mubr.bf16.mxu0 0
        %9951 = vmatmul.mubr.bf16.gmra.mrb[0].mxu0 %v9838
        %v9952 = vpop.f32.mrb[0].mxu0
        %v9953 = vadd.f32 0.0, %v9952
        %v9954 = vpop.f32.mrb[0].mxu0
        %v9955 = vpop.f32.mrb[0].mxu0
        %v9956 = vadd.f32 0.0, %v9955
        %v9957 = vpop.f32.mrb[0].mxu0
        %9958 = vmatprep.mubr.bf16.mxu0 0
        %9959 = vmatmul.mubr.bf16.gmra.mrb[0].mxu0 %v9839
        %v9960 = vpop.f32.mrb[0].mxu0
        %v9961 = vadd.f32 0.0, %v9960
        %v9962 = vpop.f32.mrb[0].mxu0
        %v9963 = vpop.f32.mrb[0].mxu0
        %v9964 = vadd.f32 0.0, %v9963
        %v9965 = vpop.f32.mrb[0].mxu0
        %9966 = vmatprep.mubr.bf16.mxu0 0
        %9967 = vmatmul.mubr.bf16.gmra.mrb[0].mxu0 %v9840
        %v9968 = vpop.f32.mrb[0].mxu0
        %v9969 = vadd.f32 0.0, %v9968
        %v9970 = vpop.f32.mrb[0].mxu0
        %v9971 = vpop.f32.mrb[0].mxu0
        %v9972 = vadd.f32 0.0, %v9971
        %v9973 = vpop.f32.mrb[0].mxu0
        %9974 = vmatprep.mubr.bf16.mxu0 0
        %9975 = vmatmul.mubr.bf16.gmra.mrb[0].mxu0 %v9841
        %v9976 = vpop.f32.mrb[0].mxu0
        %v9977 = vadd.f32 0.0, %v9976
        %v9978 = vpop.f32.mrb[0].mxu0
        %v9979 = vpop.f32.mrb[0].mxu0
        %v9980 = vadd.f32 0.0, %v9979
        %v9981 = vpop.f32.mrb[0].mxu0
        %9982 = vmatprep.mubr.bf16.mxu0 0
        %9983 = vmatmul.mubr.bf16.gmra.mrb[0].mxu0 %v9842
        %v9984 = vpop.f32.mrb[0].mxu0
        %v9985 = vadd.f32 0.0, %v9984
        %v9986 = vpop.f32.mrb[0].mxu0
        %v9987 = vpop.f32.mrb[0].mxu0
        %v9988 = vadd.f32 0.0, %v9987
        %v9989 = vpop.f32.mrb[0].mxu0
        %9990 = vmatprep.mubr.bf16.mxu0 0
        %9991 = vmatmul.mubr.bf16.gmra.mrb[0].mxu0 %v9843
        %v9992 = vpop.f32.mrb[0].mxu0
        %v9993 = vadd.f32 0.0, %v9992
        %v9994 = vpop.f32.mrb[0].mxu0
        %v9995 = vpop.f32.mrb[0].mxu0
        %v9996 = vadd.f32 0.0, %v9995
        %v9997 = vpop.f32.mrb[0].mxu0
        %9998 = vmatprep.mubr.bf16.mxu0 0
        %9999 = vmatmul.mubr.bf16.gmra.mrb[0].mxu0 %v9844
        %v10000 = vpop.f32.mrb[0].mxu0
        %v10001 = vadd.f32 0.0, %v10000
        %v10002 = vpop.f32.mrb[0].mxu0
        %v10003 = vpop.f32.mrb[0].mxu0
        %v10004 = vadd.f32 0.0, %v10003
        %v10005 = vpop.f32.mrb[0].mxu0
        %10006 = vmatprep.mubr.bf16.mxu0 0
        %10007 = vmatmul.mubr.bf16.gmra.mrb[0].mxu0 %v9845
        %v10008 = vpop.f32.mrb[0].mxu0
        %v10009 = vadd.f32 0.0, %v10008
        %v10010 = vpop.f32.mrb[0].mxu0
        %v10011 = vpop.f32.mrb[0].mxu0
        %v10012 = vadd.f32 0.0, %v10011
        %v10013 = vpop.f32.mrb[0].mxu0
        %10014 = vmatprep.mubr.bf16.mxu0 0
        %10015 = vmatmul.mubr.bf16.gmra.mrb[0].mxu0 %v9846
        %v10016 = vpop.f32.mrb[0].mxu0
        %v10017 = vadd.f32 0.0, %v10016
        %v10018 = vpop.f32.mrb[0].mxu0
        %v10019 = vpop.f32.mrb[0].mxu0
        %v10020 = vadd.f32 0.0, %v10019
        %v10021 = vpop.f32.mrb[0].mxu0
        %10022 = vmatprep.mubr.bf16.mxu0 0
        %10023 = vmatmul.mubr.bf16.gmra.mrb[0].mxu0 %v9847
        %v10024 = vpop.f32.mrb[0].mxu0
        %v10025 = vadd.f32 0.0, %v10024
        %v10026 = vpop.f32.mrb[0].mxu0
        %v10027 = vpop.f32.mrb[0].mxu0
        %v10028 = vadd.f32 0.0, %v10027
        %v10029 = vpop.f32.mrb[0].mxu0
        %10030 = vmatprep.mubr.bf16.mxu0 0
        %10031 = vmatmul.mubr.bf16.gmra.mrb[0].mxu0 %v9848
        %v10032 = vpop.f32.mrb[0].mxu0
        %v10033 = vadd.f32 0.0, %v10032
        %v10034 = vpop.f32.mrb[0].mxu0
        %v10035 = vpop.f32.mrb[0].mxu0
        %v10036 = vadd.f32 0.0, %v10035
        %v10037 = vpop.f32.mrb[0].mxu0
        %10038 = vmatprep.mubr.bf16.mxu0 0
        %10039 = vmatmul.mubr.bf16.gmra.mrb[0].mxu0 %v9849
        %v10040 = vpop.f32.mrb[0].mxu0
        %v10041 = vadd.f32 0.0, %v10040
        %v10042 = vpop.f32.mrb[0].mxu0
        %v10043 = vpop.f32.mrb[0].mxu0
        %v10044 = vadd.f32 0.0, %v10043
        %v10045 = vpop.f32.mrb[0].mxu0
        %10046 = vmatprep.mubr.bf16.mxu0 0
        %10047 = vmatmul.mubr.bf16.gmra.mrb[0].mxu0 %v9850
        %v10048 = vpop.f32.mrb[0].mxu0
        %v10049 = vadd.f32 0.0, %v10048
        %v10050 = vpop.f32.mrb[0].mxu0
        %v10051 = vpop.f32.mrb[0].mxu0
        %v10052 = vadd.f32 0.0, %v10051
        %v10053 = vpop.f32.mrb[0].mxu0
        %10054 = vmatprep.mubr.bf16.mxu0 0
        %10055 = vmatmul.mubr.bf16.gmra.mrb[0].mxu0 %v9851
        %v10056 = vpop.f32.mrb[0].mxu0
        %v10057 = vadd.f32 0.0, %v10056
        %v10058 = vpop.f32.mrb[0].mxu0
        %v10059 = vpop.f32.mrb[0].mxu0
        %v10060 = vadd.f32 0.0, %v10059
        %v10061 = vpop.f32.mrb[0].mxu0
        %10062 = vmatprep.mubr.bf16.mxu0 0
        %10063 = vmatmul.mubr.bf16.gmra.mrb[0].mxu0 %v9852
        %v10064 = vpop.f32.mrb[0].mxu0
        %v10065 = vadd.f32 0.0, %v10064
        %v10066 = vpop.f32.mrb[0].mxu0
        %v10067 = vpop.f32.mrb[0].mxu0
        %v10068 = vadd.f32 0.0, %v10067
        %v10069 = vpop.f32.mrb[0].mxu0
        %10070 = vmatprep.mubr.bf16.mxu0 0
        %10071 = vmatmul.mubr.bf16.gmra.mrb[0].mxu0 %v9853
        %v10072 = vpop.f32.mrb[0].mxu0
        %v10073 = vadd.f32 0.0, %v10072
        %v10074 = vpop.f32.mrb[0].mxu0
        %v10075 = vpop.f32.mrb[0].mxu0
        %v10076 = vadd.f32 0.0, %v10075
        %v10077 = vpop.f32.mrb[0].mxu0
        %10078 = vdwg.mxu0
        %v10079 = vadd.f32 %v9325, %v9953
        %v10080 = vadd.f32 %v9326, %v9956
        %v10081 = vadd.f32 %v9327, %v9961
        %v10082 = vadd.f32 %v9328, %v9964
        %v10083 = vadd.f32 %v9329, %v9969
        %v10084 = vadd.f32 %v9330, %v9972
        %v10085 = vadd.f32 %v9331, %v9977
        %v10086 = vadd.f32 %v9332, %v9980
        %v10087 = vadd.f32 %v9333, %v9985
        %v10088 = vadd.f32 %v9334, %v9988
        %v10089 = vadd.f32 %v9335, %v9993
        %v10090 = vadd.f32 %v9336, %v9996
        %v10091 = vadd.f32 %v9337, %v10001
        %v10092 = vadd.f32 %v9338, %v10004
        %v10093 = vadd.f32 %v9339, %v10009
        %v10094 = vadd.f32 %v9340, %v10012
        %v10095 = vadd.f32 %v9341, %v10017
        %v10096 = vadd.f32 %v9342, %v10020
        %v10097 = vadd.f32 %v9343, %v10025
        %v10098 = vadd.f32 %v9344, %v10028
        %v10099 = vadd.f32 %v9345, %v10033
        %v10100 = vadd.f32 %v9346, %v10036
        %v10101 = vadd.f32 %v9347, %v10041
        %v10102 = vadd.f32 %v9348, %v10044
        %v10103 = vadd.f32 %v9349, %v10049
        %v10104 = vadd.f32 %v9350, %v10052
        %v10105 = vadd.f32 %v9351, %v10057
        %v10106 = vadd.f32 %v9352, %v10060
        %v10107 = vadd.f32 %v9353, %v10065
        %v10108 = vadd.f32 %v9354, %v10068
        %v10109 = vadd.f32 %v9355, %v10073
        %v10110 = vadd.f32 %v9356, %v10076
        %v10111 = vld [vmem:[%s8970] sm:$0xe]
        %v10112 = vld [vmem:[%s8970 + $0xc] sm:$0xe]
        %v10113 = vld [vmem:[%s8970 + $0x18] sm:$0xe]
        %v10114 = vld [vmem:[%s8970 + $0x24] sm:$0xe]
        %v10115 = vld [vmem:[%s8970 + $0x30] sm:$0xe]
        %v10116 = vld [vmem:[%s8970 + $0x3c] sm:$0xe]
        %v10117 = vld [vmem:[%s8970 + $0x48] sm:$0xe]
        %v10118 = vld [vmem:[%s8970 + $0x54] sm:$0xe]
        %v10119 = vld [vmem:[%s8970 + $0x60] sm:$0xe]
        %v10120 = vld [vmem:[%s8970 + $0x6c] sm:$0xe]
        %v10121 = vld [vmem:[%s8970 + $0x78] sm:$0xe]
        %v10122 = vld [vmem:[%s8970 + $0x84] sm:$0xe]
        %v10123 = vld [vmem:[%s8970 + $0x90] sm:$0xe]
        %v10124 = vld [vmem:[%s8970 + $0x9c] sm:$0xe]
        %v10125 = vld [vmem:[%s8970 + $0xa8] sm:$0xe]
        %v10126 = vld [vmem:[%s8970 + $0xb4] sm:$0xe]
        %v10175 = vrot.slane %v10111, 5
        %v10176 = vrot.slane %v10175, 4
        %v10177 = vrot.slane %v9358, 5
        %v10178 = vsel %vm1447, %v10176, %v10177
        %v10179 = vrot.slane %v10177, 4
        %v10180 = vrot.slane %v9359, 5
        %v10181 = vsel %vm1447, %v10179, %v10180
        %v10182 = vrot.slane %v10112, 5
        %v10183 = vrot.slane %v10182, 4
        %v10184 = vrot.slane %v9361, 5
        %v10185 = vsel %vm1447, %v10183, %v10184
        %v10186 = vrot.slane %v10184, 4
        %v10187 = vrot.slane %v9362, 5
        %v10188 = vsel %vm1447, %v10186, %v10187
        %v10189 = vrot.slane %v10113, 5
        %v10190 = vrot.slane %v10189, 4
        %v10191 = vrot.slane %v9364, 5
        %v10192 = vsel %vm1447, %v10190, %v10191
        %v10193 = vrot.slane %v10191, 4
        %v10194 = vrot.slane %v9365, 5
        %v10195 = vsel %vm1447, %v10193, %v10194
        %v10196 = vrot.slane %v10114, 5
        %v10197 = vrot.slane %v10196, 4
        %v10198 = vrot.slane %v9367, 5
        %v10199 = vsel %vm1447, %v10197, %v10198
        %v10200 = vrot.slane %v10198, 4
        %v10201 = vrot.slane %v9368, 5
        %v10202 = vsel %vm1447, %v10200, %v10201
        %v10203 = vrot.slane %v10115, 5
        %v10204 = vrot.slane %v10203, 4
        %v10205 = vrot.slane %v9370, 5
        %v10206 = vsel %vm1447, %v10204, %v10205
        %v10207 = vrot.slane %v10205, 4
        %v10208 = vrot.slane %v9371, 5
        %v10209 = vsel %vm1447, %v10207, %v10208
        %v10210 = vrot.slane %v10116, 5
        %v10211 = vrot.slane %v10210, 4
        %v10212 = vrot.slane %v9373, 5
        %v10213 = vsel %vm1447, %v10211, %v10212
        %v10214 = vrot.slane %v10212, 4
        %v10215 = vrot.slane %v9374, 5
        %v10216 = vsel %vm1447, %v10214, %v10215
        %v10217 = vrot.slane %v10117, 5
        %v10218 = vrot.slane %v10217, 4
        %v10219 = vrot.slane %v9376, 5
        %v10220 = vsel %vm1447, %v10218, %v10219
        %v10221 = vrot.slane %v10219, 4
        %v10222 = vrot.slane %v9377, 5
        %v10223 = vsel %vm1447, %v10221, %v10222
        %v10224 = vrot.slane %v10118, 5
        %v10225 = vrot.slane %v10224, 4
        %v10226 = vrot.slane %v9379, 5
        %v10227 = vsel %vm1447, %v10225, %v10226
        %v10228 = vrot.slane %v10226, 4
        %v10229 = vrot.slane %v9380, 5
        %v10230 = vsel %vm1447, %v10228, %v10229
        %v10231 = vrot.slane %v10119, 5
        %v10232 = vrot.slane %v10231, 4
        %v10233 = vrot.slane %v9382, 5
        %v10234 = vsel %vm1447, %v10232, %v10233
        %v10235 = vrot.slane %v10233, 4
        %v10236 = vrot.slane %v9383, 5
        %v10237 = vsel %vm1447, %v10235, %v10236
        %v10238 = vrot.slane %v10120, 5
        %v10239 = vrot.slane %v10238, 4
        %v10240 = vrot.slane %v9385, 5
        %v10241 = vsel %vm1447, %v10239, %v10240
        %v10242 = vrot.slane %v10240, 4
        %v10243 = vrot.slane %v9386, 5
        %v10244 = vsel %vm1447, %v10242, %v10243
        %v10245 = vrot.slane %v10121, 5
        %v10246 = vrot.slane %v10245, 4
        %v10247 = vrot.slane %v9388, 5
        %v10248 = vsel %vm1447, %v10246, %v10247
        %v10249 = vrot.slane %v10247, 4
        %v10250 = vrot.slane %v9389, 5
        %v10251 = vsel %vm1447, %v10249, %v10250
        %v10252 = vrot.slane %v10122, 5
        %v10253 = vrot.slane %v10252, 4
        %v10254 = vrot.slane %v9391, 5
        %v10255 = vsel %vm1447, %v10253, %v10254
        %v10256 = vrot.slane %v10254, 4
        %v10257 = vrot.slane %v9392, 5
        %v10258 = vsel %vm1447, %v10256, %v10257
        %v10259 = vrot.slane %v10123, 5
        %v10260 = vrot.slane %v10259, 4
        %v10261 = vrot.slane %v9394, 5
        %v10262 = vsel %vm1447, %v10260, %v10261
        %v10263 = vrot.slane %v10261, 4
        %v10264 = vrot.slane %v9395, 5
        %v10265 = vsel %vm1447, %v10263, %v10264
        %v10266 = vrot.slane %v10124, 5
        %v10267 = vrot.slane %v10266, 4
        %v10268 = vrot.slane %v9397, 5
        %v10269 = vsel %vm1447, %v10267, %v10268
        %v10270 = vrot.slane %v10268, 4
        %v10271 = vrot.slane %v9398, 5
        %v10272 = vsel %vm1447, %v10270, %v10271
        %v10273 = vrot.slane %v10125, 5
        %v10274 = vrot.slane %v10273, 4
        %v10275 = vrot.slane %v9400, 5
        %v10276 = vsel %vm1447, %v10274, %v10275
        %v10277 = vrot.slane %v10275, 4
        %v10278 = vrot.slane %v9401, 5
        %v10279 = vsel %vm1447, %v10277, %v10278
        %v10280 = vrot.slane %v10126, 5
        %v10281 = vrot.slane %v10280, 4
        %v10282 = vrot.slane %v9403, 5
        %v10283 = vsel %vm1447, %v10281, %v10282
        %v10284 = vrot.slane %v10282, 4
        %v10285 = vrot.slane %v9404, 5
        %v10286 = vsel %vm1447, %v10284, %v10285
        %s10287 = scalar_lea.vmem [#allocation3], 512
        %v10288 = vld [vmem:[%s10287] sm:$0xf]
        %v10289 = vld [vmem:[%s10287 + $0x4] sm:$0xf]
        %v10290 = vld [vmem:[%s10287 + $0x8] sm:$0xf]
        %v10291 = vld [vmem:[%s10287 + $0xc] sm:$0xf]
        %v10292 = vld [vmem:[%s10287 + $0x10] sm:$0xf]
        %v10293 = vld [vmem:[%s10287 + $0x14] sm:$0xf]
        %v10294 = vld [vmem:[%s10287 + $0x18] sm:$0xf]
        %v10295 = vld [vmem:[%s10287 + $0x1c] sm:$0xf]
        %v10296 = vld [vmem:[%s10287 + $0x20] sm:$0xf]
        %v10297 = vld [vmem:[%s10287 + $0x24] sm:$0xf]
        %v10298 = vld [vmem:[%s10287 + $0x28] sm:$0xf]
        %v10299 = vld [vmem:[%s10287 + $0x2c] sm:$0xf]
        %v10300 = vld [vmem:[%s10287 + $0x30] sm:$0xf]
        %v10301 = vld [vmem:[%s10287 + $0x34] sm:$0xf]
        %v10302 = vld [vmem:[%s10287 + $0x38] sm:$0xf]
        %v10303 = vld [vmem:[%s10287 + $0x3c] sm:$0xf]
        %v10304 = vunpack.c.l.b16 %v10178
        %v10305 = vunpack.c.l.b16 %v10181
        %v10306 = vunpack.c.l.b16 %v10185
        %v10307 = vunpack.c.l.b16 %v10188
        %v10308 = vunpack.c.l.b16 %v10192
        %v10309 = vunpack.c.l.b16 %v10195
        %v10310 = vunpack.c.l.b16 %v10199
        %v10311 = vunpack.c.l.b16 %v10202
        %v10312 = vunpack.c.l.b16 %v10206
        %v10313 = vunpack.c.l.b16 %v10209
        %v10314 = vunpack.c.l.b16 %v10213
        %v10315 = vunpack.c.l.b16 %v10216
        %v10316 = vunpack.c.l.b16 %v10220
        %v10317 = vunpack.c.l.b16 %v10223
        %v10318 = vunpack.c.l.b16 %v10227
        %v10319 = vunpack.c.l.b16 %v10230
        %v10320 = vunpack.c.l.b16 %v10234
        %v10321 = vunpack.c.l.b16 %v10237
        %v10322 = vunpack.c.l.b16 %v10241
        %v10323 = vunpack.c.l.b16 %v10244
        %v10324 = vunpack.c.l.b16 %v10248
        %v10325 = vunpack.c.l.b16 %v10251
        %v10326 = vunpack.c.l.b16 %v10255
        %v10327 = vunpack.c.l.b16 %v10258
        %v10328 = vunpack.c.l.b16 %v10262
        %v10329 = vunpack.c.l.b16 %v10265
        %v10330 = vunpack.c.l.b16 %v10269
        %v10331 = vunpack.c.l.b16 %v10272
        %v10332 = vunpack.c.l.b16 %v10276
        %v10333 = vunpack.c.l.b16 %v10279
        %v10334 = vunpack.c.l.b16 %v10283
        %v10335 = vunpack.c.l.b16 %v10286
        %v10336 = vpack.c.b16 %v10305, %v10304
        %v10337 = vpack.c.b16 %v10307, %v10306
        %v10338 = vpack.c.b16 %v10309, %v10308
        %v10339 = vpack.c.b16 %v10311, %v10310
        %v10340 = vpack.c.b16 %v10313, %v10312
        %v10341 = vpack.c.b16 %v10315, %v10314
        %v10342 = vpack.c.b16 %v10317, %v10316
        %v10343 = vpack.c.b16 %v10319, %v10318
        %v10344 = vpack.c.b16 %v10321, %v10320
        %v10345 = vpack.c.b16 %v10323, %v10322
        %v10346 = vpack.c.b16 %v10325, %v10324
        %v10347 = vpack.c.b16 %v10327, %v10326
        %v10348 = vpack.c.b16 %v10329, %v10328
        %v10349 = vpack.c.b16 %v10331, %v10330
        %v10350 = vpack.c.b16 %v10333, %v10332
        %v10351 = vpack.c.b16 %v10335, %v10334
        %v10384 = vunpack.c.l.b16 %v10288
        %v10385 = vunpack.c.l.b16 %v10289
        %v10386 = vunpack.c.l.b16 %v10290
        %v10387 = vunpack.c.l.b16 %v10291
        %v10388 = vunpack.c.l.b16 %v10292
        %v10389 = vunpack.c.l.b16 %v10293
        %v10390 = vunpack.c.l.b16 %v10294
        %v10391 = vunpack.c.l.b16 %v10295
        %v10392 = vunpack.c.l.b16 %v10296
        %v10393 = vunpack.c.l.b16 %v10297
        %v10394 = vunpack.c.l.b16 %v10298
        %v10395 = vunpack.c.l.b16 %v10299
        %v10396 = vunpack.c.l.b16 %v10300
        %v10397 = vunpack.c.l.b16 %v10301
        %v10398 = vunpack.c.l.b16 %v10302
        %v10399 = vunpack.c.l.b16 %v10303
        %v10400 = vpack.c.b16 %v10385, %v10384
        %v10401 = vpack.c.b16 %v10387, %v10386
        %v10402 = vpack.c.b16 %v10389, %v10388
        %v10403 = vpack.c.b16 %v10391, %v10390
        %v10404 = vpack.c.b16 %v10393, %v10392
        %v10405 = vpack.c.b16 %v10395, %v10394
        %v10406 = vpack.c.b16 %v10397, %v10396
        %v10407 = vpack.c.b16 %v10399, %v10398
        %10416 = vmatprep.subr.bf16.mxu0 0
        %10417 = vmatpush1.bf16.msra.mxu0 %v10400
        %10418 = vmatprep.subr.bf16.mxu0 0
        %10419 = vmatpush1.bf16.msra.mxu0 %v10401
        %10420 = vmatprep.subr.bf16.mxu0 0
        %10421 = vmatpush1.bf16.msra.mxu0 %v10402
        %10422 = vmatprep.subr.bf16.mxu0 0
        %10423 = vmatpush1.bf16.msra.mxu0 %v10403
        %10424 = vmatprep.subr.bf16.mxu0 0
        %10425 = vmatpush1.bf16.msra.mxu0 %v10404
        %10426 = vmatprep.subr.bf16.mxu0 0
        %10427 = vmatpush1.bf16.msra.mxu0 %v10405
        %10428 = vmatprep.subr.bf16.mxu0 0
        %10429 = vmatpush1.bf16.msra.mxu0 %v10406
        %10430 = vmatprep.subr.bf16.mxu0 0
        %10431 = vmatpush1.bf16.msra.mxu0 %v10407
        %10432 = vmatprep.subr.bf16.mxu0 0
        %10433 = vmatpush1.bf16.msra.mxu0 0
        %10434 = vmatprep.subr.bf16.mxu0 0
        %10435 = vmatpush1.bf16.msra.mxu0 0
        %10436 = vmatprep.subr.bf16.mxu0 0
        %10437 = vmatpush1.bf16.msra.mxu0 0
        %10438 = vmatprep.subr.bf16.mxu0 0
        %10439 = vmatpush1.bf16.msra.mxu0 0
        %10440 = vmatprep.subr.bf16.mxu0 0
        %10441 = vmatpush1.bf16.msra.mxu0 0
        %10442 = vmatprep.subr.bf16.mxu0 0
        %10443 = vmatpush1.bf16.msra.mxu0 0
        %10444 = vmatprep.subr.bf16.mxu0 0
        %10445 = vmatpush1.bf16.msra.mxu0 0
        %10446 = vmatprep.subr.bf16.mxu0 0
        %10447 = vmatpush1.bf16.msra.mxu0 0
        %10448 = vmatprep.mubr.bf16.mxu0 0
        %10449 = vmatmul.mubr.bf16.gmra.mrb[0].mxu0 %v10336
        %v10450 = vpop.f32.mrb[0].mxu0
        %v10451 = vadd.f32 0.0, %v10450
        %v10452 = vpop.f32.mrb[0].mxu0
        %v10453 = vpop.f32.mrb[0].mxu0
        %v10454 = vadd.f32 0.0, %v10453
        %v10455 = vpop.f32.mrb[0].mxu0
        %10456 = vmatprep.mubr.bf16.mxu0 0
        %10457 = vmatmul.mubr.bf16.gmra.mrb[0].mxu0 %v10337
        %v10458 = vpop.f32.mrb[0].mxu0
        %v10459 = vadd.f32 0.0, %v10458
        %v10460 = vpop.f32.mrb[0].mxu0
        %v10461 = vpop.f32.mrb[0].mxu0
        %v10462 = vadd.f32 0.0, %v10461
        %v10463 = vpop.f32.mrb[0].mxu0
        %10464 = vmatprep.mubr.bf16.mxu0 0
        %10465 = vmatmul.mubr.bf16.gmra.mrb[0].mxu0 %v10338
        %v10466 = vpop.f32.mrb[0].mxu0
        %v10467 = vadd.f32 0.0, %v10466
        %v10468 = vpop.f32.mrb[0].mxu0
        %v10469 = vpop.f32.mrb[0].mxu0
        %v10470 = vadd.f32 0.0, %v10469
        %v10471 = vpop.f32.mrb[0].mxu0
        %10472 = vmatprep.mubr.bf16.mxu0 0
        %10473 = vmatmul.mubr.bf16.gmra.mrb[0].mxu0 %v10339
        %v10474 = vpop.f32.mrb[0].mxu0
        %v10475 = vadd.f32 0.0, %v10474
        %v10476 = vpop.f32.mrb[0].mxu0
        %v10477 = vpop.f32.mrb[0].mxu0
        %v10478 = vadd.f32 0.0, %v10477
        %v10479 = vpop.f32.mrb[0].mxu0
        %10480 = vmatprep.mubr.bf16.mxu0 0
        %10481 = vmatmul.mubr.bf16.gmra.mrb[0].mxu0 %v10340
        %v10482 = vpop.f32.mrb[0].mxu0
        %v10483 = vadd.f32 0.0, %v10482
        %v10484 = vpop.f32.mrb[0].mxu0
        %v10485 = vpop.f32.mrb[0].mxu0
        %v10486 = vadd.f32 0.0, %v10485
        %v10487 = vpop.f32.mrb[0].mxu0
        %10488 = vmatprep.mubr.bf16.mxu0 0
        %10489 = vmatmul.mubr.bf16.gmra.mrb[0].mxu0 %v10341
        %v10490 = vpop.f32.mrb[0].mxu0
        %v10491 = vadd.f32 0.0, %v10490
        %v10492 = vpop.f32.mrb[0].mxu0
        %v10493 = vpop.f32.mrb[0].mxu0
        %v10494 = vadd.f32 0.0, %v10493
        %v10495 = vpop.f32.mrb[0].mxu0
        %10496 = vmatprep.mubr.bf16.mxu0 0
        %10497 = vmatmul.mubr.bf16.gmra.mrb[0].mxu0 %v10342
        %v10498 = vpop.f32.mrb[0].mxu0
        %v10499 = vadd.f32 0.0, %v10498
        %v10500 = vpop.f32.mrb[0].mxu0
        %v10501 = vpop.f32.mrb[0].mxu0
        %v10502 = vadd.f32 0.0, %v10501
        %v10503 = vpop.f32.mrb[0].mxu0
        %10504 = vmatprep.mubr.bf16.mxu0 0
        %10505 = vmatmul.mubr.bf16.gmra.mrb[0].mxu0 %v10343
        %v10506 = vpop.f32.mrb[0].mxu0
        %v10507 = vadd.f32 0.0, %v10506
        %v10508 = vpop.f32.mrb[0].mxu0
        %v10509 = vpop.f32.mrb[0].mxu0
        %v10510 = vadd.f32 0.0, %v10509
        %v10511 = vpop.f32.mrb[0].mxu0
        %10512 = vmatprep.mubr.bf16.mxu0 0
        %10513 = vmatmul.mubr.bf16.gmra.mrb[0].mxu0 %v10344
        %v10514 = vpop.f32.mrb[0].mxu0
        %v10515 = vadd.f32 0.0, %v10514
        %v10516 = vpop.f32.mrb[0].mxu0
        %v10517 = vpop.f32.mrb[0].mxu0
        %v10518 = vadd.f32 0.0, %v10517
        %v10519 = vpop.f32.mrb[0].mxu0
        %10520 = vmatprep.mubr.bf16.mxu0 0
        %10521 = vmatmul.mubr.bf16.gmra.mrb[0].mxu0 %v10345
        %v10522 = vpop.f32.mrb[0].mxu0
        %v10523 = vadd.f32 0.0, %v10522
        %v10524 = vpop.f32.mrb[0].mxu0
        %v10525 = vpop.f32.mrb[0].mxu0
        %v10526 = vadd.f32 0.0, %v10525
        %v10527 = vpop.f32.mrb[0].mxu0
        %10528 = vmatprep.mubr.bf16.mxu0 0
        %10529 = vmatmul.mubr.bf16.gmra.mrb[0].mxu0 %v10346
        %v10530 = vpop.f32.mrb[0].mxu0
        %v10531 = vadd.f32 0.0, %v10530
        %v10532 = vpop.f32.mrb[0].mxu0
        %v10533 = vpop.f32.mrb[0].mxu0
        %v10534 = vadd.f32 0.0, %v10533
        %v10535 = vpop.f32.mrb[0].mxu0
        %10536 = vmatprep.mubr.bf16.mxu0 0
        %10537 = vmatmul.mubr.bf16.gmra.mrb[0].mxu0 %v10347
        %v10538 = vpop.f32.mrb[0].mxu0
        %v10539 = vadd.f32 0.0, %v10538
        %v10540 = vpop.f32.mrb[0].mxu0
        %v10541 = vpop.f32.mrb[0].mxu0
        %v10542 = vadd.f32 0.0, %v10541
        %v10543 = vpop.f32.mrb[0].mxu0
        %10544 = vmatprep.mubr.bf16.mxu0 0
        %10545 = vmatmul.mubr.bf16.gmra.mrb[0].mxu0 %v10348
        %v10546 = vpop.f32.mrb[0].mxu0
        %v10547 = vadd.f32 0.0, %v10546
        %v10548 = vpop.f32.mrb[0].mxu0
        %v10549 = vpop.f32.mrb[0].mxu0
        %v10550 = vadd.f32 0.0, %v10549
        %v10551 = vpop.f32.mrb[0].mxu0
        %10552 = vmatprep.mubr.bf16.mxu0 0
        %10553 = vmatmul.mubr.bf16.gmra.mrb[0].mxu0 %v10349
        %v10554 = vpop.f32.mrb[0].mxu0
        %v10555 = vadd.f32 0.0, %v10554
        %v10556 = vpop.f32.mrb[0].mxu0
        %v10557 = vpop.f32.mrb[0].mxu0
        %v10558 = vadd.f32 0.0, %v10557
        %v10559 = vpop.f32.mrb[0].mxu0
        %10560 = vmatprep.mubr.bf16.mxu0 0
        %10561 = vmatmul.mubr.bf16.gmra.mrb[0].mxu0 %v10350
        %v10562 = vpop.f32.mrb[0].mxu0
        %v10563 = vadd.f32 0.0, %v10562
        %v10564 = vpop.f32.mrb[0].mxu0
        %v10565 = vpop.f32.mrb[0].mxu0
        %v10566 = vadd.f32 0.0, %v10565
        %v10567 = vpop.f32.mrb[0].mxu0
        %10568 = vmatprep.mubr.bf16.mxu0 0
        %10569 = vmatmul.mubr.bf16.gmra.mrb[0].mxu0 %v10351
        %v10570 = vpop.f32.mrb[0].mxu0
        %v10571 = vadd.f32 0.0, %v10570
        %v10572 = vpop.f32.mrb[0].mxu0
        %v10573 = vpop.f32.mrb[0].mxu0
        %v10574 = vadd.f32 0.0, %v10573
        %v10575 = vpop.f32.mrb[0].mxu0
        %10576 = vdwg.mxu0
        %v10577 = vadd.f32 %v10079, %v10451
        %v10578 = vadd.f32 %v10080, %v10454
        %v10579 = vadd.f32 %v10081, %v10459
        %v10580 = vadd.f32 %v10082, %v10462
        %v10581 = vadd.f32 %v10083, %v10467
        %v10582 = vadd.f32 %v10084, %v10470
        %v10583 = vadd.f32 %v10085, %v10475
        %v10584 = vadd.f32 %v10086, %v10478
        %v10585 = vadd.f32 %v10087, %v10483
        %v10586 = vadd.f32 %v10088, %v10486
        %v10587 = vadd.f32 %v10089, %v10491
        %v10588 = vadd.f32 %v10090, %v10494
        %v10589 = vadd.f32 %v10091, %v10499
        %v10590 = vadd.f32 %v10092, %v10502
        %v10591 = vadd.f32 %v10093, %v10507
        %v10592 = vadd.f32 %v10094, %v10510
        %v10593 = vadd.f32 %v10095, %v10515
        %v10594 = vadd.f32 %v10096, %v10518
        %v10595 = vadd.f32 %v10097, %v10523
        %v10596 = vadd.f32 %v10098, %v10526
        %v10597 = vadd.f32 %v10099, %v10531
        %v10598 = vadd.f32 %v10100, %v10534
        %v10599 = vadd.f32 %v10101, %v10539
        %v10600 = vadd.f32 %v10102, %v10542
        %v10601 = vadd.f32 %v10103, %v10547
        %v10602 = vadd.f32 %v10104, %v10550
        %v10603 = vadd.f32 %v10105, %v10555
        %v10604 = vadd.f32 %v10106, %v10558
        %v10605 = vadd.f32 %v10107, %v10563
        %v10606 = vadd.f32 %v10108, %v10566
        %v10607 = vadd.f32 %v10109, %v10571
        %v10608 = vadd.f32 %v10110, %v10574
        %v10609 = vld [vmem:[%s1882] sm:$0xf]
        %v10610 = vld [vmem:[%s1882 + $0x4] sm:$0xf]
        %v10611 = vld [vmem:[%s1882 + $0x8] sm:$0x1]
        %v10612 = vld [vmem:[%s1882 + $0xc] sm:$0xf]
        %v10613 = vld [vmem:[%s1882 + $0x10] sm:$0xf]
        %v10614 = vld [vmem:[%s1882 + $0x14] sm:$0x1]
        %v10615 = vld [vmem:[%s1882 + $0x18] sm:$0xf]
        %v10616 = vld [vmem:[%s1882 + $0x1c] sm:$0xf]
        %v10617 = vld [vmem:[%s1882 + $0x20] sm:$0x1]
        %v10618 = vld [vmem:[%s1882 + $0x24] sm:$0xf]
        %v10619 = vld [vmem:[%s1882 + $0x28] sm:$0xf]
        %v10620 = vld [vmem:[%s1882 + $0x2c] sm:$0x1]
        %v10621 = vld [vmem:[%s1882 + $0x30] sm:$0xf]
        %v10622 = vld [vmem:[%s1882 + $0x34] sm:$0xf]
        %v10623 = vld [vmem:[%s1882 + $0x38] sm:$0x1]
        %v10624 = vld [vmem:[%s1882 + $0x3c] sm:$0xf]
        %v10625 = vld [vmem:[%s1882 + $0x40] sm:$0xf]
        %v10626 = vld [vmem:[%s1882 + $0x44] sm:$0x1]
        %v10627 = vld [vmem:[%s1882 + $0x48] sm:$0xf]
        %v10628 = vld [vmem:[%s1882 + $0x4c] sm:$0xf]
        %v10629 = vld [vmem:[%s1882 + $0x50] sm:$0x1]
        %v10630 = vld [vmem:[%s1882 + $0x54] sm:$0xf]
        %v10631 = vld [vmem:[%s1882 + $0x58] sm:$0xf]
        %v10632 = vld [vmem:[%s1882 + $0x5c] sm:$0x1]
        %v10633 = vld [vmem:[%s1882 + $0x60] sm:$0xf]
        %v10634 = vld [vmem:[%s1882 + $0x64] sm:$0xf]
        %v10635 = vld [vmem:[%s1882 + $0x68] sm:$0x1]
        %v10636 = vld [vmem:[%s1882 + $0x6c] sm:$0xf]
        %v10637 = vld [vmem:[%s1882 + $0x70] sm:$0xf]
        %v10638 = vld [vmem:[%s1882 + $0x74] sm:$0x1]
        %v10639 = vld [vmem:[%s1882 + $0x78] sm:$0xf]
        %v10640 = vld [vmem:[%s1882 + $0x7c] sm:$0xf]
        %v10641 = vld [vmem:[%s1882 + $0x80] sm:$0x1]
        %v10642 = vld [vmem:[%s1882 + $0x84] sm:$0xf]
        %v10643 = vld [vmem:[%s1882 + $0x88] sm:$0xf]
        %v10644 = vld [vmem:[%s1882 + $0x8c] sm:$0x1]
        %v10645 = vld [vmem:[%s1882 + $0x90] sm:$0xf]
        %v10646 = vld [vmem:[%s1882 + $0x94] sm:$0xf]
        %v10647 = vld [vmem:[%s1882 + $0x98] sm:$0x1]
        %v10648 = vld [vmem:[%s1882 + $0x9c] sm:$0xf]
        %v10649 = vld [vmem:[%s1882 + $0xa0] sm:$0xf]
        %v10650 = vld [vmem:[%s1882 + $0xa4] sm:$0x1]
        %v10651 = vld [vmem:[%s1882 + $0xa8] sm:$0xf]
        %v10652 = vld [vmem:[%s1882 + $0xac] sm:$0xf]
        %v10653 = vld [vmem:[%s1882 + $0xb0] sm:$0x1]
        %v10654 = vld [vmem:[%s1882 + $0xb4] sm:$0xf]
        %v10655 = vld [vmem:[%s1882 + $0xb8] sm:$0xf]
        %v10656 = vld [vmem:[%s1882 + $0xbc] sm:$0x1]
        %v10658 = vshrl.u32 %v10609, 16
        %v10660 = vrot.slane %v10658, 4
        %v10661 = vshll.u32 %v10609, 16
        %v10663 = vrot.slane %v10661, 5
        %v10664 = vor.u32 %v10660, %v10663
        %v10665 = vrot.slane %v10664, 4
        %v10667 = vshll.u32 %v10610, 16
        %v10669 = vrot.slane %v10667, 5
        %v10670 = vsel %vm417, %v10665, %v10669
        %v10671 = vshrl.u32 %v10610, 16
        %v10673 = vrot.slane %v10671, 4
        %v10674 = vor.u32 %v10673, %v10669
        %v10675 = vrot.slane %v10674, 4
        %v10677 = vshll.u32 %v10611, 16
        %v10679 = vrot.slane %v10677, 5
        %v10680 = vsel %vm417, %v10675, %v10679
        %v10682 = vshrl.u32 %v10612, 16
        %v10684 = vrot.slane %v10682, 4
        %v10685 = vshll.u32 %v10612, 16
        %v10687 = vrot.slane %v10685, 5
        %v10688 = vor.u32 %v10684, %v10687
        %v10689 = vrot.slane %v10688, 4
        %v10691 = vshll.u32 %v10613, 16
        %v10693 = vrot.slane %v10691, 5
        %v10694 = vsel %vm417, %v10689, %v10693
        %v10695 = vshrl.u32 %v10613, 16
        %v10697 = vrot.slane %v10695, 4
        %v10698 = vor.u32 %v10697, %v10693
        %v10699 = vrot.slane %v10698, 4
        %v10701 = vshll.u32 %v10614, 16
        %v10703 = vrot.slane %v10701, 5
        %v10704 = vsel %vm417, %v10699, %v10703
        %v10706 = vshrl.u32 %v10615, 16
        %v10708 = vrot.slane %v10706, 4
        %v10709 = vshll.u32 %v10615, 16
        %v10711 = vrot.slane %v10709, 5
        %v10712 = vor.u32 %v10708, %v10711
        %v10713 = vrot.slane %v10712, 4
        %v10715 = vshll.u32 %v10616, 16
        %v10717 = vrot.slane %v10715, 5
        %v10718 = vsel %vm417, %v10713, %v10717
        %v10719 = vshrl.u32 %v10616, 16
        %v10721 = vrot.slane %v10719, 4
        %v10722 = vor.u32 %v10721, %v10717
        %v10723 = vrot.slane %v10722, 4
        %v10725 = vshll.u32 %v10617, 16
        %v10727 = vrot.slane %v10725, 5
        %v10728 = vsel %vm417, %v10723, %v10727
        %v10730 = vshrl.u32 %v10618, 16
        %v10732 = vrot.slane %v10730, 4
        %v10733 = vshll.u32 %v10618, 16
        %v10735 = vrot.slane %v10733, 5
        %v10736 = vor.u32 %v10732, %v10735
        %v10737 = vrot.slane %v10736, 4
        %v10739 = vshll.u32 %v10619, 16
        %v10741 = vrot.slane %v10739, 5
        %v10742 = vsel %vm417, %v10737, %v10741
        %v10743 = vshrl.u32 %v10619, 16
        %v10745 = vrot.slane %v10743, 4
        %v10746 = vor.u32 %v10745, %v10741
        %v10747 = vrot.slane %v10746, 4
        %v10749 = vshll.u32 %v10620, 16
        %v10751 = vrot.slane %v10749, 5
        %v10752 = vsel %vm417, %v10747, %v10751
        %v10754 = vshrl.u32 %v10621, 16
        %v10756 = vrot.slane %v10754, 4
        %v10757 = vshll.u32 %v10621, 16
        %v10759 = vrot.slane %v10757, 5
        %v10760 = vor.u32 %v10756, %v10759
        %v10761 = vrot.slane %v10760, 4
        %v10763 = vshll.u32 %v10622, 16
        %v10765 = vrot.slane %v10763, 5
        %v10766 = vsel %vm417, %v10761, %v10765
        %v10767 = vshrl.u32 %v10622, 16
        %v10769 = vrot.slane %v10767, 4
        %v10770 = vor.u32 %v10769, %v10765
        %v10771 = vrot.slane %v10770, 4
        %v10773 = vshll.u32 %v10623, 16
        %v10775 = vrot.slane %v10773, 5
        %v10776 = vsel %vm417, %v10771, %v10775
        %v10778 = vshrl.u32 %v10624, 16
        %v10780 = vrot.slane %v10778, 4
        %v10781 = vshll.u32 %v10624, 16
        %v10783 = vrot.slane %v10781, 5
        %v10784 = vor.u32 %v10780, %v10783
        %v10785 = vrot.slane %v10784, 4
        %v10787 = vshll.u32 %v10625, 16
        %v10789 = vrot.slane %v10787, 5
        %v10790 = vsel %vm417, %v10785, %v10789
        %v10791 = vshrl.u32 %v10625, 16
        %v10793 = vrot.slane %v10791, 4
        %v10794 = vor.u32 %v10793, %v10789
        %v10795 = vrot.slane %v10794, 4
        %v10797 = vshll.u32 %v10626, 16
        %v10799 = vrot.slane %v10797, 5
        %v10800 = vsel %vm417, %v10795, %v10799
        %v10802 = vshrl.u32 %v10627, 16
        %v10804 = vrot.slane %v10802, 4
        %v10805 = vshll.u32 %v10627, 16
        %v10807 = vrot.slane %v10805, 5
        %v10808 = vor.u32 %v10804, %v10807
        %v10809 = vrot.slane %v10808, 4
        %v10811 = vshll.u32 %v10628, 16
        %v10813 = vrot.slane %v10811, 5
        %v10814 = vsel %vm417, %v10809, %v10813
        %v10815 = vshrl.u32 %v10628, 16
        %v10817 = vrot.slane %v10815, 4
        %v10818 = vor.u32 %v10817, %v10813
        %v10819 = vrot.slane %v10818, 4
        %v10821 = vshll.u32 %v10629, 16
        %v10823 = vrot.slane %v10821, 5
        %v10824 = vsel %vm417, %v10819, %v10823
        %v10826 = vshrl.u32 %v10630, 16
        %v10828 = vrot.slane %v10826, 4
        %v10829 = vshll.u32 %v10630, 16
        %v10831 = vrot.slane %v10829, 5
        %v10832 = vor.u32 %v10828, %v10831
        %v10833 = vrot.slane %v10832, 4
        %v10835 = vshll.u32 %v10631, 16
        %v10837 = vrot.slane %v10835, 5
        %v10838 = vsel %vm417, %v10833, %v10837
        %v10839 = vshrl.u32 %v10631, 16
        %v10841 = vrot.slane %v10839, 4
        %v10842 = vor.u32 %v10841, %v10837
        %v10843 = vrot.slane %v10842, 4
        %v10845 = vshll.u32 %v10632, 16
        %v10847 = vrot.slane %v10845, 5
        %v10848 = vsel %vm417, %v10843, %v10847
        %v10850 = vshrl.u32 %v10633, 16
        %v10852 = vrot.slane %v10850, 4
        %v10853 = vshll.u32 %v10633, 16
        %v10855 = vrot.slane %v10853, 5
        %v10856 = vor.u32 %v10852, %v10855
        %v10857 = vrot.slane %v10856, 4
        %v10859 = vshll.u32 %v10634, 16
        %v10861 = vrot.slane %v10859, 5
        %v10862 = vsel %vm417, %v10857, %v10861
        %v10863 = vshrl.u32 %v10634, 16
        %v10865 = vrot.slane %v10863, 4
        %v10866 = vor.u32 %v10865, %v10861
        %v10867 = vrot.slane %v10866, 4
        %v10869 = vshll.u32 %v10635, 16
        %v10871 = vrot.slane %v10869, 5
        %v10872 = vsel %vm417, %v10867, %v10871
        %v10874 = vshrl.u32 %v10636, 16
        %v10876 = vrot.slane %v10874, 4
        %v10877 = vshll.u32 %v10636, 16
        %v10879 = vrot.slane %v10877, 5
        %v10880 = vor.u32 %v10876, %v10879
        %v10881 = vrot.slane %v10880, 4
        %v10883 = vshll.u32 %v10637, 16
        %v10885 = vrot.slane %v10883, 5
        %v10886 = vsel %vm417, %v10881, %v10885
        %v10887 = vshrl.u32 %v10637, 16
        %v10889 = vrot.slane %v10887, 4
        %v10890 = vor.u32 %v10889, %v10885
        %v10891 = vrot.slane %v10890, 4
        %v10893 = vshll.u32 %v10638, 16
        %v10895 = vrot.slane %v10893, 5
        %v10896 = vsel %vm417, %v10891, %v10895
        %v10898 = vshrl.u32 %v10639, 16
        %v10900 = vrot.slane %v10898, 4
        %v10901 = vshll.u32 %v10639, 16
        %v10903 = vrot.slane %v10901, 5
        %v10904 = vor.u32 %v10900, %v10903
        %v10905 = vrot.slane %v10904, 4
        %v10907 = vshll.u32 %v10640, 16
        %v10909 = vrot.slane %v10907, 5
        %v10910 = vsel %vm417, %v10905, %v10909
        %v10911 = vshrl.u32 %v10640, 16
        %v10913 = vrot.slane %v10911, 4
        %v10914 = vor.u32 %v10913, %v10909
        %v10915 = vrot.slane %v10914, 4
        %v10917 = vshll.u32 %v10641, 16
        %v10919 = vrot.slane %v10917, 5
        %v10920 = vsel %vm417, %v10915, %v10919
        %v10922 = vshrl.u32 %v10642, 16
        %v10924 = vrot.slane %v10922, 4
        %v10925 = vshll.u32 %v10642, 16
        %v10927 = vrot.slane %v10925, 5
        %v10928 = vor.u32 %v10924, %v10927
        %v10929 = vrot.slane %v10928, 4
        %v10931 = vshll.u32 %v10643, 16
        %v10933 = vrot.slane %v10931, 5
        %v10934 = vsel %vm417, %v10929, %v10933
        %v10935 = vshrl.u32 %v10643, 16
        %v10937 = vrot.slane %v10935, 4
        %v10938 = vor.u32 %v10937, %v10933
        %v10939 = vrot.slane %v10938, 4
        %v10941 = vshll.u32 %v10644, 16
        %v10943 = vrot.slane %v10941, 5
        %v10944 = vsel %vm417, %v10939, %v10943
        %v10946 = vshrl.u32 %v10645, 16
        %v10948 = vrot.slane %v10946, 4
        %v10949 = vshll.u32 %v10645, 16
        %v10951 = vrot.slane %v10949, 5
        %v10952 = vor.u32 %v10948, %v10951
        %v10953 = vrot.slane %v10952, 4
        %v10955 = vshll.u32 %v10646, 16
        %v10957 = vrot.slane %v10955, 5
        %v10958 = vsel %vm417, %v10953, %v10957
        %v10959 = vshrl.u32 %v10646, 16
        %v10961 = vrot.slane %v10959, 4
        %v10962 = vor.u32 %v10961, %v10957
        %v10963 = vrot.slane %v10962, 4
        %v10965 = vshll.u32 %v10647, 16
        %v10967 = vrot.slane %v10965, 5
        %v10968 = vsel %vm417, %v10963, %v10967
        %v10970 = vshrl.u32 %v10648, 16
        %v10972 = vrot.slane %v10970, 4
        %v10973 = vshll.u32 %v10648, 16
        %v10975 = vrot.slane %v10973, 5
        %v10976 = vor.u32 %v10972, %v10975
        %v10977 = vrot.slane %v10976, 4
        %v10979 = vshll.u32 %v10649, 16
        %v10981 = vrot.slane %v10979, 5
        %v10982 = vsel %vm417, %v10977, %v10981
        %v10983 = vshrl.u32 %v10649, 16
        %v10985 = vrot.slane %v10983, 4
        %v10986 = vor.u32 %v10985, %v10981
        %v10987 = vrot.slane %v10986, 4
        %v10989 = vshll.u32 %v10650, 16
        %v10991 = vrot.slane %v10989, 5
        %v10992 = vsel %vm417, %v10987, %v10991
        %v10994 = vshrl.u32 %v10651, 16
        %v10996 = vrot.slane %v10994, 4
        %v10997 = vshll.u32 %v10651, 16
        %v10999 = vrot.slane %v10997, 5
        %v11000 = vor.u32 %v10996, %v10999
        %v11001 = vrot.slane %v11000, 4
        %v11003 = vshll.u32 %v10652, 16
        %v11005 = vrot.slane %v11003, 5
        %v11006 = vsel %vm417, %v11001, %v11005
        %v11007 = vshrl.u32 %v10652, 16
        %v11009 = vrot.slane %v11007, 4
        %v11010 = vor.u32 %v11009, %v11005
        %v11011 = vrot.slane %v11010, 4
        %v11013 = vshll.u32 %v10653, 16
        %v11015 = vrot.slane %v11013, 5
        %v11016 = vsel %vm417, %v11011, %v11015
        %v11018 = vshrl.u32 %v10654, 16
        %v11020 = vrot.slane %v11018, 4
        %v11021 = vshll.u32 %v10654, 16
        %v11023 = vrot.slane %v11021, 5
        %v11024 = vor.u32 %v11020, %v11023
        %v11025 = vrot.slane %v11024, 4
        %v11027 = vshll.u32 %v10655, 16
        %v11029 = vrot.slane %v11027, 5
        %v11030 = vsel %vm417, %v11025, %v11029
        %v11031 = vshrl.u32 %v10655, 16
        %v11033 = vrot.slane %v11031, 4
        %v11034 = vor.u32 %v11033, %v11029
        %v11035 = vrot.slane %v11034, 4
        %v11037 = vshll.u32 %v10656, 16
        %v11039 = vrot.slane %v11037, 5
        %v11040 = vsel %vm417, %v11035, %v11039
        %v11073 = vunpack.c.l.bf16 %v10670
        %v11074 = vunpack.c.l.bf16 %v10680
        %v11075 = vunpack.c.l.bf16 %v10694
        %v11076 = vunpack.c.l.bf16 %v10704
        %v11077 = vunpack.c.l.bf16 %v10718
        %v11078 = vunpack.c.l.bf16 %v10728
        %v11079 = vunpack.c.l.bf16 %v10742
        %v11080 = vunpack.c.l.bf16 %v10752
        %v11081 = vunpack.c.l.bf16 %v10766
        %v11082 = vunpack.c.l.bf16 %v10776
        %v11083 = vunpack.c.l.bf16 %v10790
        %v11084 = vunpack.c.l.bf16 %v10800
        %v11085 = vunpack.c.l.bf16 %v10814
        %v11086 = vunpack.c.l.bf16 %v10824
        %v11087 = vunpack.c.l.bf16 %v10838
        %v11088 = vunpack.c.l.bf16 %v10848
        %v11089 = vunpack.c.l.bf16 %v10862
        %v11090 = vunpack.c.l.bf16 %v10872
        %v11091 = vunpack.c.l.bf16 %v10886
        %v11092 = vunpack.c.l.bf16 %v10896
        %v11093 = vunpack.c.l.bf16 %v10910
        %v11094 = vunpack.c.l.bf16 %v10920
        %v11095 = vunpack.c.l.bf16 %v10934
        %v11096 = vunpack.c.l.bf16 %v10944
        %v11097 = vunpack.c.l.bf16 %v10958
        %v11098 = vunpack.c.l.bf16 %v10968
        %v11099 = vunpack.c.l.bf16 %v10982
        %v11100 = vunpack.c.l.bf16 %v10992
        %v11101 = vunpack.c.l.bf16 %v11006
        %v11102 = vunpack.c.l.bf16 %v11016
        %v11103 = vunpack.c.l.bf16 %v11030
        %v11104 = vunpack.c.l.bf16 %v11040
        %v11105 = vld [vmem:[%s5] sm:$0x1]
        %v11107 = vlaneseq
        %v11108 = vshrl.u32 %v11107, 7
        %v11109 = vsub.s32 0, %v11108
        %v11110 = vrot.slane %v11105, %v11109
        %v11112 = vmul.f32 %v10577, %v11110
        %v11113 = vmul.f32 %v10578, %v11110
        %v11114 = vmul.f32 %v10579, %v11110
        %v11115 = vmul.f32 %v10580, %v11110
        %v11116 = vmul.f32 %v10581, %v11110
        %v11117 = vmul.f32 %v10582, %v11110
        %v11118 = vmul.f32 %v10583, %v11110
        %v11119 = vmul.f32 %v10584, %v11110
        %v11120 = vmul.f32 %v10585, %v11110
        %v11121 = vmul.f32 %v10586, %v11110
        %v11122 = vmul.f32 %v10587, %v11110
        %v11123 = vmul.f32 %v10588, %v11110
        %v11124 = vmul.f32 %v10589, %v11110
        %v11125 = vmul.f32 %v10590, %v11110
        %v11126 = vmul.f32 %v10591, %v11110
        %v11127 = vmul.f32 %v10592, %v11110
        %v11128 = vmul.f32 %v10593, %v11110
        %v11129 = vmul.f32 %v10594, %v11110
        %v11130 = vmul.f32 %v10595, %v11110
        %v11131 = vmul.f32 %v10596, %v11110
        %v11132 = vmul.f32 %v10597, %v11110
        %v11133 = vmul.f32 %v10598, %v11110
        %v11134 = vmul.f32 %v10599, %v11110
        %v11135 = vmul.f32 %v10600, %v11110
        %v11136 = vmul.f32 %v10601, %v11110
        %v11137 = vmul.f32 %v10602, %v11110
        %v11138 = vmul.f32 %v10603, %v11110
        %v11139 = vmul.f32 %v10604, %v11110
        %v11140 = vmul.f32 %v10605, %v11110
        %v11141 = vmul.f32 %v10606, %v11110
        %v11142 = vmul.f32 %v10607, %v11110
        %v11143 = vmul.f32 %v10608, %v11110
        %v11144 = vld [vmem:[%s6] sm:$0x1]
        %v11146 = vlaneseq
        %v11147 = vshrl.u32 %v11146, 7
        %v11148 = vsub.s32 0, %v11147
        %v11149 = vrot.slane %v11144, %v11148
        %v11151 = vadd.f32 %v11112, %v11149
        %v11152 = vadd.f32 %v11113, %v11149
        %v11153 = vadd.f32 %v11114, %v11149
        %v11154 = vadd.f32 %v11115, %v11149
        %v11155 = vadd.f32 %v11116, %v11149
        %v11156 = vadd.f32 %v11117, %v11149
        %v11157 = vadd.f32 %v11118, %v11149
        %v11158 = vadd.f32 %v11119, %v11149
        %v11159 = vadd.f32 %v11120, %v11149
        %v11160 = vadd.f32 %v11121, %v11149
        %v11161 = vadd.f32 %v11122, %v11149
        %v11162 = vadd.f32 %v11123, %v11149
        %v11163 = vadd.f32 %v11124, %v11149
        %v11164 = vadd.f32 %v11125, %v11149
        %v11165 = vadd.f32 %v11126, %v11149
        %v11166 = vadd.f32 %v11127, %v11149
        %v11167 = vadd.f32 %v11128, %v11149
        %v11168 = vadd.f32 %v11129, %v11149
        %v11169 = vadd.f32 %v11130, %v11149
        %v11170 = vadd.f32 %v11131, %v11149
        %v11171 = vadd.f32 %v11132, %v11149
        %v11172 = vadd.f32 %v11133, %v11149
        %v11173 = vadd.f32 %v11134, %v11149
        %v11174 = vadd.f32 %v11135, %v11149
        %v11175 = vadd.f32 %v11136, %v11149
        %v11176 = vadd.f32 %v11137, %v11149
        %v11177 = vadd.f32 %v11138, %v11149
        %v11178 = vadd.f32 %v11139, %v11149
        %v11179 = vadd.f32 %v11140, %v11149
        %v11180 = vadd.f32 %v11141, %v11149
        %v11181 = vadd.f32 %v11142, %v11149
        %v11182 = vadd.f32 %v11143, %v11149
        %v11183 = vadd.f32 %v11151, %v11073
        %v11184 = vadd.f32 %v11152, %v11074
        %v11185 = vadd.f32 %v11153, %v11075
        %v11186 = vadd.f32 %v11154, %v11076
        %v11187 = vadd.f32 %v11155, %v11077
        %v11188 = vadd.f32 %v11156, %v11078
        %v11189 = vadd.f32 %v11157, %v11079
        %v11190 = vadd.f32 %v11158, %v11080
        %v11191 = vadd.f32 %v11159, %v11081
        %v11192 = vadd.f32 %v11160, %v11082
        %v11193 = vadd.f32 %v11161, %v11083
        %v11194 = vadd.f32 %v11162, %v11084
        %v11195 = vadd.f32 %v11163, %v11085
        %v11196 = vadd.f32 %v11164, %v11086
        %v11197 = vadd.f32 %v11165, %v11087
        %v11198 = vadd.f32 %v11166, %v11088
        %v11199 = vadd.f32 %v11167, %v11089
        %v11200 = vadd.f32 %v11168, %v11090
        %v11201 = vadd.f32 %v11169, %v11091
        %v11202 = vadd.f32 %v11170, %v11092
        %v11203 = vadd.f32 %v11171, %v11093
        %v11204 = vadd.f32 %v11172, %v11094
        %v11205 = vadd.f32 %v11173, %v11095
        %v11206 = vadd.f32 %v11174, %v11096
        %v11207 = vadd.f32 %v11175, %v11097
        %v11208 = vadd.f32 %v11176, %v11098
        %v11209 = vadd.f32 %v11177, %v11099
        %v11210 = vadd.f32 %v11178, %v11100
        %v11211 = vadd.f32 %v11179, %v11101
        %v11212 = vadd.f32 %v11180, %v11102
        %v11213 = vadd.f32 %v11181, %v11103
        %v11214 = vadd.f32 %v11182, %v11104
        %v11215 = vmax.f32 %v11183, 0.0
        %v11216 = vmax.f32 %v11184, 0.0
        %v11217 = vmax.f32 %v11185, 0.0
        %v11218 = vmax.f32 %v11186, 0.0
        %v11219 = vmax.f32 %v11187, 0.0
        %v11220 = vmax.f32 %v11188, 0.0
        %v11221 = vmax.f32 %v11189, 0.0
        %v11222 = vmax.f32 %v11190, 0.0
        %v11223 = vmax.f32 %v11191, 0.0
        %v11224 = vmax.f32 %v11192, 0.0
        %v11225 = vmax.f32 %v11193, 0.0
        %v11226 = vmax.f32 %v11194, 0.0
        %v11227 = vmax.f32 %v11195, 0.0
        %v11228 = vmax.f32 %v11196, 0.0
        %v11229 = vmax.f32 %v11197, 0.0
        %v11230 = vmax.f32 %v11198, 0.0
        %v11231 = vmax.f32 %v11199, 0.0
        %v11232 = vmax.f32 %v11200, 0.0
        %v11233 = vmax.f32 %v11201, 0.0
        %v11234 = vmax.f32 %v11202, 0.0
        %v11235 = vmax.f32 %v11203, 0.0
        %v11236 = vmax.f32 %v11204, 0.0
        %v11237 = vmax.f32 %v11205, 0.0
        %v11238 = vmax.f32 %v11206, 0.0
        %v11239 = vmax.f32 %v11207, 0.0
        %v11240 = vmax.f32 %v11208, 0.0
        %v11241 = vmax.f32 %v11209, 0.0
        %v11242 = vmax.f32 %v11210, 0.0
        %v11243 = vmax.f32 %v11211, 0.0
        %v11244 = vmax.f32 %v11212, 0.0
        %v11245 = vmax.f32 %v11213, 0.0
        %v11246 = vmax.f32 %v11214, 0.0
        %v11247 = vpack.c.bf16 %v11216, %v11215
        %v11248 = vpack.c.bf16 %v11218, %v11217
        %v11249 = vpack.c.bf16 %v11220, %v11219
        %v11250 = vpack.c.bf16 %v11222, %v11221
        %v11251 = vpack.c.bf16 %v11224, %v11223
        %v11252 = vpack.c.bf16 %v11226, %v11225
        %v11253 = vpack.c.bf16 %v11228, %v11227
        %v11254 = vpack.c.bf16 %v11230, %v11229
        %v11255 = vpack.c.bf16 %v11232, %v11231
        %v11256 = vpack.c.bf16 %v11234, %v11233
        %v11257 = vpack.c.bf16 %v11236, %v11235
        %v11258 = vpack.c.bf16 %v11238, %v11237
        %v11259 = vpack.c.bf16 %v11240, %v11239
        %v11260 = vpack.c.bf16 %v11242, %v11241
        %v11261 = vpack.c.bf16 %v11244, %v11243
        %v11262 = vpack.c.bf16 %v11246, %v11245
        %v11279 = vunpack.c.l.b16 %v11247
        %v11280 = vunpack.c.h.b16 %v11247
        %v11281 = vunpack.c.l.b16 %v11248
        %v11282 = vunpack.c.h.b16 %v11248
        %v11283 = vunpack.c.l.b16 %v11249
        %v11284 = vunpack.c.h.b16 %v11249
        %v11285 = vunpack.c.l.b16 %v11250
        %v11286 = vunpack.c.h.b16 %v11250
        %v11287 = vunpack.c.l.b16 %v11251
        %v11288 = vunpack.c.h.b16 %v11251
        %v11289 = vunpack.c.l.b16 %v11252
        %v11290 = vunpack.c.h.b16 %v11252
        %v11291 = vunpack.c.l.b16 %v11253
        %v11292 = vunpack.c.h.b16 %v11253
        %v11293 = vunpack.c.l.b16 %v11254
        %v11294 = vunpack.c.h.b16 %v11254
        %v11295 = vunpack.c.l.b16 %v11255
        %v11296 = vunpack.c.h.b16 %v11255
        %v11297 = vunpack.c.l.b16 %v11256
        %v11298 = vunpack.c.h.b16 %v11256
        %v11299 = vunpack.c.l.b16 %v11257
        %v11300 = vunpack.c.h.b16 %v11257
        %v11301 = vunpack.c.l.b16 %v11258
        %v11302 = vunpack.c.h.b16 %v11258
        %v11303 = vunpack.c.l.b16 %v11259
        %v11304 = vunpack.c.h.b16 %v11259
        %v11305 = vunpack.c.l.b16 %v11260
        %v11306 = vunpack.c.h.b16 %v11260
        %v11307 = vunpack.c.l.b16 %v11261
        %v11308 = vunpack.c.h.b16 %v11261
        %v11309 = vunpack.c.l.b16 %v11262
        %v11310 = vunpack.c.h.b16 %v11262
        %v11311 = vpack.c.b16 %v11279, %v11279
        %v11312 = vpack.c.b16 %v11280, %v11280
        %v11313 = vpack.c.b16 %v11281, %v11281
        %v11314 = vpack.c.b16 %v11282, %v11282
        %v11315 = vpack.c.b16 %v11283, %v11283
        %v11316 = vpack.c.b16 %v11284, %v11284
        %v11317 = vpack.c.b16 %v11285, %v11285
        %v11318 = vpack.c.b16 %v11286, %v11286
        %v11319 = vpack.c.b16 %v11287, %v11287
        %v11320 = vpack.c.b16 %v11288, %v11288
        %v11321 = vpack.c.b16 %v11289, %v11289
        %v11322 = vpack.c.b16 %v11290, %v11290
        %v11323 = vpack.c.b16 %v11291, %v11291
        %v11324 = vpack.c.b16 %v11292, %v11292
        %v11325 = vpack.c.b16 %v11293, %v11293
        %v11326 = vpack.c.b16 %v11294, %v11294
        %v11327 = vpack.c.b16 %v11295, %v11295
        %v11328 = vpack.c.b16 %v11296, %v11296
        %v11329 = vpack.c.b16 %v11297, %v11297
        %v11330 = vpack.c.b16 %v11298, %v11298
        %v11331 = vpack.c.b16 %v11299, %v11299
        %v11332 = vpack.c.b16 %v11300, %v11300
        %v11333 = vpack.c.b16 %v11301, %v11301
        %v11334 = vpack.c.b16 %v11302, %v11302
        %v11335 = vpack.c.b16 %v11303, %v11303
        %v11336 = vpack.c.b16 %v11304, %v11304
        %v11337 = vpack.c.b16 %v11305, %v11305
        %v11338 = vpack.c.b16 %v11306, %v11306
        %v11339 = vpack.c.b16 %v11307, %v11307
        %v11340 = vpack.c.b16 %v11308, %v11308
        %v11341 = vpack.c.b16 %v11309, %v11309
        %v11342 = vpack.c.b16 %v11310, %v11310
        %11375 = vst [vmem:[%s286] sm:$0xf] %v11311
        %11376 = vst [vmem:[%s286 + $0x4] sm:$0xf] %v11312
        %11377 = vst [vmem:[%s286 + $0x8] sm:$0xf] %v11313
        %11378 = vst [vmem:[%s286 + $0xc] sm:$0xf] %v11314
        %11379 = vst [vmem:[%s286 + $0x10] sm:$0xf] %v11315
        %11380 = vst [vmem:[%s286 + $0x14] sm:$0xf] %v11316
        %11381 = vst [vmem:[%s286 + $0x18] sm:$0xf] %v11317
        %11382 = vst [vmem:[%s286 + $0x1c] sm:$0xf] %v11318
        %11383 = vst [vmem:[%s286 + $0x20] sm:$0xf] %v11319
        %11384 = vst [vmem:[%s286 + $0x24] sm:$0xf] %v11320
        %11385 = vst [vmem:[%s286 + $0x28] sm:$0xf] %v11321
        %11386 = vst [vmem:[%s286 + $0x2c] sm:$0xf] %v11322
        %11387 = vst [vmem:[%s286 + $0x30] sm:$0xf] %v11323
        %11388 = vst [vmem:[%s286 + $0x34] sm:$0xf] %v11324
        %11389 = vst [vmem:[%s286 + $0x38] sm:$0xf] %v11325
        %11390 = vst [vmem:[%s286 + $0x3c] sm:$0xf] %v11326
        %11391 = vst [vmem:[%s286 + $0x40] sm:$0xf] %v11327
        %11392 = vst [vmem:[%s286 + $0x44] sm:$0xf] %v11328
        %11393 = vst [vmem:[%s286 + $0x48] sm:$0xf] %v11329
        %11394 = vst [vmem:[%s286 + $0x4c] sm:$0xf] %v11330
        %11395 = vst [vmem:[%s286 + $0x50] sm:$0xf] %v11331
        %11396 = vst [vmem:[%s286 + $0x54] sm:$0xf] %v11332
        %11397 = vst [vmem:[%s286 + $0x58] sm:$0xf] %v11333
        %11398 = vst [vmem:[%s286 + $0x5c] sm:$0xf] %v11334
        %11399 = vst [vmem:[%s286 + $0x60] sm:$0xf] %v11335
        %11400 = vst [vmem:[%s286 + $0x64] sm:$0xf] %v11336
        %11401 = vst [vmem:[%s286 + $0x68] sm:$0xf] %v11337
        %11402 = vst [vmem:[%s286 + $0x6c] sm:$0xf] %v11338
        %11403 = vst [vmem:[%s286 + $0x70] sm:$0xf] %v11339
        %11404 = vst [vmem:[%s286 + $0x74] sm:$0xf] %v11340
        %11405 = vst [vmem:[%s286 + $0x78] sm:$0xf] %v11341
        %11406 = vst [vmem:[%s286 + $0x7c] sm:$0xf] %v11342
        %s11407 = sand.u32 %s182, 1
        %s11408 = scalar_lea.sflag [#allocation5], %s11407
        %s11409 = sand.u32 %s182, 1
        %s11410 = smul.addr %s11409, 128
        %s11411 = scalar_lea.vmem [#allocation6], %s11410
        // Predicated region
        $region57: #{tpu_custom_call.1} parent=47 // pred_check
          %p11412 = pneg %p192
        $region58: #{tpu_custom_call.1} parent=47 // pred_check_branch
          %11414 = sbr.rel (%p11412) target = $region60
        $region59: #{tpu_custom_call.1} parent=47 // pred_region
          %s11416 = ssub.s32 2048, 2048
          %11417 = vsyncadd %s11408, %s11416
          %s11418 = smul.addr %s22, 32
          %s11419 = smul.addr %s11418, 64
          %s11420 = scalar_lea.hbm %s7, %s11419
          %s11421 = sshll.u32 %s11411, 4
          %s11422 = int_to_ptr.vmem [resolvable:$true] %s11421
          %11427 = dma.vmem_to_hbm [thread:$0]  %s11422, 2048, %s11420, %s11408, 64, 64, 4
        $region60: #{tpu_custom_call.1} parent=47 // pred_fallthru
          _
      $region48: #{tpu_custom_call.1} parent=5 // pred_fallthru
        _
      %p11428 = scmp.le.s32.totalorder 2, %s17
      // Predicated region
      $region61: #{tpu_custom_call.1} parent=5 // pred_check
        %p11429 = pneg %p11428
      $region62: #{tpu_custom_call.1} parent=5 // pred_check_branch
        %11431 = sbr.rel (%p11429) target = $region64
      $region63: #{tpu_custom_call.1} parent=5 // pred_region
        %s11432 = ssub.s32 %s17, 2
        // Predicated region
        $region65: #{tpu_custom_call.1} parent=63 // pred_check
          %p11433 = pneg %p198
        $region66: #{tpu_custom_call.1} parent=63 // pred_check_branch
          %11435 = sbr.rel (%p11433) target = $region68
        $region67: #{tpu_custom_call.1} parent=63 // pred_region
          %s11436 = sand.u32 %s183, 1
          %s11437 = scalar_lea.sflag [#allocation5], %s11436
          %s11438 = sand.u32 %s183, 1
          %s11439 = smul.addr %s11438, 128
          %s11440 = scalar_lea.vmem [#allocation6], %s11439
          %11441 = dma.done %s11437, 2048
        $region68: #{tpu_custom_call.1} parent=63 // pred_fallthru
          _
      $region64: #{tpu_custom_call.1} parent=5 // pred_fallthru
        _
    $region6: #{tpu_custom_call.1} parent=1 // loop_footer
      %s21 = sadd.s32 1, %s17
    $region7: #{tpu_custom_call.1} parent=1 // loop_footer_branch
      %16 = sbr.rel target = $region3
    $region8: #{tpu_custom_call.1} parent=1 // loop_exit
      _
    %11442 = vsyncpa [#allocation4], 1
    %s11443 = scalar_lea.sflag [#allocation4], 1
    %11444 = vsyncpa %s11443, 1
    %11445 = vsyncpa [#allocation5], 1
    %s11446 = scalar_lea.sflag [#allocation5], 1
    %11447 = vsyncpa %s11446, 1

</llo_original>
